<compile_context>
chip_gen: v6e
topology: v6e:2x2x1
jax: 0.10.0
libtpu: 0.0.40
codegen_flags: <defaults>
</compile_context>

<pallas_src>
import jax
import jax.numpy as jnp
from jax.experimental import pallas as pl
from jax.experimental.pallas import tpu as pltpu

D_MODEL = 32
N_HEADS = 4
HEAD_DIM = D_MODEL // N_HEADS       # 8
HDIM = 32                           # hdim defaults to d_model in the PyTorch module
BATCH = 2
LABELS_LEN = 8
SEQ_LEN = 8

# ---- LayerNorm stack layout (index -> which nn.LayerNorm, eps noted) ----
LN_TOP = 0            # inter_attn_layer.norm1                  (eps 1e-5)
LN_LSELF_N1 = 1       # L_self_attn_layer.norm1                 (eps 1e-5)
LN_LSELF_MLP = 2      # L_self_attn_layer.MLP_Res_Block.ln      (eps 1e-6)
LN_SSELF_N1 = 3
LN_SSELF_MLP = 4
LN_LCROSS_N1 = 5      # L_cross_attn.norm1 (mem norm)           (eps 1e-5)
LN_LCROSS_N2 = 6      # L_cross_attn.norm2 (x norm)             (eps 1e-5)
LN_LCROSS_MLP = 7
LN_SCROSS_N1 = 8
LN_SCROSS_N2 = 9
LN_SCROSS_MLP = 10
N_LN = 11

# ---- Attention / MLP block stack layout ----
BLK_LSELF, BLK_SSELF, BLK_LCROSS, BLK_SCROSS = 0, 1, 2, 3
N_BLK = 4


# ------------------------------ fused kernel --------------------------------

def _make_fused_kernel(has_self_mask, has_cross_mask):
    B, LL, SL = BATCH, LABELS_LEN, SEQ_LEN
    D, H, DH = D_MODEL, N_HEADS, HEAD_DIM
    scale = 1.0 / (DH ** 0.5)

    def kernel(*refs):
        refs = list(refs)
        idx = 0
        lf_ref = refs[idx]; idx += 1
        sf_ref = refs[idx]; idx += 1
        self_mask_ref = None
        cross_mask_ref = None
        if has_self_mask:
            self_mask_ref = refs[idx]; idx += 1
        if has_cross_mask:
            cross_mask_ref = refs[idx]; idx += 1
        (lng_ref, lnb_ref,
         wqkv_ref, bqkv_ref, wo_ref, bo_ref,
         w1_ref, b1_ref, w2_ref, b2_ref,
         lf_out_ref, sf_out_ref) = refs[idx:]

        # -------- helpers (all operate on flattened (B*S, D) activations) --------

        def layer_norm(x, ln_idx, eps):
            g = lng_ref[ln_idx]                       # (1, D)
            b = lnb_ref[ln_idx]                       # (1, D)
            mean = jnp.mean(x, axis=-1, keepdims=True)
            var = jnp.mean(jnp.square(x - mean), axis=-1, keepdims=True)
            return (x - mean) * jax.lax.rsqrt(var + eps) * g + b

        def attention(x_q, x_kv, blk, sq, sk, mask):
            wqkv = wqkv_ref[blk]                      # (D, 3D)
            bqkv = bqkv_ref[blk]                      # (1, 3D)
            if x_q is x_kv:
                # self-attention: single fused QKV matmul (N widened 32 -> 96)
                qkv = jnp.dot(x_q, wqkv, preferred_element_type=jnp.float32) + bqkv
                q, k, v = qkv[:, :D], qkv[:, D:2 * D], qkv[:, 2 * D:]
            else:
                # cross-attention: Q from x, fused KV matmul on mem
                q = jnp.dot(x_q, wqkv[:, :D],
                            preferred_element_type=jnp.float32) + bqkv[:, :D]
                kv = jnp.dot(x_kv, wqkv[:, D:],
                             preferred_element_type=jnp.float32) + bqkv[:, D:]
                k, v = kv[:, :D], kv[:, D:]

            out = jnp.zeros((B * sq, D), jnp.float32)
            # static unroll over heads; head split/merge = static slices, in-VMEM
            for h in range(H):
                cols = slice(h * DH, (h + 1) * DH)
                qh = q[:, cols].reshape(B, sq, DH)
                kh = k[:, cols].reshape(B, sk, DH)
                vh = v[:, cols].reshape(B, sk, DH)
                s = jnp.einsum('bqd,bkd->bqk', qh, kh,
                               preferred_element_type=jnp.float32) * scale
                if mask is not None:
                    s = s + mask                      # additive float mask (PyTorch)
                s = s - jnp.max(s, axis=-1, keepdims=True)
                p = jnp.exp(s)
                p = p * pl.reciprocal(jnp.sum(p, axis=-1, keepdims=True), approx=True)
                ctx = jnp.einsum('bqk,bkd->bqd', p, vh,
                                 preferred_element_type=jnp.float32)
                # per-head out-projection; summing over heads == projecting concat
                out = out + jnp.dot(ctx.reshape(B * sq, DH), wo_ref[blk, h],
                                    preferred_element_type=jnp.float32)
            return out + bo_ref[blk]

        def mlp_res_block(x, blk, ln_idx):
            # x + relu(linear2(relu(linear1(layer_norm(x)))))  (dropouts = identity)
            hdn = layer_norm(x, ln_idx, 1e-6)
            hdn = jnp.maximum(
                jnp.dot(hdn, w1_ref[blk], preferred_element_type=jnp.float32)
                + b1_ref[blk], 0.0)
            hdn = jnp.maximum(
                jnp.dot(hdn, w2_ref[blk], preferred_element_type=jnp.float32)
                + b2_ref[blk], 0.0)
            return x + hdn

        def self_block(x, sq, blk, ln_n1, ln_mlp, mask):
            n = layer_norm(x, ln_n1, 1e-5)
            x = x + attention(n, n, blk, sq, sq, mask)
            return mlp_res_block(x, blk, ln_mlp)

        def cross_block(x, mem, sq, sk, blk, ln_n1, ln_n2, ln_mlp, mask):
            mem_n = layer_norm(mem, ln_n1, 1e-5)
            x_n = layer_norm(x, ln_n2, 1e-5)
            x = x + attention(x_n, mem_n, blk, sq, sk, mask)
            return mlp_res_block(x, blk, ln_mlp)

        # ------------------------------ forward ------------------------------

        lf = lf_ref[...].reshape(B * LL, D).astype(jnp.float32)
        sf = sf_ref[...].reshape(B * SL, D).astype(jnp.float32)
        self_mask = self_mask_ref[...] if has_self_mask else None
        cross_mask = cross_mask_ref[...] if has_cross_mask else None

        # top norm1 of cat([Sf, Lf], dim=1) is a per-token LN -> apply per slab
        lf = layer_norm(lf, LN_TOP, 1e-5)
        sf = layer_norm(sf, LN_TOP, 1e-5)

        lf = self_block(lf, LL, BLK_LSELF, LN_LSELF_N1, LN_LSELF_MLP, self_mask)
        sf = self_block(sf, SL, BLK_SSELF, LN_SSELF_N1, LN_SSELF_MLP, None)
        lf = cross_block(lf, sf, LL, SL, BLK_LCROSS,
                         LN_LCROSS_N1, LN_LCROSS_N2, LN_LCROSS_MLP, None)
        sf = cross_block(sf, lf, SL, LL, BLK_SCROSS,
                         LN_SCROSS_N1, LN_SCROSS_N2, LN_SCROSS_MLP, cross_mask)

        lf_out_ref[...] = lf.reshape(B, LL, D).astype(lf_out_ref.dtype)
        sf_out_ref[...] = sf.reshape(B, SL, D).astype(sf_out_ref.dtype)

    return kernel


# ------------------------------ python wrapper -------------------------------

def inter_attn_layer(Lf, Sf, params, self_attn_label_mask=None,
                     cross_attn_label_mask=None):
    B, LL, D = Lf.shape
    _, SL, _ = Sf.shape
    assert (B, LL, D) == (BATCH, LABELS_LEN, D_MODEL) and SL == SEQ_LEN

    has_self = self_attn_label_mask is not None
    has_cross = cross_attn_label_mask is not None

    inputs = [Lf, Sf]
    if has_self:
        inputs.append(self_attn_label_mask.astype(jnp.float32))
    if has_cross:
        inputs.append(cross_attn_label_mask.astype(jnp.float32))
    inputs += [params['ln_g'], params['ln_b'],
               params['wqkv'], params['bqkv'], params['wo'], params['bo'],
               params['w1'], params['b1'], params['w2'], params['b2']]

    # Whole layer = one grid-less pallas_call: every input/output is a single
    # full-array VMEM block (total footprint < 1 MiB -> fits v5e/v6e/v7x easily).
    lf_out, sf_out = pl.pallas_call(
        _make_fused_kernel(has_self, has_cross),
        out_shape=(jax.ShapeDtypeStruct((B, LL, D), Lf.dtype),
                   jax.ShapeDtypeStruct((B, SL, D), Sf.dtype)),
        compiler_params=pltpu.CompilerParams(
            vmem_limit_bytes=16 * 1024 * 1024),   # explicit budget; << 64 MiB v7x VMEM
    )(*inputs)
    return lf_out, sf_out


# ------------------------------ parameter init ------------------------------

def init_params(key):
    keys = iter(jax.random.split(key, 16))

    def w(shape):
        return jax.random.normal(next(keys), shape, jnp.float32) * 0.02

    return dict(
        ln_g=jnp.ones((N_LN, 1, D_MODEL), jnp.float32),
        ln_b=jnp.zeros((N_LN, 1, D_MODEL), jnp.float32),
        # fused in-projection: columns [0:D]=Q, [D:2D]=K, [2D:3D]=V
        wqkv=w((N_BLK, D_MODEL, 3 * D_MODEL)),
        bqkv=jnp.zeros((N_BLK, 1, 3 * D_MODEL), jnp.float32),
        # out-projection stored per head: (blk, head, head_dim, d_model)
        wo=w((N_BLK, N_HEADS, HEAD_DIM, D_MODEL)),
        bo=jnp.zeros((N_BLK, 1, D_MODEL), jnp.float32),
        w1=w((N_BLK, D_MODEL, HDIM)),
        b1=jnp.zeros((N_BLK, 1, HDIM), jnp.float32),
        w2=w((N_BLK, HDIM, D_MODEL)),
        b2=jnp.zeros((N_BLK, 1, D_MODEL), jnp.float32),
    )


# ----------------------------------- main ------------------------------------

if __name__ == "__main__":
    key = jax.random.PRNGKey(0)
    k_l, k_s, k_p = jax.random.split(key, 3)
    Lf = jax.random.normal(k_l, (BATCH, LABELS_LEN, D_MODEL), jnp.float32)
    Sf = jax.random.normal(k_s, (BATCH, SEQ_LEN, D_MODEL), jnp.float32)
    params = init_params(k_p)

    # Additive float attention mask (PyTorch convention: large negative = masked).
    self_mask = jnp.where(
        jnp.triu(jnp.ones((LABELS_LEN, LABELS_LEN), jnp.bool_), k=1),
        -1e9, 0.0).astype(jnp.float32)

    Lf_out, Sf_out = inter_attn_layer(Lf, Sf, params,
                                      self_attn_label_mask=self_mask,
                                      cross_attn_label_mask=None)
    jax.block_until_ready((Lf_out, Sf_out))

    assert Lf_out.shape == (BATCH, LABELS_LEN, D_MODEL)
    assert Sf_out.shape == (BATCH, SEQ_LEN, D_MODEL)
    assert bool(jnp.all(jnp.isfinite(Lf_out))) and bool(jnp.all(jnp.isfinite(Sf_out)))
    print("KERNEL_OK")
</pallas_src>

<mosaic_0001>
module attributes {stable_mosaic.version = 11 : i64} {
  func.func @kernel(%arg0: memref<2x8x32xf32, #tpu.memory_space<vmem>>, %arg1: memref<2x8x32xf32, #tpu.memory_space<vmem>>, %arg2: memref<8x8xf32, #tpu.memory_space<vmem>>, %arg3: memref<11x1x32xf32, #tpu.memory_space<vmem>>, %arg4: memref<11x1x32xf32, #tpu.memory_space<vmem>>, %arg5: memref<4x32x96xf32, #tpu.memory_space<vmem>>, %arg6: memref<4x1x96xf32, #tpu.memory_space<vmem>>, %arg7: memref<4x4x8x32xf32, #tpu.memory_space<vmem>>, %arg8: memref<4x1x32xf32, #tpu.memory_space<vmem>>, %arg9: memref<4x32x32xf32, #tpu.memory_space<vmem>>, %arg10: memref<4x1x32xf32, #tpu.memory_space<vmem>>, %arg11: memref<4x32x32xf32, #tpu.memory_space<vmem>>, %arg12: memref<4x1x32xf32, #tpu.memory_space<vmem>>, %arg13: memref<2x8x32xf32, #tpu.memory_space<vmem>>, %arg14: memref<2x8x32xf32, #tpu.memory_space<vmem>>) attributes {dimension_semantics = [], scalar_prefetch = 0 : i64, scratch_operands = 0 : i64, tpu.core_type = #tpu.core_type<tc>} {
    %c0 = arith.constant 0 : index
    %c0_0 = arith.constant 0 : index
    %c0_1 = arith.constant 0 : index
    %0 = vector.load %arg0[%c0, %c0_0, %c0_1] : memref<2x8x32xf32, #tpu.memory_space<vmem>>, vector<2x8x32xf32>
    %1 = vector.shape_cast %0 : vector<2x8x32xf32> to vector<16x32xf32>
    %c0_2 = arith.constant 0 : index
    %c0_3 = arith.constant 0 : index
    %c0_4 = arith.constant 0 : index
    %2 = vector.load %arg1[%c0_2, %c0_3, %c0_4] : memref<2x8x32xf32, #tpu.memory_space<vmem>>, vector<2x8x32xf32>
    %3 = vector.shape_cast %2 : vector<2x8x32xf32> to vector<16x32xf32>
    %c0_5 = arith.constant 0 : index
    %c0_6 = arith.constant 0 : index
    %4 = vector.load %arg2[%c0_5, %c0_6] : memref<8x8xf32, #tpu.memory_space<vmem>>, vector<8x8xf32>
    %c0_7 = arith.constant 0 : index
    %c0_8 = arith.constant 0 : index
    %c0_9 = arith.constant 0 : index
    %5 = vector.load %arg3[%c0_7, %c0_8, %c0_9] : memref<11x1x32xf32, #tpu.memory_space<vmem>>, vector<1x1x32xf32>
    %6 = vector.shape_cast %5 : vector<1x1x32xf32> to vector<1x32xf32>
    %c0_10 = arith.constant 0 : index
    %c0_11 = arith.constant 0 : index
    %c0_12 = arith.constant 0 : index
    %7 = vector.load %arg4[%c0_10, %c0_11, %c0_12] : memref<11x1x32xf32, #tpu.memory_space<vmem>>, vector<1x1x32xf32>
    %8 = vector.shape_cast %7 : vector<1x1x32xf32> to vector<1x32xf32>
    %cst = arith.constant dense<0.000000e+00> : vector<16xf32>
    %9 = vector.multi_reduction <add>, %1, %cst [1] : vector<16x32xf32> to vector<16xf32>
    %10 = vector.shape_cast %9 : vector<16xf32> to vector<16x1xf32>
    %cst_13 = arith.constant 3.200000e+01 : f32
    %11 = vector.broadcast %cst_13 : f32 to vector<16x1xf32>
    %12 = arith.divf %10, %11 : vector<16x1xf32>
    %13 = vector.broadcast %12 : vector<16x1xf32> to vector<16x32xf32>
    %14 = arith.subf %1, %13 : vector<16x32xf32>
    %15 = arith.mulf %14, %14 : vector<16x32xf32>
    %cst_14 = arith.constant dense<0.000000e+00> : vector<16xf32>
    %16 = vector.multi_reduction <add>, %15, %cst_14 [1] : vector<16x32xf32> to vector<16xf32>
    %17 = vector.shape_cast %16 : vector<16xf32> to vector<16x1xf32>
    %cst_15 = arith.constant 3.200000e+01 : f32
    %18 = vector.broadcast %cst_15 : f32 to vector<16x1xf32>
    %19 = arith.divf %17, %18 : vector<16x1xf32>
    %20 = vector.broadcast %12 : vector<16x1xf32> to vector<16x32xf32>
    %21 = arith.subf %1, %20 : vector<16x32xf32>
    %cst_16 = arith.constant 9.99999974E-6 : f32
    %22 = vector.broadcast %cst_16 : f32 to vector<16x1xf32>
    %23 = arith.addf %19, %22 : vector<16x1xf32>
    %24 = math.rsqrt %23 : vector<16x1xf32>
    %25 = vector.broadcast %24 : vector<16x1xf32> to vector<16x32xf32>
    %26 = arith.mulf %21, %25 : vector<16x32xf32>
    %27 = vector.broadcast %6 : vector<1x32xf32> to vector<16x32xf32>
    %28 = arith.mulf %26, %27 : vector<16x32xf32>
    %29 = vector.broadcast %8 : vector<1x32xf32> to vector<16x32xf32>
    %30 = arith.addf %28, %29 : vector<16x32xf32>
    %c0_17 = arith.constant 0 : index
    %c0_18 = arith.constant 0 : index
    %c0_19 = arith.constant 0 : index
    %31 = vector.load %arg3[%c0_17, %c0_18, %c0_19] : memref<11x1x32xf32, #tpu.memory_space<vmem>>, vector<1x1x32xf32>
    %32 = vector.shape_cast %31 : vector<1x1x32xf32> to vector<1x32xf32>
    %c0_20 = arith.constant 0 : index
    %c0_21 = arith.constant 0 : index
    %c0_22 = arith.constant 0 : index
    %33 = vector.load %arg4[%c0_20, %c0_21, %c0_22] : memref<11x1x32xf32, #tpu.memory_space<vmem>>, vector<1x1x32xf32>
    %34 = vector.shape_cast %33 : vector<1x1x32xf32> to vector<1x32xf32>
    %cst_23 = arith.constant dense<0.000000e+00> : vector<16xf32>
    %35 = vector.multi_reduction <add>, %3, %cst_23 [1] : vector<16x32xf32> to vector<16xf32>
    %36 = vector.shape_cast %35 : vector<16xf32> to vector<16x1xf32>
    %cst_24 = arith.constant 3.200000e+01 : f32
    %37 = vector.broadcast %cst_24 : f32 to vector<16x1xf32>
    %38 = arith.divf %36, %37 : vector<16x1xf32>
    %39 = vector.broadcast %38 : vector<16x1xf32> to vector<16x32xf32>
    %40 = arith.subf %3, %39 : vector<16x32xf32>
    %41 = arith.mulf %40, %40 : vector<16x32xf32>
    %cst_25 = arith.constant dense<0.000000e+00> : vector<16xf32>
    %42 = vector.multi_reduction <add>, %41, %cst_25 [1] : vector<16x32xf32> to vector<16xf32>
    %43 = vector.shape_cast %42 : vector<16xf32> to vector<16x1xf32>
    %cst_26 = arith.constant 3.200000e+01 : f32
    %44 = vector.broadcast %cst_26 : f32 to vector<16x1xf32>
    %45 = arith.divf %43, %44 : vector<16x1xf32>
    %46 = vector.broadcast %38 : vector<16x1xf32> to vector<16x32xf32>
    %47 = arith.subf %3, %46 : vector<16x32xf32>
    %cst_27 = arith.constant 9.99999974E-6 : f32
    %48 = vector.broadcast %cst_27 : f32 to vector<16x1xf32>
    %49 = arith.addf %45, %48 : vector<16x1xf32>
    %50 = math.rsqrt %49 : vector<16x1xf32>
    %51 = vector.broadcast %50 : vector<16x1xf32> to vector<16x32xf32>
    %52 = arith.mulf %47, %51 : vector<16x32xf32>
    %53 = vector.broadcast %32 : vector<1x32xf32> to vector<16x32xf32>
    %54 = arith.mulf %52, %53 : vector<16x32xf32>
    %55 = vector.broadcast %34 : vector<1x32xf32> to vector<16x32xf32>
    %56 = arith.addf %54, %55 : vector<16x32xf32>
    %c1 = arith.constant 1 : index
    %c0_28 = arith.constant 0 : index
    %c0_29 = arith.constant 0 : index
    %57 = vector.load %arg3[%c1, %c0_28, %c0_29] : memref<11x1x32xf32, #tpu.memory_space<vmem>>, vector<1x1x32xf32>
    %58 = vector.shape_cast %57 : vector<1x1x32xf32> to vector<1x32xf32>
    %c1_30 = arith.constant 1 : index
    %c0_31 = arith.constant 0 : index
    %c0_32 = arith.constant 0 : index
    %59 = vector.load %arg4[%c1_30, %c0_31, %c0_32] : memref<11x1x32xf32, #tpu.memory_space<vmem>>, vector<1x1x32xf32>
    %60 = vector.shape_cast %59 : vector<1x1x32xf32> to vector<1x32xf32>
    %cst_33 = arith.constant dense<0.000000e+00> : vector<16xf32>
    %61 = vector.multi_reduction <add>, %30, %cst_33 [1] : vector<16x32xf32> to vector<16xf32>
    %62 = vector.shape_cast %61 : vector<16xf32> to vector<16x1xf32>
    %cst_34 = arith.constant 3.200000e+01 : f32
    %63 = vector.broadcast %cst_34 : f32 to vector<16x1xf32>
    %64 = arith.divf %62, %63 : vector<16x1xf32>
    %65 = vector.broadcast %64 : vector<16x1xf32> to vector<16x32xf32>
    %66 = arith.subf %30, %65 : vector<16x32xf32>
    %67 = arith.mulf %66, %66 : vector<16x32xf32>
    %cst_35 = arith.constant dense<0.000000e+00> : vector<16xf32>
    %68 = vector.multi_reduction <add>, %67, %cst_35 [1] : vector<16x32xf32> to vector<16xf32>
    %69 = vector.shape_cast %68 : vector<16xf32> to vector<16x1xf32>
    %cst_36 = arith.constant 3.200000e+01 : f32
    %70 = vector.broadcast %cst_36 : f32 to vector<16x1xf32>
    %71 = arith.divf %69, %70 : vector<16x1xf32>
    %72 = vector.broadcast %64 : vector<16x1xf32> to vector<16x32xf32>
    %73 = arith.subf %30, %72 : vector<16x32xf32>
    %cst_37 = arith.constant 9.99999974E-6 : f32
    %74 = vector.broadcast %cst_37 : f32 to vector<16x1xf32>
    %75 = arith.addf %71, %74 : vector<16x1xf32>
    %76 = math.rsqrt %75 : vector<16x1xf32>
    %77 = vector.broadcast %76 : vector<16x1xf32> to vector<16x32xf32>
    %78 = arith.mulf %73, %77 : vector<16x32xf32>
    %79 = vector.broadcast %58 : vector<1x32xf32> to vector<16x32xf32>
    %80 = arith.mulf %78, %79 : vector<16x32xf32>
    %81 = vector.broadcast %60 : vector<1x32xf32> to vector<16x32xf32>
    %82 = arith.addf %80, %81 : vector<16x32xf32>
    %c0_38 = arith.constant 0 : index
    %c0_39 = arith.constant 0 : index
    %c0_40 = arith.constant 0 : index
    %83 = vector.load %arg5[%c0_38, %c0_39, %c0_40] : memref<4x32x96xf32, #tpu.memory_space<vmem>>, vector<1x32x96xf32>
    %84 = vector.shape_cast %83 : vector<1x32x96xf32> to vector<32x96xf32>
    %c0_41 = arith.constant 0 : index
    %c0_42 = arith.constant 0 : index
    %c0_43 = arith.constant 0 : index
    %85 = vector.load %arg6[%c0_41, %c0_42, %c0_43] : memref<4x1x96xf32, #tpu.memory_space<vmem>>, vector<1x1x96xf32>
    %86 = vector.shape_cast %85 : vector<1x1x96xf32> to vector<1x96xf32>
    %cst_44 = arith.constant dense<0.000000e+00> : vector<16x96xf32>
    %87 = tpu.matmul %82, %84, %cst_44 {dimension_numbers = #tpu.dot_dimension_numbers<[1], [0], [0], [1], [0, 0, 1, 1], [], []>} : vector<16x32xf32>, vector<32x96xf32>, vector<16x96xf32> -> vector<16x96xf32>
    %88 = vector.broadcast %86 : vector<1x96xf32> to vector<16x96xf32>
    %89 = arith.addf %87, %88 : vector<16x96xf32>
    %90 = vector.extract_strided_slice %89 {offsets = [0, 0], sizes = [16, 32], strides = [1, 1]} : vector<16x96xf32> to vector<16x32xf32>
    %91 = vector.extract_strided_slice %89 {offsets = [0, 32], sizes = [16, 32], strides = [1, 1]} : vector<16x96xf32> to vector<16x32xf32>
    %92 = vector.extract_strided_slice %89 {offsets = [0, 64], sizes = [16, 32], strides = [1, 1]} : vector<16x96xf32> to vector<16x32xf32>
    %cst_45 = arith.constant 0.000000e+00 : f32
    %93 = vector.broadcast %cst_45 : f32 to vector<16x32xf32>
    %94 = vector.extract_strided_slice %90 {offsets = [0, 0], sizes = [16, 8], strides = [1, 1]} : vector<16x32xf32> to vector<16x8xf32>
    %95 = vector.shape_cast %94 : vector<16x8xf32> to vector<2x8x8xf32>
    %96 = vector.extract_strided_slice %91 {offsets = [0, 0], sizes = [16, 8], strides = [1, 1]} : vector<16x32xf32> to vector<16x8xf32>
    %97 = vector.shape_cast %96 : vector<16x8xf32> to vector<2x8x8xf32>
    %98 = vector.extract_strided_slice %92 {offsets = [0, 0], sizes = [16, 8], strides = [1, 1]} : vector<16x32xf32> to vector<16x8xf32>
    %99 = vector.shape_cast %98 : vector<16x8xf32> to vector<2x8x8xf32>
    "tpu.trace_start"() <{level = 10 : i32, message = "bqd,bkd->bqk"}> : () -> ()
    %cst_46 = arith.constant dense<0.000000e+00> : vector<2x8x8xf32>
    %100 = tpu.matmul %95, %97, %cst_46 {dimension_numbers = #tpu.dot_dimension_numbers<[2], [2], [1], [1], [0, 0, 0, 1, 1, 1], [0], [0]>} : vector<2x8x8xf32>, vector<2x8x8xf32>, vector<2x8x8xf32> -> vector<2x8x8xf32>
    "tpu.trace_stop"() : () -> ()
    %cst_47 = arith.constant 0.353553385 : f32
    %101 = vector.broadcast %cst_47 : f32 to vector<2x8x8xf32>
    %102 = arith.mulf %100, %101 : vector<2x8x8xf32>
    %103 = vector.shape_cast %4 : vector<8x8xf32> to vector<1x8x8xf32>
    %104 = vector.broadcast %103 : vector<1x8x8xf32> to vector<2x8x8xf32>
    %105 = arith.addf %102, %104 : vector<2x8x8xf32>
    %cst_48 = arith.constant dense<0xFF800000> : vector<2x8xf32>
    %106 = vector.multi_reduction <maximumf>, %105, %cst_48 [2] : vector<2x8x8xf32> to vector<2x8xf32>
    %107 = vector.shape_cast %106 : vector<2x8xf32> to vector<2x8x1xf32>
    %108 = vector.broadcast %107 : vector<2x8x1xf32> to vector<2x8x8xf32>
    %109 = arith.subf %105, %108 : vector<2x8x8xf32>
    %110 = math.exp %109 : vector<2x8x8xf32>
    %cst_49 = arith.constant dense<0.000000e+00> : vector<2x8xf32>
    %111 = vector.multi_reduction <add>, %110, %cst_49 [2] : vector<2x8x8xf32> to vector<2x8xf32>
    %112 = vector.shape_cast %111 : vector<2x8xf32> to vector<2x8x1xf32>
    %113 = tpu.reciprocal %112 {approx = true} : vector<2x8x1xf32> -> vector<2x8x1xf32>
    %114 = vector.broadcast %113 : vector<2x8x1xf32> to vector<2x8x8xf32>
    %115 = arith.mulf %110, %114 : vector<2x8x8xf32>
    "tpu.trace_start"() <{level = 10 : i32, message = "bqk,bkd->bqd"}> : () -> ()
    %cst_50 = arith.constant dense<0.000000e+00> : vector<2x8x8xf32>
    %116 = tpu.matmul %115, %99, %cst_50 {dimension_numbers = #tpu.dot_dimension_numbers<[2], [1], [1], [2], [0, 0, 0, 1, 1, 2], [0], [0]>} : vector<2x8x8xf32>, vector<2x8x8xf32>, vector<2x8x8xf32> -> vector<2x8x8xf32>
    "tpu.trace_stop"() : () -> ()
    %117 = vector.shape_cast %116 : vector<2x8x8xf32> to vector<16x8xf32>
    %c0_51 = arith.constant 0 : index
    %c0_52 = arith.constant 0 : index
    %c0_53 = arith.constant 0 : index
    %c0_54 = arith.constant 0 : index
    %118 = vector.load %arg7[%c0_51, %c0_52, %c0_53, %c0_54] : memref<4x4x8x32xf32, #tpu.memory_space<vmem>>, vector<1x1x8x32xf32>
    %119 = vector.shape_cast %118 : vector<1x1x8x32xf32> to vector<8x32xf32>
    %cst_55 = arith.constant dense<0.000000e+00> : vector<16x32xf32>
    %120 = tpu.matmul %117, %119, %cst_55 {dimension_numbers = #tpu.dot_dimension_numbers<[1], [0], [0], [1], [0, 0, 1, 1], [], []>} : vector<16x8xf32>, vector<8x32xf32>, vector<16x32xf32> -> vector<16x32xf32>
    %121 = arith.addf %93, %120 : vector<16x32xf32>
    %122 = vector.extract_strided_slice %90 {offsets = [0, 8], sizes = [16, 8], strides = [1, 1]} : vector<16x32xf32> to vector<16x8xf32>
    %123 = vector.shape_cast %122 : vector<16x8xf32> to vector<2x8x8xf32>
    %124 = vector.extract_strided_slice %91 {offsets = [0, 8], sizes = [16, 8], strides = [1, 1]} : vector<16x32xf32> to vector<16x8xf32>
    %125 = vector.shape_cast %124 : vector<16x8xf32> to vector<2x8x8xf32>
    %126 = vector.extract_strided_slice %92 {offsets = [0, 8], sizes = [16, 8], strides = [1, 1]} : vector<16x32xf32> to vector<16x8xf32>
    %127 = vector.shape_cast %126 : vector<16x8xf32> to vector<2x8x8xf32>
    "tpu.trace_start"() <{level = 10 : i32, message = "bqd,bkd->bqk"}> : () -> ()
    %cst_56 = arith.constant dense<0.000000e+00> : vector<2x8x8xf32>
    %128 = tpu.matmul %123, %125, %cst_56 {dimension_numbers = #tpu.dot_dimension_numbers<[2], [2], [1], [1], [0, 0, 0, 1, 1, 1], [0], [0]>} : vector<2x8x8xf32>, vector<2x8x8xf32>, vector<2x8x8xf32> -> vector<2x8x8xf32>
    "tpu.trace_stop"() : () -> ()
    %cst_57 = arith.constant 0.353553385 : f32
    %129 = vector.broadcast %cst_57 : f32 to vector<2x8x8xf32>
    %130 = arith.mulf %128, %129 : vector<2x8x8xf32>
    %131 = vector.shape_cast %4 : vector<8x8xf32> to vector<1x8x8xf32>
    %132 = vector.broadcast %131 : vector<1x8x8xf32> to vector<2x8x8xf32>
    %133 = arith.addf %130, %132 : vector<2x8x8xf32>
    %cst_58 = arith.constant dense<0xFF800000> : vector<2x8xf32>
    %134 = vector.multi_reduction <maximumf>, %133, %cst_58 [2] : vector<2x8x8xf32> to vector<2x8xf32>
    %135 = vector.shape_cast %134 : vector<2x8xf32> to vector<2x8x1xf32>
    %136 = vector.broadcast %135 : vector<2x8x1xf32> to vector<2x8x8xf32>
    %137 = arith.subf %133, %136 : vector<2x8x8xf32>
    %138 = math.exp %137 : vector<2x8x8xf32>
    %cst_59 = arith.constant dense<0.000000e+00> : vector<2x8xf32>
    %139 = vector.multi_reduction <add>, %138, %cst_59 [2] : vector<2x8x8xf32> to vector<2x8xf32>
    %140 = vector.shape_cast %139 : vector<2x8xf32> to vector<2x8x1xf32>
    %141 = tpu.reciprocal %140 {approx = true} : vector<2x8x1xf32> -> vector<2x8x1xf32>
    %142 = vector.broadcast %141 : vector<2x8x1xf32> to vector<2x8x8xf32>
    %143 = arith.mulf %138, %142 : vector<2x8x8xf32>
    "tpu.trace_start"() <{level = 10 : i32, message = "bqk,bkd->bqd"}> : () -> ()
    %cst_60 = arith.constant dense<0.000000e+00> : vector<2x8x8xf32>
    %144 = tpu.matmul %143, %127, %cst_60 {dimension_numbers = #tpu.dot_dimension_numbers<[2], [1], [1], [2], [0, 0, 0, 1, 1, 2], [0], [0]>} : vector<2x8x8xf32>, vector<2x8x8xf32>, vector<2x8x8xf32> -> vector<2x8x8xf32>
    "tpu.trace_stop"() : () -> ()
    %145 = vector.shape_cast %144 : vector<2x8x8xf32> to vector<16x8xf32>
    %c0_61 = arith.constant 0 : index
    %c1_62 = arith.constant 1 : index
    %c0_63 = arith.constant 0 : index
    %c0_64 = arith.constant 0 : index
    %146 = vector.load %arg7[%c0_61, %c1_62, %c0_63, %c0_64] : memref<4x4x8x32xf32, #tpu.memory_space<vmem>>, vector<1x1x8x32xf32>
    %147 = vector.shape_cast %146 : vector<1x1x8x32xf32> to vector<8x32xf32>
    %cst_65 = arith.constant dense<0.000000e+00> : vector<16x32xf32>
    %148 = tpu.matmul %145, %147, %cst_65 {dimension_numbers = #tpu.dot_dimension_numbers<[1], [0], [0], [1], [0, 0, 1, 1], [], []>} : vector<16x8xf32>, vector<8x32xf32>, vector<16x32xf32> -> vector<16x32xf32>
    %149 = arith.addf %121, %148 : vector<16x32xf32>
    %150 = vector.extract_strided_slice %90 {offsets = [0, 16], sizes = [16, 8], strides = [1, 1]} : vector<16x32xf32> to vector<16x8xf32>
    %151 = vector.shape_cast %150 : vector<16x8xf32> to vector<2x8x8xf32>
    %152 = vector.extract_strided_slice %91 {offsets = [0, 16], sizes = [16, 8], strides = [1, 1]} : vector<16x32xf32> to vector<16x8xf32>
    %153 = vector.shape_cast %152 : vector<16x8xf32> to vector<2x8x8xf32>
    %154 = vector.extract_strided_slice %92 {offsets = [0, 16], sizes = [16, 8], strides = [1, 1]} : vector<16x32xf32> to vector<16x8xf32>
    %155 = vector.shape_cast %154 : vector<16x8xf32> to vector<2x8x8xf32>
    "tpu.trace_start"() <{level = 10 : i32, message = "bqd,bkd->bqk"}> : () -> ()
    %cst_66 = arith.constant dense<0.000000e+00> : vector<2x8x8xf32>
    %156 = tpu.matmul %151, %153, %cst_66 {dimension_numbers = #tpu.dot_dimension_numbers<[2], [2], [1], [1], [0, 0, 0, 1, 1, 1], [0], [0]>} : vector<2x8x8xf32>, vector<2x8x8xf32>, vector<2x8x8xf32> -> vector<2x8x8xf32>
    "tpu.trace_stop"() : () -> ()
    %cst_67 = arith.constant 0.353553385 : f32
    %157 = vector.broadcast %cst_67 : f32 to vector<2x8x8xf32>
    %158 = arith.mulf %156, %157 : vector<2x8x8xf32>
    %159 = vector.shape_cast %4 : vector<8x8xf32> to vector<1x8x8xf32>
    %160 = vector.broadcast %159 : vector<1x8x8xf32> to vector<2x8x8xf32>
    %161 = arith.addf %158, %160 : vector<2x8x8xf32>
    %cst_68 = arith.constant dense<0xFF800000> : vector<2x8xf32>
    %162 = vector.multi_reduction <maximumf>, %161, %cst_68 [2] : vector<2x8x8xf32> to vector<2x8xf32>
    %163 = vector.shape_cast %162 : vector<2x8xf32> to vector<2x8x1xf32>
    %164 = vector.broadcast %163 : vector<2x8x1xf32> to vector<2x8x8xf32>
    %165 = arith.subf %161, %164 : vector<2x8x8xf32>
    %166 = math.exp %165 : vector<2x8x8xf32>
    %cst_69 = arith.constant dense<0.000000e+00> : vector<2x8xf32>
    %167 = vector.multi_reduction <add>, %166, %cst_69 [2] : vector<2x8x8xf32> to vector<2x8xf32>
    %168 = vector.shape_cast %167 : vector<2x8xf32> to vector<2x8x1xf32>
    %169 = tpu.reciprocal %168 {approx = true} : vector<2x8x1xf32> -> vector<2x8x1xf32>
    %170 = vector.broadcast %169 : vector<2x8x1xf32> to vector<2x8x8xf32>
    %171 = arith.mulf %166, %170 : vector<2x8x8xf32>
    "tpu.trace_start"() <{level = 10 : i32, message = "bqk,bkd->bqd"}> : () -> ()
    %cst_70 = arith.constant dense<0.000000e+00> : vector<2x8x8xf32>
    %172 = tpu.matmul %171, %155, %cst_70 {dimension_numbers = #tpu.dot_dimension_numbers<[2], [1], [1], [2], [0, 0, 0, 1, 1, 2], [0], [0]>} : vector<2x8x8xf32>, vector<2x8x8xf32>, vector<2x8x8xf32> -> vector<2x8x8xf32>
    "tpu.trace_stop"() : () -> ()
    %173 = vector.shape_cast %172 : vector<2x8x8xf32> to vector<16x8xf32>
    %c0_71 = arith.constant 0 : index
    %c2 = arith.constant 2 : index
    %c0_72 = arith.constant 0 : index
    %c0_73 = arith.constant 0 : index
    %174 = vector.load %arg7[%c0_71, %c2, %c0_72, %c0_73] : memref<4x4x8x32xf32, #tpu.memory_space<vmem>>, vector<1x1x8x32xf32>
    %175 = vector.shape_cast %174 : vector<1x1x8x32xf32> to vector<8x32xf32>
    %cst_74 = arith.constant dense<0.000000e+00> : vector<16x32xf32>
    %176 = tpu.matmul %173, %175, %cst_74 {dimension_numbers = #tpu.dot_dimension_numbers<[1], [0], [0], [1], [0, 0, 1, 1], [], []>} : vector<16x8xf32>, vector<8x32xf32>, vector<16x32xf32> -> vector<16x32xf32>
    %177 = arith.addf %149, %176 : vector<16x32xf32>
    %178 = vector.extract_strided_slice %90 {offsets = [0, 24], sizes = [16, 8], strides = [1, 1]} : vector<16x32xf32> to vector<16x8xf32>
    %179 = vector.shape_cast %178 : vector<16x8xf32> to vector<2x8x8xf32>
    %180 = vector.extract_strided_slice %91 {offsets = [0, 24], sizes = [16, 8], strides = [1, 1]} : vector<16x32xf32> to vector<16x8xf32>
    %181 = vector.shape_cast %180 : vector<16x8xf32> to vector<2x8x8xf32>
    %182 = vector.extract_strided_slice %92 {offsets = [0, 24], sizes = [16, 8], strides = [1, 1]} : vector<16x32xf32> to vector<16x8xf32>
    %183 = vector.shape_cast %182 : vector<16x8xf32> to vector<2x8x8xf32>
    "tpu.trace_start"() <{level = 10 : i32, message = "bqd,bkd->bqk"}> : () -> ()
    %cst_75 = arith.constant dense<0.000000e+00> : vector<2x8x8xf32>
    %184 = tpu.matmul %179, %181, %cst_75 {dimension_numbers = #tpu.dot_dimension_numbers<[2], [2], [1], [1], [0, 0, 0, 1, 1, 1], [0], [0]>} : vector<2x8x8xf32>, vector<2x8x8xf32>, vector<2x8x8xf32> -> vector<2x8x8xf32>
    "tpu.trace_stop"() : () -> ()
    %cst_76 = arith.constant 0.353553385 : f32
    %185 = vector.broadcast %cst_76 : f32 to vector<2x8x8xf32>
    %186 = arith.mulf %184, %185 : vector<2x8x8xf32>
    %187 = vector.shape_cast %4 : vector<8x8xf32> to vector<1x8x8xf32>
    %188 = vector.broadcast %187 : vector<1x8x8xf32> to vector<2x8x8xf32>
    %189 = arith.addf %186, %188 : vector<2x8x8xf32>
    %cst_77 = arith.constant dense<0xFF800000> : vector<2x8xf32>
    %190 = vector.multi_reduction <maximumf>, %189, %cst_77 [2] : vector<2x8x8xf32> to vector<2x8xf32>
    %191 = vector.shape_cast %190 : vector<2x8xf32> to vector<2x8x1xf32>
    %192 = vector.broadcast %191 : vector<2x8x1xf32> to vector<2x8x8xf32>
    %193 = arith.subf %189, %192 : vector<2x8x8xf32>
    %194 = math.exp %193 : vector<2x8x8xf32>
    %cst_78 = arith.constant dense<0.000000e+00> : vector<2x8xf32>
    %195 = vector.multi_reduction <add>, %194, %cst_78 [2] : vector<2x8x8xf32> to vector<2x8xf32>
    %196 = vector.shape_cast %195 : vector<2x8xf32> to vector<2x8x1xf32>
    %197 = tpu.reciprocal %196 {approx = true} : vector<2x8x1xf32> -> vector<2x8x1xf32>
    %198 = vector.broadcast %197 : vector<2x8x1xf32> to vector<2x8x8xf32>
    %199 = arith.mulf %194, %198 : vector<2x8x8xf32>
    "tpu.trace_start"() <{level = 10 : i32, message = "bqk,bkd->bqd"}> : () -> ()
    %cst_79 = arith.constant dense<0.000000e+00> : vector<2x8x8xf32>
    %200 = tpu.matmul %199, %183, %cst_79 {dimension_numbers = #tpu.dot_dimension_numbers<[2], [1], [1], [2], [0, 0, 0, 1, 1, 2], [0], [0]>} : vector<2x8x8xf32>, vector<2x8x8xf32>, vector<2x8x8xf32> -> vector<2x8x8xf32>
    "tpu.trace_stop"() : () -> ()
    %201 = vector.shape_cast %200 : vector<2x8x8xf32> to vector<16x8xf32>
    %c0_80 = arith.constant 0 : index
    %c3 = arith.constant 3 : index
    %c0_81 = arith.constant 0 : index
    %c0_82 = arith.constant 0 : index
    %202 = vector.load %arg7[%c0_80, %c3, %c0_81, %c0_82] : memref<4x4x8x32xf32, #tpu.memory_space<vmem>>, vector<1x1x8x32xf32>
    %203 = vector.shape_cast %202 : vector<1x1x8x32xf32> to vector<8x32xf32>
    %cst_83 = arith.constant dense<0.000000e+00> : vector<16x32xf32>
    %204 = tpu.matmul %201, %203, %cst_83 {dimension_numbers = #tpu.dot_dimension_numbers<[1], [0], [0], [1], [0, 0, 1, 1], [], []>} : vector<16x8xf32>, vector<8x32xf32>, vector<16x32xf32> -> vector<16x32xf32>
    %205 = arith.addf %177, %204 : vector<16x32xf32>
    %c0_84 = arith.constant 0 : index
    %c0_85 = arith.constant 0 : index
    %c0_86 = arith.constant 0 : index
    %206 = vector.load %arg8[%c0_84, %c0_85, %c0_86] : memref<4x1x32xf32, #tpu.memory_space<vmem>>, vector<1x1x32xf32>
    %207 = vector.shape_cast %206 : vector<1x1x32xf32> to vector<1x32xf32>
    %208 = vector.broadcast %207 : vector<1x32xf32> to vector<16x32xf32>
    %209 = arith.addf %205, %208 : vector<16x32xf32>
    %210 = arith.addf %30, %209 : vector<16x32xf32>
    %c2_87 = arith.constant 2 : index
    %c0_88 = arith.constant 0 : index
    %c0_89 = arith.constant 0 : index
    %211 = vector.load %arg3[%c2_87, %c0_88, %c0_89] : memref<11x1x32xf32, #tpu.memory_space<vmem>>, vector<1x1x32xf32>
    %212 = vector.shape_cast %211 : vector<1x1x32xf32> to vector<1x32xf32>
    %c2_90 = arith.constant 2 : index
    %c0_91 = arith.constant 0 : index
    %c0_92 = arith.constant 0 : index
    %213 = vector.load %arg4[%c2_90, %c0_91, %c0_92] : memref<11x1x32xf32, #tpu.memory_space<vmem>>, vector<1x1x32xf32>
    %214 = vector.shape_cast %213 : vector<1x1x32xf32> to vector<1x32xf32>
    %cst_93 = arith.constant dense<0.000000e+00> : vector<16xf32>
    %215 = vector.multi_reduction <add>, %210, %cst_93 [1] : vector<16x32xf32> to vector<16xf32>
    %216 = vector.shape_cast %215 : vector<16xf32> to vector<16x1xf32>
    %cst_94 = arith.constant 3.200000e+01 : f32
    %217 = vector.broadcast %cst_94 : f32 to vector<16x1xf32>
    %218 = arith.divf %216, %217 : vector<16x1xf32>
    %219 = vector.broadcast %218 : vector<16x1xf32> to vector<16x32xf32>
    %220 = arith.subf %210, %219 : vector<16x32xf32>
    %221 = arith.mulf %220, %220 : vector<16x32xf32>
    %cst_95 = arith.constant dense<0.000000e+00> : vector<16xf32>
    %222 = vector.multi_reduction <add>, %221, %cst_95 [1] : vector<16x32xf32> to vector<16xf32>
    %223 = vector.shape_cast %222 : vector<16xf32> to vector<16x1xf32>
    %cst_96 = arith.constant 3.200000e+01 : f32
    %224 = vector.broadcast %cst_96 : f32 to vector<16x1xf32>
    %225 = arith.divf %223, %224 : vector<16x1xf32>
    %226 = vector.broadcast %218 : vector<16x1xf32> to vector<16x32xf32>
    %227 = arith.subf %210, %226 : vector<16x32xf32>
    %cst_97 = arith.constant 9.99999997E-7 : f32
    %228 = vector.broadcast %cst_97 : f32 to vector<16x1xf32>
    %229 = arith.addf %225, %228 : vector<16x1xf32>
    %230 = math.rsqrt %229 : vector<16x1xf32>
    %231 = vector.broadcast %230 : vector<16x1xf32> to vector<16x32xf32>
    %232 = arith.mulf %227, %231 : vector<16x32xf32>
    %233 = vector.broadcast %212 : vector<1x32xf32> to vector<16x32xf32>
    %234 = arith.mulf %232, %233 : vector<16x32xf32>
    %235 = vector.broadcast %214 : vector<1x32xf32> to vector<16x32xf32>
    %236 = arith.addf %234, %235 : vector<16x32xf32>
    %c0_98 = arith.constant 0 : index
    %c0_99 = arith.constant 0 : index
    %c0_100 = arith.constant 0 : index
    %237 = vector.load %arg9[%c0_98, %c0_99, %c0_100] : memref<4x32x32xf32, #tpu.memory_space<vmem>>, vector<1x32x32xf32>
    %238 = vector.shape_cast %237 : vector<1x32x32xf32> to vector<32x32xf32>
    %cst_101 = arith.constant dense<0.000000e+00> : vector<16x32xf32>
    %239 = tpu.matmul %236, %238, %cst_101 {dimension_numbers = #tpu.dot_dimension_numbers<[1], [0], [0], [1], [0, 0, 1, 1], [], []>} : vector<16x32xf32>, vector<32x32xf32>, vector<16x32xf32> -> vector<16x32xf32>
    %c0_102 = arith.constant 0 : index
    %c0_103 = arith.constant 0 : index
    %c0_104 = arith.constant 0 : index
    %240 = vector.load %arg10[%c0_102, %c0_103, %c0_104] : memref<4x1x32xf32, #tpu.memory_space<vmem>>, vector<1x1x32xf32>
    %241 = vector.shape_cast %240 : vector<1x1x32xf32> to vector<1x32xf32>
    %242 = vector.broadcast %241 : vector<1x32xf32> to vector<16x32xf32>
    %243 = arith.addf %239, %242 : vector<16x32xf32>
    %cst_105 = arith.constant 0.000000e+00 : f32
    %244 = vector.broadcast %cst_105 : f32 to vector<16x32xf32>
    %245 = arith.maximumf %243, %244 : vector<16x32xf32>
    %c0_106 = arith.constant 0 : index
    %c0_107 = arith.constant 0 : index
    %c0_108 = arith.constant 0 : index
    %246 = vector.load %arg11[%c0_106, %c0_107, %c0_108] : memref<4x32x32xf32, #tpu.memory_space<vmem>>, vector<1x32x32xf32>
    %247 = vector.shape_cast %246 : vector<1x32x32xf32> to vector<32x32xf32>
    %cst_109 = arith.constant dense<0.000000e+00> : vector<16x32xf32>
    %248 = tpu.matmul %245, %247, %cst_109 {dimension_numbers = #tpu.dot_dimension_numbers<[1], [0], [0], [1], [0, 0, 1, 1], [], []>} : vector<16x32xf32>, vector<32x32xf32>, vector<16x32xf32> -> vector<16x32xf32>
    %c0_110 = arith.constant 0 : index
    %c0_111 = arith.constant 0 : index
    %c0_112 = arith.constant 0 : index
    %249 = vector.load %arg12[%c0_110, %c0_111, %c0_112] : memref<4x1x32xf32, #tpu.memory_space<vmem>>, vector<1x1x32xf32>
    %250 = vector.shape_cast %249 : vector<1x1x32xf32> to vector<1x32xf32>
    %251 = vector.broadcast %250 : vector<1x32xf32> to vector<16x32xf32>
    %252 = arith.addf %248, %251 : vector<16x32xf32>
    %cst_113 = arith.constant 0.000000e+00 : f32
    %253 = vector.broadcast %cst_113 : f32 to vector<16x32xf32>
    %254 = arith.maximumf %252, %253 : vector<16x32xf32>
    %255 = arith.addf %210, %254 : vector<16x32xf32>
    %c3_114 = arith.constant 3 : index
    %c0_115 = arith.constant 0 : index
    %c0_116 = arith.constant 0 : index
    %256 = vector.load %arg3[%c3_114, %c0_115, %c0_116] : memref<11x1x32xf32, #tpu.memory_space<vmem>>, vector<1x1x32xf32>
    %257 = vector.shape_cast %256 : vector<1x1x32xf32> to vector<1x32xf32>
    %c3_117 = arith.constant 3 : index
    %c0_118 = arith.constant 0 : index
    %c0_119 = arith.constant 0 : index
    %258 = vector.load %arg4[%c3_117, %c0_118, %c0_119] : memref<11x1x32xf32, #tpu.memory_space<vmem>>, vector<1x1x32xf32>
    %259 = vector.shape_cast %258 : vector<1x1x32xf32> to vector<1x32xf32>
    %cst_120 = arith.constant dense<0.000000e+00> : vector<16xf32>
    %260 = vector.multi_reduction <add>, %56, %cst_120 [1] : vector<16x32xf32> to vector<16xf32>
    %261 = vector.shape_cast %260 : vector<16xf32> to vector<16x1xf32>
    %cst_121 = arith.constant 3.200000e+01 : f32
    %262 = vector.broadcast %cst_121 : f32 to vector<16x1xf32>
    %263 = arith.divf %261, %262 : vector<16x1xf32>
    %264 = vector.broadcast %263 : vector<16x1xf32> to vector<16x32xf32>
    %265 = arith.subf %56, %264 : vector<16x32xf32>
    %266 = arith.mulf %265, %265 : vector<16x32xf32>
    %cst_122 = arith.constant dense<0.000000e+00> : vector<16xf32>
    %267 = vector.multi_reduction <add>, %266, %cst_122 [1] : vector<16x32xf32> to vector<16xf32>
    %268 = vector.shape_cast %267 : vector<16xf32> to vector<16x1xf32>
    %cst_123 = arith.constant 3.200000e+01 : f32
    %269 = vector.broadcast %cst_123 : f32 to vector<16x1xf32>
    %270 = arith.divf %268, %269 : vector<16x1xf32>
    %271 = vector.broadcast %263 : vector<16x1xf32> to vector<16x32xf32>
    %272 = arith.subf %56, %271 : vector<16x32xf32>
    %cst_124 = arith.constant 9.99999974E-6 : f32
    %273 = vector.broadcast %cst_124 : f32 to vector<16x1xf32>
    %274 = arith.addf %270, %273 : vector<16x1xf32>
    %275 = math.rsqrt %274 : vector<16x1xf32>
    %276 = vector.broadcast %275 : vector<16x1xf32> to vector<16x32xf32>
    %277 = arith.mulf %272, %276 : vector<16x32xf32>
    %278 = vector.broadcast %257 : vector<1x32xf32> to vector<16x32xf32>
    %279 = arith.mulf %277, %278 : vector<16x32xf32>
    %280 = vector.broadcast %259 : vector<1x32xf32> to vector<16x32xf32>
    %281 = arith.addf %279, %280 : vector<16x32xf32>
    %c1_125 = arith.constant 1 : index
    %c0_126 = arith.constant 0 : index
    %c0_127 = arith.constant 0 : index
    %282 = vector.load %arg5[%c1_125, %c0_126, %c0_127] : memref<4x32x96xf32, #tpu.memory_space<vmem>>, vector<1x32x96xf32>
    %283 = vector.shape_cast %282 : vector<1x32x96xf32> to vector<32x96xf32>
    %c1_128 = arith.constant 1 : index
    %c0_129 = arith.constant 0 : index
    %c0_130 = arith.constant 0 : index
    %284 = vector.load %arg6[%c1_128, %c0_129, %c0_130] : memref<4x1x96xf32, #tpu.memory_space<vmem>>, vector<1x1x96xf32>
    %285 = vector.shape_cast %284 : vector<1x1x96xf32> to vector<1x96xf32>
    %cst_131 = arith.constant dense<0.000000e+00> : vector<16x96xf32>
    %286 = tpu.matmul %281, %283, %cst_131 {dimension_numbers = #tpu.dot_dimension_numbers<[1], [0], [0], [1], [0, 0, 1, 1], [], []>} : vector<16x32xf32>, vector<32x96xf32>, vector<16x96xf32> -> vector<16x96xf32>
    %287 = vector.broadcast %285 : vector<1x96xf32> to vector<16x96xf32>
    %288 = arith.addf %286, %287 : vector<16x96xf32>
    %289 = vector.extract_strided_slice %288 {offsets = [0, 0], sizes = [16, 32], strides = [1, 1]} : vector<16x96xf32> to vector<16x32xf32>
    %290 = vector.extract_strided_slice %288 {offsets = [0, 32], sizes = [16, 32], strides = [1, 1]} : vector<16x96xf32> to vector<16x32xf32>
    %291 = vector.extract_strided_slice %288 {offsets = [0, 64], sizes = [16, 32], strides = [1, 1]} : vector<16x96xf32> to vector<16x32xf32>
    %cst_132 = arith.constant 0.000000e+00 : f32
    %292 = vector.broadcast %cst_132 : f32 to vector<16x32xf32>
    %293 = vector.extract_strided_slice %289 {offsets = [0, 0], sizes = [16, 8], strides = [1, 1]} : vector<16x32xf32> to vector<16x8xf32>
    %294 = vector.shape_cast %293 : vector<16x8xf32> to vector<2x8x8xf32>
    %295 = vector.extract_strided_slice %290 {offsets = [0, 0], sizes = [16, 8], strides = [1, 1]} : vector<16x32xf32> to vector<16x8xf32>
    %296 = vector.shape_cast %295 : vector<16x8xf32> to vector<2x8x8xf32>
    %297 = vector.extract_strided_slice %291 {offsets = [0, 0], sizes = [16, 8], strides = [1, 1]} : vector<16x32xf32> to vector<16x8xf32>
    %298 = vector.shape_cast %297 : vector<16x8xf32> to vector<2x8x8xf32>
    "tpu.trace_start"() <{level = 10 : i32, message = "bqd,bkd->bqk"}> : () -> ()
    %cst_133 = arith.constant dense<0.000000e+00> : vector<2x8x8xf32>
    %299 = tpu.matmul %294, %296, %cst_133 {dimension_numbers = #tpu.dot_dimension_numbers<[2], [2], [1], [1], [0, 0, 0, 1, 1, 1], [0], [0]>} : vector<2x8x8xf32>, vector<2x8x8xf32>, vector<2x8x8xf32> -> vector<2x8x8xf32>
    "tpu.trace_stop"() : () -> ()
    %cst_134 = arith.constant 0.353553385 : f32
    %300 = vector.broadcast %cst_134 : f32 to vector<2x8x8xf32>
    %301 = arith.mulf %299, %300 : vector<2x8x8xf32>
    %cst_135 = arith.constant dense<0xFF800000> : vector<2x8xf32>
    %302 = vector.multi_reduction <maximumf>, %301, %cst_135 [2] : vector<2x8x8xf32> to vector<2x8xf32>
    %303 = vector.shape_cast %302 : vector<2x8xf32> to vector<2x8x1xf32>
    %304 = vector.broadcast %303 : vector<2x8x1xf32> to vector<2x8x8xf32>
    %305 = arith.subf %301, %304 : vector<2x8x8xf32>
    %306 = math.exp %305 : vector<2x8x8xf32>
    %cst_136 = arith.constant dense<0.000000e+00> : vector<2x8xf32>
    %307 = vector.multi_reduction <add>, %306, %cst_136 [2] : vector<2x8x8xf32> to vector<2x8xf32>
    %308 = vector.shape_cast %307 : vector<2x8xf32> to vector<2x8x1xf32>
    %309 = tpu.reciprocal %308 {approx = true} : vector<2x8x1xf32> -> vector<2x8x1xf32>
    %310 = vector.broadcast %309 : vector<2x8x1xf32> to vector<2x8x8xf32>
    %311 = arith.mulf %306, %310 : vector<2x8x8xf32>
    "tpu.trace_start"() <{level = 10 : i32, message = "bqk,bkd->bqd"}> : () -> ()
    %cst_137 = arith.constant dense<0.000000e+00> : vector<2x8x8xf32>
    %312 = tpu.matmul %311, %298, %cst_137 {dimension_numbers = #tpu.dot_dimension_numbers<[2], [1], [1], [2], [0, 0, 0, 1, 1, 2], [0], [0]>} : vector<2x8x8xf32>, vector<2x8x8xf32>, vector<2x8x8xf32> -> vector<2x8x8xf32>
    "tpu.trace_stop"() : () -> ()
    %313 = vector.shape_cast %312 : vector<2x8x8xf32> to vector<16x8xf32>
    %c1_138 = arith.constant 1 : index
    %c0_139 = arith.constant 0 : index
    %c0_140 = arith.constant 0 : index
    %c0_141 = arith.constant 0 : index
    %314 = vector.load %arg7[%c1_138, %c0_139, %c0_140, %c0_141] : memref<4x4x8x32xf32, #tpu.memory_space<vmem>>, vector<1x1x8x32xf32>
    %315 = vector.shape_cast %314 : vector<1x1x8x32xf32> to vector<8x32xf32>
    %cst_142 = arith.constant dense<0.000000e+00> : vector<16x32xf32>
    %316 = tpu.matmul %313, %315, %cst_142 {dimension_numbers = #tpu.dot_dimension_numbers<[1], [0], [0], [1], [0, 0, 1, 1], [], []>} : vector<16x8xf32>, vector<8x32xf32>, vector<16x32xf32> -> vector<16x32xf32>
    %317 = arith.addf %292, %316 : vector<16x32xf32>
    %318 = vector.extract_strided_slice %289 {offsets = [0, 8], sizes = [16, 8], strides = [1, 1]} : vector<16x32xf32> to vector<16x8xf32>
    %319 = vector.shape_cast %318 : vector<16x8xf32> to vector<2x8x8xf32>
    %320 = vector.extract_strided_slice %290 {offsets = [0, 8], sizes = [16, 8], strides = [1, 1]} : vector<16x32xf32> to vector<16x8xf32>
    %321 = vector.shape_cast %320 : vector<16x8xf32> to vector<2x8x8xf32>
    %322 = vector.extract_strided_slice %291 {offsets = [0, 8], sizes = [16, 8], strides = [1, 1]} : vector<16x32xf32> to vector<16x8xf32>
    %323 = vector.shape_cast %322 : vector<16x8xf32> to vector<2x8x8xf32>
    "tpu.trace_start"() <{level = 10 : i32, message = "bqd,bkd->bqk"}> : () -> ()
    %cst_143 = arith.constant dense<0.000000e+00> : vector<2x8x8xf32>
    %324 = tpu.matmul %319, %321, %cst_143 {dimension_numbers = #tpu.dot_dimension_numbers<[2], [2], [1], [1], [0, 0, 0, 1, 1, 1], [0], [0]>} : vector<2x8x8xf32>, vector<2x8x8xf32>, vector<2x8x8xf32> -> vector<2x8x8xf32>
    "tpu.trace_stop"() : () -> ()
    %cst_144 = arith.constant 0.353553385 : f32
    %325 = vector.broadcast %cst_144 : f32 to vector<2x8x8xf32>
    %326 = arith.mulf %324, %325 : vector<2x8x8xf32>
    %cst_145 = arith.constant dense<0xFF800000> : vector<2x8xf32>
    %327 = vector.multi_reduction <maximumf>, %326, %cst_145 [2] : vector<2x8x8xf32> to vector<2x8xf32>
    %328 = vector.shape_cast %327 : vector<2x8xf32> to vector<2x8x1xf32>
    %329 = vector.broadcast %328 : vector<2x8x1xf32> to vector<2x8x8xf32>
    %330 = arith.subf %326, %329 : vector<2x8x8xf32>
    %331 = math.exp %330 : vector<2x8x8xf32>
    %cst_146 = arith.constant dense<0.000000e+00> : vector<2x8xf32>
    %332 = vector.multi_reduction <add>, %331, %cst_146 [2] : vector<2x8x8xf32> to vector<2x8xf32>
    %333 = vector.shape_cast %332 : vector<2x8xf32> to vector<2x8x1xf32>
    %334 = tpu.reciprocal %333 {approx = true} : vector<2x8x1xf32> -> vector<2x8x1xf32>
    %335 = vector.broadcast %334 : vector<2x8x1xf32> to vector<2x8x8xf32>
    %336 = arith.mulf %331, %335 : vector<2x8x8xf32>
    "tpu.trace_start"() <{level = 10 : i32, message = "bqk,bkd->bqd"}> : () -> ()
    %cst_147 = arith.constant dense<0.000000e+00> : vector<2x8x8xf32>
    %337 = tpu.matmul %336, %323, %cst_147 {dimension_numbers = #tpu.dot_dimension_numbers<[2], [1], [1], [2], [0, 0, 0, 1, 1, 2], [0], [0]>} : vector<2x8x8xf32>, vector<2x8x8xf32>, vector<2x8x8xf32> -> vector<2x8x8xf32>
    "tpu.trace_stop"() : () -> ()
    %338 = vector.shape_cast %337 : vector<2x8x8xf32> to vector<16x8xf32>
    %c1_148 = arith.constant 1 : index
    %c1_149 = arith.constant 1 : index
    %c0_150 = arith.constant 0 : index
    %c0_151 = arith.constant 0 : index
    %339 = vector.load %arg7[%c1_148, %c1_149, %c0_150, %c0_151] : memref<4x4x8x32xf32, #tpu.memory_space<vmem>>, vector<1x1x8x32xf32>
    %340 = vector.shape_cast %339 : vector<1x1x8x32xf32> to vector<8x32xf32>
    %cst_152 = arith.constant dense<0.000000e+00> : vector<16x32xf32>
    %341 = tpu.matmul %338, %340, %cst_152 {dimension_numbers = #tpu.dot_dimension_numbers<[1], [0], [0], [1], [0, 0, 1, 1], [], []>} : vector<16x8xf32>, vector<8x32xf32>, vector<16x32xf32> -> vector<16x32xf32>
    %342 = arith.addf %317, %341 : vector<16x32xf32>
    %343 = vector.extract_strided_slice %289 {offsets = [0, 16], sizes = [16, 8], strides = [1, 1]} : vector<16x32xf32> to vector<16x8xf32>
    %344 = vector.shape_cast %343 : vector<16x8xf32> to vector<2x8x8xf32>
    %345 = vector.extract_strided_slice %290 {offsets = [0, 16], sizes = [16, 8], strides = [1, 1]} : vector<16x32xf32> to vector<16x8xf32>
    %346 = vector.shape_cast %345 : vector<16x8xf32> to vector<2x8x8xf32>
    %347 = vector.extract_strided_slice %291 {offsets = [0, 16], sizes = [16, 8], strides = [1, 1]} : vector<16x32xf32> to vector<16x8xf32>
    %348 = vector.shape_cast %347 : vector<16x8xf32> to vector<2x8x8xf32>
    "tpu.trace_start"() <{level = 10 : i32, message = "bqd,bkd->bqk"}> : () -> ()
    %cst_153 = arith.constant dense<0.000000e+00> : vector<2x8x8xf32>
    %349 = tpu.matmul %344, %346, %cst_153 {dimension_numbers = #tpu.dot_dimension_numbers<[2], [2], [1], [1], [0, 0, 0, 1, 1, 1], [0], [0]>} : vector<2x8x8xf32>, vector<2x8x8xf32>, vector<2x8x8xf32> -> vector<2x8x8xf32>
    "tpu.trace_stop"() : () -> ()
    %cst_154 = arith.constant 0.353553385 : f32
    %350 = vector.broadcast %cst_154 : f32 to vector<2x8x8xf32>
    %351 = arith.mulf %349, %350 : vector<2x8x8xf32>
    %cst_155 = arith.constant dense<0xFF800000> : vector<2x8xf32>
    %352 = vector.multi_reduction <maximumf>, %351, %cst_155 [2] : vector<2x8x8xf32> to vector<2x8xf32>
    %353 = vector.shape_cast %352 : vector<2x8xf32> to vector<2x8x1xf32>
    %354 = vector.broadcast %353 : vector<2x8x1xf32> to vector<2x8x8xf32>
    %355 = arith.subf %351, %354 : vector<2x8x8xf32>
    %356 = math.exp %355 : vector<2x8x8xf32>
    %cst_156 = arith.constant dense<0.000000e+00> : vector<2x8xf32>
    %357 = vector.multi_reduction <add>, %356, %cst_156 [2] : vector<2x8x8xf32> to vector<2x8xf32>
    %358 = vector.shape_cast %357 : vector<2x8xf32> to vector<2x8x1xf32>
    %359 = tpu.reciprocal %358 {approx = true} : vector<2x8x1xf32> -> vector<2x8x1xf32>
    %360 = vector.broadcast %359 : vector<2x8x1xf32> to vector<2x8x8xf32>
    %361 = arith.mulf %356, %360 : vector<2x8x8xf32>
    "tpu.trace_start"() <{level = 10 : i32, message = "bqk,bkd->bqd"}> : () -> ()
    %cst_157 = arith.constant dense<0.000000e+00> : vector<2x8x8xf32>
    %362 = tpu.matmul %361, %348, %cst_157 {dimension_numbers = #tpu.dot_dimension_numbers<[2], [1], [1], [2], [0, 0, 0, 1, 1, 2], [0], [0]>} : vector<2x8x8xf32>, vector<2x8x8xf32>, vector<2x8x8xf32> -> vector<2x8x8xf32>
    "tpu.trace_stop"() : () -> ()
    %363 = vector.shape_cast %362 : vector<2x8x8xf32> to vector<16x8xf32>
    %c1_158 = arith.constant 1 : index
    %c2_159 = arith.constant 2 : index
    %c0_160 = arith.constant 0 : index
    %c0_161 = arith.constant 0 : index
    %364 = vector.load %arg7[%c1_158, %c2_159, %c0_160, %c0_161] : memref<4x4x8x32xf32, #tpu.memory_space<vmem>>, vector<1x1x8x32xf32>
    %365 = vector.shape_cast %364 : vector<1x1x8x32xf32> to vector<8x32xf32>
    %cst_162 = arith.constant dense<0.000000e+00> : vector<16x32xf32>
    %366 = tpu.matmul %363, %365, %cst_162 {dimension_numbers = #tpu.dot_dimension_numbers<[1], [0], [0], [1], [0, 0, 1, 1], [], []>} : vector<16x8xf32>, vector<8x32xf32>, vector<16x32xf32> -> vector<16x32xf32>
    %367 = arith.addf %342, %366 : vector<16x32xf32>
    %368 = vector.extract_strided_slice %289 {offsets = [0, 24], sizes = [16, 8], strides = [1, 1]} : vector<16x32xf32> to vector<16x8xf32>
    %369 = vector.shape_cast %368 : vector<16x8xf32> to vector<2x8x8xf32>
    %370 = vector.extract_strided_slice %290 {offsets = [0, 24], sizes = [16, 8], strides = [1, 1]} : vector<16x32xf32> to vector<16x8xf32>
    %371 = vector.shape_cast %370 : vector<16x8xf32> to vector<2x8x8xf32>
    %372 = vector.extract_strided_slice %291 {offsets = [0, 24], sizes = [16, 8], strides = [1, 1]} : vector<16x32xf32> to vector<16x8xf32>
    %373 = vector.shape_cast %372 : vector<16x8xf32> to vector<2x8x8xf32>
    "tpu.trace_start"() <{level = 10 : i32, message = "bqd,bkd->bqk"}> : () -> ()
    %cst_163 = arith.constant dense<0.000000e+00> : vector<2x8x8xf32>
    %374 = tpu.matmul %369, %371, %cst_163 {dimension_numbers = #tpu.dot_dimension_numbers<[2], [2], [1], [1], [0, 0, 0, 1, 1, 1], [0], [0]>} : vector<2x8x8xf32>, vector<2x8x8xf32>, vector<2x8x8xf32> -> vector<2x8x8xf32>
    "tpu.trace_stop"() : () -> ()
    %cst_164 = arith.constant 0.353553385 : f32
    %375 = vector.broadcast %cst_164 : f32 to vector<2x8x8xf32>
    %376 = arith.mulf %374, %375 : vector<2x8x8xf32>
    %cst_165 = arith.constant dense<0xFF800000> : vector<2x8xf32>
    %377 = vector.multi_reduction <maximumf>, %376, %cst_165 [2] : vector<2x8x8xf32> to vector<2x8xf32>
    %378 = vector.shape_cast %377 : vector<2x8xf32> to vector<2x8x1xf32>
    %379 = vector.broadcast %378 : vector<2x8x1xf32> to vector<2x8x8xf32>
    %380 = arith.subf %376, %379 : vector<2x8x8xf32>
    %381 = math.exp %380 : vector<2x8x8xf32>
    %cst_166 = arith.constant dense<0.000000e+00> : vector<2x8xf32>
    %382 = vector.multi_reduction <add>, %381, %cst_166 [2] : vector<2x8x8xf32> to vector<2x8xf32>
    %383 = vector.shape_cast %382 : vector<2x8xf32> to vector<2x8x1xf32>
    %384 = tpu.reciprocal %383 {approx = true} : vector<2x8x1xf32> -> vector<2x8x1xf32>
    %385 = vector.broadcast %384 : vector<2x8x1xf32> to vector<2x8x8xf32>
    %386 = arith.mulf %381, %385 : vector<2x8x8xf32>
    "tpu.trace_start"() <{level = 10 : i32, message = "bqk,bkd->bqd"}> : () -> ()
    %cst_167 = arith.constant dense<0.000000e+00> : vector<2x8x8xf32>
    %387 = tpu.matmul %386, %373, %cst_167 {dimension_numbers = #tpu.dot_dimension_numbers<[2], [1], [1], [2], [0, 0, 0, 1, 1, 2], [0], [0]>} : vector<2x8x8xf32>, vector<2x8x8xf32>, vector<2x8x8xf32> -> vector<2x8x8xf32>
    "tpu.trace_stop"() : () -> ()
    %388 = vector.shape_cast %387 : vector<2x8x8xf32> to vector<16x8xf32>
    %c1_168 = arith.constant 1 : index
    %c3_169 = arith.constant 3 : index
    %c0_170 = arith.constant 0 : index
    %c0_171 = arith.constant 0 : index
    %389 = vector.load %arg7[%c1_168, %c3_169, %c0_170, %c0_171] : memref<4x4x8x32xf32, #tpu.memory_space<vmem>>, vector<1x1x8x32xf32>
    %390 = vector.shape_cast %389 : vector<1x1x8x32xf32> to vector<8x32xf32>
    %cst_172 = arith.constant dense<0.000000e+00> : vector<16x32xf32>
    %391 = tpu.matmul %388, %390, %cst_172 {dimension_numbers = #tpu.dot_dimension_numbers<[1], [0], [0], [1], [0, 0, 1, 1], [], []>} : vector<16x8xf32>, vector<8x32xf32>, vector<16x32xf32> -> vector<16x32xf32>
    %392 = arith.addf %367, %391 : vector<16x32xf32>
    %c1_173 = arith.constant 1 : index
    %c0_174 = arith.constant 0 : index
    %c0_175 = arith.constant 0 : index
    %393 = vector.load %arg8[%c1_173, %c0_174, %c0_175] : memref<4x1x32xf32, #tpu.memory_space<vmem>>, vector<1x1x32xf32>
    %394 = vector.shape_cast %393 : vector<1x1x32xf32> to vector<1x32xf32>
    %395 = vector.broadcast %394 : vector<1x32xf32> to vector<16x32xf32>
    %396 = arith.addf %392, %395 : vector<16x32xf32>
    %397 = arith.addf %56, %396 : vector<16x32xf32>
    %c4 = arith.constant 4 : index
    %c0_176 = arith.constant 0 : index
    %c0_177 = arith.constant 0 : index
    %398 = vector.load %arg3[%c4, %c0_176, %c0_177] : memref<11x1x32xf32, #tpu.memory_space<vmem>>, vector<1x1x32xf32>
    %399 = vector.shape_cast %398 : vector<1x1x32xf32> to vector<1x32xf32>
    %c4_178 = arith.constant 4 : index
    %c0_179 = arith.constant 0 : index
    %c0_180 = arith.constant 0 : index
    %400 = vector.load %arg4[%c4_178, %c0_179, %c0_180] : memref<11x1x32xf32, #tpu.memory_space<vmem>>, vector<1x1x32xf32>
    %401 = vector.shape_cast %400 : vector<1x1x32xf32> to vector<1x32xf32>
    %cst_181 = arith.constant dense<0.000000e+00> : vector<16xf32>
    %402 = vector.multi_reduction <add>, %397, %cst_181 [1] : vector<16x32xf32> to vector<16xf32>
    %403 = vector.shape_cast %402 : vector<16xf32> to vector<16x1xf32>
    %cst_182 = arith.constant 3.200000e+01 : f32
    %404 = vector.broadcast %cst_182 : f32 to vector<16x1xf32>
    %405 = arith.divf %403, %404 : vector<16x1xf32>
    %406 = vector.broadcast %405 : vector<16x1xf32> to vector<16x32xf32>
    %407 = arith.subf %397, %406 : vector<16x32xf32>
    %408 = arith.mulf %407, %407 : vector<16x32xf32>
    %cst_183 = arith.constant dense<0.000000e+00> : vector<16xf32>
    %409 = vector.multi_reduction <add>, %408, %cst_183 [1] : vector<16x32xf32> to vector<16xf32>
    %410 = vector.shape_cast %409 : vector<16xf32> to vector<16x1xf32>
    %cst_184 = arith.constant 3.200000e+01 : f32
    %411 = vector.broadcast %cst_184 : f32 to vector<16x1xf32>
    %412 = arith.divf %410, %411 : vector<16x1xf32>
    %413 = vector.broadcast %405 : vector<16x1xf32> to vector<16x32xf32>
    %414 = arith.subf %397, %413 : vector<16x32xf32>
    %cst_185 = arith.constant 9.99999997E-7 : f32
    %415 = vector.broadcast %cst_185 : f32 to vector<16x1xf32>
    %416 = arith.addf %412, %415 : vector<16x1xf32>
    %417 = math.rsqrt %416 : vector<16x1xf32>
    %418 = vector.broadcast %417 : vector<16x1xf32> to vector<16x32xf32>
    %419 = arith.mulf %414, %418 : vector<16x32xf32>
    %420 = vector.broadcast %399 : vector<1x32xf32> to vector<16x32xf32>
    %421 = arith.mulf %419, %420 : vector<16x32xf32>
    %422 = vector.broadcast %401 : vector<1x32xf32> to vector<16x32xf32>
    %423 = arith.addf %421, %422 : vector<16x32xf32>
    %c1_186 = arith.constant 1 : index
    %c0_187 = arith.constant 0 : index
    %c0_188 = arith.constant 0 : index
    %424 = vector.load %arg9[%c1_186, %c0_187, %c0_188] : memref<4x32x32xf32, #tpu.memory_space<vmem>>, vector<1x32x32xf32>
    %425 = vector.shape_cast %424 : vector<1x32x32xf32> to vector<32x32xf32>
    %cst_189 = arith.constant dense<0.000000e+00> : vector<16x32xf32>
    %426 = tpu.matmul %423, %425, %cst_189 {dimension_numbers = #tpu.dot_dimension_numbers<[1], [0], [0], [1], [0, 0, 1, 1], [], []>} : vector<16x32xf32>, vector<32x32xf32>, vector<16x32xf32> -> vector<16x32xf32>
    %c1_190 = arith.constant 1 : index
    %c0_191 = arith.constant 0 : index
    %c0_192 = arith.constant 0 : index
    %427 = vector.load %arg10[%c1_190, %c0_191, %c0_192] : memref<4x1x32xf32, #tpu.memory_space<vmem>>, vector<1x1x32xf32>
    %428 = vector.shape_cast %427 : vector<1x1x32xf32> to vector<1x32xf32>
    %429 = vector.broadcast %428 : vector<1x32xf32> to vector<16x32xf32>
    %430 = arith.addf %426, %429 : vector<16x32xf32>
    %cst_193 = arith.constant 0.000000e+00 : f32
    %431 = vector.broadcast %cst_193 : f32 to vector<16x32xf32>
    %432 = arith.maximumf %430, %431 : vector<16x32xf32>
    %c1_194 = arith.constant 1 : index
    %c0_195 = arith.constant 0 : index
    %c0_196 = arith.constant 0 : index
    %433 = vector.load %arg11[%c1_194, %c0_195, %c0_196] : memref<4x32x32xf32, #tpu.memory_space<vmem>>, vector<1x32x32xf32>
    %434 = vector.shape_cast %433 : vector<1x32x32xf32> to vector<32x32xf32>
    %cst_197 = arith.constant dense<0.000000e+00> : vector<16x32xf32>
    %435 = tpu.matmul %432, %434, %cst_197 {dimension_numbers = #tpu.dot_dimension_numbers<[1], [0], [0], [1], [0, 0, 1, 1], [], []>} : vector<16x32xf32>, vector<32x32xf32>, vector<16x32xf32> -> vector<16x32xf32>
    %c1_198 = arith.constant 1 : index
    %c0_199 = arith.constant 0 : index
    %c0_200 = arith.constant 0 : index
    %436 = vector.load %arg12[%c1_198, %c0_199, %c0_200] : memref<4x1x32xf32, #tpu.memory_space<vmem>>, vector<1x1x32xf32>
    %437 = vector.shape_cast %436 : vector<1x1x32xf32> to vector<1x32xf32>
    %438 = vector.broadcast %437 : vector<1x32xf32> to vector<16x32xf32>
    %439 = arith.addf %435, %438 : vector<16x32xf32>
    %cst_201 = arith.constant 0.000000e+00 : f32
    %440 = vector.broadcast %cst_201 : f32 to vector<16x32xf32>
    %441 = arith.maximumf %439, %440 : vector<16x32xf32>
    %442 = arith.addf %397, %441 : vector<16x32xf32>
    %c5 = arith.constant 5 : index
    %c0_202 = arith.constant 0 : index
    %c0_203 = arith.constant 0 : index
    %443 = vector.load %arg3[%c5, %c0_202, %c0_203] : memref<11x1x32xf32, #tpu.memory_space<vmem>>, vector<1x1x32xf32>
    %444 = vector.shape_cast %443 : vector<1x1x32xf32> to vector<1x32xf32>
    %c5_204 = arith.constant 5 : index
    %c0_205 = arith.constant 0 : index
    %c0_206 = arith.constant 0 : index
    %445 = vector.load %arg4[%c5_204, %c0_205, %c0_206] : memref<11x1x32xf32, #tpu.memory_space<vmem>>, vector<1x1x32xf32>
    %446 = vector.shape_cast %445 : vector<1x1x32xf32> to vector<1x32xf32>
    %cst_207 = arith.constant dense<0.000000e+00> : vector<16xf32>
    %447 = vector.multi_reduction <add>, %442, %cst_207 [1] : vector<16x32xf32> to vector<16xf32>
    %448 = vector.shape_cast %447 : vector<16xf32> to vector<16x1xf32>
    %cst_208 = arith.constant 3.200000e+01 : f32
    %449 = vector.broadcast %cst_208 : f32 to vector<16x1xf32>
    %450 = arith.divf %448, %449 : vector<16x1xf32>
    %451 = vector.broadcast %450 : vector<16x1xf32> to vector<16x32xf32>
    %452 = arith.subf %442, %451 : vector<16x32xf32>
    %453 = arith.mulf %452, %452 : vector<16x32xf32>
    %cst_209 = arith.constant dense<0.000000e+00> : vector<16xf32>
    %454 = vector.multi_reduction <add>, %453, %cst_209 [1] : vector<16x32xf32> to vector<16xf32>
    %455 = vector.shape_cast %454 : vector<16xf32> to vector<16x1xf32>
    %cst_210 = arith.constant 3.200000e+01 : f32
    %456 = vector.broadcast %cst_210 : f32 to vector<16x1xf32>
    %457 = arith.divf %455, %456 : vector<16x1xf32>
    %458 = vector.broadcast %450 : vector<16x1xf32> to vector<16x32xf32>
    %459 = arith.subf %442, %458 : vector<16x32xf32>
    %cst_211 = arith.constant 9.99999974E-6 : f32
    %460 = vector.broadcast %cst_211 : f32 to vector<16x1xf32>
    %461 = arith.addf %457, %460 : vector<16x1xf32>
    %462 = math.rsqrt %461 : vector<16x1xf32>
    %463 = vector.broadcast %462 : vector<16x1xf32> to vector<16x32xf32>
    %464 = arith.mulf %459, %463 : vector<16x32xf32>
    %465 = vector.broadcast %444 : vector<1x32xf32> to vector<16x32xf32>
    %466 = arith.mulf %464, %465 : vector<16x32xf32>
    %467 = vector.broadcast %446 : vector<1x32xf32> to vector<16x32xf32>
    %468 = arith.addf %466, %467 : vector<16x32xf32>
    %c6 = arith.constant 6 : index
    %c0_212 = arith.constant 0 : index
    %c0_213 = arith.constant 0 : index
    %469 = vector.load %arg3[%c6, %c0_212, %c0_213] : memref<11x1x32xf32, #tpu.memory_space<vmem>>, vector<1x1x32xf32>
    %470 = vector.shape_cast %469 : vector<1x1x32xf32> to vector<1x32xf32>
    %c6_214 = arith.constant 6 : index
    %c0_215 = arith.constant 0 : index
    %c0_216 = arith.constant 0 : index
    %471 = vector.load %arg4[%c6_214, %c0_215, %c0_216] : memref<11x1x32xf32, #tpu.memory_space<vmem>>, vector<1x1x32xf32>
    %472 = vector.shape_cast %471 : vector<1x1x32xf32> to vector<1x32xf32>
    %cst_217 = arith.constant dense<0.000000e+00> : vector<16xf32>
    %473 = vector.multi_reduction <add>, %255, %cst_217 [1] : vector<16x32xf32> to vector<16xf32>
    %474 = vector.shape_cast %473 : vector<16xf32> to vector<16x1xf32>
    %cst_218 = arith.constant 3.200000e+01 : f32
    %475 = vector.broadcast %cst_218 : f32 to vector<16x1xf32>
    %476 = arith.divf %474, %475 : vector<16x1xf32>
    %477 = vector.broadcast %476 : vector<16x1xf32> to vector<16x32xf32>
    %478 = arith.subf %255, %477 : vector<16x32xf32>
    %479 = arith.mulf %478, %478 : vector<16x32xf32>
    %cst_219 = arith.constant dense<0.000000e+00> : vector<16xf32>
    %480 = vector.multi_reduction <add>, %479, %cst_219 [1] : vector<16x32xf32> to vector<16xf32>
    %481 = vector.shape_cast %480 : vector<16xf32> to vector<16x1xf32>
    %cst_220 = arith.constant 3.200000e+01 : f32
    %482 = vector.broadcast %cst_220 : f32 to vector<16x1xf32>
    %483 = arith.divf %481, %482 : vector<16x1xf32>
    %484 = vector.broadcast %476 : vector<16x1xf32> to vector<16x32xf32>
    %485 = arith.subf %255, %484 : vector<16x32xf32>
    %cst_221 = arith.constant 9.99999974E-6 : f32
    %486 = vector.broadcast %cst_221 : f32 to vector<16x1xf32>
    %487 = arith.addf %483, %486 : vector<16x1xf32>
    %488 = math.rsqrt %487 : vector<16x1xf32>
    %489 = vector.broadcast %488 : vector<16x1xf32> to vector<16x32xf32>
    %490 = arith.mulf %485, %489 : vector<16x32xf32>
    %491 = vector.broadcast %470 : vector<1x32xf32> to vector<16x32xf32>
    %492 = arith.mulf %490, %491 : vector<16x32xf32>
    %493 = vector.broadcast %472 : vector<1x32xf32> to vector<16x32xf32>
    %494 = arith.addf %492, %493 : vector<16x32xf32>
    %c2_222 = arith.constant 2 : index
    %c0_223 = arith.constant 0 : index
    %c0_224 = arith.constant 0 : index
    %495 = vector.load %arg5[%c2_222, %c0_223, %c0_224] : memref<4x32x96xf32, #tpu.memory_space<vmem>>, vector<1x32x96xf32>
    %496 = vector.shape_cast %495 : vector<1x32x96xf32> to vector<32x96xf32>
    %c2_225 = arith.constant 2 : index
    %c0_226 = arith.constant 0 : index
    %c0_227 = arith.constant 0 : index
    %497 = vector.load %arg6[%c2_225, %c0_226, %c0_227] : memref<4x1x96xf32, #tpu.memory_space<vmem>>, vector<1x1x96xf32>
    %498 = vector.shape_cast %497 : vector<1x1x96xf32> to vector<1x96xf32>
    %499 = vector.extract_strided_slice %496 {offsets = [0, 0], sizes = [32, 32], strides = [1, 1]} : vector<32x96xf32> to vector<32x32xf32>
    %cst_228 = arith.constant dense<0.000000e+00> : vector<16x32xf32>
    %500 = tpu.matmul %494, %499, %cst_228 {dimension_numbers = #tpu.dot_dimension_numbers<[1], [0], [0], [1], [0, 0, 1, 1], [], []>} : vector<16x32xf32>, vector<32x32xf32>, vector<16x32xf32> -> vector<16x32xf32>
    %501 = vector.extract_strided_slice %498 {offsets = [0, 0], sizes = [1, 32], strides = [1, 1]} : vector<1x96xf32> to vector<1x32xf32>
    %502 = vector.broadcast %501 : vector<1x32xf32> to vector<16x32xf32>
    %503 = arith.addf %500, %502 : vector<16x32xf32>
    %504 = vector.extract_strided_slice %496 {offsets = [0, 32], sizes = [32, 64], strides = [1, 1]} : vector<32x96xf32> to vector<32x64xf32>
    %cst_229 = arith.constant dense<0.000000e+00> : vector<16x64xf32>
    %505 = tpu.matmul %468, %504, %cst_229 {dimension_numbers = #tpu.dot_dimension_numbers<[1], [0], [0], [1], [0, 0, 1, 1], [], []>} : vector<16x32xf32>, vector<32x64xf32>, vector<16x64xf32> -> vector<16x64xf32>
    %506 = vector.extract_strided_slice %498 {offsets = [0, 32], sizes = [1, 64], strides = [1, 1]} : vector<1x96xf32> to vector<1x64xf32>
    %507 = vector.broadcast %506 : vector<1x64xf32> to vector<16x64xf32>
    %508 = arith.addf %505, %507 : vector<16x64xf32>
    %509 = vector.extract_strided_slice %508 {offsets = [0, 0], sizes = [16, 32], strides = [1, 1]} : vector<16x64xf32> to vector<16x32xf32>
    %510 = vector.extract_strided_slice %508 {offsets = [0, 32], sizes = [16, 32], strides = [1, 1]} : vector<16x64xf32> to vector<16x32xf32>
    %cst_230 = arith.constant 0.000000e+00 : f32
    %511 = vector.broadcast %cst_230 : f32 to vector<16x32xf32>
    %512 = vector.extract_strided_slice %503 {offsets = [0, 0], sizes = [16, 8], strides = [1, 1]} : vector<16x32xf32> to vector<16x8xf32>
    %513 = vector.shape_cast %512 : vector<16x8xf32> to vector<2x8x8xf32>
    %514 = vector.extract_strided_slice %509 {offsets = [0, 0], sizes = [16, 8], strides = [1, 1]} : vector<16x32xf32> to vector<16x8xf32>
    %515 = vector.shape_cast %514 : vector<16x8xf32> to vector<2x8x8xf32>
    %516 = vector.extract_strided_slice %510 {offsets = [0, 0], sizes = [16, 8], strides = [1, 1]} : vector<16x32xf32> to vector<16x8xf32>
    %517 = vector.shape_cast %516 : vector<16x8xf32> to vector<2x8x8xf32>
    "tpu.trace_start"() <{level = 10 : i32, message = "bqd,bkd->bqk"}> : () -> ()
    %cst_231 = arith.constant dense<0.000000e+00> : vector<2x8x8xf32>
    %518 = tpu.matmul %513, %515, %cst_231 {dimension_numbers = #tpu.dot_dimension_numbers<[2], [2], [1], [1], [0, 0, 0, 1, 1, 1], [0], [0]>} : vector<2x8x8xf32>, vector<2x8x8xf32>, vector<2x8x8xf32> -> vector<2x8x8xf32>
    "tpu.trace_stop"() : () -> ()
    %cst_232 = arith.constant 0.353553385 : f32
    %519 = vector.broadcast %cst_232 : f32 to vector<2x8x8xf32>
    %520 = arith.mulf %518, %519 : vector<2x8x8xf32>
    %cst_233 = arith.constant dense<0xFF800000> : vector<2x8xf32>
    %521 = vector.multi_reduction <maximumf>, %520, %cst_233 [2] : vector<2x8x8xf32> to vector<2x8xf32>
    %522 = vector.shape_cast %521 : vector<2x8xf32> to vector<2x8x1xf32>
    %523 = vector.broadcast %522 : vector<2x8x1xf32> to vector<2x8x8xf32>
    %524 = arith.subf %520, %523 : vector<2x8x8xf32>
    %525 = math.exp %524 : vector<2x8x8xf32>
    %cst_234 = arith.constant dense<0.000000e+00> : vector<2x8xf32>
    %526 = vector.multi_reduction <add>, %525, %cst_234 [2] : vector<2x8x8xf32> to vector<2x8xf32>
    %527 = vector.shape_cast %526 : vector<2x8xf32> to vector<2x8x1xf32>
    %528 = tpu.reciprocal %527 {approx = true} : vector<2x8x1xf32> -> vector<2x8x1xf32>
    %529 = vector.broadcast %528 : vector<2x8x1xf32> to vector<2x8x8xf32>
    %530 = arith.mulf %525, %529 : vector<2x8x8xf32>
    "tpu.trace_start"() <{level = 10 : i32, message = "bqk,bkd->bqd"}> : () -> ()
    %cst_235 = arith.constant dense<0.000000e+00> : vector<2x8x8xf32>
    %531 = tpu.matmul %530, %517, %cst_235 {dimension_numbers = #tpu.dot_dimension_numbers<[2], [1], [1], [2], [0, 0, 0, 1, 1, 2], [0], [0]>} : vector<2x8x8xf32>, vector<2x8x8xf32>, vector<2x8x8xf32> -> vector<2x8x8xf32>
    "tpu.trace_stop"() : () -> ()
    %532 = vector.shape_cast %531 : vector<2x8x8xf32> to vector<16x8xf32>
    %c2_236 = arith.constant 2 : index
    %c0_237 = arith.constant 0 : index
    %c0_238 = arith.constant 0 : index
    %c0_239 = arith.constant 0 : index
    %533 = vector.load %arg7[%c2_236, %c0_237, %c0_238, %c0_239] : memref<4x4x8x32xf32, #tpu.memory_space<vmem>>, vector<1x1x8x32xf32>
    %534 = vector.shape_cast %533 : vector<1x1x8x32xf32> to vector<8x32xf32>
    %cst_240 = arith.constant dense<0.000000e+00> : vector<16x32xf32>
    %535 = tpu.matmul %532, %534, %cst_240 {dimension_numbers = #tpu.dot_dimension_numbers<[1], [0], [0], [1], [0, 0, 1, 1], [], []>} : vector<16x8xf32>, vector<8x32xf32>, vector<16x32xf32> -> vector<16x32xf32>
    %536 = arith.addf %511, %535 : vector<16x32xf32>
    %537 = vector.extract_strided_slice %503 {offsets = [0, 8], sizes = [16, 8], strides = [1, 1]} : vector<16x32xf32> to vector<16x8xf32>
    %538 = vector.shape_cast %537 : vector<16x8xf32> to vector<2x8x8xf32>
    %539 = vector.extract_strided_slice %509 {offsets = [0, 8], sizes = [16, 8], strides = [1, 1]} : vector<16x32xf32> to vector<16x8xf32>
    %540 = vector.shape_cast %539 : vector<16x8xf32> to vector<2x8x8xf32>
    %541 = vector.extract_strided_slice %510 {offsets = [0, 8], sizes = [16, 8], strides = [1, 1]} : vector<16x32xf32> to vector<16x8xf32>
    %542 = vector.shape_cast %541 : vector<16x8xf32> to vector<2x8x8xf32>
    "tpu.trace_start"() <{level = 10 : i32, message = "bqd,bkd->bqk"}> : () -> ()
    %cst_241 = arith.constant dense<0.000000e+00> : vector<2x8x8xf32>
    %543 = tpu.matmul %538, %540, %cst_241 {dimension_numbers = #tpu.dot_dimension_numbers<[2], [2], [1], [1], [0, 0, 0, 1, 1, 1], [0], [0]>} : vector<2x8x8xf32>, vector<2x8x8xf32>, vector<2x8x8xf32> -> vector<2x8x8xf32>
    "tpu.trace_stop"() : () -> ()
    %cst_242 = arith.constant 0.353553385 : f32
    %544 = vector.broadcast %cst_242 : f32 to vector<2x8x8xf32>
    %545 = arith.mulf %543, %544 : vector<2x8x8xf32>
    %cst_243 = arith.constant dense<0xFF800000> : vector<2x8xf32>
    %546 = vector.multi_reduction <maximumf>, %545, %cst_243 [2] : vector<2x8x8xf32> to vector<2x8xf32>
    %547 = vector.shape_cast %546 : vector<2x8xf32> to vector<2x8x1xf32>
    %548 = vector.broadcast %547 : vector<2x8x1xf32> to vector<2x8x8xf32>
    %549 = arith.subf %545, %548 : vector<2x8x8xf32>
    %550 = math.exp %549 : vector<2x8x8xf32>
    %cst_244 = arith.constant dense<0.000000e+00> : vector<2x8xf32>
    %551 = vector.multi_reduction <add>, %550, %cst_244 [2] : vector<2x8x8xf32> to vector<2x8xf32>
    %552 = vector.shape_cast %551 : vector<2x8xf32> to vector<2x8x1xf32>
    %553 = tpu.reciprocal %552 {approx = true} : vector<2x8x1xf32> -> vector<2x8x1xf32>
    %554 = vector.broadcast %553 : vector<2x8x1xf32> to vector<2x8x8xf32>
    %555 = arith.mulf %550, %554 : vector<2x8x8xf32>
    "tpu.trace_start"() <{level = 10 : i32, message = "bqk,bkd->bqd"}> : () -> ()
    %cst_245 = arith.constant dense<0.000000e+00> : vector<2x8x8xf32>
    %556 = tpu.matmul %555, %542, %cst_245 {dimension_numbers = #tpu.dot_dimension_numbers<[2], [1], [1], [2], [0, 0, 0, 1, 1, 2], [0], [0]>} : vector<2x8x8xf32>, vector<2x8x8xf32>, vector<2x8x8xf32> -> vector<2x8x8xf32>
    "tpu.trace_stop"() : () -> ()
    %557 = vector.shape_cast %556 : vector<2x8x8xf32> to vector<16x8xf32>
    %c2_246 = arith.constant 2 : index
    %c1_247 = arith.constant 1 : index
    %c0_248 = arith.constant 0 : index
    %c0_249 = arith.constant 0 : index
    %558 = vector.load %arg7[%c2_246, %c1_247, %c0_248, %c0_249] : memref<4x4x8x32xf32, #tpu.memory_space<vmem>>, vector<1x1x8x32xf32>
    %559 = vector.shape_cast %558 : vector<1x1x8x32xf32> to vector<8x32xf32>
    %cst_250 = arith.constant dense<0.000000e+00> : vector<16x32xf32>
    %560 = tpu.matmul %557, %559, %cst_250 {dimension_numbers = #tpu.dot_dimension_numbers<[1], [0], [0], [1], [0, 0, 1, 1], [], []>} : vector<16x8xf32>, vector<8x32xf32>, vector<16x32xf32> -> vector<16x32xf32>
    %561 = arith.addf %536, %560 : vector<16x32xf32>
    %562 = vector.extract_strided_slice %503 {offsets = [0, 16], sizes = [16, 8], strides = [1, 1]} : vector<16x32xf32> to vector<16x8xf32>
    %563 = vector.shape_cast %562 : vector<16x8xf32> to vector<2x8x8xf32>
    %564 = vector.extract_strided_slice %509 {offsets = [0, 16], sizes = [16, 8], strides = [1, 1]} : vector<16x32xf32> to vector<16x8xf32>
    %565 = vector.shape_cast %564 : vector<16x8xf32> to vector<2x8x8xf32>
    %566 = vector.extract_strided_slice %510 {offsets = [0, 16], sizes = [16, 8], strides = [1, 1]} : vector<16x32xf32> to vector<16x8xf32>
    %567 = vector.shape_cast %566 : vector<16x8xf32> to vector<2x8x8xf32>
    "tpu.trace_start"() <{level = 10 : i32, message = "bqd,bkd->bqk"}> : () -> ()
    %cst_251 = arith.constant dense<0.000000e+00> : vector<2x8x8xf32>
    %568 = tpu.matmul %563, %565, %cst_251 {dimension_numbers = #tpu.dot_dimension_numbers<[2], [2], [1], [1], [0, 0, 0, 1, 1, 1], [0], [0]>} : vector<2x8x8xf32>, vector<2x8x8xf32>, vector<2x8x8xf32> -> vector<2x8x8xf32>
    "tpu.trace_stop"() : () -> ()
    %cst_252 = arith.constant 0.353553385 : f32
    %569 = vector.broadcast %cst_252 : f32 to vector<2x8x8xf32>
    %570 = arith.mulf %568, %569 : vector<2x8x8xf32>
    %cst_253 = arith.constant dense<0xFF800000> : vector<2x8xf32>
    %571 = vector.multi_reduction <maximumf>, %570, %cst_253 [2] : vector<2x8x8xf32> to vector<2x8xf32>
    %572 = vector.shape_cast %571 : vector<2x8xf32> to vector<2x8x1xf32>
    %573 = vector.broadcast %572 : vector<2x8x1xf32> to vector<2x8x8xf32>
    %574 = arith.subf %570, %573 : vector<2x8x8xf32>
    %575 = math.exp %574 : vector<2x8x8xf32>
    %cst_254 = arith.constant dense<0.000000e+00> : vector<2x8xf32>
    %576 = vector.multi_reduction <add>, %575, %cst_254 [2] : vector<2x8x8xf32> to vector<2x8xf32>
    %577 = vector.shape_cast %576 : vector<2x8xf32> to vector<2x8x1xf32>
    %578 = tpu.reciprocal %577 {approx = true} : vector<2x8x1xf32> -> vector<2x8x1xf32>
    %579 = vector.broadcast %578 : vector<2x8x1xf32> to vector<2x8x8xf32>
    %580 = arith.mulf %575, %579 : vector<2x8x8xf32>
    "tpu.trace_start"() <{level = 10 : i32, message = "bqk,bkd->bqd"}> : () -> ()
    %cst_255 = arith.constant dense<0.000000e+00> : vector<2x8x8xf32>
    %581 = tpu.matmul %580, %567, %cst_255 {dimension_numbers = #tpu.dot_dimension_numbers<[2], [1], [1], [2], [0, 0, 0, 1, 1, 2], [0], [0]>} : vector<2x8x8xf32>, vector<2x8x8xf32>, vector<2x8x8xf32> -> vector<2x8x8xf32>
    "tpu.trace_stop"() : () -> ()
    %582 = vector.shape_cast %581 : vector<2x8x8xf32> to vector<16x8xf32>
    %c2_256 = arith.constant 2 : index
    %c2_257 = arith.constant 2 : index
    %c0_258 = arith.constant 0 : index
    %c0_259 = arith.constant 0 : index
    %583 = vector.load %arg7[%c2_256, %c2_257, %c0_258, %c0_259] : memref<4x4x8x32xf32, #tpu.memory_space<vmem>>, vector<1x1x8x32xf32>
    %584 = vector.shape_cast %583 : vector<1x1x8x32xf32> to vector<8x32xf32>
    %cst_260 = arith.constant dense<0.000000e+00> : vector<16x32xf32>
    %585 = tpu.matmul %582, %584, %cst_260 {dimension_numbers = #tpu.dot_dimension_numbers<[1], [0], [0], [1], [0, 0, 1, 1], [], []>} : vector<16x8xf32>, vector<8x32xf32>, vector<16x32xf32> -> vector<16x32xf32>
    %586 = arith.addf %561, %585 : vector<16x32xf32>
    %587 = vector.extract_strided_slice %503 {offsets = [0, 24], sizes = [16, 8], strides = [1, 1]} : vector<16x32xf32> to vector<16x8xf32>
    %588 = vector.shape_cast %587 : vector<16x8xf32> to vector<2x8x8xf32>
    %589 = vector.extract_strided_slice %509 {offsets = [0, 24], sizes = [16, 8], strides = [1, 1]} : vector<16x32xf32> to vector<16x8xf32>
    %590 = vector.shape_cast %589 : vector<16x8xf32> to vector<2x8x8xf32>
    %591 = vector.extract_strided_slice %510 {offsets = [0, 24], sizes = [16, 8], strides = [1, 1]} : vector<16x32xf32> to vector<16x8xf32>
    %592 = vector.shape_cast %591 : vector<16x8xf32> to vector<2x8x8xf32>
    "tpu.trace_start"() <{level = 10 : i32, message = "bqd,bkd->bqk"}> : () -> ()
    %cst_261 = arith.constant dense<0.000000e+00> : vector<2x8x8xf32>
    %593 = tpu.matmul %588, %590, %cst_261 {dimension_numbers = #tpu.dot_dimension_numbers<[2], [2], [1], [1], [0, 0, 0, 1, 1, 1], [0], [0]>} : vector<2x8x8xf32>, vector<2x8x8xf32>, vector<2x8x8xf32> -> vector<2x8x8xf32>
    "tpu.trace_stop"() : () -> ()
    %cst_262 = arith.constant 0.353553385 : f32
    %594 = vector.broadcast %cst_262 : f32 to vector<2x8x8xf32>
    %595 = arith.mulf %593, %594 : vector<2x8x8xf32>
    %cst_263 = arith.constant dense<0xFF800000> : vector<2x8xf32>
    %596 = vector.multi_reduction <maximumf>, %595, %cst_263 [2] : vector<2x8x8xf32> to vector<2x8xf32>
    %597 = vector.shape_cast %596 : vector<2x8xf32> to vector<2x8x1xf32>
    %598 = vector.broadcast %597 : vector<2x8x1xf32> to vector<2x8x8xf32>
    %599 = arith.subf %595, %598 : vector<2x8x8xf32>
    %600 = math.exp %599 : vector<2x8x8xf32>
    %cst_264 = arith.constant dense<0.000000e+00> : vector<2x8xf32>
    %601 = vector.multi_reduction <add>, %600, %cst_264 [2] : vector<2x8x8xf32> to vector<2x8xf32>
    %602 = vector.shape_cast %601 : vector<2x8xf32> to vector<2x8x1xf32>
    %603 = tpu.reciprocal %602 {approx = true} : vector<2x8x1xf32> -> vector<2x8x1xf32>
    %604 = vector.broadcast %603 : vector<2x8x1xf32> to vector<2x8x8xf32>
    %605 = arith.mulf %600, %604 : vector<2x8x8xf32>
    "tpu.trace_start"() <{level = 10 : i32, message = "bqk,bkd->bqd"}> : () -> ()
    %cst_265 = arith.constant dense<0.000000e+00> : vector<2x8x8xf32>
    %606 = tpu.matmul %605, %592, %cst_265 {dimension_numbers = #tpu.dot_dimension_numbers<[2], [1], [1], [2], [0, 0, 0, 1, 1, 2], [0], [0]>} : vector<2x8x8xf32>, vector<2x8x8xf32>, vector<2x8x8xf32> -> vector<2x8x8xf32>
    "tpu.trace_stop"() : () -> ()
    %607 = vector.shape_cast %606 : vector<2x8x8xf32> to vector<16x8xf32>
    %c2_266 = arith.constant 2 : index
    %c3_267 = arith.constant 3 : index
    %c0_268 = arith.constant 0 : index
    %c0_269 = arith.constant 0 : index
    %608 = vector.load %arg7[%c2_266, %c3_267, %c0_268, %c0_269] : memref<4x4x8x32xf32, #tpu.memory_space<vmem>>, vector<1x1x8x32xf32>
    %609 = vector.shape_cast %608 : vector<1x1x8x32xf32> to vector<8x32xf32>
    %cst_270 = arith.constant dense<0.000000e+00> : vector<16x32xf32>
    %610 = tpu.matmul %607, %609, %cst_270 {dimension_numbers = #tpu.dot_dimension_numbers<[1], [0], [0], [1], [0, 0, 1, 1], [], []>} : vector<16x8xf32>, vector<8x32xf32>, vector<16x32xf32> -> vector<16x32xf32>
    %611 = arith.addf %586, %610 : vector<16x32xf32>
    %c2_271 = arith.constant 2 : index
    %c0_272 = arith.constant 0 : index
    %c0_273 = arith.constant 0 : index
    %612 = vector.load %arg8[%c2_271, %c0_272, %c0_273] : memref<4x1x32xf32, #tpu.memory_space<vmem>>, vector<1x1x32xf32>
    %613 = vector.shape_cast %612 : vector<1x1x32xf32> to vector<1x32xf32>
    %614 = vector.broadcast %613 : vector<1x32xf32> to vector<16x32xf32>
    %615 = arith.addf %611, %614 : vector<16x32xf32>
    %616 = arith.addf %255, %615 : vector<16x32xf32>
    %c7 = arith.constant 7 : index
    %c0_274 = arith.constant 0 : index
    %c0_275 = arith.constant 0 : index
    %617 = vector.load %arg3[%c7, %c0_274, %c0_275] : memref<11x1x32xf32, #tpu.memory_space<vmem>>, vector<1x1x32xf32>
    %618 = vector.shape_cast %617 : vector<1x1x32xf32> to vector<1x32xf32>
    %c7_276 = arith.constant 7 : index
    %c0_277 = arith.constant 0 : index
    %c0_278 = arith.constant 0 : index
    %619 = vector.load %arg4[%c7_276, %c0_277, %c0_278] : memref<11x1x32xf32, #tpu.memory_space<vmem>>, vector<1x1x32xf32>
    %620 = vector.shape_cast %619 : vector<1x1x32xf32> to vector<1x32xf32>
    %cst_279 = arith.constant dense<0.000000e+00> : vector<16xf32>
    %621 = vector.multi_reduction <add>, %616, %cst_279 [1] : vector<16x32xf32> to vector<16xf32>
    %622 = vector.shape_cast %621 : vector<16xf32> to vector<16x1xf32>
    %cst_280 = arith.constant 3.200000e+01 : f32
    %623 = vector.broadcast %cst_280 : f32 to vector<16x1xf32>
    %624 = arith.divf %622, %623 : vector<16x1xf32>
    %625 = vector.broadcast %624 : vector<16x1xf32> to vector<16x32xf32>
    %626 = arith.subf %616, %625 : vector<16x32xf32>
    %627 = arith.mulf %626, %626 : vector<16x32xf32>
    %cst_281 = arith.constant dense<0.000000e+00> : vector<16xf32>
    %628 = vector.multi_reduction <add>, %627, %cst_281 [1] : vector<16x32xf32> to vector<16xf32>
    %629 = vector.shape_cast %628 : vector<16xf32> to vector<16x1xf32>
    %cst_282 = arith.constant 3.200000e+01 : f32
    %630 = vector.broadcast %cst_282 : f32 to vector<16x1xf32>
    %631 = arith.divf %629, %630 : vector<16x1xf32>
    %632 = vector.broadcast %624 : vector<16x1xf32> to vector<16x32xf32>
    %633 = arith.subf %616, %632 : vector<16x32xf32>
    %cst_283 = arith.constant 9.99999997E-7 : f32
    %634 = vector.broadcast %cst_283 : f32 to vector<16x1xf32>
    %635 = arith.addf %631, %634 : vector<16x1xf32>
    %636 = math.rsqrt %635 : vector<16x1xf32>
    %637 = vector.broadcast %636 : vector<16x1xf32> to vector<16x32xf32>
    %638 = arith.mulf %633, %637 : vector<16x32xf32>
    %639 = vector.broadcast %618 : vector<1x32xf32> to vector<16x32xf32>
    %640 = arith.mulf %638, %639 : vector<16x32xf32>
    %641 = vector.broadcast %620 : vector<1x32xf32> to vector<16x32xf32>
    %642 = arith.addf %640, %641 : vector<16x32xf32>
    %c2_284 = arith.constant 2 : index
    %c0_285 = arith.constant 0 : index
    %c0_286 = arith.constant 0 : index
    %643 = vector.load %arg9[%c2_284, %c0_285, %c0_286] : memref<4x32x32xf32, #tpu.memory_space<vmem>>, vector<1x32x32xf32>
    %644 = vector.shape_cast %643 : vector<1x32x32xf32> to vector<32x32xf32>
    %cst_287 = arith.constant dense<0.000000e+00> : vector<16x32xf32>
    %645 = tpu.matmul %642, %644, %cst_287 {dimension_numbers = #tpu.dot_dimension_numbers<[1], [0], [0], [1], [0, 0, 1, 1], [], []>} : vector<16x32xf32>, vector<32x32xf32>, vector<16x32xf32> -> vector<16x32xf32>
    %c2_288 = arith.constant 2 : index
    %c0_289 = arith.constant 0 : index
    %c0_290 = arith.constant 0 : index
    %646 = vector.load %arg10[%c2_288, %c0_289, %c0_290] : memref<4x1x32xf32, #tpu.memory_space<vmem>>, vector<1x1x32xf32>
    %647 = vector.shape_cast %646 : vector<1x1x32xf32> to vector<1x32xf32>
    %648 = vector.broadcast %647 : vector<1x32xf32> to vector<16x32xf32>
    %649 = arith.addf %645, %648 : vector<16x32xf32>
    %cst_291 = arith.constant 0.000000e+00 : f32
    %650 = vector.broadcast %cst_291 : f32 to vector<16x32xf32>
    %651 = arith.maximumf %649, %650 : vector<16x32xf32>
    %c2_292 = arith.constant 2 : index
    %c0_293 = arith.constant 0 : index
    %c0_294 = arith.constant 0 : index
    %652 = vector.load %arg11[%c2_292, %c0_293, %c0_294] : memref<4x32x32xf32, #tpu.memory_space<vmem>>, vector<1x32x32xf32>
    %653 = vector.shape_cast %652 : vector<1x32x32xf32> to vector<32x32xf32>
    %cst_295 = arith.constant dense<0.000000e+00> : vector<16x32xf32>
    %654 = tpu.matmul %651, %653, %cst_295 {dimension_numbers = #tpu.dot_dimension_numbers<[1], [0], [0], [1], [0, 0, 1, 1], [], []>} : vector<16x32xf32>, vector<32x32xf32>, vector<16x32xf32> -> vector<16x32xf32>
    %c2_296 = arith.constant 2 : index
    %c0_297 = arith.constant 0 : index
    %c0_298 = arith.constant 0 : index
    %655 = vector.load %arg12[%c2_296, %c0_297, %c0_298] : memref<4x1x32xf32, #tpu.memory_space<vmem>>, vector<1x1x32xf32>
    %656 = vector.shape_cast %655 : vector<1x1x32xf32> to vector<1x32xf32>
    %657 = vector.broadcast %656 : vector<1x32xf32> to vector<16x32xf32>
    %658 = arith.addf %654, %657 : vector<16x32xf32>
    %cst_299 = arith.constant 0.000000e+00 : f32
    %659 = vector.broadcast %cst_299 : f32 to vector<16x32xf32>
    %660 = arith.maximumf %658, %659 : vector<16x32xf32>
    %661 = arith.addf %616, %660 : vector<16x32xf32>
    %c8 = arith.constant 8 : index
    %c0_300 = arith.constant 0 : index
    %c0_301 = arith.constant 0 : index
    %662 = vector.load %arg3[%c8, %c0_300, %c0_301] : memref<11x1x32xf32, #tpu.memory_space<vmem>>, vector<1x1x32xf32>
    %663 = vector.shape_cast %662 : vector<1x1x32xf32> to vector<1x32xf32>
    %c8_302 = arith.constant 8 : index
    %c0_303 = arith.constant 0 : index
    %c0_304 = arith.constant 0 : index
    %664 = vector.load %arg4[%c8_302, %c0_303, %c0_304] : memref<11x1x32xf32, #tpu.memory_space<vmem>>, vector<1x1x32xf32>
    %665 = vector.shape_cast %664 : vector<1x1x32xf32> to vector<1x32xf32>
    %cst_305 = arith.constant dense<0.000000e+00> : vector<16xf32>
    %666 = vector.multi_reduction <add>, %661, %cst_305 [1] : vector<16x32xf32> to vector<16xf32>
    %667 = vector.shape_cast %666 : vector<16xf32> to vector<16x1xf32>
    %cst_306 = arith.constant 3.200000e+01 : f32
    %668 = vector.broadcast %cst_306 : f32 to vector<16x1xf32>
    %669 = arith.divf %667, %668 : vector<16x1xf32>
    %670 = vector.broadcast %669 : vector<16x1xf32> to vector<16x32xf32>
    %671 = arith.subf %661, %670 : vector<16x32xf32>
    %672 = arith.mulf %671, %671 : vector<16x32xf32>
    %cst_307 = arith.constant dense<0.000000e+00> : vector<16xf32>
    %673 = vector.multi_reduction <add>, %672, %cst_307 [1] : vector<16x32xf32> to vector<16xf32>
    %674 = vector.shape_cast %673 : vector<16xf32> to vector<16x1xf32>
    %cst_308 = arith.constant 3.200000e+01 : f32
    %675 = vector.broadcast %cst_308 : f32 to vector<16x1xf32>
    %676 = arith.divf %674, %675 : vector<16x1xf32>
    %677 = vector.broadcast %669 : vector<16x1xf32> to vector<16x32xf32>
    %678 = arith.subf %661, %677 : vector<16x32xf32>
    %cst_309 = arith.constant 9.99999974E-6 : f32
    %679 = vector.broadcast %cst_309 : f32 to vector<16x1xf32>
    %680 = arith.addf %676, %679 : vector<16x1xf32>
    %681 = math.rsqrt %680 : vector<16x1xf32>
    %682 = vector.broadcast %681 : vector<16x1xf32> to vector<16x32xf32>
    %683 = arith.mulf %678, %682 : vector<16x32xf32>
    %684 = vector.broadcast %663 : vector<1x32xf32> to vector<16x32xf32>
    %685 = arith.mulf %683, %684 : vector<16x32xf32>
    %686 = vector.broadcast %665 : vector<1x32xf32> to vector<16x32xf32>
    %687 = arith.addf %685, %686 : vector<16x32xf32>
    %c9 = arith.constant 9 : index
    %c0_310 = arith.constant 0 : index
    %c0_311 = arith.constant 0 : index
    %688 = vector.load %arg3[%c9, %c0_310, %c0_311] : memref<11x1x32xf32, #tpu.memory_space<vmem>>, vector<1x1x32xf32>
    %689 = vector.shape_cast %688 : vector<1x1x32xf32> to vector<1x32xf32>
    %c9_312 = arith.constant 9 : index
    %c0_313 = arith.constant 0 : index
    %c0_314 = arith.constant 0 : index
    %690 = vector.load %arg4[%c9_312, %c0_313, %c0_314] : memref<11x1x32xf32, #tpu.memory_space<vmem>>, vector<1x1x32xf32>
    %691 = vector.shape_cast %690 : vector<1x1x32xf32> to vector<1x32xf32>
    %cst_315 = arith.constant dense<0.000000e+00> : vector<16xf32>
    %692 = vector.multi_reduction <add>, %442, %cst_315 [1] : vector<16x32xf32> to vector<16xf32>
    %693 = vector.shape_cast %692 : vector<16xf32> to vector<16x1xf32>
    %cst_316 = arith.constant 3.200000e+01 : f32
    %694 = vector.broadcast %cst_316 : f32 to vector<16x1xf32>
    %695 = arith.divf %693, %694 : vector<16x1xf32>
    %696 = vector.broadcast %695 : vector<16x1xf32> to vector<16x32xf32>
    %697 = arith.subf %442, %696 : vector<16x32xf32>
    %698 = arith.mulf %697, %697 : vector<16x32xf32>
    %cst_317 = arith.constant dense<0.000000e+00> : vector<16xf32>
    %699 = vector.multi_reduction <add>, %698, %cst_317 [1] : vector<16x32xf32> to vector<16xf32>
    %700 = vector.shape_cast %699 : vector<16xf32> to vector<16x1xf32>
    %cst_318 = arith.constant 3.200000e+01 : f32
    %701 = vector.broadcast %cst_318 : f32 to vector<16x1xf32>
    %702 = arith.divf %700, %701 : vector<16x1xf32>
    %703 = vector.broadcast %695 : vector<16x1xf32> to vector<16x32xf32>
    %704 = arith.subf %442, %703 : vector<16x32xf32>
    %cst_319 = arith.constant 9.99999974E-6 : f32
    %705 = vector.broadcast %cst_319 : f32 to vector<16x1xf32>
    %706 = arith.addf %702, %705 : vector<16x1xf32>
    %707 = math.rsqrt %706 : vector<16x1xf32>
    %708 = vector.broadcast %707 : vector<16x1xf32> to vector<16x32xf32>
    %709 = arith.mulf %704, %708 : vector<16x32xf32>
    %710 = vector.broadcast %689 : vector<1x32xf32> to vector<16x32xf32>
    %711 = arith.mulf %709, %710 : vector<16x32xf32>
    %712 = vector.broadcast %691 : vector<1x32xf32> to vector<16x32xf32>
    %713 = arith.addf %711, %712 : vector<16x32xf32>
    %c3_320 = arith.constant 3 : index
    %c0_321 = arith.constant 0 : index
    %c0_322 = arith.constant 0 : index
    %714 = vector.load %arg5[%c3_320, %c0_321, %c0_322] : memref<4x32x96xf32, #tpu.memory_space<vmem>>, vector<1x32x96xf32>
    %715 = vector.shape_cast %714 : vector<1x32x96xf32> to vector<32x96xf32>
    %c3_323 = arith.constant 3 : index
    %c0_324 = arith.constant 0 : index
    %c0_325 = arith.constant 0 : index
    %716 = vector.load %arg6[%c3_323, %c0_324, %c0_325] : memref<4x1x96xf32, #tpu.memory_space<vmem>>, vector<1x1x96xf32>
    %717 = vector.shape_cast %716 : vector<1x1x96xf32> to vector<1x96xf32>
    %718 = vector.extract_strided_slice %715 {offsets = [0, 0], sizes = [32, 32], strides = [1, 1]} : vector<32x96xf32> to vector<32x32xf32>
    %cst_326 = arith.constant dense<0.000000e+00> : vector<16x32xf32>
    %719 = tpu.matmul %713, %718, %cst_326 {dimension_numbers = #tpu.dot_dimension_numbers<[1], [0], [0], [1], [0, 0, 1, 1], [], []>} : vector<16x32xf32>, vector<32x32xf32>, vector<16x32xf32> -> vector<16x32xf32>
    %720 = vector.extract_strided_slice %717 {offsets = [0, 0], sizes = [1, 32], strides = [1, 1]} : vector<1x96xf32> to vector<1x32xf32>
    %721 = vector.broadcast %720 : vector<1x32xf32> to vector<16x32xf32>
    %722 = arith.addf %719, %721 : vector<16x32xf32>
    %723 = vector.extract_strided_slice %715 {offsets = [0, 32], sizes = [32, 64], strides = [1, 1]} : vector<32x96xf32> to vector<32x64xf32>
    %cst_327 = arith.constant dense<0.000000e+00> : vector<16x64xf32>
    %724 = tpu.matmul %687, %723, %cst_327 {dimension_numbers = #tpu.dot_dimension_numbers<[1], [0], [0], [1], [0, 0, 1, 1], [], []>} : vector<16x32xf32>, vector<32x64xf32>, vector<16x64xf32> -> vector<16x64xf32>
    %725 = vector.extract_strided_slice %717 {offsets = [0, 32], sizes = [1, 64], strides = [1, 1]} : vector<1x96xf32> to vector<1x64xf32>
    %726 = vector.broadcast %725 : vector<1x64xf32> to vector<16x64xf32>
    %727 = arith.addf %724, %726 : vector<16x64xf32>
    %728 = vector.extract_strided_slice %727 {offsets = [0, 0], sizes = [16, 32], strides = [1, 1]} : vector<16x64xf32> to vector<16x32xf32>
    %729 = vector.extract_strided_slice %727 {offsets = [0, 32], sizes = [16, 32], strides = [1, 1]} : vector<16x64xf32> to vector<16x32xf32>
    %cst_328 = arith.constant 0.000000e+00 : f32
    %730 = vector.broadcast %cst_328 : f32 to vector<16x32xf32>
    %731 = vector.extract_strided_slice %722 {offsets = [0, 0], sizes = [16, 8], strides = [1, 1]} : vector<16x32xf32> to vector<16x8xf32>
    %732 = vector.shape_cast %731 : vector<16x8xf32> to vector<2x8x8xf32>
    %733 = vector.extract_strided_slice %728 {offsets = [0, 0], sizes = [16, 8], strides = [1, 1]} : vector<16x32xf32> to vector<16x8xf32>
    %734 = vector.shape_cast %733 : vector<16x8xf32> to vector<2x8x8xf32>
    %735 = vector.extract_strided_slice %729 {offsets = [0, 0], sizes = [16, 8], strides = [1, 1]} : vector<16x32xf32> to vector<16x8xf32>
    %736 = vector.shape_cast %735 : vector<16x8xf32> to vector<2x8x8xf32>
    "tpu.trace_start"() <{level = 10 : i32, message = "bqd,bkd->bqk"}> : () -> ()
    %cst_329 = arith.constant dense<0.000000e+00> : vector<2x8x8xf32>
    %737 = tpu.matmul %732, %734, %cst_329 {dimension_numbers = #tpu.dot_dimension_numbers<[2], [2], [1], [1], [0, 0, 0, 1, 1, 1], [0], [0]>} : vector<2x8x8xf32>, vector<2x8x8xf32>, vector<2x8x8xf32> -> vector<2x8x8xf32>
    "tpu.trace_stop"() : () -> ()
    %cst_330 = arith.constant 0.353553385 : f32
    %738 = vector.broadcast %cst_330 : f32 to vector<2x8x8xf32>
    %739 = arith.mulf %737, %738 : vector<2x8x8xf32>
    %cst_331 = arith.constant dense<0xFF800000> : vector<2x8xf32>
    %740 = vector.multi_reduction <maximumf>, %739, %cst_331 [2] : vector<2x8x8xf32> to vector<2x8xf32>
    %741 = vector.shape_cast %740 : vector<2x8xf32> to vector<2x8x1xf32>
    %742 = vector.broadcast %741 : vector<2x8x1xf32> to vector<2x8x8xf32>
    %743 = arith.subf %739, %742 : vector<2x8x8xf32>
    %744 = math.exp %743 : vector<2x8x8xf32>
    %cst_332 = arith.constant dense<0.000000e+00> : vector<2x8xf32>
    %745 = vector.multi_reduction <add>, %744, %cst_332 [2] : vector<2x8x8xf32> to vector<2x8xf32>
    %746 = vector.shape_cast %745 : vector<2x8xf32> to vector<2x8x1xf32>
    %747 = tpu.reciprocal %746 {approx = true} : vector<2x8x1xf32> -> vector<2x8x1xf32>
    %748 = vector.broadcast %747 : vector<2x8x1xf32> to vector<2x8x8xf32>
    %749 = arith.mulf %744, %748 : vector<2x8x8xf32>
    "tpu.trace_start"() <{level = 10 : i32, message = "bqk,bkd->bqd"}> : () -> ()
    %cst_333 = arith.constant dense<0.000000e+00> : vector<2x8x8xf32>
    %750 = tpu.matmul %749, %736, %cst_333 {dimension_numbers = #tpu.dot_dimension_numbers<[2], [1], [1], [2], [0, 0, 0, 1, 1, 2], [0], [0]>} : vector<2x8x8xf32>, vector<2x8x8xf32>, vector<2x8x8xf32> -> vector<2x8x8xf32>
    "tpu.trace_stop"() : () -> ()
    %751 = vector.shape_cast %750 : vector<2x8x8xf32> to vector<16x8xf32>
    %c3_334 = arith.constant 3 : index
    %c0_335 = arith.constant 0 : index
    %c0_336 = arith.constant 0 : index
    %c0_337 = arith.constant 0 : index
    %752 = vector.load %arg7[%c3_334, %c0_335, %c0_336, %c0_337] : memref<4x4x8x32xf32, #tpu.memory_space<vmem>>, vector<1x1x8x32xf32>
    %753 = vector.shape_cast %752 : vector<1x1x8x32xf32> to vector<8x32xf32>
    %cst_338 = arith.constant dense<0.000000e+00> : vector<16x32xf32>
    %754 = tpu.matmul %751, %753, %cst_338 {dimension_numbers = #tpu.dot_dimension_numbers<[1], [0], [0], [1], [0, 0, 1, 1], [], []>} : vector<16x8xf32>, vector<8x32xf32>, vector<16x32xf32> -> vector<16x32xf32>
    %755 = arith.addf %730, %754 : vector<16x32xf32>
    %756 = vector.extract_strided_slice %722 {offsets = [0, 8], sizes = [16, 8], strides = [1, 1]} : vector<16x32xf32> to vector<16x8xf32>
    %757 = vector.shape_cast %756 : vector<16x8xf32> to vector<2x8x8xf32>
    %758 = vector.extract_strided_slice %728 {offsets = [0, 8], sizes = [16, 8], strides = [1, 1]} : vector<16x32xf32> to vector<16x8xf32>
    %759 = vector.shape_cast %758 : vector<16x8xf32> to vector<2x8x8xf32>
    %760 = vector.extract_strided_slice %729 {offsets = [0, 8], sizes = [16, 8], strides = [1, 1]} : vector<16x32xf32> to vector<16x8xf32>
    %761 = vector.shape_cast %760 : vector<16x8xf32> to vector<2x8x8xf32>
    "tpu.trace_start"() <{level = 10 : i32, message = "bqd,bkd->bqk"}> : () -> ()
    %cst_339 = arith.constant dense<0.000000e+00> : vector<2x8x8xf32>
    %762 = tpu.matmul %757, %759, %cst_339 {dimension_numbers = #tpu.dot_dimension_numbers<[2], [2], [1], [1], [0, 0, 0, 1, 1, 1], [0], [0]>} : vector<2x8x8xf32>, vector<2x8x8xf32>, vector<2x8x8xf32> -> vector<2x8x8xf32>
    "tpu.trace_stop"() : () -> ()
    %cst_340 = arith.constant 0.353553385 : f32
    %763 = vector.broadcast %cst_340 : f32 to vector<2x8x8xf32>
    %764 = arith.mulf %762, %763 : vector<2x8x8xf32>
    %cst_341 = arith.constant dense<0xFF800000> : vector<2x8xf32>
    %765 = vector.multi_reduction <maximumf>, %764, %cst_341 [2] : vector<2x8x8xf32> to vector<2x8xf32>
    %766 = vector.shape_cast %765 : vector<2x8xf32> to vector<2x8x1xf32>
    %767 = vector.broadcast %766 : vector<2x8x1xf32> to vector<2x8x8xf32>
    %768 = arith.subf %764, %767 : vector<2x8x8xf32>
    %769 = math.exp %768 : vector<2x8x8xf32>
    %cst_342 = arith.constant dense<0.000000e+00> : vector<2x8xf32>
    %770 = vector.multi_reduction <add>, %769, %cst_342 [2] : vector<2x8x8xf32> to vector<2x8xf32>
    %771 = vector.shape_cast %770 : vector<2x8xf32> to vector<2x8x1xf32>
    %772 = tpu.reciprocal %771 {approx = true} : vector<2x8x1xf32> -> vector<2x8x1xf32>
    %773 = vector.broadcast %772 : vector<2x8x1xf32> to vector<2x8x8xf32>
    %774 = arith.mulf %769, %773 : vector<2x8x8xf32>
    "tpu.trace_start"() <{level = 10 : i32, message = "bqk,bkd->bqd"}> : () -> ()
    %cst_343 = arith.constant dense<0.000000e+00> : vector<2x8x8xf32>
    %775 = tpu.matmul %774, %761, %cst_343 {dimension_numbers = #tpu.dot_dimension_numbers<[2], [1], [1], [2], [0, 0, 0, 1, 1, 2], [0], [0]>} : vector<2x8x8xf32>, vector<2x8x8xf32>, vector<2x8x8xf32> -> vector<2x8x8xf32>
    "tpu.trace_stop"() : () -> ()
    %776 = vector.shape_cast %775 : vector<2x8x8xf32> to vector<16x8xf32>
    %c3_344 = arith.constant 3 : index
    %c1_345 = arith.constant 1 : index
    %c0_346 = arith.constant 0 : index
    %c0_347 = arith.constant 0 : index
    %777 = vector.load %arg7[%c3_344, %c1_345, %c0_346, %c0_347] : memref<4x4x8x32xf32, #tpu.memory_space<vmem>>, vector<1x1x8x32xf32>
    %778 = vector.shape_cast %777 : vector<1x1x8x32xf32> to vector<8x32xf32>
    %cst_348 = arith.constant dense<0.000000e+00> : vector<16x32xf32>
    %779 = tpu.matmul %776, %778, %cst_348 {dimension_numbers = #tpu.dot_dimension_numbers<[1], [0], [0], [1], [0, 0, 1, 1], [], []>} : vector<16x8xf32>, vector<8x32xf32>, vector<16x32xf32> -> vector<16x32xf32>
    %780 = arith.addf %755, %779 : vector<16x32xf32>
    %781 = vector.extract_strided_slice %722 {offsets = [0, 16], sizes = [16, 8], strides = [1, 1]} : vector<16x32xf32> to vector<16x8xf32>
    %782 = vector.shape_cast %781 : vector<16x8xf32> to vector<2x8x8xf32>
    %783 = vector.extract_strided_slice %728 {offsets = [0, 16], sizes = [16, 8], strides = [1, 1]} : vector<16x32xf32> to vector<16x8xf32>
    %784 = vector.shape_cast %783 : vector<16x8xf32> to vector<2x8x8xf32>
    %785 = vector.extract_strided_slice %729 {offsets = [0, 16], sizes = [16, 8], strides = [1, 1]} : vector<16x32xf32> to vector<16x8xf32>
    %786 = vector.shape_cast %785 : vector<16x8xf32> to vector<2x8x8xf32>
    "tpu.trace_start"() <{level = 10 : i32, message = "bqd,bkd->bqk"}> : () -> ()
    %cst_349 = arith.constant dense<0.000000e+00> : vector<2x8x8xf32>
    %787 = tpu.matmul %782, %784, %cst_349 {dimension_numbers = #tpu.dot_dimension_numbers<[2], [2], [1], [1], [0, 0, 0, 1, 1, 1], [0], [0]>} : vector<2x8x8xf32>, vector<2x8x8xf32>, vector<2x8x8xf32> -> vector<2x8x8xf32>
    "tpu.trace_stop"() : () -> ()
    %cst_350 = arith.constant 0.353553385 : f32
    %788 = vector.broadcast %cst_350 : f32 to vector<2x8x8xf32>
    %789 = arith.mulf %787, %788 : vector<2x8x8xf32>
    %cst_351 = arith.constant dense<0xFF800000> : vector<2x8xf32>
    %790 = vector.multi_reduction <maximumf>, %789, %cst_351 [2] : vector<2x8x8xf32> to vector<2x8xf32>
    %791 = vector.shape_cast %790 : vector<2x8xf32> to vector<2x8x1xf32>
    %792 = vector.broadcast %791 : vector<2x8x1xf32> to vector<2x8x8xf32>
    %793 = arith.subf %789, %792 : vector<2x8x8xf32>
    %794 = math.exp %793 : vector<2x8x8xf32>
    %cst_352 = arith.constant dense<0.000000e+00> : vector<2x8xf32>
    %795 = vector.multi_reduction <add>, %794, %cst_352 [2] : vector<2x8x8xf32> to vector<2x8xf32>
    %796 = vector.shape_cast %795 : vector<2x8xf32> to vector<2x8x1xf32>
    %797 = tpu.reciprocal %796 {approx = true} : vector<2x8x1xf32> -> vector<2x8x1xf32>
    %798 = vector.broadcast %797 : vector<2x8x1xf32> to vector<2x8x8xf32>
    %799 = arith.mulf %794, %798 : vector<2x8x8xf32>
    "tpu.trace_start"() <{level = 10 : i32, message = "bqk,bkd->bqd"}> : () -> ()
    %cst_353 = arith.constant dense<0.000000e+00> : vector<2x8x8xf32>
    %800 = tpu.matmul %799, %786, %cst_353 {dimension_numbers = #tpu.dot_dimension_numbers<[2], [1], [1], [2], [0, 0, 0, 1, 1, 2], [0], [0]>} : vector<2x8x8xf32>, vector<2x8x8xf32>, vector<2x8x8xf32> -> vector<2x8x8xf32>
    "tpu.trace_stop"() : () -> ()
    %801 = vector.shape_cast %800 : vector<2x8x8xf32> to vector<16x8xf32>
    %c3_354 = arith.constant 3 : index
    %c2_355 = arith.constant 2 : index
    %c0_356 = arith.constant 0 : index
    %c0_357 = arith.constant 0 : index
    %802 = vector.load %arg7[%c3_354, %c2_355, %c0_356, %c0_357] : memref<4x4x8x32xf32, #tpu.memory_space<vmem>>, vector<1x1x8x32xf32>
    %803 = vector.shape_cast %802 : vector<1x1x8x32xf32> to vector<8x32xf32>
    %cst_358 = arith.constant dense<0.000000e+00> : vector<16x32xf32>
    %804 = tpu.matmul %801, %803, %cst_358 {dimension_numbers = #tpu.dot_dimension_numbers<[1], [0], [0], [1], [0, 0, 1, 1], [], []>} : vector<16x8xf32>, vector<8x32xf32>, vector<16x32xf32> -> vector<16x32xf32>
    %805 = arith.addf %780, %804 : vector<16x32xf32>
    %806 = vector.extract_strided_slice %722 {offsets = [0, 24], sizes = [16, 8], strides = [1, 1]} : vector<16x32xf32> to vector<16x8xf32>
    %807 = vector.shape_cast %806 : vector<16x8xf32> to vector<2x8x8xf32>
    %808 = vector.extract_strided_slice %728 {offsets = [0, 24], sizes = [16, 8], strides = [1, 1]} : vector<16x32xf32> to vector<16x8xf32>
    %809 = vector.shape_cast %808 : vector<16x8xf32> to vector<2x8x8xf32>
    %810 = vector.extract_strided_slice %729 {offsets = [0, 24], sizes = [16, 8], strides = [1, 1]} : vector<16x32xf32> to vector<16x8xf32>
    %811 = vector.shape_cast %810 : vector<16x8xf32> to vector<2x8x8xf32>
    "tpu.trace_start"() <{level = 10 : i32, message = "bqd,bkd->bqk"}> : () -> ()
    %cst_359 = arith.constant dense<0.000000e+00> : vector<2x8x8xf32>
    %812 = tpu.matmul %807, %809, %cst_359 {dimension_numbers = #tpu.dot_dimension_numbers<[2], [2], [1], [1], [0, 0, 0, 1, 1, 1], [0], [0]>} : vector<2x8x8xf32>, vector<2x8x8xf32>, vector<2x8x8xf32> -> vector<2x8x8xf32>
    "tpu.trace_stop"() : () -> ()
    %cst_360 = arith.constant 0.353553385 : f32
    %813 = vector.broadcast %cst_360 : f32 to vector<2x8x8xf32>
    %814 = arith.mulf %812, %813 : vector<2x8x8xf32>
    %cst_361 = arith.constant dense<0xFF800000> : vector<2x8xf32>
    %815 = vector.multi_reduction <maximumf>, %814, %cst_361 [2] : vector<2x8x8xf32> to vector<2x8xf32>
    %816 = vector.shape_cast %815 : vector<2x8xf32> to vector<2x8x1xf32>
    %817 = vector.broadcast %816 : vector<2x8x1xf32> to vector<2x8x8xf32>
    %818 = arith.subf %814, %817 : vector<2x8x8xf32>
    %819 = math.exp %818 : vector<2x8x8xf32>
    %cst_362 = arith.constant dense<0.000000e+00> : vector<2x8xf32>
    %820 = vector.multi_reduction <add>, %819, %cst_362 [2] : vector<2x8x8xf32> to vector<2x8xf32>
    %821 = vector.shape_cast %820 : vector<2x8xf32> to vector<2x8x1xf32>
    %822 = tpu.reciprocal %821 {approx = true} : vector<2x8x1xf32> -> vector<2x8x1xf32>
    %823 = vector.broadcast %822 : vector<2x8x1xf32> to vector<2x8x8xf32>
    %824 = arith.mulf %819, %823 : vector<2x8x8xf32>
    "tpu.trace_start"() <{level = 10 : i32, message = "bqk,bkd->bqd"}> : () -> ()
    %cst_363 = arith.constant dense<0.000000e+00> : vector<2x8x8xf32>
    %825 = tpu.matmul %824, %811, %cst_363 {dimension_numbers = #tpu.dot_dimension_numbers<[2], [1], [1], [2], [0, 0, 0, 1, 1, 2], [0], [0]>} : vector<2x8x8xf32>, vector<2x8x8xf32>, vector<2x8x8xf32> -> vector<2x8x8xf32>
    "tpu.trace_stop"() : () -> ()
    %826 = vector.shape_cast %825 : vector<2x8x8xf32> to vector<16x8xf32>
    %c3_364 = arith.constant 3 : index
    %c3_365 = arith.constant 3 : index
    %c0_366 = arith.constant 0 : index
    %c0_367 = arith.constant 0 : index
    %827 = vector.load %arg7[%c3_364, %c3_365, %c0_366, %c0_367] : memref<4x4x8x32xf32, #tpu.memory_space<vmem>>, vector<1x1x8x32xf32>
    %828 = vector.shape_cast %827 : vector<1x1x8x32xf32> to vector<8x32xf32>
    %cst_368 = arith.constant dense<0.000000e+00> : vector<16x32xf32>
    %829 = tpu.matmul %826, %828, %cst_368 {dimension_numbers = #tpu.dot_dimension_numbers<[1], [0], [0], [1], [0, 0, 1, 1], [], []>} : vector<16x8xf32>, vector<8x32xf32>, vector<16x32xf32> -> vector<16x32xf32>
    %830 = arith.addf %805, %829 : vector<16x32xf32>
    %c3_369 = arith.constant 3 : index
    %c0_370 = arith.constant 0 : index
    %c0_371 = arith.constant 0 : index
    %831 = vector.load %arg8[%c3_369, %c0_370, %c0_371] : memref<4x1x32xf32, #tpu.memory_space<vmem>>, vector<1x1x32xf32>
    %832 = vector.shape_cast %831 : vector<1x1x32xf32> to vector<1x32xf32>
    %833 = vector.broadcast %832 : vector<1x32xf32> to vector<16x32xf32>
    %834 = arith.addf %830, %833 : vector<16x32xf32>
    %835 = arith.addf %442, %834 : vector<16x32xf32>
    %c10 = arith.constant 10 : index
    %c0_372 = arith.constant 0 : index
    %c0_373 = arith.constant 0 : index
    %836 = vector.load %arg3[%c10, %c0_372, %c0_373] : memref<11x1x32xf32, #tpu.memory_space<vmem>>, vector<1x1x32xf32>
    %837 = vector.shape_cast %836 : vector<1x1x32xf32> to vector<1x32xf32>
    %c10_374 = arith.constant 10 : index
    %c0_375 = arith.constant 0 : index
    %c0_376 = arith.constant 0 : index
    %838 = vector.load %arg4[%c10_374, %c0_375, %c0_376] : memref<11x1x32xf32, #tpu.memory_space<vmem>>, vector<1x1x32xf32>
    %839 = vector.shape_cast %838 : vector<1x1x32xf32> to vector<1x32xf32>
    %cst_377 = arith.constant dense<0.000000e+00> : vector<16xf32>
    %840 = vector.multi_reduction <add>, %835, %cst_377 [1] : vector<16x32xf32> to vector<16xf32>
    %841 = vector.shape_cast %840 : vector<16xf32> to vector<16x1xf32>
    %cst_378 = arith.constant 3.200000e+01 : f32
    %842 = vector.broadcast %cst_378 : f32 to vector<16x1xf32>
    %843 = arith.divf %841, %842 : vector<16x1xf32>
    %844 = vector.broadcast %843 : vector<16x1xf32> to vector<16x32xf32>
    %845 = arith.subf %835, %844 : vector<16x32xf32>
    %846 = arith.mulf %845, %845 : vector<16x32xf32>
    %cst_379 = arith.constant dense<0.000000e+00> : vector<16xf32>
    %847 = vector.multi_reduction <add>, %846, %cst_379 [1] : vector<16x32xf32> to vector<16xf32>
    %848 = vector.shape_cast %847 : vector<16xf32> to vector<16x1xf32>
    %cst_380 = arith.constant 3.200000e+01 : f32
    %849 = vector.broadcast %cst_380 : f32 to vector<16x1xf32>
    %850 = arith.divf %848, %849 : vector<16x1xf32>
    %851 = vector.broadcast %843 : vector<16x1xf32> to vector<16x32xf32>
    %852 = arith.subf %835, %851 : vector<16x32xf32>
    %cst_381 = arith.constant 9.99999997E-7 : f32
    %853 = vector.broadcast %cst_381 : f32 to vector<16x1xf32>
    %854 = arith.addf %850, %853 : vector<16x1xf32>
    %855 = math.rsqrt %854 : vector<16x1xf32>
    %856 = vector.broadcast %855 : vector<16x1xf32> to vector<16x32xf32>
    %857 = arith.mulf %852, %856 : vector<16x32xf32>
    %858 = vector.broadcast %837 : vector<1x32xf32> to vector<16x32xf32>
    %859 = arith.mulf %857, %858 : vector<16x32xf32>
    %860 = vector.broadcast %839 : vector<1x32xf32> to vector<16x32xf32>
    %861 = arith.addf %859, %860 : vector<16x32xf32>
    %c3_382 = arith.constant 3 : index
    %c0_383 = arith.constant 0 : index
    %c0_384 = arith.constant 0 : index
    %862 = vector.load %arg9[%c3_382, %c0_383, %c0_384] : memref<4x32x32xf32, #tpu.memory_space<vmem>>, vector<1x32x32xf32>
    %863 = vector.shape_cast %862 : vector<1x32x32xf32> to vector<32x32xf32>
    %cst_385 = arith.constant dense<0.000000e+00> : vector<16x32xf32>
    %864 = tpu.matmul %861, %863, %cst_385 {dimension_numbers = #tpu.dot_dimension_numbers<[1], [0], [0], [1], [0, 0, 1, 1], [], []>} : vector<16x32xf32>, vector<32x32xf32>, vector<16x32xf32> -> vector<16x32xf32>
    %c3_386 = arith.constant 3 : index
    %c0_387 = arith.constant 0 : index
    %c0_388 = arith.constant 0 : index
    %865 = vector.load %arg10[%c3_386, %c0_387, %c0_388] : memref<4x1x32xf32, #tpu.memory_space<vmem>>, vector<1x1x32xf32>
    %866 = vector.shape_cast %865 : vector<1x1x32xf32> to vector<1x32xf32>
    %867 = vector.broadcast %866 : vector<1x32xf32> to vector<16x32xf32>
    %868 = arith.addf %864, %867 : vector<16x32xf32>
    %cst_389 = arith.constant 0.000000e+00 : f32
    %869 = vector.broadcast %cst_389 : f32 to vector<16x32xf32>
    %870 = arith.maximumf %868, %869 : vector<16x32xf32>
    %c3_390 = arith.constant 3 : index
    %c0_391 = arith.constant 0 : index
    %c0_392 = arith.constant 0 : index
    %871 = vector.load %arg11[%c3_390, %c0_391, %c0_392] : memref<4x32x32xf32, #tpu.memory_space<vmem>>, vector<1x32x32xf32>
    %872 = vector.shape_cast %871 : vector<1x32x32xf32> to vector<32x32xf32>
    %cst_393 = arith.constant dense<0.000000e+00> : vector<16x32xf32>
    %873 = tpu.matmul %870, %872, %cst_393 {dimension_numbers = #tpu.dot_dimension_numbers<[1], [0], [0], [1], [0, 0, 1, 1], [], []>} : vector<16x32xf32>, vector<32x32xf32>, vector<16x32xf32> -> vector<16x32xf32>
    %c3_394 = arith.constant 3 : index
    %c0_395 = arith.constant 0 : index
    %c0_396 = arith.constant 0 : index
    %874 = vector.load %arg12[%c3_394, %c0_395, %c0_396] : memref<4x1x32xf32, #tpu.memory_space<vmem>>, vector<1x1x32xf32>
    %875 = vector.shape_cast %874 : vector<1x1x32xf32> to vector<1x32xf32>
    %876 = vector.broadcast %875 : vector<1x32xf32> to vector<16x32xf32>
    %877 = arith.addf %873, %876 : vector<16x32xf32>
    %cst_397 = arith.constant 0.000000e+00 : f32
    %878 = vector.broadcast %cst_397 : f32 to vector<16x32xf32>
    %879 = arith.maximumf %877, %878 : vector<16x32xf32>
    %880 = arith.addf %835, %879 : vector<16x32xf32>
    %881 = vector.shape_cast %661 : vector<16x32xf32> to vector<2x8x32xf32>
    %c0_398 = arith.constant 0 : index
    %c0_399 = arith.constant 0 : index
    %c0_400 = arith.constant 0 : index
    %882 = vector.load %arg13[%c0_398, %c0_399, %c0_400] : memref<2x8x32xf32, #tpu.memory_space<vmem>>, vector<2x8x32xf32>
    tpu.vector_store %arg13[%c0_398, %c0_399, %c0_400], %881 {strides = array<i32>} : memref<2x8x32xf32, #tpu.memory_space<vmem>>, vector<2x8x32xf32>,
    %883 = vector.shape_cast %880 : vector<16x32xf32> to vector<2x8x32xf32>
    %c0_401 = arith.constant 0 : index
    %c0_402 = arith.constant 0 : index
    %c0_403 = arith.constant 0 : index
    %884 = vector.load %arg14[%c0_401, %c0_402, %c0_403] : memref<2x8x32xf32, #tpu.memory_space<vmem>>, vector<2x8x32xf32>
    tpu.vector_store %arg14[%c0_401, %c0_402, %c0_403], %883 {strides = array<i32>} : memref<2x8x32xf32, #tpu.memory_space<vmem>>, vector<2x8x32xf32>,
    return
  }
}

</mosaic_0001>

<llo_original>
// kernel: tpu_custom_call.1
$region0: #{tpu_custom_call.1}
  #allocation0 [shape = 'u32[]', space=smem, size = 0x4, offset = 0x4, fixed_abs, tag = 'smem constant byte address 0x4 - core index']
  #allocation1 [shape = 'u32[144,128]{1,0:T(1,128)}', space=vmem, size = 0x12000, scoped, tag = 'internal scratch']
  %s0 = inlined_call_operand.hbm [shape: f32[2,8,32], index: 0, kind: input, shape index: {}]
  %s1 = inlined_call_operand.hbm [shape: f32[2,8,32], index: 1, kind: input, shape index: {}]
  %s2 = inlined_call_operand.hbm [shape: f32[8,8], index: 2, kind: input, shape index: {}]
  %s3 = inlined_call_operand.hbm [shape: f32[11,1,32], index: 3, kind: input, shape index: {}]
  %s4 = inlined_call_operand.hbm [shape: f32[11,1,32], index: 4, kind: input, shape index: {}]
  %s5 = inlined_call_operand.hbm [shape: f32[4,32,96], index: 5, kind: input, shape index: {}]
  %s6 = inlined_call_operand.vmem [shape: f32[4,1,96], index: 6, kind: input, shape index: {}]
  %s7 = inlined_call_operand.hbm [shape: f32[4,4,8,32], index: 7, kind: input, shape index: {}]
  %s8 = inlined_call_operand.vmem [shape: f32[4,1,32], index: 8, kind: input, shape index: {}]
  %s9 = inlined_call_operand.hbm [shape: f32[4,32,32], index: 9, kind: input, shape index: {}]
  %s10 = inlined_call_operand.vmem [shape: f32[4,1,32], index: 10, kind: input, shape index: {}]
  %s11 = inlined_call_operand.hbm [shape: f32[4,32,32], index: 11, kind: input, shape index: {}]
  %s12 = inlined_call_operand.vmem [shape: f32[4,1,32], index: 12, kind: input, shape index: {}]
  %s13 = inlined_call_operand.hbm [shape: f32[2,8,32], index: 13, kind: output, shape index: {0}]
  %s14 = inlined_call_operand.hbm [shape: f32[2,8,32], index: 14, kind: output, shape index: {1}]
  %15 = xla_tuple %s13, %s14
  %s16 = sld [smem:[#allocation0]]
  $region106: #{tpu_custom_call.1} parent=0
    _
  %s18 = ssub.s32 1, %s16
  %s19 = scalar_select 0, %s18, %s16
  $region1: #{tpu_custom_call.1} parent=0
    #allocation2 [shape = 'u8[8192]{0}', space=vmem, size = 0x2000, scoped, tag = 'input window, operand 0, single buffered']
    #allocation3 [shape = 's32[1]{0}', space=sflag, size = 0x4, scoped, tag = 'scoped memory for tpu_custom_call.1']
    #allocation4 [shape = 's32[1]{0}', space=sflag, size = 0x4, scoped, tag = 'scoped memory for tpu_custom_call.1']
    #allocation5 [shape = 'u8[8192]{0}', space=vmem, size = 0x2000, scoped, tag = 'input window, operand 1, single buffered']
    #allocation6 [shape = 's32[1]{0}', space=sflag, size = 0x4, scoped, tag = 'scoped memory for tpu_custom_call.1']
    #allocation7 [shape = 'u8[4096]{0}', space=vmem, size = 0x1000, scoped, tag = 'input window, operand 2, single buffered']
    #allocation8 [shape = 'u8[5632]{0}', space=vmem, size = 0x1800, scoped, tag = 'input window, operand 3, single buffered']
    #allocation9 [shape = 's32[1]{0}', space=sflag, size = 0x4, scoped, tag = 'scoped memory for tpu_custom_call.1']
    #allocation10 [shape = 'u8[5632]{0}', space=vmem, size = 0x1800, scoped, tag = 'input window, operand 4, single buffered']
    #allocation11 [shape = 'u8[65536]{0}', space=vmem, size = 0x10000, scoped, tag = 'input window, operand 5, single buffered']
    #allocation12 [shape = 's32[1]{0}', space=sflag, size = 0x4, scoped, tag = 'scoped memory for tpu_custom_call.1']
    #allocation13 [shape = 'u8[65536]{0}', space=vmem, size = 0x10000, scoped, tag = 'input window, operand 7, single buffered']
    #allocation14 [shape = 'u8[65536]{0}', space=vmem, size = 0x10000, scoped, tag = 'input window, operand 9, single buffered']
    #allocation15 [shape = 's32[1]{0}', space=sflag, size = 0x4, scoped, tag = 'scoped memory for tpu_custom_call.1']
    #allocation16 [shape = 'u8[65536]{0}', space=vmem, size = 0x10000, scoped, tag = 'input window, operand 11, single buffered']
    #allocation17 [shape = 'u8[8192]{0}', space=vmem, size = 0x2000, scoped, tag = 'output window, operand 0, single buffered']
    #allocation18 [shape = 'u8[8192]{0}', space=vmem, size = 0x2000, scoped, tag = 'output window, operand 1, single buffered']
    #allocation19 [shape = 's32[1]{0}', space=sflag, size = 0x4, scoped, tag = 'scoped memory for tpu_custom_call.1']
    %20 = vsyncpa [#allocation3], 0
    %21 = vsyncpa [#allocation6], 0
    %22 = vsyncpa [#allocation9], 0
    %23 = vsyncpa [#allocation12], 0
    %24 = vsyncpa [#allocation15], 0
    %25 = vsyncpa [#allocation4], 0
    %26 = vsyncpa [#allocation19], 0
    // Predicated region
    $region2: #{tpu_custom_call.1} parent=1 // pred_check
      _
    $region3: #{tpu_custom_call.1} parent=1 // pred_check_branch
      %28 = sbr.rel (0) target = $region5
    $region4: #{tpu_custom_call.1} parent=1 // pred_region
      %s30 = ssub.s32 256, 256
      %31 = vsyncadd [#allocation3], %s30
      %s32 = sshll.u32 [#allocation2], 4
      %s33 = int_to_ptr.vmem [resolvable:$true] %s32
      %38 = dma.hbm_to_vmem [thread:$0]  %s0, 256, %s33, [#allocation3], 128, 128, 8
    $region5: #{tpu_custom_call.1} parent=1 // pred_fallthru
      _
    // Predicated region
    $region6: #{tpu_custom_call.1} parent=1 // pred_check
      _
    $region7: #{tpu_custom_call.1} parent=1 // pred_check_branch
      %40 = sbr.rel (0) target = $region9
    $region8: #{tpu_custom_call.1} parent=1 // pred_region
      %s42 = ssub.s32 256, 256
      %43 = vsyncadd [#allocation6], %s42
      %s44 = sshll.u32 [#allocation5], 4
      %s45 = int_to_ptr.vmem [resolvable:$true] %s44
      %50 = dma.hbm_to_vmem [thread:$0]  %s1, 256, %s45, [#allocation6], 128, 128, 8
    $region9: #{tpu_custom_call.1} parent=1 // pred_fallthru
      _
    // Predicated region
    $region10: #{tpu_custom_call.1} parent=1 // pred_check
      _
    $region11: #{tpu_custom_call.1} parent=1 // pred_check_branch
      %52 = sbr.rel (0) target = $region13
    $region12: #{tpu_custom_call.1} parent=1 // pred_region
      %s54 = ssub.s32 128, 128
      %55 = vsyncadd [#allocation6], %s54
      %s57 = sshll.u32 [#allocation7], 4
      %s58 = int_to_ptr.vmem [resolvable:$true] %s57
      %60 = dma.hbm_to_vmem [thread:$0]  %s2, 128, %s58, [#allocation6]
    $region13: #{tpu_custom_call.1} parent=1 // pred_fallthru
      _
    // Predicated region
    $region14: #{tpu_custom_call.1} parent=1 // pred_check
      _
    $region15: #{tpu_custom_call.1} parent=1 // pred_check_branch
      %62 = sbr.rel (0) target = $region17
    $region16: #{tpu_custom_call.1} parent=1 // pred_region
      %s64 = ssub.s32 176, 176
      %65 = vsyncadd [#allocation9], %s64
      %s66 = sshll.u32 [#allocation8], 4
      %s67 = int_to_ptr.vmem [resolvable:$true] %s66
      %72 = dma.hbm_to_vmem [thread:$0]  %s3, 176, %s67, [#allocation9], 16, 16, 1
    $region17: #{tpu_custom_call.1} parent=1 // pred_fallthru
      _
    // Predicated region
    $region18: #{tpu_custom_call.1} parent=1 // pred_check
      _
    $region19: #{tpu_custom_call.1} parent=1 // pred_check_branch
      %74 = sbr.rel (0) target = $region21
    $region20: #{tpu_custom_call.1} parent=1 // pred_region
      %s76 = ssub.s32 176, 176
      %77 = vsyncadd [#allocation9], %s76
      %s78 = sshll.u32 [#allocation10], 4
      %s79 = int_to_ptr.vmem [resolvable:$true] %s78
      %84 = dma.hbm_to_vmem [thread:$0]  %s4, 176, %s79, [#allocation9], 16, 16, 1
    $region21: #{tpu_custom_call.1} parent=1 // pred_fallthru
      _
    // Predicated region
    $region22: #{tpu_custom_call.1} parent=1 // pred_check
      _
    $region23: #{tpu_custom_call.1} parent=1 // pred_check_branch
      %86 = sbr.rel (0) target = $region25
    $region24: #{tpu_custom_call.1} parent=1 // pred_region
      %s88 = ssub.s32 2048, 2048
      %89 = vsyncadd [#allocation12], %s88
      %s90 = sshll.u32 [#allocation11], 4
      %s91 = int_to_ptr.vmem [resolvable:$true] %s90
      %96 = dma.hbm_to_vmem [thread:$0]  %s5, 2048, %s91, [#allocation12], 128, 128, 8
    $region25: #{tpu_custom_call.1} parent=1 // pred_fallthru
      _
    // Predicated region
    $region26: #{tpu_custom_call.1} parent=1 // pred_check
      _
    $region27: #{tpu_custom_call.1} parent=1 // pred_check_branch
      %98 = sbr.rel (0) target = $region29
    $region28: #{tpu_custom_call.1} parent=1 // pred_region
      _
    $region29: #{tpu_custom_call.1} parent=1 // pred_fallthru
      _
    // Predicated region
    $region30: #{tpu_custom_call.1} parent=1 // pred_check
      _
    $region31: #{tpu_custom_call.1} parent=1 // pred_check_branch
      %100 = sbr.rel (0) target = $region33
    $region32: #{tpu_custom_call.1} parent=1 // pred_region
      %s102 = ssub.s32 2048, 2048
      %103 = vsyncadd [#allocation12], %s102
      %s104 = sshll.u32 [#allocation13], 4
      %s105 = int_to_ptr.vmem [resolvable:$true] %s104
      %110 = dma.hbm_to_vmem [thread:$0]  %s7, 2048, %s105, [#allocation12], 128, 128, 8
    $region33: #{tpu_custom_call.1} parent=1 // pred_fallthru
      _
    // Predicated region
    $region34: #{tpu_custom_call.1} parent=1 // pred_check
      _
    $region35: #{tpu_custom_call.1} parent=1 // pred_check_branch
      %112 = sbr.rel (0) target = $region37
    $region36: #{tpu_custom_call.1} parent=1 // pred_region
      _
    $region37: #{tpu_custom_call.1} parent=1 // pred_fallthru
      _
    // Predicated region
    $region38: #{tpu_custom_call.1} parent=1 // pred_check
      _
    $region39: #{tpu_custom_call.1} parent=1 // pred_check_branch
      %114 = sbr.rel (0) target = $region41
    $region40: #{tpu_custom_call.1} parent=1 // pred_region
      %s116 = ssub.s32 2048, 2048
      %117 = vsyncadd [#allocation15], %s116
      %s118 = sshll.u32 [#allocation14], 4
      %s119 = int_to_ptr.vmem [resolvable:$true] %s118
      %124 = dma.hbm_to_vmem [thread:$0]  %s9, 2048, %s119, [#allocation15], 128, 128, 8
    $region41: #{tpu_custom_call.1} parent=1 // pred_fallthru
      _
    // Predicated region
    $region42: #{tpu_custom_call.1} parent=1 // pred_check
      _
    $region43: #{tpu_custom_call.1} parent=1 // pred_check_branch
      %126 = sbr.rel (0) target = $region45
    $region44: #{tpu_custom_call.1} parent=1 // pred_region
      _
    $region45: #{tpu_custom_call.1} parent=1 // pred_fallthru
      _
    // Predicated region
    $region46: #{tpu_custom_call.1} parent=1 // pred_check
      _
    $region47: #{tpu_custom_call.1} parent=1 // pred_check_branch
      %128 = sbr.rel (0) target = $region49
    $region48: #{tpu_custom_call.1} parent=1 // pred_region
      %s130 = ssub.s32 2048, 2048
      %131 = vsyncadd [#allocation15], %s130
      %s132 = sshll.u32 [#allocation16], 4
      %s133 = int_to_ptr.vmem [resolvable:$true] %s132
      %138 = dma.hbm_to_vmem [thread:$0]  %s11, 2048, %s133, [#allocation15], 128, 128, 8
    $region49: #{tpu_custom_call.1} parent=1 // pred_fallthru
      _
    // Predicated region
    $region50: #{tpu_custom_call.1} parent=1 // pred_check
      _
    $region51: #{tpu_custom_call.1} parent=1 // pred_check_branch
      %140 = sbr.rel (0) target = $region53
    $region52: #{tpu_custom_call.1} parent=1 // pred_region
      _
    $region53: #{tpu_custom_call.1} parent=1 // pred_fallthru
      _
    // Predicated region
    $region54: #{tpu_custom_call.1} parent=1 // pred_check
      _
    $region55: #{tpu_custom_call.1} parent=1 // pred_check_branch
      %142 = sbr.rel (0) target = $region57
    $region56: #{tpu_custom_call.1} parent=1 // pred_region
      %143 = dma.done [#allocation3], 256
    $region57: #{tpu_custom_call.1} parent=1 // pred_fallthru
      _
    // Predicated region
    $region58: #{tpu_custom_call.1} parent=1 // pred_check
      _
    $region59: #{tpu_custom_call.1} parent=1 // pred_check_branch
      %145 = sbr.rel (0) target = $region61
    $region60: #{tpu_custom_call.1} parent=1 // pred_region
      %146 = dma.done [#allocation6], 256
    $region61: #{tpu_custom_call.1} parent=1 // pred_fallthru
      _
    // Predicated region
    $region62: #{tpu_custom_call.1} parent=1 // pred_check
      _
    $region63: #{tpu_custom_call.1} parent=1 // pred_check_branch
      %148 = sbr.rel (0) target = $region65
    $region64: #{tpu_custom_call.1} parent=1 // pred_region
      %149 = dma.done [#allocation6], 128
    $region65: #{tpu_custom_call.1} parent=1 // pred_fallthru
      _
    // Predicated region
    $region66: #{tpu_custom_call.1} parent=1 // pred_check
      _
    $region67: #{tpu_custom_call.1} parent=1 // pred_check_branch
      %151 = sbr.rel (0) target = $region69
    $region68: #{tpu_custom_call.1} parent=1 // pred_region
      %152 = dma.done [#allocation9], 176
    $region69: #{tpu_custom_call.1} parent=1 // pred_fallthru
      _
    // Predicated region
    $region70: #{tpu_custom_call.1} parent=1 // pred_check
      _
    $region71: #{tpu_custom_call.1} parent=1 // pred_check_branch
      %154 = sbr.rel (0) target = $region73
    $region72: #{tpu_custom_call.1} parent=1 // pred_region
      %155 = dma.done [#allocation9], 176
    $region73: #{tpu_custom_call.1} parent=1 // pred_fallthru
      _
    // Predicated region
    $region74: #{tpu_custom_call.1} parent=1 // pred_check
      _
    $region75: #{tpu_custom_call.1} parent=1 // pred_check_branch
      %157 = sbr.rel (0) target = $region77
    $region76: #{tpu_custom_call.1} parent=1 // pred_region
      %158 = dma.done [#allocation12], 2048
    $region77: #{tpu_custom_call.1} parent=1 // pred_fallthru
      _
    // Predicated region
    $region78: #{tpu_custom_call.1} parent=1 // pred_check
      _
    $region79: #{tpu_custom_call.1} parent=1 // pred_check_branch
      %160 = sbr.rel (0) target = $region81
    $region80: #{tpu_custom_call.1} parent=1 // pred_region
      %161 = dma.done [#allocation12], 2048
    $region81: #{tpu_custom_call.1} parent=1 // pred_fallthru
      _
    // Predicated region
    $region82: #{tpu_custom_call.1} parent=1 // pred_check
      _
    $region83: #{tpu_custom_call.1} parent=1 // pred_check_branch
      %163 = sbr.rel (0) target = $region85
    $region84: #{tpu_custom_call.1} parent=1 // pred_region
      %164 = dma.done [#allocation15], 2048
    $region85: #{tpu_custom_call.1} parent=1 // pred_fallthru
      _
    // Predicated region
    $region86: #{tpu_custom_call.1} parent=1 // pred_check
      _
    $region87: #{tpu_custom_call.1} parent=1 // pred_check_branch
      %166 = sbr.rel (0) target = $region89
    $region88: #{tpu_custom_call.1} parent=1 // pred_region
      %167 = dma.done [#allocation15], 2048
    $region89: #{tpu_custom_call.1} parent=1 // pred_fallthru
      _
    %v168 = vld [vmem:[#allocation2] sm:$0xff]
    %v169 = vld [vmem:[#allocation2 + $0x8] sm:$0xff]
    %v170 = vld [vmem:[#allocation5] sm:$0xff]
    %v171 = vld [vmem:[#allocation5 + $0x8] sm:$0xff]
    %v172 = vld [vmem:[#allocation7] sm:$0xff]
    %v173 = vld [vmem:[#allocation8] sm:$0x1]
    %v174 = vld [vmem:[#allocation10] sm:$0x1]
    %vm175 = vcmask 261120
    %v176 = vsel %vm175, %v168, 0.0
    %177 = vadd.xlane.f32.xlu0 %v176
    %v178 = vpop.xlane.xlu0 %177
    %v179 = vsel %vm175, %v169, 0.0
    %180 = vadd.xlane.f32.xlu0 %v179
    %v181 = vpop.xlane.xlu0 %180
    %v182 = vrcp.pop 32.0
    %v183 = vmul.f32 %v178, %v182
    %v184 = vmul.f32 %v181, %v182
    %v185 = vsub.f32 %v168, %v183
    %v186 = vsub.f32 %v169, %v184
    %v187 = vmul.f32 %v185, %v185
    %v188 = vmul.f32 %v186, %v186
    %v189 = vsel %vm175, %v187, 0.0
    %190 = vadd.xlane.f32.xlu0 %v189
    %v191 = vpop.xlane.xlu0 %190
    %v192 = vsel %vm175, %v188, 0.0
    %193 = vadd.xlane.f32.xlu0 %v192
    %v194 = vpop.xlane.xlu0 %193
    %v195 = vmul.f32 %v191, %v182
    %v196 = vmul.f32 %v194, %v182
    %v197 = vadd.f32 %v195, 1e-05
    %v198 = vadd.f32 %v196, 1e-05
    %v199 = vrsqrt.pop %v197
    %v200 = vrsqrt.pop %v198
    %v201 = vmul.f32 %v185, %v199
    %v202 = vmul.f32 %v186, %v200
    %v204 = vlaneseq
    %v205 = vshrl.u32 %v204, 7
    %v206 = vsub.s32 0, %v205
    %v207 = vrot.slane %v173, %v206
    %v209 = vmul.f32 %v201, %v207
    %v210 = vmul.f32 %v202, %v207
    %v212 = vlaneseq
    %v213 = vshrl.u32 %v212, 7
    %v214 = vsub.s32 0, %v213
    %v215 = vrot.slane %v174, %v214
    %v217 = vadd.f32 %v209, %v215
    %v218 = vadd.f32 %v210, %v215
    %v219 = vsel %vm175, %v170, 0.0
    %220 = vadd.xlane.f32.xlu0 %v219
    %v221 = vpop.xlane.xlu0 %220
    %v222 = vsel %vm175, %v171, 0.0
    %223 = vadd.xlane.f32.xlu0 %v222
    %v224 = vpop.xlane.xlu0 %223
    %v225 = vmul.f32 %v221, %v182
    %v226 = vmul.f32 %v224, %v182
    %v227 = vsub.f32 %v170, %v225
    %v228 = vsub.f32 %v171, %v226
    %v229 = vmul.f32 %v227, %v227
    %v230 = vmul.f32 %v228, %v228
    %v231 = vsel %vm175, %v229, 0.0
    %232 = vadd.xlane.f32.xlu0 %v231
    %v233 = vpop.xlane.xlu0 %232
    %v234 = vsel %vm175, %v230, 0.0
    %235 = vadd.xlane.f32.xlu0 %v234
    %v236 = vpop.xlane.xlu0 %235
    %v237 = vmul.f32 %v233, %v182
    %v238 = vmul.f32 %v236, %v182
    %v239 = vadd.f32 %v237, 1e-05
    %v240 = vadd.f32 %v238, 1e-05
    %v241 = vrsqrt.pop %v239
    %v242 = vrsqrt.pop %v240
    %v243 = vmul.f32 %v227, %v241
    %v244 = vmul.f32 %v228, %v242
    %v245 = vmul.f32 %v243, %v207
    %v246 = vmul.f32 %v244, %v207
    %v247 = vadd.f32 %v245, %v215
    %v248 = vadd.f32 %v246, %v215
    %s249 = scalar_lea.vmem [#allocation8], 1
    %v250 = vld [vmem:[%s249] sm:$0x1]
    %s251 = scalar_lea.vmem [#allocation10], 1
    %v252 = vld [vmem:[%s251] sm:$0x1]
    %v253 = vsel %vm175, %v217, 0.0
    %254 = vadd.xlane.f32.xlu0 %v253
    %v255 = vpop.xlane.xlu0 %254
    %v256 = vsel %vm175, %v218, 0.0
    %257 = vadd.xlane.f32.xlu0 %v256
    %v258 = vpop.xlane.xlu0 %257
    %v259 = vmul.f32 %v255, %v182
    %v260 = vmul.f32 %v258, %v182
    %v261 = vsub.f32 %v217, %v259
    %v262 = vsub.f32 %v218, %v260
    %v263 = vmul.f32 %v261, %v261
    %v264 = vmul.f32 %v262, %v262
    %v265 = vsel %vm175, %v263, 0.0
    %266 = vadd.xlane.f32.xlu0 %v265
    %v267 = vpop.xlane.xlu0 %266
    %v268 = vsel %vm175, %v264, 0.0
    %269 = vadd.xlane.f32.xlu0 %v268
    %v270 = vpop.xlane.xlu0 %269
    %v271 = vmul.f32 %v267, %v182
    %v272 = vmul.f32 %v270, %v182
    %v273 = vadd.f32 %v271, 1e-05
    %v274 = vadd.f32 %v272, 1e-05
    %v275 = vrsqrt.pop %v273
    %v276 = vrsqrt.pop %v274
    %v277 = vmul.f32 %v261, %v275
    %v278 = vmul.f32 %v262, %v276
    %v280 = vlaneseq
    %v281 = vshrl.u32 %v280, 7
    %v282 = vsub.s32 0, %v281
    %v283 = vrot.slane %v250, %v282
    %v285 = vmul.f32 %v277, %v283
    %v286 = vmul.f32 %v278, %v283
    %v288 = vlaneseq
    %v289 = vshrl.u32 %v288, 7
    %v290 = vsub.s32 0, %v289
    %v291 = vrot.slane %v252, %v290
    %v293 = vadd.f32 %v285, %v291
    %v294 = vadd.f32 %v286, %v291
    %v295 = vld [vmem:[#allocation11] sm:$0xff]
    %v296 = vld [vmem:[#allocation11 + $0x8] sm:$0xff]
    %v297 = vld [vmem:[#allocation11 + $0x10] sm:$0xff]
    %v298 = vld [vmem:[#allocation11 + $0x18] sm:$0xff]
    %v299 = vld [vmem:[%s6] sm:$0x1]
    %v301 = vlaneseq
    %v302 = vshrl.u32 %v301, 7
    %v303 = vsub.s32 0, %v302
    %v304 = vrot.slane %v299, %v303
    %v307 = vsel %vm175, %v293, 0
    %v310 = vsel %vm175, %v294, 0
    %312 = vmatprep.subr.mxu0 0.0
    %313 = vmatpush1.msra.mxu0 0.0
    %314 = vmatprep.subr.mxu0 0.0
    %315 = vmatpush1.msra.mxu0 0.0
    %316 = vmatprep.subr.mxu0 0.0
    %317 = vmatpush1.msra.mxu0 0.0
    %318 = vmatprep.subr.mxu0 0.0
    %319 = vmatpush1.msra.mxu0 0.0
    %320 = vmatprep.subr.mxu0 0.0
    %321 = vmatpush1.msra.mxu0 0.0
    %322 = vmatprep.subr.mxu0 0.0
    %323 = vmatpush1.msra.mxu0 0.0
    %324 = vmatprep.subr.mxu0 0.0
    %325 = vmatpush1.msra.mxu0 0.0
    %326 = vmatprep.subr.mxu0 0.0
    %327 = vmatpush1.msra.mxu0 0.0
    %328 = vmatprep.subr.mxu0 0.0
    %329 = vmatpush1.msra.mxu0 0.0
    %330 = vmatprep.subr.mxu0 0.0
    %331 = vmatpush1.msra.mxu0 0.0
    %332 = vmatprep.subr.mxu0 0.0
    %333 = vmatpush1.msra.mxu0 0.0
    %334 = vmatprep.subr.mxu0 0.0
    %335 = vmatpush1.msra.mxu0 0.0
    %336 = vmatprep.subr.mxu0 0.0
    %337 = vmatpush1.msra.mxu0 %v298
    %338 = vmatprep.subr.mxu0 0.0
    %339 = vmatpush1.msra.mxu0 %v297
    %340 = vmatprep.subr.mxu0 0.0
    %341 = vmatpush1.msra.mxu0 %v296
    %342 = vmatprep.subr.mxu0 0.0
    %343 = vmatpush1.msra.mxu0 %v295
    %344 = vmatprep.subr.mxu0 0.0
    %345 = vmatpush2.msra.mxu0 0.0
    %346 = vmatprep.subr.mxu0 0.0
    %347 = vmatpush2.msra.mxu0 0.0
    %348 = vmatprep.subr.mxu0 0.0
    %349 = vmatpush2.msra.mxu0 0.0
    %350 = vmatprep.subr.mxu0 0.0
    %351 = vmatpush2.msra.mxu0 0.0
    %352 = vmatprep.subr.mxu0 0.0
    %353 = vmatpush2.msra.mxu0 0.0
    %354 = vmatprep.subr.mxu0 0.0
    %355 = vmatpush2.msra.mxu0 0.0
    %356 = vmatprep.subr.mxu0 0.0
    %357 = vmatpush2.msra.mxu0 0.0
    %358 = vmatprep.subr.mxu0 0.0
    %359 = vmatpush2.msra.mxu0 0.0
    %360 = vmatprep.subr.mxu0 0.0
    %361 = vmatpush2.msra.mxu0 0.0
    %362 = vmatprep.subr.mxu0 0.0
    %363 = vmatpush2.msra.mxu0 0.0
    %364 = vmatprep.subr.mxu0 0.0
    %365 = vmatpush2.msra.mxu0 0.0
    %366 = vmatprep.subr.mxu0 0.0
    %367 = vmatpush2.msra.mxu0 0.0
    %368 = vmatprep.subr.mxu0 0.0
    %369 = vmatpush2.msra.mxu0 0.0
    %370 = vmatprep.subr.mxu0 0.0
    %371 = vmatpush2.msra.mxu0 0.0
    %372 = vmatprep.subr.mxu0 0.0
    %373 = vmatpush2.msra.mxu0 0.0
    %374 = vmatprep.subr.mxu0 0.0
    %375 = vmatpush2.msra.mxu0 0.0
    %376 = vmatprep.mubr.f32.mxu0 0.0
    %377 = vmatmul.mubr.f32.gmra.mxu0 %v307
    %v378 = vpop.f32.mrf.mxu0
    %v379 = vadd.f32 %v304, %v378
    %v380 = vpop.f32.mrf.mxu0
    %381 = vmatprep.mubr.f32.mxu0 0.0
    %382 = vmatmul.mubr.f32.gmra.mxu0 %v310
    %v383 = vpop.f32.mrf.mxu0
    %v384 = vadd.f32 %v304, %v383
    %v385 = vpop.f32.mrf.mxu0
    %386 = vdwg.mxu0
    %388 = vrot.lane.b32.xlu0 %v379, 96
    %v389 = vpop.permute.xlu0 %388
    %vm390 = vcmask 64512
    %v391 = vsel %vm390, %v379, 0
    %v393 = vsel %vm390, %v389, 0
    %395 = vmatprep.subr.mxu0 0.0
    %396 = vmatpush1.xpose.msra.mxu0 0.0
    %397 = vmatprep.subr.mxu0 0.0
    %398 = vmatpush1.xpose.msra.mxu0 0.0
    %399 = vmatprep.subr.mxu0 0.0
    %400 = vmatpush1.xpose.msra.mxu0 0.0
    %401 = vmatprep.subr.mxu0 0.0
    %402 = vmatpush1.xpose.msra.mxu0 0.0
    %403 = vmatprep.subr.mxu0 0.0
    %404 = vmatpush1.xpose.msra.mxu0 0.0
    %405 = vmatprep.subr.mxu0 0.0
    %406 = vmatpush1.xpose.msra.mxu0 0.0
    %407 = vmatprep.subr.mxu0 0.0
    %408 = vmatpush1.xpose.msra.mxu0 0.0
    %409 = vmatprep.subr.mxu0 0.0
    %410 = vmatpush1.xpose.msra.mxu0 0.0
    %411 = vmatprep.subr.mxu0 0.0
    %412 = vmatpush1.xpose.msra.mxu0 0.0
    %413 = vmatprep.subr.mxu0 0.0
    %414 = vmatpush1.xpose.msra.mxu0 0.0
    %415 = vmatprep.subr.mxu0 0.0
    %416 = vmatpush1.xpose.msra.mxu0 0.0
    %417 = vmatprep.subr.mxu0 0.0
    %418 = vmatpush1.xpose.msra.mxu0 0.0
    %419 = vmatprep.subr.mxu0 0.0
    %420 = vmatpush1.xpose.msra.mxu0 0.0
    %421 = vmatprep.subr.mxu0 0.0
    %422 = vmatpush1.xpose.msra.mxu0 0.0
    %423 = vmatprep.subr.mxu0 0.0
    %424 = vmatpush1.xpose.msra.mxu0 0.0
    %425 = vmatprep.subr.mxu0 0.0
    %426 = vmatpush1.xpose.msra.mxu0 %v393
    %427 = vmatprep.subr.mxu0 0.0
    %428 = vmatpush2.xpose.msra.mxu0 0.0
    %429 = vmatprep.subr.mxu0 0.0
    %430 = vmatpush2.xpose.msra.mxu0 0.0
    %431 = vmatprep.subr.mxu0 0.0
    %432 = vmatpush2.xpose.msra.mxu0 0.0
    %433 = vmatprep.subr.mxu0 0.0
    %434 = vmatpush2.xpose.msra.mxu0 0.0
    %435 = vmatprep.subr.mxu0 0.0
    %436 = vmatpush2.xpose.msra.mxu0 0.0
    %437 = vmatprep.subr.mxu0 0.0
    %438 = vmatpush2.xpose.msra.mxu0 0.0
    %439 = vmatprep.subr.mxu0 0.0
    %440 = vmatpush2.xpose.msra.mxu0 0.0
    %441 = vmatprep.subr.mxu0 0.0
    %442 = vmatpush2.xpose.msra.mxu0 0.0
    %443 = vmatprep.subr.mxu0 0.0
    %444 = vmatpush2.xpose.msra.mxu0 0.0
    %445 = vmatprep.subr.mxu0 0.0
    %446 = vmatpush2.xpose.msra.mxu0 0.0
    %447 = vmatprep.subr.mxu0 0.0
    %448 = vmatpush2.xpose.msra.mxu0 0.0
    %449 = vmatprep.subr.mxu0 0.0
    %450 = vmatpush2.xpose.msra.mxu0 0.0
    %451 = vmatprep.subr.mxu0 0.0
    %452 = vmatpush2.xpose.msra.mxu0 0.0
    %453 = vmatprep.subr.mxu0 0.0
    %454 = vmatpush2.xpose.msra.mxu0 0.0
    %455 = vmatprep.subr.mxu0 0.0
    %456 = vmatpush2.xpose.msra.mxu0 0.0
    %457 = vmatprep.subr.mxu0 0.0
    %458 = vmatpush2.xpose.msra.mxu0 0.0
    %459 = vmatprep.mubr.f32.mxu0 0.0
    %460 = vmatmul.mubr.f32.gmra.mxu0 %v391
    %v461 = vpop.f32.mrf.mxu0
    %v462 = vadd.f32 0.0, %v461
    %v463 = vpop.f32.mrf.mxu0
    %464 = vdwg.mxu0
    %466 = vrot.lane.b32.xlu0 %v384, 96
    %v467 = vpop.permute.xlu0 %466
    %v468 = vsel %vm390, %v384, 0
    %v470 = vsel %vm390, %v467, 0
    %472 = vmatprep.subr.mxu0 0.0
    %473 = vmatpush1.xpose.msra.mxu0 0.0
    %474 = vmatprep.subr.mxu0 0.0
    %475 = vmatpush1.xpose.msra.mxu0 0.0
    %476 = vmatprep.subr.mxu0 0.0
    %477 = vmatpush1.xpose.msra.mxu0 0.0
    %478 = vmatprep.subr.mxu0 0.0
    %479 = vmatpush1.xpose.msra.mxu0 0.0
    %480 = vmatprep.subr.mxu0 0.0
    %481 = vmatpush1.xpose.msra.mxu0 0.0
    %482 = vmatprep.subr.mxu0 0.0
    %483 = vmatpush1.xpose.msra.mxu0 0.0
    %484 = vmatprep.subr.mxu0 0.0
    %485 = vmatpush1.xpose.msra.mxu0 0.0
    %486 = vmatprep.subr.mxu0 0.0
    %487 = vmatpush1.xpose.msra.mxu0 0.0
    %488 = vmatprep.subr.mxu0 0.0
    %489 = vmatpush1.xpose.msra.mxu0 0.0
    %490 = vmatprep.subr.mxu0 0.0
    %491 = vmatpush1.xpose.msra.mxu0 0.0
    %492 = vmatprep.subr.mxu0 0.0
    %493 = vmatpush1.xpose.msra.mxu0 0.0
    %494 = vmatprep.subr.mxu0 0.0
    %495 = vmatpush1.xpose.msra.mxu0 0.0
    %496 = vmatprep.subr.mxu0 0.0
    %497 = vmatpush1.xpose.msra.mxu0 0.0
    %498 = vmatprep.subr.mxu0 0.0
    %499 = vmatpush1.xpose.msra.mxu0 0.0
    %500 = vmatprep.subr.mxu0 0.0
    %501 = vmatpush1.xpose.msra.mxu0 0.0
    %502 = vmatprep.subr.mxu0 0.0
    %503 = vmatpush1.xpose.msra.mxu0 %v470
    %504 = vmatprep.subr.mxu0 0.0
    %505 = vmatpush2.xpose.msra.mxu0 0.0
    %506 = vmatprep.subr.mxu0 0.0
    %507 = vmatpush2.xpose.msra.mxu0 0.0
    %508 = vmatprep.subr.mxu0 0.0
    %509 = vmatpush2.xpose.msra.mxu0 0.0
    %510 = vmatprep.subr.mxu0 0.0
    %511 = vmatpush2.xpose.msra.mxu0 0.0
    %512 = vmatprep.subr.mxu0 0.0
    %513 = vmatpush2.xpose.msra.mxu0 0.0
    %514 = vmatprep.subr.mxu0 0.0
    %515 = vmatpush2.xpose.msra.mxu0 0.0
    %516 = vmatprep.subr.mxu0 0.0
    %517 = vmatpush2.xpose.msra.mxu0 0.0
    %518 = vmatprep.subr.mxu0 0.0
    %519 = vmatpush2.xpose.msra.mxu0 0.0
    %520 = vmatprep.subr.mxu0 0.0
    %521 = vmatpush2.xpose.msra.mxu0 0.0
    %522 = vmatprep.subr.mxu0 0.0
    %523 = vmatpush2.xpose.msra.mxu0 0.0
    %524 = vmatprep.subr.mxu0 0.0
    %525 = vmatpush2.xpose.msra.mxu0 0.0
    %526 = vmatprep.subr.mxu0 0.0
    %527 = vmatpush2.xpose.msra.mxu0 0.0
    %528 = vmatprep.subr.mxu0 0.0
    %529 = vmatpush2.xpose.msra.mxu0 0.0
    %530 = vmatprep.subr.mxu0 0.0
    %531 = vmatpush2.xpose.msra.mxu0 0.0
    %532 = vmatprep.subr.mxu0 0.0
    %533 = vmatpush2.xpose.msra.mxu0 0.0
    %534 = vmatprep.subr.mxu0 0.0
    %535 = vmatpush2.xpose.msra.mxu0 0.0
    %536 = vmatprep.mubr.f32.mxu0 0.0
    %537 = vmatmul.mubr.f32.gmra.mxu0 %v468
    %v538 = vpop.f32.mrf.mxu0
    %v539 = vadd.f32 0.0, %v538
    %v540 = vpop.f32.mrf.mxu0
    %541 = vdwg.mxu0
    %v542 = vmul.f32 %v462, 0.35355338
    %v543 = vmul.f32 %v539, 0.35355338
    %v544 = vadd.f32 %v542, %v172
    %v545 = vadd.f32 %v543, %v172
    %v546 = vsel %vm390, %v544, -inf
    %547 = vmax.xlane.f32.xlu0 %v546
    %v548 = vpop.xlane.xlu0 %547
    %v549 = vsel %vm390, %v545, -inf
    %550 = vmax.xlane.f32.xlu0 %v549
    %v551 = vpop.xlane.xlu0 %550
    %v552 = vsub.f32 %v544, %v548
    %v553 = vsub.f32 %v545, %v551
    %v554 = vmul.f32 %v552, 1.442695
    %v555 = vpow.pop %v554
    %v556 = vmul.f32 %v553, 1.442695
    %v557 = vpow.pop %v556
    %v558 = vsel %vm390, %v555, 0.0
    %559 = vadd.xlane.f32.xlu0 %v558
    %v560 = vpop.xlane.xlu0 %559
    %v561 = vsel %vm390, %v557, 0.0
    %562 = vadd.xlane.f32.xlu0 %v561
    %v563 = vpop.xlane.xlu0 %562
    %v564 = vrcp.pop %v560
    %v565 = vrcp.pop %v563
    %v566 = vmul.f32 %v555, %v564
    %v567 = vmul.f32 %v557, %v565
    %568 = vrot.lane.b32.xlu0 %v379, 64
    %v569 = vpop.permute.xlu0 %568
    %v572 = vsel %vm390, %v566, 0
    %574 = vmatprep.subr.mxu0 0.0
    %575 = vmatpush1.msra.mxu0 0.0
    %576 = vmatprep.subr.mxu0 0.0
    %577 = vmatpush1.msra.mxu0 0.0
    %578 = vmatprep.subr.mxu0 0.0
    %579 = vmatpush1.msra.mxu0 0.0
    %580 = vmatprep.subr.mxu0 0.0
    %581 = vmatpush1.msra.mxu0 0.0
    %582 = vmatprep.subr.mxu0 0.0
    %583 = vmatpush1.msra.mxu0 0.0
    %584 = vmatprep.subr.mxu0 0.0
    %585 = vmatpush1.msra.mxu0 0.0
    %586 = vmatprep.subr.mxu0 0.0
    %587 = vmatpush1.msra.mxu0 0.0
    %588 = vmatprep.subr.mxu0 0.0
    %589 = vmatpush1.msra.mxu0 0.0
    %590 = vmatprep.subr.mxu0 0.0
    %591 = vmatpush1.msra.mxu0 0.0
    %592 = vmatprep.subr.mxu0 0.0
    %593 = vmatpush1.msra.mxu0 0.0
    %594 = vmatprep.subr.mxu0 0.0
    %595 = vmatpush1.msra.mxu0 0.0
    %596 = vmatprep.subr.mxu0 0.0
    %597 = vmatpush1.msra.mxu0 0.0
    %598 = vmatprep.subr.mxu0 0.0
    %599 = vmatpush1.msra.mxu0 0.0
    %600 = vmatprep.subr.mxu0 0.0
    %601 = vmatpush1.msra.mxu0 0.0
    %602 = vmatprep.subr.mxu0 0.0
    %603 = vmatpush1.msra.mxu0 0.0
    %604 = vmatprep.subr.mxu0 0.0
    %605 = vmatpush1.msra.mxu0 %v569
    %606 = vmatprep.subr.mxu0 0.0
    %607 = vmatpush2.msra.mxu0 0.0
    %608 = vmatprep.subr.mxu0 0.0
    %609 = vmatpush2.msra.mxu0 0.0
    %610 = vmatprep.subr.mxu0 0.0
    %611 = vmatpush2.msra.mxu0 0.0
    %612 = vmatprep.subr.mxu0 0.0
    %613 = vmatpush2.msra.mxu0 0.0
    %614 = vmatprep.subr.mxu0 0.0
    %615 = vmatpush2.msra.mxu0 0.0
    %616 = vmatprep.subr.mxu0 0.0
    %617 = vmatpush2.msra.mxu0 0.0
    %618 = vmatprep.subr.mxu0 0.0
    %619 = vmatpush2.msra.mxu0 0.0
    %620 = vmatprep.subr.mxu0 0.0
    %621 = vmatpush2.msra.mxu0 0.0
    %622 = vmatprep.subr.mxu0 0.0
    %623 = vmatpush2.msra.mxu0 0.0
    %624 = vmatprep.subr.mxu0 0.0
    %625 = vmatpush2.msra.mxu0 0.0
    %626 = vmatprep.subr.mxu0 0.0
    %627 = vmatpush2.msra.mxu0 0.0
    %628 = vmatprep.subr.mxu0 0.0
    %629 = vmatpush2.msra.mxu0 0.0
    %630 = vmatprep.subr.mxu0 0.0
    %631 = vmatpush2.msra.mxu0 0.0
    %632 = vmatprep.subr.mxu0 0.0
    %633 = vmatpush2.msra.mxu0 0.0
    %634 = vmatprep.subr.mxu0 0.0
    %635 = vmatpush2.msra.mxu0 0.0
    %636 = vmatprep.subr.mxu0 0.0
    %637 = vmatpush2.msra.mxu0 0.0
    %638 = vmatprep.mubr.f32.mxu0 0.0
    %639 = vmatmul.mubr.f32.gmra.mxu0 %v572
    %v640 = vpop.f32.mrf.mxu0
    %v641 = vadd.f32 0.0, %v640
    %v642 = vpop.f32.mrf.mxu0
    %643 = vdwg.mxu0
    %644 = vrot.lane.b32.xlu0 %v384, 64
    %v645 = vpop.permute.xlu0 %644
    %v648 = vsel %vm390, %v567, 0
    %650 = vmatprep.subr.mxu0 0.0
    %651 = vmatpush1.msra.mxu0 0.0
    %652 = vmatprep.subr.mxu0 0.0
    %653 = vmatpush1.msra.mxu0 0.0
    %654 = vmatprep.subr.mxu0 0.0
    %655 = vmatpush1.msra.mxu0 0.0
    %656 = vmatprep.subr.mxu0 0.0
    %657 = vmatpush1.msra.mxu0 0.0
    %658 = vmatprep.subr.mxu0 0.0
    %659 = vmatpush1.msra.mxu0 0.0
    %660 = vmatprep.subr.mxu0 0.0
    %661 = vmatpush1.msra.mxu0 0.0
    %662 = vmatprep.subr.mxu0 0.0
    %663 = vmatpush1.msra.mxu0 0.0
    %664 = vmatprep.subr.mxu0 0.0
    %665 = vmatpush1.msra.mxu0 0.0
    %666 = vmatprep.subr.mxu0 0.0
    %667 = vmatpush1.msra.mxu0 0.0
    %668 = vmatprep.subr.mxu0 0.0
    %669 = vmatpush1.msra.mxu0 0.0
    %670 = vmatprep.subr.mxu0 0.0
    %671 = vmatpush1.msra.mxu0 0.0
    %672 = vmatprep.subr.mxu0 0.0
    %673 = vmatpush1.msra.mxu0 0.0
    %674 = vmatprep.subr.mxu0 0.0
    %675 = vmatpush1.msra.mxu0 0.0
    %676 = vmatprep.subr.mxu0 0.0
    %677 = vmatpush1.msra.mxu0 0.0
    %678 = vmatprep.subr.mxu0 0.0
    %679 = vmatpush1.msra.mxu0 0.0
    %680 = vmatprep.subr.mxu0 0.0
    %681 = vmatpush1.msra.mxu0 %v645
    %682 = vmatprep.subr.mxu0 0.0
    %683 = vmatpush2.msra.mxu0 0.0
    %684 = vmatprep.subr.mxu0 0.0
    %685 = vmatpush2.msra.mxu0 0.0
    %686 = vmatprep.subr.mxu0 0.0
    %687 = vmatpush2.msra.mxu0 0.0
    %688 = vmatprep.subr.mxu0 0.0
    %689 = vmatpush2.msra.mxu0 0.0
    %690 = vmatprep.subr.mxu0 0.0
    %691 = vmatpush2.msra.mxu0 0.0
    %692 = vmatprep.subr.mxu0 0.0
    %693 = vmatpush2.msra.mxu0 0.0
    %694 = vmatprep.subr.mxu0 0.0
    %695 = vmatpush2.msra.mxu0 0.0
    %696 = vmatprep.subr.mxu0 0.0
    %697 = vmatpush2.msra.mxu0 0.0
    %698 = vmatprep.subr.mxu0 0.0
    %699 = vmatpush2.msra.mxu0 0.0
    %700 = vmatprep.subr.mxu0 0.0
    %701 = vmatpush2.msra.mxu0 0.0
    %702 = vmatprep.subr.mxu0 0.0
    %703 = vmatpush2.msra.mxu0 0.0
    %704 = vmatprep.subr.mxu0 0.0
    %705 = vmatpush2.msra.mxu0 0.0
    %706 = vmatprep.subr.mxu0 0.0
    %707 = vmatpush2.msra.mxu0 0.0
    %708 = vmatprep.subr.mxu0 0.0
    %709 = vmatpush2.msra.mxu0 0.0
    %710 = vmatprep.subr.mxu0 0.0
    %711 = vmatpush2.msra.mxu0 0.0
    %712 = vmatprep.subr.mxu0 0.0
    %713 = vmatpush2.msra.mxu0 0.0
    %714 = vmatprep.mubr.f32.mxu0 0.0
    %715 = vmatmul.mubr.f32.gmra.mxu0 %v648
    %v716 = vpop.f32.mrf.mxu0
    %v717 = vadd.f32 0.0, %v716
    %v718 = vpop.f32.mrf.mxu0
    %719 = vdwg.mxu0
    %v720 = vld [vmem:[#allocation13] sm:$0xff]
    %721 = vrot.lane.b32.xlu0 %v379, 120
    %v722 = vpop.permute.xlu0 %721
    %723 = vrot.lane.b32.xlu0 %v379, 88
    %v724 = vpop.permute.xlu0 %723
    %v725 = vsel %vm390, %v722, 0
    %v727 = vsel %vm390, %v724, 0
    %729 = vmatprep.subr.mxu0 0.0
    %730 = vmatpush1.xpose.msra.mxu0 0.0
    %731 = vmatprep.subr.mxu0 0.0
    %732 = vmatpush1.xpose.msra.mxu0 0.0
    %733 = vmatprep.subr.mxu0 0.0
    %734 = vmatpush1.xpose.msra.mxu0 0.0
    %735 = vmatprep.subr.mxu0 0.0
    %736 = vmatpush1.xpose.msra.mxu0 0.0
    %737 = vmatprep.subr.mxu0 0.0
    %738 = vmatpush1.xpose.msra.mxu0 0.0
    %739 = vmatprep.subr.mxu0 0.0
    %740 = vmatpush1.xpose.msra.mxu0 0.0
    %741 = vmatprep.subr.mxu0 0.0
    %742 = vmatpush1.xpose.msra.mxu0 0.0
    %743 = vmatprep.subr.mxu0 0.0
    %744 = vmatpush1.xpose.msra.mxu0 0.0
    %745 = vmatprep.subr.mxu0 0.0
    %746 = vmatpush1.xpose.msra.mxu0 0.0
    %747 = vmatprep.subr.mxu0 0.0
    %748 = vmatpush1.xpose.msra.mxu0 0.0
    %749 = vmatprep.subr.mxu0 0.0
    %750 = vmatpush1.xpose.msra.mxu0 0.0
    %751 = vmatprep.subr.mxu0 0.0
    %752 = vmatpush1.xpose.msra.mxu0 0.0
    %753 = vmatprep.subr.mxu0 0.0
    %754 = vmatpush1.xpose.msra.mxu0 0.0
    %755 = vmatprep.subr.mxu0 0.0
    %756 = vmatpush1.xpose.msra.mxu0 0.0
    %757 = vmatprep.subr.mxu0 0.0
    %758 = vmatpush1.xpose.msra.mxu0 0.0
    %759 = vmatprep.subr.mxu0 0.0
    %760 = vmatpush1.xpose.msra.mxu0 %v727
    %761 = vmatprep.subr.mxu0 0.0
    %762 = vmatpush2.xpose.msra.mxu0 0.0
    %763 = vmatprep.subr.mxu0 0.0
    %764 = vmatpush2.xpose.msra.mxu0 0.0
    %765 = vmatprep.subr.mxu0 0.0
    %766 = vmatpush2.xpose.msra.mxu0 0.0
    %767 = vmatprep.subr.mxu0 0.0
    %768 = vmatpush2.xpose.msra.mxu0 0.0
    %769 = vmatprep.subr.mxu0 0.0
    %770 = vmatpush2.xpose.msra.mxu0 0.0
    %771 = vmatprep.subr.mxu0 0.0
    %772 = vmatpush2.xpose.msra.mxu0 0.0
    %773 = vmatprep.subr.mxu0 0.0
    %774 = vmatpush2.xpose.msra.mxu0 0.0
    %775 = vmatprep.subr.mxu0 0.0
    %776 = vmatpush2.xpose.msra.mxu0 0.0
    %777 = vmatprep.subr.mxu0 0.0
    %778 = vmatpush2.xpose.msra.mxu0 0.0
    %779 = vmatprep.subr.mxu0 0.0
    %780 = vmatpush2.xpose.msra.mxu0 0.0
    %781 = vmatprep.subr.mxu0 0.0
    %782 = vmatpush2.xpose.msra.mxu0 0.0
    %783 = vmatprep.subr.mxu0 0.0
    %784 = vmatpush2.xpose.msra.mxu0 0.0
    %785 = vmatprep.subr.mxu0 0.0
    %786 = vmatpush2.xpose.msra.mxu0 0.0
    %787 = vmatprep.subr.mxu0 0.0
    %788 = vmatpush2.xpose.msra.mxu0 0.0
    %789 = vmatprep.subr.mxu0 0.0
    %790 = vmatpush2.xpose.msra.mxu0 0.0
    %791 = vmatprep.subr.mxu0 0.0
    %792 = vmatpush2.xpose.msra.mxu0 0.0
    %793 = vmatprep.mubr.f32.mxu0 0.0
    %794 = vmatmul.mubr.f32.gmra.mxu0 %v725
    %v795 = vpop.f32.mrf.mxu0
    %v796 = vadd.f32 0.0, %v795
    %v797 = vpop.f32.mrf.mxu0
    %798 = vdwg.mxu0
    %799 = vrot.lane.b32.xlu0 %v384, 120
    %v800 = vpop.permute.xlu0 %799
    %801 = vrot.lane.b32.xlu0 %v384, 88
    %v802 = vpop.permute.xlu0 %801
    %v803 = vsel %vm390, %v800, 0
    %v805 = vsel %vm390, %v802, 0
    %807 = vmatprep.subr.mxu0 0.0
    %808 = vmatpush1.xpose.msra.mxu0 0.0
    %809 = vmatprep.subr.mxu0 0.0
    %810 = vmatpush1.xpose.msra.mxu0 0.0
    %811 = vmatprep.subr.mxu0 0.0
    %812 = vmatpush1.xpose.msra.mxu0 0.0
    %813 = vmatprep.subr.mxu0 0.0
    %814 = vmatpush1.xpose.msra.mxu0 0.0
    %815 = vmatprep.subr.mxu0 0.0
    %816 = vmatpush1.xpose.msra.mxu0 0.0
    %817 = vmatprep.subr.mxu0 0.0
    %818 = vmatpush1.xpose.msra.mxu0 0.0
    %819 = vmatprep.subr.mxu0 0.0
    %820 = vmatpush1.xpose.msra.mxu0 0.0
    %821 = vmatprep.subr.mxu0 0.0
    %822 = vmatpush1.xpose.msra.mxu0 0.0
    %823 = vmatprep.subr.mxu0 0.0
    %824 = vmatpush1.xpose.msra.mxu0 0.0
    %825 = vmatprep.subr.mxu0 0.0
    %826 = vmatpush1.xpose.msra.mxu0 0.0
    %827 = vmatprep.subr.mxu0 0.0
    %828 = vmatpush1.xpose.msra.mxu0 0.0
    %829 = vmatprep.subr.mxu0 0.0
    %830 = vmatpush1.xpose.msra.mxu0 0.0
    %831 = vmatprep.subr.mxu0 0.0
    %832 = vmatpush1.xpose.msra.mxu0 0.0
    %833 = vmatprep.subr.mxu0 0.0
    %834 = vmatpush1.xpose.msra.mxu0 0.0
    %835 = vmatprep.subr.mxu0 0.0
    %836 = vmatpush1.xpose.msra.mxu0 0.0
    %837 = vmatprep.subr.mxu0 0.0
    %838 = vmatpush1.xpose.msra.mxu0 %v805
    %839 = vmatprep.subr.mxu0 0.0
    %840 = vmatpush2.xpose.msra.mxu0 0.0
    %841 = vmatprep.subr.mxu0 0.0
    %842 = vmatpush2.xpose.msra.mxu0 0.0
    %843 = vmatprep.subr.mxu0 0.0
    %844 = vmatpush2.xpose.msra.mxu0 0.0
    %845 = vmatprep.subr.mxu0 0.0
    %846 = vmatpush2.xpose.msra.mxu0 0.0
    %847 = vmatprep.subr.mxu0 0.0
    %848 = vmatpush2.xpose.msra.mxu0 0.0
    %849 = vmatprep.subr.mxu0 0.0
    %850 = vmatpush2.xpose.msra.mxu0 0.0
    %851 = vmatprep.subr.mxu0 0.0
    %852 = vmatpush2.xpose.msra.mxu0 0.0
    %853 = vmatprep.subr.mxu0 0.0
    %854 = vmatpush2.xpose.msra.mxu0 0.0
    %855 = vmatprep.subr.mxu0 0.0
    %856 = vmatpush2.xpose.msra.mxu0 0.0
    %857 = vmatprep.subr.mxu0 0.0
    %858 = vmatpush2.xpose.msra.mxu0 0.0
    %859 = vmatprep.subr.mxu0 0.0
    %860 = vmatpush2.xpose.msra.mxu0 0.0
    %861 = vmatprep.subr.mxu0 0.0
    %862 = vmatpush2.xpose.msra.mxu0 0.0
    %863 = vmatprep.subr.mxu0 0.0
    %864 = vmatpush2.xpose.msra.mxu0 0.0
    %865 = vmatprep.subr.mxu0 0.0
    %866 = vmatpush2.xpose.msra.mxu0 0.0
    %867 = vmatprep.subr.mxu0 0.0
    %868 = vmatpush2.xpose.msra.mxu0 0.0
    %869 = vmatprep.subr.mxu0 0.0
    %870 = vmatpush2.xpose.msra.mxu0 0.0
    %871 = vmatprep.mubr.f32.mxu0 0.0
    %872 = vmatmul.mubr.f32.gmra.mxu0 %v803
    %v873 = vpop.f32.mrf.mxu0
    %v874 = vadd.f32 0.0, %v873
    %v875 = vpop.f32.mrf.mxu0
    %876 = vdwg.mxu0
    %v877 = vmul.f32 %v796, 0.35355338
    %v878 = vmul.f32 %v874, 0.35355338
    %v879 = vadd.f32 %v877, %v172
    %v880 = vadd.f32 %v878, %v172
    %v881 = vsel %vm390, %v879, -inf
    %882 = vmax.xlane.f32.xlu0 %v881
    %v883 = vpop.xlane.xlu0 %882
    %v884 = vsel %vm390, %v880, -inf
    %885 = vmax.xlane.f32.xlu0 %v884
    %v886 = vpop.xlane.xlu0 %885
    %v887 = vsub.f32 %v879, %v883
    %v888 = vsub.f32 %v880, %v886
    %v889 = vmul.f32 %v887, 1.442695
    %v890 = vpow.pop %v889
    %v891 = vmul.f32 %v888, 1.442695
    %v892 = vpow.pop %v891
    %v893 = vsel %vm390, %v890, 0.0
    %894 = vadd.xlane.f32.xlu0 %v893
    %v895 = vpop.xlane.xlu0 %894
    %v896 = vsel %vm390, %v892, 0.0
    %897 = vadd.xlane.f32.xlu0 %v896
    %v898 = vpop.xlane.xlu0 %897
    %v899 = vrcp.pop %v895
    %v900 = vrcp.pop %v898
    %v901 = vmul.f32 %v890, %v899
    %v902 = vmul.f32 %v892, %v900
    %903 = vrot.lane.b32.xlu0 %v379, 56
    %v904 = vpop.permute.xlu0 %903
    %v907 = vsel %vm390, %v901, 0
    %909 = vmatprep.subr.mxu0 0.0
    %910 = vmatpush1.msra.mxu0 0.0
    %911 = vmatprep.subr.mxu0 0.0
    %912 = vmatpush1.msra.mxu0 0.0
    %913 = vmatprep.subr.mxu0 0.0
    %914 = vmatpush1.msra.mxu0 0.0
    %915 = vmatprep.subr.mxu0 0.0
    %916 = vmatpush1.msra.mxu0 0.0
    %917 = vmatprep.subr.mxu0 0.0
    %918 = vmatpush1.msra.mxu0 0.0
    %919 = vmatprep.subr.mxu0 0.0
    %920 = vmatpush1.msra.mxu0 0.0
    %921 = vmatprep.subr.mxu0 0.0
    %922 = vmatpush1.msra.mxu0 0.0
    %923 = vmatprep.subr.mxu0 0.0
    %924 = vmatpush1.msra.mxu0 0.0
    %925 = vmatprep.subr.mxu0 0.0
    %926 = vmatpush1.msra.mxu0 0.0
    %927 = vmatprep.subr.mxu0 0.0
    %928 = vmatpush1.msra.mxu0 0.0
    %929 = vmatprep.subr.mxu0 0.0
    %930 = vmatpush1.msra.mxu0 0.0
    %931 = vmatprep.subr.mxu0 0.0
    %932 = vmatpush1.msra.mxu0 0.0
    %933 = vmatprep.subr.mxu0 0.0
    %934 = vmatpush1.msra.mxu0 0.0
    %935 = vmatprep.subr.mxu0 0.0
    %936 = vmatpush1.msra.mxu0 0.0
    %937 = vmatprep.subr.mxu0 0.0
    %938 = vmatpush1.msra.mxu0 0.0
    %939 = vmatprep.subr.mxu0 0.0
    %940 = vmatpush1.msra.mxu0 %v904
    %941 = vmatprep.subr.mxu0 0.0
    %942 = vmatpush2.msra.mxu0 0.0
    %943 = vmatprep.subr.mxu0 0.0
    %944 = vmatpush2.msra.mxu0 0.0
    %945 = vmatprep.subr.mxu0 0.0
    %946 = vmatpush2.msra.mxu0 0.0
    %947 = vmatprep.subr.mxu0 0.0
    %948 = vmatpush2.msra.mxu0 0.0
    %949 = vmatprep.subr.mxu0 0.0
    %950 = vmatpush2.msra.mxu0 0.0
    %951 = vmatprep.subr.mxu0 0.0
    %952 = vmatpush2.msra.mxu0 0.0
    %953 = vmatprep.subr.mxu0 0.0
    %954 = vmatpush2.msra.mxu0 0.0
    %955 = vmatprep.subr.mxu0 0.0
    %956 = vmatpush2.msra.mxu0 0.0
    %957 = vmatprep.subr.mxu0 0.0
    %958 = vmatpush2.msra.mxu0 0.0
    %959 = vmatprep.subr.mxu0 0.0
    %960 = vmatpush2.msra.mxu0 0.0
    %961 = vmatprep.subr.mxu0 0.0
    %962 = vmatpush2.msra.mxu0 0.0
    %963 = vmatprep.subr.mxu0 0.0
    %964 = vmatpush2.msra.mxu0 0.0
    %965 = vmatprep.subr.mxu0 0.0
    %966 = vmatpush2.msra.mxu0 0.0
    %967 = vmatprep.subr.mxu0 0.0
    %968 = vmatpush2.msra.mxu0 0.0
    %969 = vmatprep.subr.mxu0 0.0
    %970 = vmatpush2.msra.mxu0 0.0
    %971 = vmatprep.subr.mxu0 0.0
    %972 = vmatpush2.msra.mxu0 0.0
    %973 = vmatprep.mubr.f32.mxu0 0.0
    %974 = vmatmul.mubr.f32.gmra.mxu0 %v907
    %v975 = vpop.f32.mrf.mxu0
    %v976 = vadd.f32 0.0, %v975
    %v977 = vpop.f32.mrf.mxu0
    %978 = vdwg.mxu0
    %979 = vrot.lane.b32.xlu0 %v384, 56
    %v980 = vpop.permute.xlu0 %979
    %v983 = vsel %vm390, %v902, 0
    %985 = vmatprep.subr.mxu0 0.0
    %986 = vmatpush1.msra.mxu0 0.0
    %987 = vmatprep.subr.mxu0 0.0
    %988 = vmatpush1.msra.mxu0 0.0
    %989 = vmatprep.subr.mxu0 0.0
    %990 = vmatpush1.msra.mxu0 0.0
    %991 = vmatprep.subr.mxu0 0.0
    %992 = vmatpush1.msra.mxu0 0.0
    %993 = vmatprep.subr.mxu0 0.0
    %994 = vmatpush1.msra.mxu0 0.0
    %995 = vmatprep.subr.mxu0 0.0
    %996 = vmatpush1.msra.mxu0 0.0
    %997 = vmatprep.subr.mxu0 0.0
    %998 = vmatpush1.msra.mxu0 0.0
    %999 = vmatprep.subr.mxu0 0.0
    %1000 = vmatpush1.msra.mxu0 0.0
    %1001 = vmatprep.subr.mxu0 0.0
    %1002 = vmatpush1.msra.mxu0 0.0
    %1003 = vmatprep.subr.mxu0 0.0
    %1004 = vmatpush1.msra.mxu0 0.0
    %1005 = vmatprep.subr.mxu0 0.0
    %1006 = vmatpush1.msra.mxu0 0.0
    %1007 = vmatprep.subr.mxu0 0.0
    %1008 = vmatpush1.msra.mxu0 0.0
    %1009 = vmatprep.subr.mxu0 0.0
    %1010 = vmatpush1.msra.mxu0 0.0
    %1011 = vmatprep.subr.mxu0 0.0
    %1012 = vmatpush1.msra.mxu0 0.0
    %1013 = vmatprep.subr.mxu0 0.0
    %1014 = vmatpush1.msra.mxu0 0.0
    %1015 = vmatprep.subr.mxu0 0.0
    %1016 = vmatpush1.msra.mxu0 %v980
    %1017 = vmatprep.subr.mxu0 0.0
    %1018 = vmatpush2.msra.mxu0 0.0
    %1019 = vmatprep.subr.mxu0 0.0
    %1020 = vmatpush2.msra.mxu0 0.0
    %1021 = vmatprep.subr.mxu0 0.0
    %1022 = vmatpush2.msra.mxu0 0.0
    %1023 = vmatprep.subr.mxu0 0.0
    %1024 = vmatpush2.msra.mxu0 0.0
    %1025 = vmatprep.subr.mxu0 0.0
    %1026 = vmatpush2.msra.mxu0 0.0
    %1027 = vmatprep.subr.mxu0 0.0
    %1028 = vmatpush2.msra.mxu0 0.0
    %1029 = vmatprep.subr.mxu0 0.0
    %1030 = vmatpush2.msra.mxu0 0.0
    %1031 = vmatprep.subr.mxu0 0.0
    %1032 = vmatpush2.msra.mxu0 0.0
    %1033 = vmatprep.subr.mxu0 0.0
    %1034 = vmatpush2.msra.mxu0 0.0
    %1035 = vmatprep.subr.mxu0 0.0
    %1036 = vmatpush2.msra.mxu0 0.0
    %1037 = vmatprep.subr.mxu0 0.0
    %1038 = vmatpush2.msra.mxu0 0.0
    %1039 = vmatprep.subr.mxu0 0.0
    %1040 = vmatpush2.msra.mxu0 0.0
    %1041 = vmatprep.subr.mxu0 0.0
    %1042 = vmatpush2.msra.mxu0 0.0
    %1043 = vmatprep.subr.mxu0 0.0
    %1044 = vmatpush2.msra.mxu0 0.0
    %1045 = vmatprep.subr.mxu0 0.0
    %1046 = vmatpush2.msra.mxu0 0.0
    %1047 = vmatprep.subr.mxu0 0.0
    %1048 = vmatpush2.msra.mxu0 0.0
    %1049 = vmatprep.mubr.f32.mxu0 0.0
    %1050 = vmatmul.mubr.f32.gmra.mxu0 %v983
    %v1051 = vpop.f32.mrf.mxu0
    %v1052 = vadd.f32 0.0, %v1051
    %v1053 = vpop.f32.mrf.mxu0
    %1054 = vdwg.mxu0
    %s1055 = scalar_lea.vmem [#allocation13], 8
    %v1056 = vld [vmem:[%s1055] sm:$0xff]
    %v1058 = vsel %vm390, %v976, 0
    %v1061 = vsel %vm390, %v1052, 0
    %1063 = vmatprep.subr.mxu0 0.0
    %1064 = vmatpush1.msra.mxu0 0.0
    %1065 = vmatprep.subr.mxu0 0.0
    %1066 = vmatpush1.msra.mxu0 0.0
    %1067 = vmatprep.subr.mxu0 0.0
    %1068 = vmatpush1.msra.mxu0 0.0
    %1069 = vmatprep.subr.mxu0 0.0
    %1070 = vmatpush1.msra.mxu0 0.0
    %1071 = vmatprep.subr.mxu0 0.0
    %1072 = vmatpush1.msra.mxu0 0.0
    %1073 = vmatprep.subr.mxu0 0.0
    %1074 = vmatpush1.msra.mxu0 0.0
    %1075 = vmatprep.subr.mxu0 0.0
    %1076 = vmatpush1.msra.mxu0 0.0
    %1077 = vmatprep.subr.mxu0 0.0
    %1078 = vmatpush1.msra.mxu0 0.0
    %1079 = vmatprep.subr.mxu0 0.0
    %1080 = vmatpush1.msra.mxu0 0.0
    %1081 = vmatprep.subr.mxu0 0.0
    %1082 = vmatpush1.msra.mxu0 0.0
    %1083 = vmatprep.subr.mxu0 0.0
    %1084 = vmatpush1.msra.mxu0 0.0
    %1085 = vmatprep.subr.mxu0 0.0
    %1086 = vmatpush1.msra.mxu0 0.0
    %1087 = vmatprep.subr.mxu0 0.0
    %1088 = vmatpush1.msra.mxu0 0.0
    %1089 = vmatprep.subr.mxu0 0.0
    %1090 = vmatpush1.msra.mxu0 0.0
    %1091 = vmatprep.subr.mxu0 0.0
    %1092 = vmatpush1.msra.mxu0 0.0
    %1093 = vmatprep.subr.mxu0 0.0
    %1094 = vmatpush1.msra.mxu0 %v1056
    %1095 = vmatprep.subr.mxu0 0.0
    %1096 = vmatpush2.msra.mxu0 0.0
    %1097 = vmatprep.subr.mxu0 0.0
    %1098 = vmatpush2.msra.mxu0 0.0
    %1099 = vmatprep.subr.mxu0 0.0
    %1100 = vmatpush2.msra.mxu0 0.0
    %1101 = vmatprep.subr.mxu0 0.0
    %1102 = vmatpush2.msra.mxu0 0.0
    %1103 = vmatprep.subr.mxu0 0.0
    %1104 = vmatpush2.msra.mxu0 0.0
    %1105 = vmatprep.subr.mxu0 0.0
    %1106 = vmatpush2.msra.mxu0 0.0
    %1107 = vmatprep.subr.mxu0 0.0
    %1108 = vmatpush2.msra.mxu0 0.0
    %1109 = vmatprep.subr.mxu0 0.0
    %1110 = vmatpush2.msra.mxu0 0.0
    %1111 = vmatprep.subr.mxu0 0.0
    %1112 = vmatpush2.msra.mxu0 0.0
    %1113 = vmatprep.subr.mxu0 0.0
    %1114 = vmatpush2.msra.mxu0 0.0
    %1115 = vmatprep.subr.mxu0 0.0
    %1116 = vmatpush2.msra.mxu0 0.0
    %1117 = vmatprep.subr.mxu0 0.0
    %1118 = vmatpush2.msra.mxu0 0.0
    %1119 = vmatprep.subr.mxu0 0.0
    %1120 = vmatpush2.msra.mxu0 0.0
    %1121 = vmatprep.subr.mxu0 0.0
    %1122 = vmatpush2.msra.mxu0 0.0
    %1123 = vmatprep.subr.mxu0 0.0
    %1124 = vmatpush2.msra.mxu0 0.0
    %1125 = vmatprep.subr.mxu0 0.0
    %1126 = vmatpush2.msra.mxu0 0.0
    %1127 = vmatprep.mubr.f32.mxu0 0.0
    %1128 = vmatmul.mubr.f32.gmra.mxu0 %v1058
    %v1129 = vpop.f32.mrf.mxu0
    %v1130 = vadd.f32 0.0, %v1129
    %v1131 = vpop.f32.mrf.mxu0
    %1132 = vmatprep.mubr.f32.mxu0 0.0
    %1133 = vmatmul.mubr.f32.gmra.mxu0 %v1061
    %v1134 = vpop.f32.mrf.mxu0
    %v1135 = vadd.f32 0.0, %v1134
    %v1136 = vpop.f32.mrf.mxu0
    %1137 = vdwg.mxu0
    %v1139 = vsel %vm390, %v641, 0
    %v1142 = vsel %vm390, %v717, 0
    %1144 = vmatprep.subr.mxu0 0.0
    %1145 = vmatpush1.msra.mxu0 0.0
    %1146 = vmatprep.subr.mxu0 0.0
    %1147 = vmatpush1.msra.mxu0 0.0
    %1148 = vmatprep.subr.mxu0 0.0
    %1149 = vmatpush1.msra.mxu0 0.0
    %1150 = vmatprep.subr.mxu0 0.0
    %1151 = vmatpush1.msra.mxu0 0.0
    %1152 = vmatprep.subr.mxu0 0.0
    %1153 = vmatpush1.msra.mxu0 0.0
    %1154 = vmatprep.subr.mxu0 0.0
    %1155 = vmatpush1.msra.mxu0 0.0
    %1156 = vmatprep.subr.mxu0 0.0
    %1157 = vmatpush1.msra.mxu0 0.0
    %1158 = vmatprep.subr.mxu0 0.0
    %1159 = vmatpush1.msra.mxu0 0.0
    %1160 = vmatprep.subr.mxu0 0.0
    %1161 = vmatpush1.msra.mxu0 0.0
    %1162 = vmatprep.subr.mxu0 0.0
    %1163 = vmatpush1.msra.mxu0 0.0
    %1164 = vmatprep.subr.mxu0 0.0
    %1165 = vmatpush1.msra.mxu0 0.0
    %1166 = vmatprep.subr.mxu0 0.0
    %1167 = vmatpush1.msra.mxu0 0.0
    %1168 = vmatprep.subr.mxu0 0.0
    %1169 = vmatpush1.msra.mxu0 0.0
    %1170 = vmatprep.subr.mxu0 0.0
    %1171 = vmatpush1.msra.mxu0 0.0
    %1172 = vmatprep.subr.mxu0 0.0
    %1173 = vmatpush1.msra.mxu0 0.0
    %1174 = vmatprep.subr.mxu0 0.0
    %1175 = vmatpush1.msra.mxu0 %v720
    %1176 = vmatprep.subr.mxu0 0.0
    %1177 = vmatpush2.msra.mxu0 0.0
    %1178 = vmatprep.subr.mxu0 0.0
    %1179 = vmatpush2.msra.mxu0 0.0
    %1180 = vmatprep.subr.mxu0 0.0
    %1181 = vmatpush2.msra.mxu0 0.0
    %1182 = vmatprep.subr.mxu0 0.0
    %1183 = vmatpush2.msra.mxu0 0.0
    %1184 = vmatprep.subr.mxu0 0.0
    %1185 = vmatpush2.msra.mxu0 0.0
    %1186 = vmatprep.subr.mxu0 0.0
    %1187 = vmatpush2.msra.mxu0 0.0
    %1188 = vmatprep.subr.mxu0 0.0
    %1189 = vmatpush2.msra.mxu0 0.0
    %1190 = vmatprep.subr.mxu0 0.0
    %1191 = vmatpush2.msra.mxu0 0.0
    %1192 = vmatprep.subr.mxu0 0.0
    %1193 = vmatpush2.msra.mxu0 0.0
    %1194 = vmatprep.subr.mxu0 0.0
    %1195 = vmatpush2.msra.mxu0 0.0
    %1196 = vmatprep.subr.mxu0 0.0
    %1197 = vmatpush2.msra.mxu0 0.0
    %1198 = vmatprep.subr.mxu0 0.0
    %1199 = vmatpush2.msra.mxu0 0.0
    %1200 = vmatprep.subr.mxu0 0.0
    %1201 = vmatpush2.msra.mxu0 0.0
    %1202 = vmatprep.subr.mxu0 0.0
    %1203 = vmatpush2.msra.mxu0 0.0
    %1204 = vmatprep.subr.mxu0 0.0
    %1205 = vmatpush2.msra.mxu0 0.0
    %1206 = vmatprep.subr.mxu0 0.0
    %1207 = vmatpush2.msra.mxu0 0.0
    %1208 = vmatprep.mubr.f32.mxu0 0.0
    %1209 = vmatmul.mubr.f32.gmra.mxu0 %v1139
    %v1210 = vpop.f32.mrf.mxu0
    %v1211 = vadd.f32 %v1130, %v1210
    %v1212 = vpop.f32.mrf.mxu0
    %1213 = vmatprep.mubr.f32.mxu0 0.0
    %1214 = vmatmul.mubr.f32.gmra.mxu0 %v1142
    %v1215 = vpop.f32.mrf.mxu0
    %v1216 = vadd.f32 %v1135, %v1215
    %v1217 = vpop.f32.mrf.mxu0
    %1218 = vdwg.mxu0
    %1219 = vrot.lane.b32.xlu0 %v379, 112
    %v1220 = vpop.permute.xlu0 %1219
    %1221 = vrot.lane.b32.xlu0 %v379, 80
    %v1222 = vpop.permute.xlu0 %1221
    %v1223 = vsel %vm390, %v1220, 0
    %v1225 = vsel %vm390, %v1222, 0
    %1227 = vmatprep.subr.mxu0 0.0
    %1228 = vmatpush1.xpose.msra.mxu0 0.0
    %1229 = vmatprep.subr.mxu0 0.0
    %1230 = vmatpush1.xpose.msra.mxu0 0.0
    %1231 = vmatprep.subr.mxu0 0.0
    %1232 = vmatpush1.xpose.msra.mxu0 0.0
    %1233 = vmatprep.subr.mxu0 0.0
    %1234 = vmatpush1.xpose.msra.mxu0 0.0
    %1235 = vmatprep.subr.mxu0 0.0
    %1236 = vmatpush1.xpose.msra.mxu0 0.0
    %1237 = vmatprep.subr.mxu0 0.0
    %1238 = vmatpush1.xpose.msra.mxu0 0.0
    %1239 = vmatprep.subr.mxu0 0.0
    %1240 = vmatpush1.xpose.msra.mxu0 0.0
    %1241 = vmatprep.subr.mxu0 0.0
    %1242 = vmatpush1.xpose.msra.mxu0 0.0
    %1243 = vmatprep.subr.mxu0 0.0
    %1244 = vmatpush1.xpose.msra.mxu0 0.0
    %1245 = vmatprep.subr.mxu0 0.0
    %1246 = vmatpush1.xpose.msra.mxu0 0.0
    %1247 = vmatprep.subr.mxu0 0.0
    %1248 = vmatpush1.xpose.msra.mxu0 0.0
    %1249 = vmatprep.subr.mxu0 0.0
    %1250 = vmatpush1.xpose.msra.mxu0 0.0
    %1251 = vmatprep.subr.mxu0 0.0
    %1252 = vmatpush1.xpose.msra.mxu0 0.0
    %1253 = vmatprep.subr.mxu0 0.0
    %1254 = vmatpush1.xpose.msra.mxu0 0.0
    %1255 = vmatprep.subr.mxu0 0.0
    %1256 = vmatpush1.xpose.msra.mxu0 0.0
    %1257 = vmatprep.subr.mxu0 0.0
    %1258 = vmatpush1.xpose.msra.mxu0 %v1225
    %1259 = vmatprep.subr.mxu0 0.0
    %1260 = vmatpush2.xpose.msra.mxu0 0.0
    %1261 = vmatprep.subr.mxu0 0.0
    %1262 = vmatpush2.xpose.msra.mxu0 0.0
    %1263 = vmatprep.subr.mxu0 0.0
    %1264 = vmatpush2.xpose.msra.mxu0 0.0
    %1265 = vmatprep.subr.mxu0 0.0
    %1266 = vmatpush2.xpose.msra.mxu0 0.0
    %1267 = vmatprep.subr.mxu0 0.0
    %1268 = vmatpush2.xpose.msra.mxu0 0.0
    %1269 = vmatprep.subr.mxu0 0.0
    %1270 = vmatpush2.xpose.msra.mxu0 0.0
    %1271 = vmatprep.subr.mxu0 0.0
    %1272 = vmatpush2.xpose.msra.mxu0 0.0
    %1273 = vmatprep.subr.mxu0 0.0
    %1274 = vmatpush2.xpose.msra.mxu0 0.0
    %1275 = vmatprep.subr.mxu0 0.0
    %1276 = vmatpush2.xpose.msra.mxu0 0.0
    %1277 = vmatprep.subr.mxu0 0.0
    %1278 = vmatpush2.xpose.msra.mxu0 0.0
    %1279 = vmatprep.subr.mxu0 0.0
    %1280 = vmatpush2.xpose.msra.mxu0 0.0
    %1281 = vmatprep.subr.mxu0 0.0
    %1282 = vmatpush2.xpose.msra.mxu0 0.0
    %1283 = vmatprep.subr.mxu0 0.0
    %1284 = vmatpush2.xpose.msra.mxu0 0.0
    %1285 = vmatprep.subr.mxu0 0.0
    %1286 = vmatpush2.xpose.msra.mxu0 0.0
    %1287 = vmatprep.subr.mxu0 0.0
    %1288 = vmatpush2.xpose.msra.mxu0 0.0
    %1289 = vmatprep.subr.mxu0 0.0
    %1290 = vmatpush2.xpose.msra.mxu0 0.0
    %1291 = vmatprep.mubr.f32.mxu0 0.0
    %1292 = vmatmul.mubr.f32.gmra.mxu0 %v1223
    %v1293 = vpop.f32.mrf.mxu0
    %v1294 = vadd.f32 0.0, %v1293
    %v1295 = vpop.f32.mrf.mxu0
    %1296 = vdwg.mxu0
    %1297 = vrot.lane.b32.xlu0 %v384, 112
    %v1298 = vpop.permute.xlu0 %1297
    %1299 = vrot.lane.b32.xlu0 %v384, 80
    %v1300 = vpop.permute.xlu0 %1299
    %v1301 = vsel %vm390, %v1298, 0
    %v1303 = vsel %vm390, %v1300, 0
    %1305 = vmatprep.subr.mxu0 0.0
    %1306 = vmatpush1.xpose.msra.mxu0 0.0
    %1307 = vmatprep.subr.mxu0 0.0
    %1308 = vmatpush1.xpose.msra.mxu0 0.0
    %1309 = vmatprep.subr.mxu0 0.0
    %1310 = vmatpush1.xpose.msra.mxu0 0.0
    %1311 = vmatprep.subr.mxu0 0.0
    %1312 = vmatpush1.xpose.msra.mxu0 0.0
    %1313 = vmatprep.subr.mxu0 0.0
    %1314 = vmatpush1.xpose.msra.mxu0 0.0
    %1315 = vmatprep.subr.mxu0 0.0
    %1316 = vmatpush1.xpose.msra.mxu0 0.0
    %1317 = vmatprep.subr.mxu0 0.0
    %1318 = vmatpush1.xpose.msra.mxu0 0.0
    %1319 = vmatprep.subr.mxu0 0.0
    %1320 = vmatpush1.xpose.msra.mxu0 0.0
    %1321 = vmatprep.subr.mxu0 0.0
    %1322 = vmatpush1.xpose.msra.mxu0 0.0
    %1323 = vmatprep.subr.mxu0 0.0
    %1324 = vmatpush1.xpose.msra.mxu0 0.0
    %1325 = vmatprep.subr.mxu0 0.0
    %1326 = vmatpush1.xpose.msra.mxu0 0.0
    %1327 = vmatprep.subr.mxu0 0.0
    %1328 = vmatpush1.xpose.msra.mxu0 0.0
    %1329 = vmatprep.subr.mxu0 0.0
    %1330 = vmatpush1.xpose.msra.mxu0 0.0
    %1331 = vmatprep.subr.mxu0 0.0
    %1332 = vmatpush1.xpose.msra.mxu0 0.0
    %1333 = vmatprep.subr.mxu0 0.0
    %1334 = vmatpush1.xpose.msra.mxu0 0.0
    %1335 = vmatprep.subr.mxu0 0.0
    %1336 = vmatpush1.xpose.msra.mxu0 %v1303
    %1337 = vmatprep.subr.mxu0 0.0
    %1338 = vmatpush2.xpose.msra.mxu0 0.0
    %1339 = vmatprep.subr.mxu0 0.0
    %1340 = vmatpush2.xpose.msra.mxu0 0.0
    %1341 = vmatprep.subr.mxu0 0.0
    %1342 = vmatpush2.xpose.msra.mxu0 0.0
    %1343 = vmatprep.subr.mxu0 0.0
    %1344 = vmatpush2.xpose.msra.mxu0 0.0
    %1345 = vmatprep.subr.mxu0 0.0
    %1346 = vmatpush2.xpose.msra.mxu0 0.0
    %1347 = vmatprep.subr.mxu0 0.0
    %1348 = vmatpush2.xpose.msra.mxu0 0.0
    %1349 = vmatprep.subr.mxu0 0.0
    %1350 = vmatpush2.xpose.msra.mxu0 0.0
    %1351 = vmatprep.subr.mxu0 0.0
    %1352 = vmatpush2.xpose.msra.mxu0 0.0
    %1353 = vmatprep.subr.mxu0 0.0
    %1354 = vmatpush2.xpose.msra.mxu0 0.0
    %1355 = vmatprep.subr.mxu0 0.0
    %1356 = vmatpush2.xpose.msra.mxu0 0.0
    %1357 = vmatprep.subr.mxu0 0.0
    %1358 = vmatpush2.xpose.msra.mxu0 0.0
    %1359 = vmatprep.subr.mxu0 0.0
    %1360 = vmatpush2.xpose.msra.mxu0 0.0
    %1361 = vmatprep.subr.mxu0 0.0
    %1362 = vmatpush2.xpose.msra.mxu0 0.0
    %1363 = vmatprep.subr.mxu0 0.0
    %1364 = vmatpush2.xpose.msra.mxu0 0.0
    %1365 = vmatprep.subr.mxu0 0.0
    %1366 = vmatpush2.xpose.msra.mxu0 0.0
    %1367 = vmatprep.subr.mxu0 0.0
    %1368 = vmatpush2.xpose.msra.mxu0 0.0
    %1369 = vmatprep.mubr.f32.mxu0 0.0
    %1370 = vmatmul.mubr.f32.gmra.mxu0 %v1301
    %v1371 = vpop.f32.mrf.mxu0
    %v1372 = vadd.f32 0.0, %v1371
    %v1373 = vpop.f32.mrf.mxu0
    %1374 = vdwg.mxu0
    %v1375 = vmul.f32 %v1294, 0.35355338
    %v1376 = vmul.f32 %v1372, 0.35355338
    %v1377 = vadd.f32 %v1375, %v172
    %v1378 = vadd.f32 %v1376, %v172
    %v1379 = vsel %vm390, %v1377, -inf
    %1380 = vmax.xlane.f32.xlu0 %v1379
    %v1381 = vpop.xlane.xlu0 %1380
    %v1382 = vsel %vm390, %v1378, -inf
    %1383 = vmax.xlane.f32.xlu0 %v1382
    %v1384 = vpop.xlane.xlu0 %1383
    %v1385 = vsub.f32 %v1377, %v1381
    %v1386 = vsub.f32 %v1378, %v1384
    %v1387 = vmul.f32 %v1385, 1.442695
    %v1388 = vpow.pop %v1387
    %v1389 = vmul.f32 %v1386, 1.442695
    %v1390 = vpow.pop %v1389
    %v1391 = vsel %vm390, %v1388, 0.0
    %1392 = vadd.xlane.f32.xlu0 %v1391
    %v1393 = vpop.xlane.xlu0 %1392
    %v1394 = vsel %vm390, %v1390, 0.0
    %1395 = vadd.xlane.f32.xlu0 %v1394
    %v1396 = vpop.xlane.xlu0 %1395
    %v1397 = vrcp.pop %v1393
    %v1398 = vrcp.pop %v1396
    %v1399 = vmul.f32 %v1388, %v1397
    %v1400 = vmul.f32 %v1390, %v1398
    %1401 = vrot.lane.b32.xlu0 %v379, 48
    %v1402 = vpop.permute.xlu0 %1401
    %v1405 = vsel %vm390, %v1399, 0
    %1407 = vmatprep.subr.mxu0 0.0
    %1408 = vmatpush1.msra.mxu0 0.0
    %1409 = vmatprep.subr.mxu0 0.0
    %1410 = vmatpush1.msra.mxu0 0.0
    %1411 = vmatprep.subr.mxu0 0.0
    %1412 = vmatpush1.msra.mxu0 0.0
    %1413 = vmatprep.subr.mxu0 0.0
    %1414 = vmatpush1.msra.mxu0 0.0
    %1415 = vmatprep.subr.mxu0 0.0
    %1416 = vmatpush1.msra.mxu0 0.0
    %1417 = vmatprep.subr.mxu0 0.0
    %1418 = vmatpush1.msra.mxu0 0.0
    %1419 = vmatprep.subr.mxu0 0.0
    %1420 = vmatpush1.msra.mxu0 0.0
    %1421 = vmatprep.subr.mxu0 0.0
    %1422 = vmatpush1.msra.mxu0 0.0
    %1423 = vmatprep.subr.mxu0 0.0
    %1424 = vmatpush1.msra.mxu0 0.0
    %1425 = vmatprep.subr.mxu0 0.0
    %1426 = vmatpush1.msra.mxu0 0.0
    %1427 = vmatprep.subr.mxu0 0.0
    %1428 = vmatpush1.msra.mxu0 0.0
    %1429 = vmatprep.subr.mxu0 0.0
    %1430 = vmatpush1.msra.mxu0 0.0
    %1431 = vmatprep.subr.mxu0 0.0
    %1432 = vmatpush1.msra.mxu0 0.0
    %1433 = vmatprep.subr.mxu0 0.0
    %1434 = vmatpush1.msra.mxu0 0.0
    %1435 = vmatprep.subr.mxu0 0.0
    %1436 = vmatpush1.msra.mxu0 0.0
    %1437 = vmatprep.subr.mxu0 0.0
    %1438 = vmatpush1.msra.mxu0 %v1402
    %1439 = vmatprep.subr.mxu0 0.0
    %1440 = vmatpush2.msra.mxu0 0.0
    %1441 = vmatprep.subr.mxu0 0.0
    %1442 = vmatpush2.msra.mxu0 0.0
    %1443 = vmatprep.subr.mxu0 0.0
    %1444 = vmatpush2.msra.mxu0 0.0
    %1445 = vmatprep.subr.mxu0 0.0
    %1446 = vmatpush2.msra.mxu0 0.0
    %1447 = vmatprep.subr.mxu0 0.0
    %1448 = vmatpush2.msra.mxu0 0.0
    %1449 = vmatprep.subr.mxu0 0.0
    %1450 = vmatpush2.msra.mxu0 0.0
    %1451 = vmatprep.subr.mxu0 0.0
    %1452 = vmatpush2.msra.mxu0 0.0
    %1453 = vmatprep.subr.mxu0 0.0
    %1454 = vmatpush2.msra.mxu0 0.0
    %1455 = vmatprep.subr.mxu0 0.0
    %1456 = vmatpush2.msra.mxu0 0.0
    %1457 = vmatprep.subr.mxu0 0.0
    %1458 = vmatpush2.msra.mxu0 0.0
    %1459 = vmatprep.subr.mxu0 0.0
    %1460 = vmatpush2.msra.mxu0 0.0
    %1461 = vmatprep.subr.mxu0 0.0
    %1462 = vmatpush2.msra.mxu0 0.0
    %1463 = vmatprep.subr.mxu0 0.0
    %1464 = vmatpush2.msra.mxu0 0.0
    %1465 = vmatprep.subr.mxu0 0.0
    %1466 = vmatpush2.msra.mxu0 0.0
    %1467 = vmatprep.subr.mxu0 0.0
    %1468 = vmatpush2.msra.mxu0 0.0
    %1469 = vmatprep.subr.mxu0 0.0
    %1470 = vmatpush2.msra.mxu0 0.0
    %1471 = vmatprep.mubr.f32.mxu0 0.0
    %1472 = vmatmul.mubr.f32.gmra.mxu0 %v1405
    %v1473 = vpop.f32.mrf.mxu0
    %v1474 = vadd.f32 0.0, %v1473
    %v1475 = vpop.f32.mrf.mxu0
    %1476 = vdwg.mxu0
    %1477 = vrot.lane.b32.xlu0 %v384, 48
    %v1478 = vpop.permute.xlu0 %1477
    %v1481 = vsel %vm390, %v1400, 0
    %1483 = vmatprep.subr.mxu0 0.0
    %1484 = vmatpush1.msra.mxu0 0.0
    %1485 = vmatprep.subr.mxu0 0.0
    %1486 = vmatpush1.msra.mxu0 0.0
    %1487 = vmatprep.subr.mxu0 0.0
    %1488 = vmatpush1.msra.mxu0 0.0
    %1489 = vmatprep.subr.mxu0 0.0
    %1490 = vmatpush1.msra.mxu0 0.0
    %1491 = vmatprep.subr.mxu0 0.0
    %1492 = vmatpush1.msra.mxu0 0.0
    %1493 = vmatprep.subr.mxu0 0.0
    %1494 = vmatpush1.msra.mxu0 0.0
    %1495 = vmatprep.subr.mxu0 0.0
    %1496 = vmatpush1.msra.mxu0 0.0
    %1497 = vmatprep.subr.mxu0 0.0
    %1498 = vmatpush1.msra.mxu0 0.0
    %1499 = vmatprep.subr.mxu0 0.0
    %1500 = vmatpush1.msra.mxu0 0.0
    %1501 = vmatprep.subr.mxu0 0.0
    %1502 = vmatpush1.msra.mxu0 0.0
    %1503 = vmatprep.subr.mxu0 0.0
    %1504 = vmatpush1.msra.mxu0 0.0
    %1505 = vmatprep.subr.mxu0 0.0
    %1506 = vmatpush1.msra.mxu0 0.0
    %1507 = vmatprep.subr.mxu0 0.0
    %1508 = vmatpush1.msra.mxu0 0.0
    %1509 = vmatprep.subr.mxu0 0.0
    %1510 = vmatpush1.msra.mxu0 0.0
    %1511 = vmatprep.subr.mxu0 0.0
    %1512 = vmatpush1.msra.mxu0 0.0
    %1513 = vmatprep.subr.mxu0 0.0
    %1514 = vmatpush1.msra.mxu0 %v1478
    %1515 = vmatprep.subr.mxu0 0.0
    %1516 = vmatpush2.msra.mxu0 0.0
    %1517 = vmatprep.subr.mxu0 0.0
    %1518 = vmatpush2.msra.mxu0 0.0
    %1519 = vmatprep.subr.mxu0 0.0
    %1520 = vmatpush2.msra.mxu0 0.0
    %1521 = vmatprep.subr.mxu0 0.0
    %1522 = vmatpush2.msra.mxu0 0.0
    %1523 = vmatprep.subr.mxu0 0.0
    %1524 = vmatpush2.msra.mxu0 0.0
    %1525 = vmatprep.subr.mxu0 0.0
    %1526 = vmatpush2.msra.mxu0 0.0
    %1527 = vmatprep.subr.mxu0 0.0
    %1528 = vmatpush2.msra.mxu0 0.0
    %1529 = vmatprep.subr.mxu0 0.0
    %1530 = vmatpush2.msra.mxu0 0.0
    %1531 = vmatprep.subr.mxu0 0.0
    %1532 = vmatpush2.msra.mxu0 0.0
    %1533 = vmatprep.subr.mxu0 0.0
    %1534 = vmatpush2.msra.mxu0 0.0
    %1535 = vmatprep.subr.mxu0 0.0
    %1536 = vmatpush2.msra.mxu0 0.0
    %1537 = vmatprep.subr.mxu0 0.0
    %1538 = vmatpush2.msra.mxu0 0.0
    %1539 = vmatprep.subr.mxu0 0.0
    %1540 = vmatpush2.msra.mxu0 0.0
    %1541 = vmatprep.subr.mxu0 0.0
    %1542 = vmatpush2.msra.mxu0 0.0
    %1543 = vmatprep.subr.mxu0 0.0
    %1544 = vmatpush2.msra.mxu0 0.0
    %1545 = vmatprep.subr.mxu0 0.0
    %1546 = vmatpush2.msra.mxu0 0.0
    %1547 = vmatprep.mubr.f32.mxu0 0.0
    %1548 = vmatmul.mubr.f32.gmra.mxu0 %v1481
    %v1549 = vpop.f32.mrf.mxu0
    %v1550 = vadd.f32 0.0, %v1549
    %v1551 = vpop.f32.mrf.mxu0
    %1552 = vdwg.mxu0
    %s1553 = scalar_lea.vmem [#allocation13], 16
    %v1554 = vld [vmem:[%s1553] sm:$0xff]
    %v1556 = vsel %vm390, %v1474, 0
    %v1559 = vsel %vm390, %v1550, 0
    %1561 = vmatprep.subr.mxu0 0.0
    %1562 = vmatpush1.msra.mxu0 0.0
    %1563 = vmatprep.subr.mxu0 0.0
    %1564 = vmatpush1.msra.mxu0 0.0
    %1565 = vmatprep.subr.mxu0 0.0
    %1566 = vmatpush1.msra.mxu0 0.0
    %1567 = vmatprep.subr.mxu0 0.0
    %1568 = vmatpush1.msra.mxu0 0.0
    %1569 = vmatprep.subr.mxu0 0.0
    %1570 = vmatpush1.msra.mxu0 0.0
    %1571 = vmatprep.subr.mxu0 0.0
    %1572 = vmatpush1.msra.mxu0 0.0
    %1573 = vmatprep.subr.mxu0 0.0
    %1574 = vmatpush1.msra.mxu0 0.0
    %1575 = vmatprep.subr.mxu0 0.0
    %1576 = vmatpush1.msra.mxu0 0.0
    %1577 = vmatprep.subr.mxu0 0.0
    %1578 = vmatpush1.msra.mxu0 0.0
    %1579 = vmatprep.subr.mxu0 0.0
    %1580 = vmatpush1.msra.mxu0 0.0
    %1581 = vmatprep.subr.mxu0 0.0
    %1582 = vmatpush1.msra.mxu0 0.0
    %1583 = vmatprep.subr.mxu0 0.0
    %1584 = vmatpush1.msra.mxu0 0.0
    %1585 = vmatprep.subr.mxu0 0.0
    %1586 = vmatpush1.msra.mxu0 0.0
    %1587 = vmatprep.subr.mxu0 0.0
    %1588 = vmatpush1.msra.mxu0 0.0
    %1589 = vmatprep.subr.mxu0 0.0
    %1590 = vmatpush1.msra.mxu0 0.0
    %1591 = vmatprep.subr.mxu0 0.0
    %1592 = vmatpush1.msra.mxu0 %v1554
    %1593 = vmatprep.subr.mxu0 0.0
    %1594 = vmatpush2.msra.mxu0 0.0
    %1595 = vmatprep.subr.mxu0 0.0
    %1596 = vmatpush2.msra.mxu0 0.0
    %1597 = vmatprep.subr.mxu0 0.0
    %1598 = vmatpush2.msra.mxu0 0.0
    %1599 = vmatprep.subr.mxu0 0.0
    %1600 = vmatpush2.msra.mxu0 0.0
    %1601 = vmatprep.subr.mxu0 0.0
    %1602 = vmatpush2.msra.mxu0 0.0
    %1603 = vmatprep.subr.mxu0 0.0
    %1604 = vmatpush2.msra.mxu0 0.0
    %1605 = vmatprep.subr.mxu0 0.0
    %1606 = vmatpush2.msra.mxu0 0.0
    %1607 = vmatprep.subr.mxu0 0.0
    %1608 = vmatpush2.msra.mxu0 0.0
    %1609 = vmatprep.subr.mxu0 0.0
    %1610 = vmatpush2.msra.mxu0 0.0
    %1611 = vmatprep.subr.mxu0 0.0
    %1612 = vmatpush2.msra.mxu0 0.0
    %1613 = vmatprep.subr.mxu0 0.0
    %1614 = vmatpush2.msra.mxu0 0.0
    %1615 = vmatprep.subr.mxu0 0.0
    %1616 = vmatpush2.msra.mxu0 0.0
    %1617 = vmatprep.subr.mxu0 0.0
    %1618 = vmatpush2.msra.mxu0 0.0
    %1619 = vmatprep.subr.mxu0 0.0
    %1620 = vmatpush2.msra.mxu0 0.0
    %1621 = vmatprep.subr.mxu0 0.0
    %1622 = vmatpush2.msra.mxu0 0.0
    %1623 = vmatprep.subr.mxu0 0.0
    %1624 = vmatpush2.msra.mxu0 0.0
    %1625 = vmatprep.mubr.f32.mxu0 0.0
    %1626 = vmatmul.mubr.f32.gmra.mxu0 %v1556
    %v1627 = vpop.f32.mrf.mxu0
    %v1628 = vadd.f32 0.0, %v1627
    %v1629 = vpop.f32.mrf.mxu0
    %1630 = vmatprep.mubr.f32.mxu0 0.0
    %1631 = vmatmul.mubr.f32.gmra.mxu0 %v1559
    %v1632 = vpop.f32.mrf.mxu0
    %v1633 = vadd.f32 0.0, %v1632
    %v1634 = vpop.f32.mrf.mxu0
    %1635 = vdwg.mxu0
    %v1636 = vadd.f32 %v1211, %v1628
    %v1637 = vadd.f32 %v1216, %v1633
    %1638 = vrot.lane.b32.xlu0 %v379, 104
    %v1639 = vpop.permute.xlu0 %1638
    %1640 = vrot.lane.b32.xlu0 %v379, 72
    %v1641 = vpop.permute.xlu0 %1640
    %v1642 = vsel %vm390, %v1639, 0
    %v1644 = vsel %vm390, %v1641, 0
    %1646 = vmatprep.subr.mxu0 0.0
    %1647 = vmatpush1.xpose.msra.mxu0 0.0
    %1648 = vmatprep.subr.mxu0 0.0
    %1649 = vmatpush1.xpose.msra.mxu0 0.0
    %1650 = vmatprep.subr.mxu0 0.0
    %1651 = vmatpush1.xpose.msra.mxu0 0.0
    %1652 = vmatprep.subr.mxu0 0.0
    %1653 = vmatpush1.xpose.msra.mxu0 0.0
    %1654 = vmatprep.subr.mxu0 0.0
    %1655 = vmatpush1.xpose.msra.mxu0 0.0
    %1656 = vmatprep.subr.mxu0 0.0
    %1657 = vmatpush1.xpose.msra.mxu0 0.0
    %1658 = vmatprep.subr.mxu0 0.0
    %1659 = vmatpush1.xpose.msra.mxu0 0.0
    %1660 = vmatprep.subr.mxu0 0.0
    %1661 = vmatpush1.xpose.msra.mxu0 0.0
    %1662 = vmatprep.subr.mxu0 0.0
    %1663 = vmatpush1.xpose.msra.mxu0 0.0
    %1664 = vmatprep.subr.mxu0 0.0
    %1665 = vmatpush1.xpose.msra.mxu0 0.0
    %1666 = vmatprep.subr.mxu0 0.0
    %1667 = vmatpush1.xpose.msra.mxu0 0.0
    %1668 = vmatprep.subr.mxu0 0.0
    %1669 = vmatpush1.xpose.msra.mxu0 0.0
    %1670 = vmatprep.subr.mxu0 0.0
    %1671 = vmatpush1.xpose.msra.mxu0 0.0
    %1672 = vmatprep.subr.mxu0 0.0
    %1673 = vmatpush1.xpose.msra.mxu0 0.0
    %1674 = vmatprep.subr.mxu0 0.0
    %1675 = vmatpush1.xpose.msra.mxu0 0.0
    %1676 = vmatprep.subr.mxu0 0.0
    %1677 = vmatpush1.xpose.msra.mxu0 %v1644
    %1678 = vmatprep.subr.mxu0 0.0
    %1679 = vmatpush2.xpose.msra.mxu0 0.0
    %1680 = vmatprep.subr.mxu0 0.0
    %1681 = vmatpush2.xpose.msra.mxu0 0.0
    %1682 = vmatprep.subr.mxu0 0.0
    %1683 = vmatpush2.xpose.msra.mxu0 0.0
    %1684 = vmatprep.subr.mxu0 0.0
    %1685 = vmatpush2.xpose.msra.mxu0 0.0
    %1686 = vmatprep.subr.mxu0 0.0
    %1687 = vmatpush2.xpose.msra.mxu0 0.0
    %1688 = vmatprep.subr.mxu0 0.0
    %1689 = vmatpush2.xpose.msra.mxu0 0.0
    %1690 = vmatprep.subr.mxu0 0.0
    %1691 = vmatpush2.xpose.msra.mxu0 0.0
    %1692 = vmatprep.subr.mxu0 0.0
    %1693 = vmatpush2.xpose.msra.mxu0 0.0
    %1694 = vmatprep.subr.mxu0 0.0
    %1695 = vmatpush2.xpose.msra.mxu0 0.0
    %1696 = vmatprep.subr.mxu0 0.0
    %1697 = vmatpush2.xpose.msra.mxu0 0.0
    %1698 = vmatprep.subr.mxu0 0.0
    %1699 = vmatpush2.xpose.msra.mxu0 0.0
    %1700 = vmatprep.subr.mxu0 0.0
    %1701 = vmatpush2.xpose.msra.mxu0 0.0
    %1702 = vmatprep.subr.mxu0 0.0
    %1703 = vmatpush2.xpose.msra.mxu0 0.0
    %1704 = vmatprep.subr.mxu0 0.0
    %1705 = vmatpush2.xpose.msra.mxu0 0.0
    %1706 = vmatprep.subr.mxu0 0.0
    %1707 = vmatpush2.xpose.msra.mxu0 0.0
    %1708 = vmatprep.subr.mxu0 0.0
    %1709 = vmatpush2.xpose.msra.mxu0 0.0
    %1710 = vmatprep.mubr.f32.mxu0 0.0
    %1711 = vmatmul.mubr.f32.gmra.mxu0 %v1642
    %v1712 = vpop.f32.mrf.mxu0
    %v1713 = vadd.f32 0.0, %v1712
    %v1714 = vpop.f32.mrf.mxu0
    %1715 = vdwg.mxu0
    %1716 = vrot.lane.b32.xlu0 %v384, 104
    %v1717 = vpop.permute.xlu0 %1716
    %1718 = vrot.lane.b32.xlu0 %v384, 72
    %v1719 = vpop.permute.xlu0 %1718
    %v1720 = vsel %vm390, %v1717, 0
    %v1722 = vsel %vm390, %v1719, 0
    %1724 = vmatprep.subr.mxu0 0.0
    %1725 = vmatpush1.xpose.msra.mxu0 0.0
    %1726 = vmatprep.subr.mxu0 0.0
    %1727 = vmatpush1.xpose.msra.mxu0 0.0
    %1728 = vmatprep.subr.mxu0 0.0
    %1729 = vmatpush1.xpose.msra.mxu0 0.0
    %1730 = vmatprep.subr.mxu0 0.0
    %1731 = vmatpush1.xpose.msra.mxu0 0.0
    %1732 = vmatprep.subr.mxu0 0.0
    %1733 = vmatpush1.xpose.msra.mxu0 0.0
    %1734 = vmatprep.subr.mxu0 0.0
    %1735 = vmatpush1.xpose.msra.mxu0 0.0
    %1736 = vmatprep.subr.mxu0 0.0
    %1737 = vmatpush1.xpose.msra.mxu0 0.0
    %1738 = vmatprep.subr.mxu0 0.0
    %1739 = vmatpush1.xpose.msra.mxu0 0.0
    %1740 = vmatprep.subr.mxu0 0.0
    %1741 = vmatpush1.xpose.msra.mxu0 0.0
    %1742 = vmatprep.subr.mxu0 0.0
    %1743 = vmatpush1.xpose.msra.mxu0 0.0
    %1744 = vmatprep.subr.mxu0 0.0
    %1745 = vmatpush1.xpose.msra.mxu0 0.0
    %1746 = vmatprep.subr.mxu0 0.0
    %1747 = vmatpush1.xpose.msra.mxu0 0.0
    %1748 = vmatprep.subr.mxu0 0.0
    %1749 = vmatpush1.xpose.msra.mxu0 0.0
    %1750 = vmatprep.subr.mxu0 0.0
    %1751 = vmatpush1.xpose.msra.mxu0 0.0
    %1752 = vmatprep.subr.mxu0 0.0
    %1753 = vmatpush1.xpose.msra.mxu0 0.0
    %1754 = vmatprep.subr.mxu0 0.0
    %1755 = vmatpush1.xpose.msra.mxu0 %v1722
    %1756 = vmatprep.subr.mxu0 0.0
    %1757 = vmatpush2.xpose.msra.mxu0 0.0
    %1758 = vmatprep.subr.mxu0 0.0
    %1759 = vmatpush2.xpose.msra.mxu0 0.0
    %1760 = vmatprep.subr.mxu0 0.0
    %1761 = vmatpush2.xpose.msra.mxu0 0.0
    %1762 = vmatprep.subr.mxu0 0.0
    %1763 = vmatpush2.xpose.msra.mxu0 0.0
    %1764 = vmatprep.subr.mxu0 0.0
    %1765 = vmatpush2.xpose.msra.mxu0 0.0
    %1766 = vmatprep.subr.mxu0 0.0
    %1767 = vmatpush2.xpose.msra.mxu0 0.0
    %1768 = vmatprep.subr.mxu0 0.0
    %1769 = vmatpush2.xpose.msra.mxu0 0.0
    %1770 = vmatprep.subr.mxu0 0.0
    %1771 = vmatpush2.xpose.msra.mxu0 0.0
    %1772 = vmatprep.subr.mxu0 0.0
    %1773 = vmatpush2.xpose.msra.mxu0 0.0
    %1774 = vmatprep.subr.mxu0 0.0
    %1775 = vmatpush2.xpose.msra.mxu0 0.0
    %1776 = vmatprep.subr.mxu0 0.0
    %1777 = vmatpush2.xpose.msra.mxu0 0.0
    %1778 = vmatprep.subr.mxu0 0.0
    %1779 = vmatpush2.xpose.msra.mxu0 0.0
    %1780 = vmatprep.subr.mxu0 0.0
    %1781 = vmatpush2.xpose.msra.mxu0 0.0
    %1782 = vmatprep.subr.mxu0 0.0
    %1783 = vmatpush2.xpose.msra.mxu0 0.0
    %1784 = vmatprep.subr.mxu0 0.0
    %1785 = vmatpush2.xpose.msra.mxu0 0.0
    %1786 = vmatprep.subr.mxu0 0.0
    %1787 = vmatpush2.xpose.msra.mxu0 0.0
    %1788 = vmatprep.mubr.f32.mxu0 0.0
    %1789 = vmatmul.mubr.f32.gmra.mxu0 %v1720
    %v1790 = vpop.f32.mrf.mxu0
    %v1791 = vadd.f32 0.0, %v1790
    %v1792 = vpop.f32.mrf.mxu0
    %1793 = vdwg.mxu0
    %v1794 = vmul.f32 %v1713, 0.35355338
    %v1795 = vmul.f32 %v1791, 0.35355338
    %v1796 = vadd.f32 %v1794, %v172
    %v1797 = vadd.f32 %v1795, %v172
    %v1798 = vsel %vm390, %v1796, -inf
    %1799 = vmax.xlane.f32.xlu0 %v1798
    %v1800 = vpop.xlane.xlu0 %1799
    %v1801 = vsel %vm390, %v1797, -inf
    %1802 = vmax.xlane.f32.xlu0 %v1801
    %v1803 = vpop.xlane.xlu0 %1802
    %v1804 = vsub.f32 %v1796, %v1800
    %v1805 = vsub.f32 %v1797, %v1803
    %v1806 = vmul.f32 %v1804, 1.442695
    %v1807 = vpow.pop %v1806
    %v1808 = vmul.f32 %v1805, 1.442695
    %v1809 = vpow.pop %v1808
    %v1810 = vsel %vm390, %v1807, 0.0
    %1811 = vadd.xlane.f32.xlu0 %v1810
    %v1812 = vpop.xlane.xlu0 %1811
    %v1813 = vsel %vm390, %v1809, 0.0
    %1814 = vadd.xlane.f32.xlu0 %v1813
    %v1815 = vpop.xlane.xlu0 %1814
    %v1816 = vrcp.pop %v1812
    %v1817 = vrcp.pop %v1815
    %v1818 = vmul.f32 %v1807, %v1816
    %v1819 = vmul.f32 %v1809, %v1817
    %1820 = vrot.lane.b32.xlu0 %v379, 40
    %v1821 = vpop.permute.xlu0 %1820
    %v1824 = vsel %vm390, %v1818, 0
    %1826 = vmatprep.subr.mxu0 0.0
    %1827 = vmatpush1.msra.mxu0 0.0
    %1828 = vmatprep.subr.mxu0 0.0
    %1829 = vmatpush1.msra.mxu0 0.0
    %1830 = vmatprep.subr.mxu0 0.0
    %1831 = vmatpush1.msra.mxu0 0.0
    %1832 = vmatprep.subr.mxu0 0.0
    %1833 = vmatpush1.msra.mxu0 0.0
    %1834 = vmatprep.subr.mxu0 0.0
    %1835 = vmatpush1.msra.mxu0 0.0
    %1836 = vmatprep.subr.mxu0 0.0
    %1837 = vmatpush1.msra.mxu0 0.0
    %1838 = vmatprep.subr.mxu0 0.0
    %1839 = vmatpush1.msra.mxu0 0.0
    %1840 = vmatprep.subr.mxu0 0.0
    %1841 = vmatpush1.msra.mxu0 0.0
    %1842 = vmatprep.subr.mxu0 0.0
    %1843 = vmatpush1.msra.mxu0 0.0
    %1844 = vmatprep.subr.mxu0 0.0
    %1845 = vmatpush1.msra.mxu0 0.0
    %1846 = vmatprep.subr.mxu0 0.0
    %1847 = vmatpush1.msra.mxu0 0.0
    %1848 = vmatprep.subr.mxu0 0.0
    %1849 = vmatpush1.msra.mxu0 0.0
    %1850 = vmatprep.subr.mxu0 0.0
    %1851 = vmatpush1.msra.mxu0 0.0
    %1852 = vmatprep.subr.mxu0 0.0
    %1853 = vmatpush1.msra.mxu0 0.0
    %1854 = vmatprep.subr.mxu0 0.0
    %1855 = vmatpush1.msra.mxu0 0.0
    %1856 = vmatprep.subr.mxu0 0.0
    %1857 = vmatpush1.msra.mxu0 %v1821
    %1858 = vmatprep.subr.mxu0 0.0
    %1859 = vmatpush2.msra.mxu0 0.0
    %1860 = vmatprep.subr.mxu0 0.0
    %1861 = vmatpush2.msra.mxu0 0.0
    %1862 = vmatprep.subr.mxu0 0.0
    %1863 = vmatpush2.msra.mxu0 0.0
    %1864 = vmatprep.subr.mxu0 0.0
    %1865 = vmatpush2.msra.mxu0 0.0
    %1866 = vmatprep.subr.mxu0 0.0
    %1867 = vmatpush2.msra.mxu0 0.0
    %1868 = vmatprep.subr.mxu0 0.0
    %1869 = vmatpush2.msra.mxu0 0.0
    %1870 = vmatprep.subr.mxu0 0.0
    %1871 = vmatpush2.msra.mxu0 0.0
    %1872 = vmatprep.subr.mxu0 0.0
    %1873 = vmatpush2.msra.mxu0 0.0
    %1874 = vmatprep.subr.mxu0 0.0
    %1875 = vmatpush2.msra.mxu0 0.0
    %1876 = vmatprep.subr.mxu0 0.0
    %1877 = vmatpush2.msra.mxu0 0.0
    %1878 = vmatprep.subr.mxu0 0.0
    %1879 = vmatpush2.msra.mxu0 0.0
    %1880 = vmatprep.subr.mxu0 0.0
    %1881 = vmatpush2.msra.mxu0 0.0
    %1882 = vmatprep.subr.mxu0 0.0
    %1883 = vmatpush2.msra.mxu0 0.0
    %1884 = vmatprep.subr.mxu0 0.0
    %1885 = vmatpush2.msra.mxu0 0.0
    %1886 = vmatprep.subr.mxu0 0.0
    %1887 = vmatpush2.msra.mxu0 0.0
    %1888 = vmatprep.subr.mxu0 0.0
    %1889 = vmatpush2.msra.mxu0 0.0
    %1890 = vmatprep.mubr.f32.mxu0 0.0
    %1891 = vmatmul.mubr.f32.gmra.mxu0 %v1824
    %v1892 = vpop.f32.mrf.mxu0
    %v1893 = vadd.f32 0.0, %v1892
    %v1894 = vpop.f32.mrf.mxu0
    %1895 = vdwg.mxu0
    %1896 = vrot.lane.b32.xlu0 %v384, 40
    %v1897 = vpop.permute.xlu0 %1896
    %v1900 = vsel %vm390, %v1819, 0
    %1902 = vmatprep.subr.mxu0 0.0
    %1903 = vmatpush1.msra.mxu0 0.0
    %1904 = vmatprep.subr.mxu0 0.0
    %1905 = vmatpush1.msra.mxu0 0.0
    %1906 = vmatprep.subr.mxu0 0.0
    %1907 = vmatpush1.msra.mxu0 0.0
    %1908 = vmatprep.subr.mxu0 0.0
    %1909 = vmatpush1.msra.mxu0 0.0
    %1910 = vmatprep.subr.mxu0 0.0
    %1911 = vmatpush1.msra.mxu0 0.0
    %1912 = vmatprep.subr.mxu0 0.0
    %1913 = vmatpush1.msra.mxu0 0.0
    %1914 = vmatprep.subr.mxu0 0.0
    %1915 = vmatpush1.msra.mxu0 0.0
    %1916 = vmatprep.subr.mxu0 0.0
    %1917 = vmatpush1.msra.mxu0 0.0
    %1918 = vmatprep.subr.mxu0 0.0
    %1919 = vmatpush1.msra.mxu0 0.0
    %1920 = vmatprep.subr.mxu0 0.0
    %1921 = vmatpush1.msra.mxu0 0.0
    %1922 = vmatprep.subr.mxu0 0.0
    %1923 = vmatpush1.msra.mxu0 0.0
    %1924 = vmatprep.subr.mxu0 0.0
    %1925 = vmatpush1.msra.mxu0 0.0
    %1926 = vmatprep.subr.mxu0 0.0
    %1927 = vmatpush1.msra.mxu0 0.0
    %1928 = vmatprep.subr.mxu0 0.0
    %1929 = vmatpush1.msra.mxu0 0.0
    %1930 = vmatprep.subr.mxu0 0.0
    %1931 = vmatpush1.msra.mxu0 0.0
    %1932 = vmatprep.subr.mxu0 0.0
    %1933 = vmatpush1.msra.mxu0 %v1897
    %1934 = vmatprep.subr.mxu0 0.0
    %1935 = vmatpush2.msra.mxu0 0.0
    %1936 = vmatprep.subr.mxu0 0.0
    %1937 = vmatpush2.msra.mxu0 0.0
    %1938 = vmatprep.subr.mxu0 0.0
    %1939 = vmatpush2.msra.mxu0 0.0
    %1940 = vmatprep.subr.mxu0 0.0
    %1941 = vmatpush2.msra.mxu0 0.0
    %1942 = vmatprep.subr.mxu0 0.0
    %1943 = vmatpush2.msra.mxu0 0.0
    %1944 = vmatprep.subr.mxu0 0.0
    %1945 = vmatpush2.msra.mxu0 0.0
    %1946 = vmatprep.subr.mxu0 0.0
    %1947 = vmatpush2.msra.mxu0 0.0
    %1948 = vmatprep.subr.mxu0 0.0
    %1949 = vmatpush2.msra.mxu0 0.0
    %1950 = vmatprep.subr.mxu0 0.0
    %1951 = vmatpush2.msra.mxu0 0.0
    %1952 = vmatprep.subr.mxu0 0.0
    %1953 = vmatpush2.msra.mxu0 0.0
    %1954 = vmatprep.subr.mxu0 0.0
    %1955 = vmatpush2.msra.mxu0 0.0
    %1956 = vmatprep.subr.mxu0 0.0
    %1957 = vmatpush2.msra.mxu0 0.0
    %1958 = vmatprep.subr.mxu0 0.0
    %1959 = vmatpush2.msra.mxu0 0.0
    %1960 = vmatprep.subr.mxu0 0.0
    %1961 = vmatpush2.msra.mxu0 0.0
    %1962 = vmatprep.subr.mxu0 0.0
    %1963 = vmatpush2.msra.mxu0 0.0
    %1964 = vmatprep.subr.mxu0 0.0
    %1965 = vmatpush2.msra.mxu0 0.0
    %1966 = vmatprep.mubr.f32.mxu0 0.0
    %1967 = vmatmul.mubr.f32.gmra.mxu0 %v1900
    %v1968 = vpop.f32.mrf.mxu0
    %v1969 = vadd.f32 0.0, %v1968
    %v1970 = vpop.f32.mrf.mxu0
    %1971 = vdwg.mxu0
    %s1972 = scalar_lea.vmem [#allocation13], 24
    %v1973 = vld [vmem:[%s1972] sm:$0xff]
    %v1975 = vsel %vm390, %v1893, 0
    %v1978 = vsel %vm390, %v1969, 0
    %1980 = vmatprep.subr.mxu0 0.0
    %1981 = vmatpush1.msra.mxu0 0.0
    %1982 = vmatprep.subr.mxu0 0.0
    %1983 = vmatpush1.msra.mxu0 0.0
    %1984 = vmatprep.subr.mxu0 0.0
    %1985 = vmatpush1.msra.mxu0 0.0
    %1986 = vmatprep.subr.mxu0 0.0
    %1987 = vmatpush1.msra.mxu0 0.0
    %1988 = vmatprep.subr.mxu0 0.0
    %1989 = vmatpush1.msra.mxu0 0.0
    %1990 = vmatprep.subr.mxu0 0.0
    %1991 = vmatpush1.msra.mxu0 0.0
    %1992 = vmatprep.subr.mxu0 0.0
    %1993 = vmatpush1.msra.mxu0 0.0
    %1994 = vmatprep.subr.mxu0 0.0
    %1995 = vmatpush1.msra.mxu0 0.0
    %1996 = vmatprep.subr.mxu0 0.0
    %1997 = vmatpush1.msra.mxu0 0.0
    %1998 = vmatprep.subr.mxu0 0.0
    %1999 = vmatpush1.msra.mxu0 0.0
    %2000 = vmatprep.subr.mxu0 0.0
    %2001 = vmatpush1.msra.mxu0 0.0
    %2002 = vmatprep.subr.mxu0 0.0
    %2003 = vmatpush1.msra.mxu0 0.0
    %2004 = vmatprep.subr.mxu0 0.0
    %2005 = vmatpush1.msra.mxu0 0.0
    %2006 = vmatprep.subr.mxu0 0.0
    %2007 = vmatpush1.msra.mxu0 0.0
    %2008 = vmatprep.subr.mxu0 0.0
    %2009 = vmatpush1.msra.mxu0 0.0
    %2010 = vmatprep.subr.mxu0 0.0
    %2011 = vmatpush1.msra.mxu0 %v1973
    %2012 = vmatprep.subr.mxu0 0.0
    %2013 = vmatpush2.msra.mxu0 0.0
    %2014 = vmatprep.subr.mxu0 0.0
    %2015 = vmatpush2.msra.mxu0 0.0
    %2016 = vmatprep.subr.mxu0 0.0
    %2017 = vmatpush2.msra.mxu0 0.0
    %2018 = vmatprep.subr.mxu0 0.0
    %2019 = vmatpush2.msra.mxu0 0.0
    %2020 = vmatprep.subr.mxu0 0.0
    %2021 = vmatpush2.msra.mxu0 0.0
    %2022 = vmatprep.subr.mxu0 0.0
    %2023 = vmatpush2.msra.mxu0 0.0
    %2024 = vmatprep.subr.mxu0 0.0
    %2025 = vmatpush2.msra.mxu0 0.0
    %2026 = vmatprep.subr.mxu0 0.0
    %2027 = vmatpush2.msra.mxu0 0.0
    %2028 = vmatprep.subr.mxu0 0.0
    %2029 = vmatpush2.msra.mxu0 0.0
    %2030 = vmatprep.subr.mxu0 0.0
    %2031 = vmatpush2.msra.mxu0 0.0
    %2032 = vmatprep.subr.mxu0 0.0
    %2033 = vmatpush2.msra.mxu0 0.0
    %2034 = vmatprep.subr.mxu0 0.0
    %2035 = vmatpush2.msra.mxu0 0.0
    %2036 = vmatprep.subr.mxu0 0.0
    %2037 = vmatpush2.msra.mxu0 0.0
    %2038 = vmatprep.subr.mxu0 0.0
    %2039 = vmatpush2.msra.mxu0 0.0
    %2040 = vmatprep.subr.mxu0 0.0
    %2041 = vmatpush2.msra.mxu0 0.0
    %2042 = vmatprep.subr.mxu0 0.0
    %2043 = vmatpush2.msra.mxu0 0.0
    %2044 = vmatprep.mubr.f32.mxu0 0.0
    %2045 = vmatmul.mubr.f32.gmra.mxu0 %v1975
    %v2046 = vpop.f32.mrf.mxu0
    %v2047 = vadd.f32 0.0, %v2046
    %v2048 = vpop.f32.mrf.mxu0
    %2049 = vmatprep.mubr.f32.mxu0 0.0
    %2050 = vmatmul.mubr.f32.gmra.mxu0 %v1978
    %v2051 = vpop.f32.mrf.mxu0
    %v2052 = vadd.f32 0.0, %v2051
    %v2053 = vpop.f32.mrf.mxu0
    %2054 = vdwg.mxu0
    %v2055 = vadd.f32 %v1636, %v2047
    %v2056 = vadd.f32 %v1637, %v2052
    %v2057 = vld [vmem:[%s8] sm:$0x1]
    %v2059 = vlaneseq
    %v2060 = vshrl.u32 %v2059, 7
    %v2061 = vsub.s32 0, %v2060
    %v2062 = vrot.slane %v2057, %v2061
    %v2064 = vadd.f32 %v2055, %v2062
    %v2065 = vadd.f32 %v2056, %v2062
    %v2066 = vadd.f32 %v217, %v2064
    %v2067 = vadd.f32 %v218, %v2065
    %s2068 = scalar_lea.vmem [#allocation8], 2
    %v2069 = vld [vmem:[%s2068] sm:$0x1]
    %s2070 = scalar_lea.vmem [#allocation10], 2
    %v2071 = vld [vmem:[%s2070] sm:$0x1]
    %v2072 = vsel %vm175, %v2066, 0.0
    %2073 = vadd.xlane.f32.xlu0 %v2072
    %v2074 = vpop.xlane.xlu0 %2073
    %v2075 = vsel %vm175, %v2067, 0.0
    %2076 = vadd.xlane.f32.xlu0 %v2075
    %v2077 = vpop.xlane.xlu0 %2076
    %v2078 = vmul.f32 %v2074, %v182
    %v2079 = vmul.f32 %v2077, %v182
    %v2080 = vsub.f32 %v2066, %v2078
    %v2081 = vsub.f32 %v2067, %v2079
    %v2082 = vmul.f32 %v2080, %v2080
    %v2083 = vmul.f32 %v2081, %v2081
    %v2084 = vsel %vm175, %v2082, 0.0
    %2085 = vadd.xlane.f32.xlu0 %v2084
    %v2086 = vpop.xlane.xlu0 %2085
    %v2087 = vsel %vm175, %v2083, 0.0
    %2088 = vadd.xlane.f32.xlu0 %v2087
    %v2089 = vpop.xlane.xlu0 %2088
    %v2090 = vmul.f32 %v2086, %v182
    %v2091 = vmul.f32 %v2089, %v182
    %v2092 = vadd.f32 %v2090, 1e-06
    %v2093 = vadd.f32 %v2091, 1e-06
    %v2094 = vrsqrt.pop %v2092
    %v2095 = vrsqrt.pop %v2093
    %v2096 = vmul.f32 %v2080, %v2094
    %v2097 = vmul.f32 %v2081, %v2095
    %v2099 = vlaneseq
    %v2100 = vshrl.u32 %v2099, 7
    %v2101 = vsub.s32 0, %v2100
    %v2102 = vrot.slane %v2069, %v2101
    %v2104 = vmul.f32 %v2096, %v2102
    %v2105 = vmul.f32 %v2097, %v2102
    %v2107 = vlaneseq
    %v2108 = vshrl.u32 %v2107, 7
    %v2109 = vsub.s32 0, %v2108
    %v2110 = vrot.slane %v2071, %v2109
    %v2112 = vadd.f32 %v2104, %v2110
    %v2113 = vadd.f32 %v2105, %v2110
    %v2114 = vld [vmem:[#allocation14] sm:$0xff]
    %v2115 = vld [vmem:[#allocation14 + $0x8] sm:$0xff]
    %v2116 = vld [vmem:[#allocation14 + $0x10] sm:$0xff]
    %v2117 = vld [vmem:[#allocation14 + $0x18] sm:$0xff]
    %v2118 = vld [vmem:[%s10] sm:$0x1]
    %v2120 = vlaneseq
    %v2121 = vshrl.u32 %v2120, 7
    %v2122 = vsub.s32 0, %v2121
    %v2123 = vrot.slane %v2118, %v2122
    %v2126 = vsel %vm175, %v2112, 0
    %v2129 = vsel %vm175, %v2113, 0
    %2131 = vmatprep.subr.mxu0 0.0
    %2132 = vmatpush1.msra.mxu0 0.0
    %2133 = vmatprep.subr.mxu0 0.0
    %2134 = vmatpush1.msra.mxu0 0.0
    %2135 = vmatprep.subr.mxu0 0.0
    %2136 = vmatpush1.msra.mxu0 0.0
    %2137 = vmatprep.subr.mxu0 0.0
    %2138 = vmatpush1.msra.mxu0 0.0
    %2139 = vmatprep.subr.mxu0 0.0
    %2140 = vmatpush1.msra.mxu0 0.0
    %2141 = vmatprep.subr.mxu0 0.0
    %2142 = vmatpush1.msra.mxu0 0.0
    %2143 = vmatprep.subr.mxu0 0.0
    %2144 = vmatpush1.msra.mxu0 0.0
    %2145 = vmatprep.subr.mxu0 0.0
    %2146 = vmatpush1.msra.mxu0 0.0
    %2147 = vmatprep.subr.mxu0 0.0
    %2148 = vmatpush1.msra.mxu0 0.0
    %2149 = vmatprep.subr.mxu0 0.0
    %2150 = vmatpush1.msra.mxu0 0.0
    %2151 = vmatprep.subr.mxu0 0.0
    %2152 = vmatpush1.msra.mxu0 0.0
    %2153 = vmatprep.subr.mxu0 0.0
    %2154 = vmatpush1.msra.mxu0 0.0
    %2155 = vmatprep.subr.mxu0 0.0
    %2156 = vmatpush1.msra.mxu0 %v2117
    %2157 = vmatprep.subr.mxu0 0.0
    %2158 = vmatpush1.msra.mxu0 %v2116
    %2159 = vmatprep.subr.mxu0 0.0
    %2160 = vmatpush1.msra.mxu0 %v2115
    %2161 = vmatprep.subr.mxu0 0.0
    %2162 = vmatpush1.msra.mxu0 %v2114
    %2163 = vmatprep.subr.mxu0 0.0
    %2164 = vmatpush2.msra.mxu0 0.0
    %2165 = vmatprep.subr.mxu0 0.0
    %2166 = vmatpush2.msra.mxu0 0.0
    %2167 = vmatprep.subr.mxu0 0.0
    %2168 = vmatpush2.msra.mxu0 0.0
    %2169 = vmatprep.subr.mxu0 0.0
    %2170 = vmatpush2.msra.mxu0 0.0
    %2171 = vmatprep.subr.mxu0 0.0
    %2172 = vmatpush2.msra.mxu0 0.0
    %2173 = vmatprep.subr.mxu0 0.0
    %2174 = vmatpush2.msra.mxu0 0.0
    %2175 = vmatprep.subr.mxu0 0.0
    %2176 = vmatpush2.msra.mxu0 0.0
    %2177 = vmatprep.subr.mxu0 0.0
    %2178 = vmatpush2.msra.mxu0 0.0
    %2179 = vmatprep.subr.mxu0 0.0
    %2180 = vmatpush2.msra.mxu0 0.0
    %2181 = vmatprep.subr.mxu0 0.0
    %2182 = vmatpush2.msra.mxu0 0.0
    %2183 = vmatprep.subr.mxu0 0.0
    %2184 = vmatpush2.msra.mxu0 0.0
    %2185 = vmatprep.subr.mxu0 0.0
    %2186 = vmatpush2.msra.mxu0 0.0
    %2187 = vmatprep.subr.mxu0 0.0
    %2188 = vmatpush2.msra.mxu0 0.0
    %2189 = vmatprep.subr.mxu0 0.0
    %2190 = vmatpush2.msra.mxu0 0.0
    %2191 = vmatprep.subr.mxu0 0.0
    %2192 = vmatpush2.msra.mxu0 0.0
    %2193 = vmatprep.subr.mxu0 0.0
    %2194 = vmatpush2.msra.mxu0 0.0
    %2195 = vmatprep.mubr.f32.mxu0 0.0
    %2196 = vmatmul.mubr.f32.gmra.mxu0 %v2126
    %v2197 = vpop.f32.mrf.mxu0
    %v2198 = vadd.f32 %v2123, %v2197
    %v2199 = vpop.f32.mrf.mxu0
    %2200 = vmatprep.mubr.f32.mxu0 0.0
    %2201 = vmatmul.mubr.f32.gmra.mxu0 %v2129
    %v2202 = vpop.f32.mrf.mxu0
    %v2203 = vadd.f32 %v2123, %v2202
    %v2204 = vpop.f32.mrf.mxu0
    %2205 = vdwg.mxu0
    %v2206 = vmax.f32 %v2198, 0.0
    %v2207 = vmax.f32 %v2203, 0.0
    %v2208 = vld [vmem:[#allocation16] sm:$0xff]
    %v2209 = vld [vmem:[#allocation16 + $0x8] sm:$0xff]
    %v2210 = vld [vmem:[#allocation16 + $0x10] sm:$0xff]
    %v2211 = vld [vmem:[#allocation16 + $0x18] sm:$0xff]
    %v2212 = vld [vmem:[%s12] sm:$0x1]
    %v2214 = vlaneseq
    %v2215 = vshrl.u32 %v2214, 7
    %v2216 = vsub.s32 0, %v2215
    %v2217 = vrot.slane %v2212, %v2216
    %v2220 = vsel %vm175, %v2206, 0
    %v2223 = vsel %vm175, %v2207, 0
    %2225 = vmatprep.subr.mxu0 0.0
    %2226 = vmatpush1.msra.mxu0 0.0
    %2227 = vmatprep.subr.mxu0 0.0
    %2228 = vmatpush1.msra.mxu0 0.0
    %2229 = vmatprep.subr.mxu0 0.0
    %2230 = vmatpush1.msra.mxu0 0.0
    %2231 = vmatprep.subr.mxu0 0.0
    %2232 = vmatpush1.msra.mxu0 0.0
    %2233 = vmatprep.subr.mxu0 0.0
    %2234 = vmatpush1.msra.mxu0 0.0
    %2235 = vmatprep.subr.mxu0 0.0
    %2236 = vmatpush1.msra.mxu0 0.0
    %2237 = vmatprep.subr.mxu0 0.0
    %2238 = vmatpush1.msra.mxu0 0.0
    %2239 = vmatprep.subr.mxu0 0.0
    %2240 = vmatpush1.msra.mxu0 0.0
    %2241 = vmatprep.subr.mxu0 0.0
    %2242 = vmatpush1.msra.mxu0 0.0
    %2243 = vmatprep.subr.mxu0 0.0
    %2244 = vmatpush1.msra.mxu0 0.0
    %2245 = vmatprep.subr.mxu0 0.0
    %2246 = vmatpush1.msra.mxu0 0.0
    %2247 = vmatprep.subr.mxu0 0.0
    %2248 = vmatpush1.msra.mxu0 0.0
    %2249 = vmatprep.subr.mxu0 0.0
    %2250 = vmatpush1.msra.mxu0 %v2211
    %2251 = vmatprep.subr.mxu0 0.0
    %2252 = vmatpush1.msra.mxu0 %v2210
    %2253 = vmatprep.subr.mxu0 0.0
    %2254 = vmatpush1.msra.mxu0 %v2209
    %2255 = vmatprep.subr.mxu0 0.0
    %2256 = vmatpush1.msra.mxu0 %v2208
    %2257 = vmatprep.subr.mxu0 0.0
    %2258 = vmatpush2.msra.mxu0 0.0
    %2259 = vmatprep.subr.mxu0 0.0
    %2260 = vmatpush2.msra.mxu0 0.0
    %2261 = vmatprep.subr.mxu0 0.0
    %2262 = vmatpush2.msra.mxu0 0.0
    %2263 = vmatprep.subr.mxu0 0.0
    %2264 = vmatpush2.msra.mxu0 0.0
    %2265 = vmatprep.subr.mxu0 0.0
    %2266 = vmatpush2.msra.mxu0 0.0
    %2267 = vmatprep.subr.mxu0 0.0
    %2268 = vmatpush2.msra.mxu0 0.0
    %2269 = vmatprep.subr.mxu0 0.0
    %2270 = vmatpush2.msra.mxu0 0.0
    %2271 = vmatprep.subr.mxu0 0.0
    %2272 = vmatpush2.msra.mxu0 0.0
    %2273 = vmatprep.subr.mxu0 0.0
    %2274 = vmatpush2.msra.mxu0 0.0
    %2275 = vmatprep.subr.mxu0 0.0
    %2276 = vmatpush2.msra.mxu0 0.0
    %2277 = vmatprep.subr.mxu0 0.0
    %2278 = vmatpush2.msra.mxu0 0.0
    %2279 = vmatprep.subr.mxu0 0.0
    %2280 = vmatpush2.msra.mxu0 0.0
    %2281 = vmatprep.subr.mxu0 0.0
    %2282 = vmatpush2.msra.mxu0 0.0
    %2283 = vmatprep.subr.mxu0 0.0
    %2284 = vmatpush2.msra.mxu0 0.0
    %2285 = vmatprep.subr.mxu0 0.0
    %2286 = vmatpush2.msra.mxu0 0.0
    %2287 = vmatprep.subr.mxu0 0.0
    %2288 = vmatpush2.msra.mxu0 0.0
    %2289 = vmatprep.mubr.f32.mxu0 0.0
    %2290 = vmatmul.mubr.f32.gmra.mxu0 %v2220
    %v2291 = vpop.f32.mrf.mxu0
    %v2292 = vadd.f32 %v2217, %v2291
    %v2293 = vpop.f32.mrf.mxu0
    %2294 = vmatprep.mubr.f32.mxu0 0.0
    %2295 = vmatmul.mubr.f32.gmra.mxu0 %v2223
    %v2296 = vpop.f32.mrf.mxu0
    %v2297 = vadd.f32 %v2217, %v2296
    %v2298 = vpop.f32.mrf.mxu0
    %2299 = vdwg.mxu0
    %v2300 = vmax.f32 %v2292, 0.0
    %v2301 = vmax.f32 %v2297, 0.0
    %v2302 = vadd.f32 %v2066, %v2300
    %v2303 = vadd.f32 %v2067, %v2301
    %s2304 = scalar_lea.vmem [#allocation8], 3
    %v2305 = vld [vmem:[%s2304] sm:$0x1]
    %s2306 = scalar_lea.vmem [#allocation10], 3
    %v2307 = vld [vmem:[%s2306] sm:$0x1]
    %v2308 = vsel %vm175, %v247, 0.0
    %2309 = vadd.xlane.f32.xlu0 %v2308
    %v2310 = vpop.xlane.xlu0 %2309
    %v2311 = vsel %vm175, %v248, 0.0
    %2312 = vadd.xlane.f32.xlu0 %v2311
    %v2313 = vpop.xlane.xlu0 %2312
    %v2314 = vmul.f32 %v2310, %v182
    %v2315 = vmul.f32 %v2313, %v182
    %v2316 = vsub.f32 %v247, %v2314
    %v2317 = vsub.f32 %v248, %v2315
    %v2318 = vmul.f32 %v2316, %v2316
    %v2319 = vmul.f32 %v2317, %v2317
    %v2320 = vsel %vm175, %v2318, 0.0
    %2321 = vadd.xlane.f32.xlu0 %v2320
    %v2322 = vpop.xlane.xlu0 %2321
    %v2323 = vsel %vm175, %v2319, 0.0
    %2324 = vadd.xlane.f32.xlu0 %v2323
    %v2325 = vpop.xlane.xlu0 %2324
    %v2326 = vmul.f32 %v2322, %v182
    %v2327 = vmul.f32 %v2325, %v182
    %v2328 = vadd.f32 %v2326, 1e-05
    %v2329 = vadd.f32 %v2327, 1e-05
    %v2330 = vrsqrt.pop %v2328
    %v2331 = vrsqrt.pop %v2329
    %v2332 = vmul.f32 %v2316, %v2330
    %v2333 = vmul.f32 %v2317, %v2331
    %v2335 = vlaneseq
    %v2336 = vshrl.u32 %v2335, 7
    %v2337 = vsub.s32 0, %v2336
    %v2338 = vrot.slane %v2305, %v2337
    %v2340 = vmul.f32 %v2332, %v2338
    %v2341 = vmul.f32 %v2333, %v2338
    %v2343 = vlaneseq
    %v2344 = vshrl.u32 %v2343, 7
    %v2345 = vsub.s32 0, %v2344
    %v2346 = vrot.slane %v2307, %v2345
    %v2348 = vadd.f32 %v2340, %v2346
    %v2349 = vadd.f32 %v2341, %v2346
    %s2350 = scalar_lea.vmem [#allocation11], 32
    %v2351 = vld [vmem:[%s2350] sm:$0xff]
    %v2352 = vld [vmem:[%s2350 + $0x8] sm:$0xff]
    %v2353 = vld [vmem:[%s2350 + $0x10] sm:$0xff]
    %v2354 = vld [vmem:[%s2350 + $0x18] sm:$0xff]
    %s2355 = scalar_lea.vmem %s6, 1
    %v2356 = vld [vmem:[%s2355] sm:$0x1]
    %v2358 = vlaneseq
    %v2359 = vshrl.u32 %v2358, 7
    %v2360 = vsub.s32 0, %v2359
    %v2361 = vrot.slane %v2356, %v2360
    %v2364 = vsel %vm175, %v2348, 0
    %v2367 = vsel %vm175, %v2349, 0
    %2369 = vmatprep.subr.mxu0 0.0
    %2370 = vmatpush1.msra.mxu0 0.0
    %2371 = vmatprep.subr.mxu0 0.0
    %2372 = vmatpush1.msra.mxu0 0.0
    %2373 = vmatprep.subr.mxu0 0.0
    %2374 = vmatpush1.msra.mxu0 0.0
    %2375 = vmatprep.subr.mxu0 0.0
    %2376 = vmatpush1.msra.mxu0 0.0
    %2377 = vmatprep.subr.mxu0 0.0
    %2378 = vmatpush1.msra.mxu0 0.0
    %2379 = vmatprep.subr.mxu0 0.0
    %2380 = vmatpush1.msra.mxu0 0.0
    %2381 = vmatprep.subr.mxu0 0.0
    %2382 = vmatpush1.msra.mxu0 0.0
    %2383 = vmatprep.subr.mxu0 0.0
    %2384 = vmatpush1.msra.mxu0 0.0
    %2385 = vmatprep.subr.mxu0 0.0
    %2386 = vmatpush1.msra.mxu0 0.0
    %2387 = vmatprep.subr.mxu0 0.0
    %2388 = vmatpush1.msra.mxu0 0.0
    %2389 = vmatprep.subr.mxu0 0.0
    %2390 = vmatpush1.msra.mxu0 0.0
    %2391 = vmatprep.subr.mxu0 0.0
    %2392 = vmatpush1.msra.mxu0 0.0
    %2393 = vmatprep.subr.mxu0 0.0
    %2394 = vmatpush1.msra.mxu0 %v2354
    %2395 = vmatprep.subr.mxu0 0.0
    %2396 = vmatpush1.msra.mxu0 %v2353
    %2397 = vmatprep.subr.mxu0 0.0
    %2398 = vmatpush1.msra.mxu0 %v2352
    %2399 = vmatprep.subr.mxu0 0.0
    %2400 = vmatpush1.msra.mxu0 %v2351
    %2401 = vmatprep.subr.mxu0 0.0
    %2402 = vmatpush2.msra.mxu0 0.0
    %2403 = vmatprep.subr.mxu0 0.0
    %2404 = vmatpush2.msra.mxu0 0.0
    %2405 = vmatprep.subr.mxu0 0.0
    %2406 = vmatpush2.msra.mxu0 0.0
    %2407 = vmatprep.subr.mxu0 0.0
    %2408 = vmatpush2.msra.mxu0 0.0
    %2409 = vmatprep.subr.mxu0 0.0
    %2410 = vmatpush2.msra.mxu0 0.0
    %2411 = vmatprep.subr.mxu0 0.0
    %2412 = vmatpush2.msra.mxu0 0.0
    %2413 = vmatprep.subr.mxu0 0.0
    %2414 = vmatpush2.msra.mxu0 0.0
    %2415 = vmatprep.subr.mxu0 0.0
    %2416 = vmatpush2.msra.mxu0 0.0
    %2417 = vmatprep.subr.mxu0 0.0
    %2418 = vmatpush2.msra.mxu0 0.0
    %2419 = vmatprep.subr.mxu0 0.0
    %2420 = vmatpush2.msra.mxu0 0.0
    %2421 = vmatprep.subr.mxu0 0.0
    %2422 = vmatpush2.msra.mxu0 0.0
    %2423 = vmatprep.subr.mxu0 0.0
    %2424 = vmatpush2.msra.mxu0 0.0
    %2425 = vmatprep.subr.mxu0 0.0
    %2426 = vmatpush2.msra.mxu0 0.0
    %2427 = vmatprep.subr.mxu0 0.0
    %2428 = vmatpush2.msra.mxu0 0.0
    %2429 = vmatprep.subr.mxu0 0.0
    %2430 = vmatpush2.msra.mxu0 0.0
    %2431 = vmatprep.subr.mxu0 0.0
    %2432 = vmatpush2.msra.mxu0 0.0
    %2433 = vmatprep.mubr.f32.mxu0 0.0
    %2434 = vmatmul.mubr.f32.gmra.mxu0 %v2364
    %v2435 = vpop.f32.mrf.mxu0
    %v2436 = vadd.f32 %v2361, %v2435
    %v2437 = vpop.f32.mrf.mxu0
    %2438 = vmatprep.mubr.f32.mxu0 0.0
    %2439 = vmatmul.mubr.f32.gmra.mxu0 %v2367
    %v2440 = vpop.f32.mrf.mxu0
    %v2441 = vadd.f32 %v2361, %v2440
    %v2442 = vpop.f32.mrf.mxu0
    %2443 = vdwg.mxu0
    %2445 = vrot.lane.b32.xlu0 %v2436, 96
    %v2446 = vpop.permute.xlu0 %2445
    %v2447 = vsel %vm390, %v2436, 0
    %v2449 = vsel %vm390, %v2446, 0
    %2451 = vmatprep.subr.mxu0 0.0
    %2452 = vmatpush1.xpose.msra.mxu0 0.0
    %2453 = vmatprep.subr.mxu0 0.0
    %2454 = vmatpush1.xpose.msra.mxu0 0.0
    %2455 = vmatprep.subr.mxu0 0.0
    %2456 = vmatpush1.xpose.msra.mxu0 0.0
    %2457 = vmatprep.subr.mxu0 0.0
    %2458 = vmatpush1.xpose.msra.mxu0 0.0
    %2459 = vmatprep.subr.mxu0 0.0
    %2460 = vmatpush1.xpose.msra.mxu0 0.0
    %2461 = vmatprep.subr.mxu0 0.0
    %2462 = vmatpush1.xpose.msra.mxu0 0.0
    %2463 = vmatprep.subr.mxu0 0.0
    %2464 = vmatpush1.xpose.msra.mxu0 0.0
    %2465 = vmatprep.subr.mxu0 0.0
    %2466 = vmatpush1.xpose.msra.mxu0 0.0
    %2467 = vmatprep.subr.mxu0 0.0
    %2468 = vmatpush1.xpose.msra.mxu0 0.0
    %2469 = vmatprep.subr.mxu0 0.0
    %2470 = vmatpush1.xpose.msra.mxu0 0.0
    %2471 = vmatprep.subr.mxu0 0.0
    %2472 = vmatpush1.xpose.msra.mxu0 0.0
    %2473 = vmatprep.subr.mxu0 0.0
    %2474 = vmatpush1.xpose.msra.mxu0 0.0
    %2475 = vmatprep.subr.mxu0 0.0
    %2476 = vmatpush1.xpose.msra.mxu0 0.0
    %2477 = vmatprep.subr.mxu0 0.0
    %2478 = vmatpush1.xpose.msra.mxu0 0.0
    %2479 = vmatprep.subr.mxu0 0.0
    %2480 = vmatpush1.xpose.msra.mxu0 0.0
    %2481 = vmatprep.subr.mxu0 0.0
    %2482 = vmatpush1.xpose.msra.mxu0 %v2449
    %2483 = vmatprep.subr.mxu0 0.0
    %2484 = vmatpush2.xpose.msra.mxu0 0.0
    %2485 = vmatprep.subr.mxu0 0.0
    %2486 = vmatpush2.xpose.msra.mxu0 0.0
    %2487 = vmatprep.subr.mxu0 0.0
    %2488 = vmatpush2.xpose.msra.mxu0 0.0
    %2489 = vmatprep.subr.mxu0 0.0
    %2490 = vmatpush2.xpose.msra.mxu0 0.0
    %2491 = vmatprep.subr.mxu0 0.0
    %2492 = vmatpush2.xpose.msra.mxu0 0.0
    %2493 = vmatprep.subr.mxu0 0.0
    %2494 = vmatpush2.xpose.msra.mxu0 0.0
    %2495 = vmatprep.subr.mxu0 0.0
    %2496 = vmatpush2.xpose.msra.mxu0 0.0
    %2497 = vmatprep.subr.mxu0 0.0
    %2498 = vmatpush2.xpose.msra.mxu0 0.0
    %2499 = vmatprep.subr.mxu0 0.0
    %2500 = vmatpush2.xpose.msra.mxu0 0.0
    %2501 = vmatprep.subr.mxu0 0.0
    %2502 = vmatpush2.xpose.msra.mxu0 0.0
    %2503 = vmatprep.subr.mxu0 0.0
    %2504 = vmatpush2.xpose.msra.mxu0 0.0
    %2505 = vmatprep.subr.mxu0 0.0
    %2506 = vmatpush2.xpose.msra.mxu0 0.0
    %2507 = vmatprep.subr.mxu0 0.0
    %2508 = vmatpush2.xpose.msra.mxu0 0.0
    %2509 = vmatprep.subr.mxu0 0.0
    %2510 = vmatpush2.xpose.msra.mxu0 0.0
    %2511 = vmatprep.subr.mxu0 0.0
    %2512 = vmatpush2.xpose.msra.mxu0 0.0
    %2513 = vmatprep.subr.mxu0 0.0
    %2514 = vmatpush2.xpose.msra.mxu0 0.0
    %2515 = vmatprep.mubr.f32.mxu0 0.0
    %2516 = vmatmul.mubr.f32.gmra.mxu0 %v2447
    %v2517 = vpop.f32.mrf.mxu0
    %v2518 = vadd.f32 0.0, %v2517
    %v2519 = vpop.f32.mrf.mxu0
    %2520 = vdwg.mxu0
    %2522 = vrot.lane.b32.xlu0 %v2441, 96
    %v2523 = vpop.permute.xlu0 %2522
    %v2524 = vsel %vm390, %v2441, 0
    %v2526 = vsel %vm390, %v2523, 0
    %2528 = vmatprep.subr.mxu0 0.0
    %2529 = vmatpush1.xpose.msra.mxu0 0.0
    %2530 = vmatprep.subr.mxu0 0.0
    %2531 = vmatpush1.xpose.msra.mxu0 0.0
    %2532 = vmatprep.subr.mxu0 0.0
    %2533 = vmatpush1.xpose.msra.mxu0 0.0
    %2534 = vmatprep.subr.mxu0 0.0
    %2535 = vmatpush1.xpose.msra.mxu0 0.0
    %2536 = vmatprep.subr.mxu0 0.0
    %2537 = vmatpush1.xpose.msra.mxu0 0.0
    %2538 = vmatprep.subr.mxu0 0.0
    %2539 = vmatpush1.xpose.msra.mxu0 0.0
    %2540 = vmatprep.subr.mxu0 0.0
    %2541 = vmatpush1.xpose.msra.mxu0 0.0
    %2542 = vmatprep.subr.mxu0 0.0
    %2543 = vmatpush1.xpose.msra.mxu0 0.0
    %2544 = vmatprep.subr.mxu0 0.0
    %2545 = vmatpush1.xpose.msra.mxu0 0.0
    %2546 = vmatprep.subr.mxu0 0.0
    %2547 = vmatpush1.xpose.msra.mxu0 0.0
    %2548 = vmatprep.subr.mxu0 0.0
    %2549 = vmatpush1.xpose.msra.mxu0 0.0
    %2550 = vmatprep.subr.mxu0 0.0
    %2551 = vmatpush1.xpose.msra.mxu0 0.0
    %2552 = vmatprep.subr.mxu0 0.0
    %2553 = vmatpush1.xpose.msra.mxu0 0.0
    %2554 = vmatprep.subr.mxu0 0.0
    %2555 = vmatpush1.xpose.msra.mxu0 0.0
    %2556 = vmatprep.subr.mxu0 0.0
    %2557 = vmatpush1.xpose.msra.mxu0 0.0
    %2558 = vmatprep.subr.mxu0 0.0
    %2559 = vmatpush1.xpose.msra.mxu0 %v2526
    %2560 = vmatprep.subr.mxu0 0.0
    %2561 = vmatpush2.xpose.msra.mxu0 0.0
    %2562 = vmatprep.subr.mxu0 0.0
    %2563 = vmatpush2.xpose.msra.mxu0 0.0
    %2564 = vmatprep.subr.mxu0 0.0
    %2565 = vmatpush2.xpose.msra.mxu0 0.0
    %2566 = vmatprep.subr.mxu0 0.0
    %2567 = vmatpush2.xpose.msra.mxu0 0.0
    %2568 = vmatprep.subr.mxu0 0.0
    %2569 = vmatpush2.xpose.msra.mxu0 0.0
    %2570 = vmatprep.subr.mxu0 0.0
    %2571 = vmatpush2.xpose.msra.mxu0 0.0
    %2572 = vmatprep.subr.mxu0 0.0
    %2573 = vmatpush2.xpose.msra.mxu0 0.0
    %2574 = vmatprep.subr.mxu0 0.0
    %2575 = vmatpush2.xpose.msra.mxu0 0.0
    %2576 = vmatprep.subr.mxu0 0.0
    %2577 = vmatpush2.xpose.msra.mxu0 0.0
    %2578 = vmatprep.subr.mxu0 0.0
    %2579 = vmatpush2.xpose.msra.mxu0 0.0
    %2580 = vmatprep.subr.mxu0 0.0
    %2581 = vmatpush2.xpose.msra.mxu0 0.0
    %2582 = vmatprep.subr.mxu0 0.0
    %2583 = vmatpush2.xpose.msra.mxu0 0.0
    %2584 = vmatprep.subr.mxu0 0.0
    %2585 = vmatpush2.xpose.msra.mxu0 0.0
    %2586 = vmatprep.subr.mxu0 0.0
    %2587 = vmatpush2.xpose.msra.mxu0 0.0
    %2588 = vmatprep.subr.mxu0 0.0
    %2589 = vmatpush2.xpose.msra.mxu0 0.0
    %2590 = vmatprep.subr.mxu0 0.0
    %2591 = vmatpush2.xpose.msra.mxu0 0.0
    %2592 = vmatprep.mubr.f32.mxu0 0.0
    %2593 = vmatmul.mubr.f32.gmra.mxu0 %v2524
    %v2594 = vpop.f32.mrf.mxu0
    %v2595 = vadd.f32 0.0, %v2594
    %v2596 = vpop.f32.mrf.mxu0
    %2597 = vdwg.mxu0
    %v2598 = vmul.f32 %v2518, 0.35355338
    %v2599 = vmul.f32 %v2595, 0.35355338
    %v2600 = vsel %vm390, %v2598, -inf
    %2601 = vmax.xlane.f32.xlu0 %v2600
    %v2602 = vpop.xlane.xlu0 %2601
    %v2603 = vsel %vm390, %v2599, -inf
    %2604 = vmax.xlane.f32.xlu0 %v2603
    %v2605 = vpop.xlane.xlu0 %2604
    %v2606 = vsub.f32 %v2598, %v2602
    %v2607 = vsub.f32 %v2599, %v2605
    %v2608 = vmul.f32 %v2606, 1.442695
    %v2609 = vpow.pop %v2608
    %v2610 = vmul.f32 %v2607, 1.442695
    %v2611 = vpow.pop %v2610
    %v2612 = vsel %vm390, %v2609, 0.0
    %2613 = vadd.xlane.f32.xlu0 %v2612
    %v2614 = vpop.xlane.xlu0 %2613
    %v2615 = vsel %vm390, %v2611, 0.0
    %2616 = vadd.xlane.f32.xlu0 %v2615
    %v2617 = vpop.xlane.xlu0 %2616
    %v2618 = vrcp.pop %v2614
    %v2619 = vrcp.pop %v2617
    %v2620 = vmul.f32 %v2609, %v2618
    %v2621 = vmul.f32 %v2611, %v2619
    %2622 = vrot.lane.b32.xlu0 %v2436, 64
    %v2623 = vpop.permute.xlu0 %2622
    %v2626 = vsel %vm390, %v2620, 0
    %2628 = vmatprep.subr.mxu0 0.0
    %2629 = vmatpush1.msra.mxu0 0.0
    %2630 = vmatprep.subr.mxu0 0.0
    %2631 = vmatpush1.msra.mxu0 0.0
    %2632 = vmatprep.subr.mxu0 0.0
    %2633 = vmatpush1.msra.mxu0 0.0
    %2634 = vmatprep.subr.mxu0 0.0
    %2635 = vmatpush1.msra.mxu0 0.0
    %2636 = vmatprep.subr.mxu0 0.0
    %2637 = vmatpush1.msra.mxu0 0.0
    %2638 = vmatprep.subr.mxu0 0.0
    %2639 = vmatpush1.msra.mxu0 0.0
    %2640 = vmatprep.subr.mxu0 0.0
    %2641 = vmatpush1.msra.mxu0 0.0
    %2642 = vmatprep.subr.mxu0 0.0
    %2643 = vmatpush1.msra.mxu0 0.0
    %2644 = vmatprep.subr.mxu0 0.0
    %2645 = vmatpush1.msra.mxu0 0.0
    %2646 = vmatprep.subr.mxu0 0.0
    %2647 = vmatpush1.msra.mxu0 0.0
    %2648 = vmatprep.subr.mxu0 0.0
    %2649 = vmatpush1.msra.mxu0 0.0
    %2650 = vmatprep.subr.mxu0 0.0
    %2651 = vmatpush1.msra.mxu0 0.0
    %2652 = vmatprep.subr.mxu0 0.0
    %2653 = vmatpush1.msra.mxu0 0.0
    %2654 = vmatprep.subr.mxu0 0.0
    %2655 = vmatpush1.msra.mxu0 0.0
    %2656 = vmatprep.subr.mxu0 0.0
    %2657 = vmatpush1.msra.mxu0 0.0
    %2658 = vmatprep.subr.mxu0 0.0
    %2659 = vmatpush1.msra.mxu0 %v2623
    %2660 = vmatprep.subr.mxu0 0.0
    %2661 = vmatpush2.msra.mxu0 0.0
    %2662 = vmatprep.subr.mxu0 0.0
    %2663 = vmatpush2.msra.mxu0 0.0
    %2664 = vmatprep.subr.mxu0 0.0
    %2665 = vmatpush2.msra.mxu0 0.0
    %2666 = vmatprep.subr.mxu0 0.0
    %2667 = vmatpush2.msra.mxu0 0.0
    %2668 = vmatprep.subr.mxu0 0.0
    %2669 = vmatpush2.msra.mxu0 0.0
    %2670 = vmatprep.subr.mxu0 0.0
    %2671 = vmatpush2.msra.mxu0 0.0
    %2672 = vmatprep.subr.mxu0 0.0
    %2673 = vmatpush2.msra.mxu0 0.0
    %2674 = vmatprep.subr.mxu0 0.0
    %2675 = vmatpush2.msra.mxu0 0.0
    %2676 = vmatprep.subr.mxu0 0.0
    %2677 = vmatpush2.msra.mxu0 0.0
    %2678 = vmatprep.subr.mxu0 0.0
    %2679 = vmatpush2.msra.mxu0 0.0
    %2680 = vmatprep.subr.mxu0 0.0
    %2681 = vmatpush2.msra.mxu0 0.0
    %2682 = vmatprep.subr.mxu0 0.0
    %2683 = vmatpush2.msra.mxu0 0.0
    %2684 = vmatprep.subr.mxu0 0.0
    %2685 = vmatpush2.msra.mxu0 0.0
    %2686 = vmatprep.subr.mxu0 0.0
    %2687 = vmatpush2.msra.mxu0 0.0
    %2688 = vmatprep.subr.mxu0 0.0
    %2689 = vmatpush2.msra.mxu0 0.0
    %2690 = vmatprep.subr.mxu0 0.0
    %2691 = vmatpush2.msra.mxu0 0.0
    %2692 = vmatprep.mubr.f32.mxu0 0.0
    %2693 = vmatmul.mubr.f32.gmra.mxu0 %v2626
    %v2694 = vpop.f32.mrf.mxu0
    %v2695 = vadd.f32 0.0, %v2694
    %v2696 = vpop.f32.mrf.mxu0
    %2697 = vdwg.mxu0
    %2698 = vrot.lane.b32.xlu0 %v2441, 64
    %v2699 = vpop.permute.xlu0 %2698
    %v2702 = vsel %vm390, %v2621, 0
    %2704 = vmatprep.subr.mxu0 0.0
    %2705 = vmatpush1.msra.mxu0 0.0
    %2706 = vmatprep.subr.mxu0 0.0
    %2707 = vmatpush1.msra.mxu0 0.0
    %2708 = vmatprep.subr.mxu0 0.0
    %2709 = vmatpush1.msra.mxu0 0.0
    %2710 = vmatprep.subr.mxu0 0.0
    %2711 = vmatpush1.msra.mxu0 0.0
    %2712 = vmatprep.subr.mxu0 0.0
    %2713 = vmatpush1.msra.mxu0 0.0
    %2714 = vmatprep.subr.mxu0 0.0
    %2715 = vmatpush1.msra.mxu0 0.0
    %2716 = vmatprep.subr.mxu0 0.0
    %2717 = vmatpush1.msra.mxu0 0.0
    %2718 = vmatprep.subr.mxu0 0.0
    %2719 = vmatpush1.msra.mxu0 0.0
    %2720 = vmatprep.subr.mxu0 0.0
    %2721 = vmatpush1.msra.mxu0 0.0
    %2722 = vmatprep.subr.mxu0 0.0
    %2723 = vmatpush1.msra.mxu0 0.0
    %2724 = vmatprep.subr.mxu0 0.0
    %2725 = vmatpush1.msra.mxu0 0.0
    %2726 = vmatprep.subr.mxu0 0.0
    %2727 = vmatpush1.msra.mxu0 0.0
    %2728 = vmatprep.subr.mxu0 0.0
    %2729 = vmatpush1.msra.mxu0 0.0
    %2730 = vmatprep.subr.mxu0 0.0
    %2731 = vmatpush1.msra.mxu0 0.0
    %2732 = vmatprep.subr.mxu0 0.0
    %2733 = vmatpush1.msra.mxu0 0.0
    %2734 = vmatprep.subr.mxu0 0.0
    %2735 = vmatpush1.msra.mxu0 %v2699
    %2736 = vmatprep.subr.mxu0 0.0
    %2737 = vmatpush2.msra.mxu0 0.0
    %2738 = vmatprep.subr.mxu0 0.0
    %2739 = vmatpush2.msra.mxu0 0.0
    %2740 = vmatprep.subr.mxu0 0.0
    %2741 = vmatpush2.msra.mxu0 0.0
    %2742 = vmatprep.subr.mxu0 0.0
    %2743 = vmatpush2.msra.mxu0 0.0
    %2744 = vmatprep.subr.mxu0 0.0
    %2745 = vmatpush2.msra.mxu0 0.0
    %2746 = vmatprep.subr.mxu0 0.0
    %2747 = vmatpush2.msra.mxu0 0.0
    %2748 = vmatprep.subr.mxu0 0.0
    %2749 = vmatpush2.msra.mxu0 0.0
    %2750 = vmatprep.subr.mxu0 0.0
    %2751 = vmatpush2.msra.mxu0 0.0
    %2752 = vmatprep.subr.mxu0 0.0
    %2753 = vmatpush2.msra.mxu0 0.0
    %2754 = vmatprep.subr.mxu0 0.0
    %2755 = vmatpush2.msra.mxu0 0.0
    %2756 = vmatprep.subr.mxu0 0.0
    %2757 = vmatpush2.msra.mxu0 0.0
    %2758 = vmatprep.subr.mxu0 0.0
    %2759 = vmatpush2.msra.mxu0 0.0
    %2760 = vmatprep.subr.mxu0 0.0
    %2761 = vmatpush2.msra.mxu0 0.0
    %2762 = vmatprep.subr.mxu0 0.0
    %2763 = vmatpush2.msra.mxu0 0.0
    %2764 = vmatprep.subr.mxu0 0.0
    %2765 = vmatpush2.msra.mxu0 0.0
    %2766 = vmatprep.subr.mxu0 0.0
    %2767 = vmatpush2.msra.mxu0 0.0
    %2768 = vmatprep.mubr.f32.mxu0 0.0
    %2769 = vmatmul.mubr.f32.gmra.mxu0 %v2702
    %v2770 = vpop.f32.mrf.mxu0
    %v2771 = vadd.f32 0.0, %v2770
    %v2772 = vpop.f32.mrf.mxu0
    %2773 = vdwg.mxu0
    %s2774 = scalar_lea.vmem [#allocation13], 32
    %v2775 = vld [vmem:[%s2774] sm:$0xff]
    %2776 = vrot.lane.b32.xlu0 %v2436, 120
    %v2777 = vpop.permute.xlu0 %2776
    %2778 = vrot.lane.b32.xlu0 %v2436, 88
    %v2779 = vpop.permute.xlu0 %2778
    %v2780 = vsel %vm390, %v2777, 0
    %v2782 = vsel %vm390, %v2779, 0
    %2784 = vmatprep.subr.mxu0 0.0
    %2785 = vmatpush1.xpose.msra.mxu0 0.0
    %2786 = vmatprep.subr.mxu0 0.0
    %2787 = vmatpush1.xpose.msra.mxu0 0.0
    %2788 = vmatprep.subr.mxu0 0.0
    %2789 = vmatpush1.xpose.msra.mxu0 0.0
    %2790 = vmatprep.subr.mxu0 0.0
    %2791 = vmatpush1.xpose.msra.mxu0 0.0
    %2792 = vmatprep.subr.mxu0 0.0
    %2793 = vmatpush1.xpose.msra.mxu0 0.0
    %2794 = vmatprep.subr.mxu0 0.0
    %2795 = vmatpush1.xpose.msra.mxu0 0.0
    %2796 = vmatprep.subr.mxu0 0.0
    %2797 = vmatpush1.xpose.msra.mxu0 0.0
    %2798 = vmatprep.subr.mxu0 0.0
    %2799 = vmatpush1.xpose.msra.mxu0 0.0
    %2800 = vmatprep.subr.mxu0 0.0
    %2801 = vmatpush1.xpose.msra.mxu0 0.0
    %2802 = vmatprep.subr.mxu0 0.0
    %2803 = vmatpush1.xpose.msra.mxu0 0.0
    %2804 = vmatprep.subr.mxu0 0.0
    %2805 = vmatpush1.xpose.msra.mxu0 0.0
    %2806 = vmatprep.subr.mxu0 0.0
    %2807 = vmatpush1.xpose.msra.mxu0 0.0
    %2808 = vmatprep.subr.mxu0 0.0
    %2809 = vmatpush1.xpose.msra.mxu0 0.0
    %2810 = vmatprep.subr.mxu0 0.0
    %2811 = vmatpush1.xpose.msra.mxu0 0.0
    %2812 = vmatprep.subr.mxu0 0.0
    %2813 = vmatpush1.xpose.msra.mxu0 0.0
    %2814 = vmatprep.subr.mxu0 0.0
    %2815 = vmatpush1.xpose.msra.mxu0 %v2782
    %2816 = vmatprep.subr.mxu0 0.0
    %2817 = vmatpush2.xpose.msra.mxu0 0.0
    %2818 = vmatprep.subr.mxu0 0.0
    %2819 = vmatpush2.xpose.msra.mxu0 0.0
    %2820 = vmatprep.subr.mxu0 0.0
    %2821 = vmatpush2.xpose.msra.mxu0 0.0
    %2822 = vmatprep.subr.mxu0 0.0
    %2823 = vmatpush2.xpose.msra.mxu0 0.0
    %2824 = vmatprep.subr.mxu0 0.0
    %2825 = vmatpush2.xpose.msra.mxu0 0.0
    %2826 = vmatprep.subr.mxu0 0.0
    %2827 = vmatpush2.xpose.msra.mxu0 0.0
    %2828 = vmatprep.subr.mxu0 0.0
    %2829 = vmatpush2.xpose.msra.mxu0 0.0
    %2830 = vmatprep.subr.mxu0 0.0
    %2831 = vmatpush2.xpose.msra.mxu0 0.0
    %2832 = vmatprep.subr.mxu0 0.0
    %2833 = vmatpush2.xpose.msra.mxu0 0.0
    %2834 = vmatprep.subr.mxu0 0.0
    %2835 = vmatpush2.xpose.msra.mxu0 0.0
    %2836 = vmatprep.subr.mxu0 0.0
    %2837 = vmatpush2.xpose.msra.mxu0 0.0
    %2838 = vmatprep.subr.mxu0 0.0
    %2839 = vmatpush2.xpose.msra.mxu0 0.0
    %2840 = vmatprep.subr.mxu0 0.0
    %2841 = vmatpush2.xpose.msra.mxu0 0.0
    %2842 = vmatprep.subr.mxu0 0.0
    %2843 = vmatpush2.xpose.msra.mxu0 0.0
    %2844 = vmatprep.subr.mxu0 0.0
    %2845 = vmatpush2.xpose.msra.mxu0 0.0
    %2846 = vmatprep.subr.mxu0 0.0
    %2847 = vmatpush2.xpose.msra.mxu0 0.0
    %2848 = vmatprep.mubr.f32.mxu0 0.0
    %2849 = vmatmul.mubr.f32.gmra.mxu0 %v2780
    %v2850 = vpop.f32.mrf.mxu0
    %v2851 = vadd.f32 0.0, %v2850
    %v2852 = vpop.f32.mrf.mxu0
    %2853 = vdwg.mxu0
    %2854 = vrot.lane.b32.xlu0 %v2441, 120
    %v2855 = vpop.permute.xlu0 %2854
    %2856 = vrot.lane.b32.xlu0 %v2441, 88
    %v2857 = vpop.permute.xlu0 %2856
    %v2858 = vsel %vm390, %v2855, 0
    %v2860 = vsel %vm390, %v2857, 0
    %2862 = vmatprep.subr.mxu0 0.0
    %2863 = vmatpush1.xpose.msra.mxu0 0.0
    %2864 = vmatprep.subr.mxu0 0.0
    %2865 = vmatpush1.xpose.msra.mxu0 0.0
    %2866 = vmatprep.subr.mxu0 0.0
    %2867 = vmatpush1.xpose.msra.mxu0 0.0
    %2868 = vmatprep.subr.mxu0 0.0
    %2869 = vmatpush1.xpose.msra.mxu0 0.0
    %2870 = vmatprep.subr.mxu0 0.0
    %2871 = vmatpush1.xpose.msra.mxu0 0.0
    %2872 = vmatprep.subr.mxu0 0.0
    %2873 = vmatpush1.xpose.msra.mxu0 0.0
    %2874 = vmatprep.subr.mxu0 0.0
    %2875 = vmatpush1.xpose.msra.mxu0 0.0
    %2876 = vmatprep.subr.mxu0 0.0
    %2877 = vmatpush1.xpose.msra.mxu0 0.0
    %2878 = vmatprep.subr.mxu0 0.0
    %2879 = vmatpush1.xpose.msra.mxu0 0.0
    %2880 = vmatprep.subr.mxu0 0.0
    %2881 = vmatpush1.xpose.msra.mxu0 0.0
    %2882 = vmatprep.subr.mxu0 0.0
    %2883 = vmatpush1.xpose.msra.mxu0 0.0
    %2884 = vmatprep.subr.mxu0 0.0
    %2885 = vmatpush1.xpose.msra.mxu0 0.0
    %2886 = vmatprep.subr.mxu0 0.0
    %2887 = vmatpush1.xpose.msra.mxu0 0.0
    %2888 = vmatprep.subr.mxu0 0.0
    %2889 = vmatpush1.xpose.msra.mxu0 0.0
    %2890 = vmatprep.subr.mxu0 0.0
    %2891 = vmatpush1.xpose.msra.mxu0 0.0
    %2892 = vmatprep.subr.mxu0 0.0
    %2893 = vmatpush1.xpose.msra.mxu0 %v2860
    %2894 = vmatprep.subr.mxu0 0.0
    %2895 = vmatpush2.xpose.msra.mxu0 0.0
    %2896 = vmatprep.subr.mxu0 0.0
    %2897 = vmatpush2.xpose.msra.mxu0 0.0
    %2898 = vmatprep.subr.mxu0 0.0
    %2899 = vmatpush2.xpose.msra.mxu0 0.0
    %2900 = vmatprep.subr.mxu0 0.0
    %2901 = vmatpush2.xpose.msra.mxu0 0.0
    %2902 = vmatprep.subr.mxu0 0.0
    %2903 = vmatpush2.xpose.msra.mxu0 0.0
    %2904 = vmatprep.subr.mxu0 0.0
    %2905 = vmatpush2.xpose.msra.mxu0 0.0
    %2906 = vmatprep.subr.mxu0 0.0
    %2907 = vmatpush2.xpose.msra.mxu0 0.0
    %2908 = vmatprep.subr.mxu0 0.0
    %2909 = vmatpush2.xpose.msra.mxu0 0.0
    %2910 = vmatprep.subr.mxu0 0.0
    %2911 = vmatpush2.xpose.msra.mxu0 0.0
    %2912 = vmatprep.subr.mxu0 0.0
    %2913 = vmatpush2.xpose.msra.mxu0 0.0
    %2914 = vmatprep.subr.mxu0 0.0
    %2915 = vmatpush2.xpose.msra.mxu0 0.0
    %2916 = vmatprep.subr.mxu0 0.0
    %2917 = vmatpush2.xpose.msra.mxu0 0.0
    %2918 = vmatprep.subr.mxu0 0.0
    %2919 = vmatpush2.xpose.msra.mxu0 0.0
    %2920 = vmatprep.subr.mxu0 0.0
    %2921 = vmatpush2.xpose.msra.mxu0 0.0
    %2922 = vmatprep.subr.mxu0 0.0
    %2923 = vmatpush2.xpose.msra.mxu0 0.0
    %2924 = vmatprep.subr.mxu0 0.0
    %2925 = vmatpush2.xpose.msra.mxu0 0.0
    %2926 = vmatprep.mubr.f32.mxu0 0.0
    %2927 = vmatmul.mubr.f32.gmra.mxu0 %v2858
    %v2928 = vpop.f32.mrf.mxu0
    %v2929 = vadd.f32 0.0, %v2928
    %v2930 = vpop.f32.mrf.mxu0
    %2931 = vdwg.mxu0
    %v2932 = vmul.f32 %v2851, 0.35355338
    %v2933 = vmul.f32 %v2929, 0.35355338
    %v2934 = vsel %vm390, %v2932, -inf
    %2935 = vmax.xlane.f32.xlu0 %v2934
    %v2936 = vpop.xlane.xlu0 %2935
    %v2937 = vsel %vm390, %v2933, -inf
    %2938 = vmax.xlane.f32.xlu0 %v2937
    %v2939 = vpop.xlane.xlu0 %2938
    %v2940 = vsub.f32 %v2932, %v2936
    %v2941 = vsub.f32 %v2933, %v2939
    %v2942 = vmul.f32 %v2940, 1.442695
    %v2943 = vpow.pop %v2942
    %v2944 = vmul.f32 %v2941, 1.442695
    %v2945 = vpow.pop %v2944
    %v2946 = vsel %vm390, %v2943, 0.0
    %2947 = vadd.xlane.f32.xlu0 %v2946
    %v2948 = vpop.xlane.xlu0 %2947
    %v2949 = vsel %vm390, %v2945, 0.0
    %2950 = vadd.xlane.f32.xlu0 %v2949
    %v2951 = vpop.xlane.xlu0 %2950
    %v2952 = vrcp.pop %v2948
    %v2953 = vrcp.pop %v2951
    %v2954 = vmul.f32 %v2943, %v2952
    %v2955 = vmul.f32 %v2945, %v2953
    %2956 = vrot.lane.b32.xlu0 %v2436, 56
    %v2957 = vpop.permute.xlu0 %2956
    %v2960 = vsel %vm390, %v2954, 0
    %2962 = vmatprep.subr.mxu0 0.0
    %2963 = vmatpush1.msra.mxu0 0.0
    %2964 = vmatprep.subr.mxu0 0.0
    %2965 = vmatpush1.msra.mxu0 0.0
    %2966 = vmatprep.subr.mxu0 0.0
    %2967 = vmatpush1.msra.mxu0 0.0
    %2968 = vmatprep.subr.mxu0 0.0
    %2969 = vmatpush1.msra.mxu0 0.0
    %2970 = vmatprep.subr.mxu0 0.0
    %2971 = vmatpush1.msra.mxu0 0.0
    %2972 = vmatprep.subr.mxu0 0.0
    %2973 = vmatpush1.msra.mxu0 0.0
    %2974 = vmatprep.subr.mxu0 0.0
    %2975 = vmatpush1.msra.mxu0 0.0
    %2976 = vmatprep.subr.mxu0 0.0
    %2977 = vmatpush1.msra.mxu0 0.0
    %2978 = vmatprep.subr.mxu0 0.0
    %2979 = vmatpush1.msra.mxu0 0.0
    %2980 = vmatprep.subr.mxu0 0.0
    %2981 = vmatpush1.msra.mxu0 0.0
    %2982 = vmatprep.subr.mxu0 0.0
    %2983 = vmatpush1.msra.mxu0 0.0
    %2984 = vmatprep.subr.mxu0 0.0
    %2985 = vmatpush1.msra.mxu0 0.0
    %2986 = vmatprep.subr.mxu0 0.0
    %2987 = vmatpush1.msra.mxu0 0.0
    %2988 = vmatprep.subr.mxu0 0.0
    %2989 = vmatpush1.msra.mxu0 0.0
    %2990 = vmatprep.subr.mxu0 0.0
    %2991 = vmatpush1.msra.mxu0 0.0
    %2992 = vmatprep.subr.mxu0 0.0
    %2993 = vmatpush1.msra.mxu0 %v2957
    %2994 = vmatprep.subr.mxu0 0.0
    %2995 = vmatpush2.msra.mxu0 0.0
    %2996 = vmatprep.subr.mxu0 0.0
    %2997 = vmatpush2.msra.mxu0 0.0
    %2998 = vmatprep.subr.mxu0 0.0
    %2999 = vmatpush2.msra.mxu0 0.0
    %3000 = vmatprep.subr.mxu0 0.0
    %3001 = vmatpush2.msra.mxu0 0.0
    %3002 = vmatprep.subr.mxu0 0.0
    %3003 = vmatpush2.msra.mxu0 0.0
    %3004 = vmatprep.subr.mxu0 0.0
    %3005 = vmatpush2.msra.mxu0 0.0
    %3006 = vmatprep.subr.mxu0 0.0
    %3007 = vmatpush2.msra.mxu0 0.0
    %3008 = vmatprep.subr.mxu0 0.0
    %3009 = vmatpush2.msra.mxu0 0.0
    %3010 = vmatprep.subr.mxu0 0.0
    %3011 = vmatpush2.msra.mxu0 0.0
    %3012 = vmatprep.subr.mxu0 0.0
    %3013 = vmatpush2.msra.mxu0 0.0
    %3014 = vmatprep.subr.mxu0 0.0
    %3015 = vmatpush2.msra.mxu0 0.0
    %3016 = vmatprep.subr.mxu0 0.0
    %3017 = vmatpush2.msra.mxu0 0.0
    %3018 = vmatprep.subr.mxu0 0.0
    %3019 = vmatpush2.msra.mxu0 0.0
    %3020 = vmatprep.subr.mxu0 0.0
    %3021 = vmatpush2.msra.mxu0 0.0
    %3022 = vmatprep.subr.mxu0 0.0
    %3023 = vmatpush2.msra.mxu0 0.0
    %3024 = vmatprep.subr.mxu0 0.0
    %3025 = vmatpush2.msra.mxu0 0.0
    %3026 = vmatprep.mubr.f32.mxu0 0.0
    %3027 = vmatmul.mubr.f32.gmra.mxu0 %v2960
    %v3028 = vpop.f32.mrf.mxu0
    %v3029 = vadd.f32 0.0, %v3028
    %v3030 = vpop.f32.mrf.mxu0
    %3031 = vdwg.mxu0
    %3032 = vrot.lane.b32.xlu0 %v2441, 56
    %v3033 = vpop.permute.xlu0 %3032
    %v3036 = vsel %vm390, %v2955, 0
    %3038 = vmatprep.subr.mxu0 0.0
    %3039 = vmatpush1.msra.mxu0 0.0
    %3040 = vmatprep.subr.mxu0 0.0
    %3041 = vmatpush1.msra.mxu0 0.0
    %3042 = vmatprep.subr.mxu0 0.0
    %3043 = vmatpush1.msra.mxu0 0.0
    %3044 = vmatprep.subr.mxu0 0.0
    %3045 = vmatpush1.msra.mxu0 0.0
    %3046 = vmatprep.subr.mxu0 0.0
    %3047 = vmatpush1.msra.mxu0 0.0
    %3048 = vmatprep.subr.mxu0 0.0
    %3049 = vmatpush1.msra.mxu0 0.0
    %3050 = vmatprep.subr.mxu0 0.0
    %3051 = vmatpush1.msra.mxu0 0.0
    %3052 = vmatprep.subr.mxu0 0.0
    %3053 = vmatpush1.msra.mxu0 0.0
    %3054 = vmatprep.subr.mxu0 0.0
    %3055 = vmatpush1.msra.mxu0 0.0
    %3056 = vmatprep.subr.mxu0 0.0
    %3057 = vmatpush1.msra.mxu0 0.0
    %3058 = vmatprep.subr.mxu0 0.0
    %3059 = vmatpush1.msra.mxu0 0.0
    %3060 = vmatprep.subr.mxu0 0.0
    %3061 = vmatpush1.msra.mxu0 0.0
    %3062 = vmatprep.subr.mxu0 0.0
    %3063 = vmatpush1.msra.mxu0 0.0
    %3064 = vmatprep.subr.mxu0 0.0
    %3065 = vmatpush1.msra.mxu0 0.0
    %3066 = vmatprep.subr.mxu0 0.0
    %3067 = vmatpush1.msra.mxu0 0.0
    %3068 = vmatprep.subr.mxu0 0.0
    %3069 = vmatpush1.msra.mxu0 %v3033
    %3070 = vmatprep.subr.mxu0 0.0
    %3071 = vmatpush2.msra.mxu0 0.0
    %3072 = vmatprep.subr.mxu0 0.0
    %3073 = vmatpush2.msra.mxu0 0.0
    %3074 = vmatprep.subr.mxu0 0.0
    %3075 = vmatpush2.msra.mxu0 0.0
    %3076 = vmatprep.subr.mxu0 0.0
    %3077 = vmatpush2.msra.mxu0 0.0
    %3078 = vmatprep.subr.mxu0 0.0
    %3079 = vmatpush2.msra.mxu0 0.0
    %3080 = vmatprep.subr.mxu0 0.0
    %3081 = vmatpush2.msra.mxu0 0.0
    %3082 = vmatprep.subr.mxu0 0.0
    %3083 = vmatpush2.msra.mxu0 0.0
    %3084 = vmatprep.subr.mxu0 0.0
    %3085 = vmatpush2.msra.mxu0 0.0
    %3086 = vmatprep.subr.mxu0 0.0
    %3087 = vmatpush2.msra.mxu0 0.0
    %3088 = vmatprep.subr.mxu0 0.0
    %3089 = vmatpush2.msra.mxu0 0.0
    %3090 = vmatprep.subr.mxu0 0.0
    %3091 = vmatpush2.msra.mxu0 0.0
    %3092 = vmatprep.subr.mxu0 0.0
    %3093 = vmatpush2.msra.mxu0 0.0
    %3094 = vmatprep.subr.mxu0 0.0
    %3095 = vmatpush2.msra.mxu0 0.0
    %3096 = vmatprep.subr.mxu0 0.0
    %3097 = vmatpush2.msra.mxu0 0.0
    %3098 = vmatprep.subr.mxu0 0.0
    %3099 = vmatpush2.msra.mxu0 0.0
    %3100 = vmatprep.subr.mxu0 0.0
    %3101 = vmatpush2.msra.mxu0 0.0
    %3102 = vmatprep.mubr.f32.mxu0 0.0
    %3103 = vmatmul.mubr.f32.gmra.mxu0 %v3036
    %v3104 = vpop.f32.mrf.mxu0
    %v3105 = vadd.f32 0.0, %v3104
    %v3106 = vpop.f32.mrf.mxu0
    %3107 = vdwg.mxu0
    %s3108 = scalar_lea.vmem [#allocation13], 40
    %v3109 = vld [vmem:[%s3108] sm:$0xff]
    %v3111 = vsel %vm390, %v3029, 0
    %v3114 = vsel %vm390, %v3105, 0
    %3116 = vmatprep.subr.mxu0 0.0
    %3117 = vmatpush1.msra.mxu0 0.0
    %3118 = vmatprep.subr.mxu0 0.0
    %3119 = vmatpush1.msra.mxu0 0.0
    %3120 = vmatprep.subr.mxu0 0.0
    %3121 = vmatpush1.msra.mxu0 0.0
    %3122 = vmatprep.subr.mxu0 0.0
    %3123 = vmatpush1.msra.mxu0 0.0
    %3124 = vmatprep.subr.mxu0 0.0
    %3125 = vmatpush1.msra.mxu0 0.0
    %3126 = vmatprep.subr.mxu0 0.0
    %3127 = vmatpush1.msra.mxu0 0.0
    %3128 = vmatprep.subr.mxu0 0.0
    %3129 = vmatpush1.msra.mxu0 0.0
    %3130 = vmatprep.subr.mxu0 0.0
    %3131 = vmatpush1.msra.mxu0 0.0
    %3132 = vmatprep.subr.mxu0 0.0
    %3133 = vmatpush1.msra.mxu0 0.0
    %3134 = vmatprep.subr.mxu0 0.0
    %3135 = vmatpush1.msra.mxu0 0.0
    %3136 = vmatprep.subr.mxu0 0.0
    %3137 = vmatpush1.msra.mxu0 0.0
    %3138 = vmatprep.subr.mxu0 0.0
    %3139 = vmatpush1.msra.mxu0 0.0
    %3140 = vmatprep.subr.mxu0 0.0
    %3141 = vmatpush1.msra.mxu0 0.0
    %3142 = vmatprep.subr.mxu0 0.0
    %3143 = vmatpush1.msra.mxu0 0.0
    %3144 = vmatprep.subr.mxu0 0.0
    %3145 = vmatpush1.msra.mxu0 0.0
    %3146 = vmatprep.subr.mxu0 0.0
    %3147 = vmatpush1.msra.mxu0 %v3109
    %3148 = vmatprep.subr.mxu0 0.0
    %3149 = vmatpush2.msra.mxu0 0.0
    %3150 = vmatprep.subr.mxu0 0.0
    %3151 = vmatpush2.msra.mxu0 0.0
    %3152 = vmatprep.subr.mxu0 0.0
    %3153 = vmatpush2.msra.mxu0 0.0
    %3154 = vmatprep.subr.mxu0 0.0
    %3155 = vmatpush2.msra.mxu0 0.0
    %3156 = vmatprep.subr.mxu0 0.0
    %3157 = vmatpush2.msra.mxu0 0.0
    %3158 = vmatprep.subr.mxu0 0.0
    %3159 = vmatpush2.msra.mxu0 0.0
    %3160 = vmatprep.subr.mxu0 0.0
    %3161 = vmatpush2.msra.mxu0 0.0
    %3162 = vmatprep.subr.mxu0 0.0
    %3163 = vmatpush2.msra.mxu0 0.0
    %3164 = vmatprep.subr.mxu0 0.0
    %3165 = vmatpush2.msra.mxu0 0.0
    %3166 = vmatprep.subr.mxu0 0.0
    %3167 = vmatpush2.msra.mxu0 0.0
    %3168 = vmatprep.subr.mxu0 0.0
    %3169 = vmatpush2.msra.mxu0 0.0
    %3170 = vmatprep.subr.mxu0 0.0
    %3171 = vmatpush2.msra.mxu0 0.0
    %3172 = vmatprep.subr.mxu0 0.0
    %3173 = vmatpush2.msra.mxu0 0.0
    %3174 = vmatprep.subr.mxu0 0.0
    %3175 = vmatpush2.msra.mxu0 0.0
    %3176 = vmatprep.subr.mxu0 0.0
    %3177 = vmatpush2.msra.mxu0 0.0
    %3178 = vmatprep.subr.mxu0 0.0
    %3179 = vmatpush2.msra.mxu0 0.0
    %3180 = vmatprep.mubr.f32.mxu0 0.0
    %3181 = vmatmul.mubr.f32.gmra.mxu0 %v3111
    %v3182 = vpop.f32.mrf.mxu0
    %v3183 = vadd.f32 0.0, %v3182
    %v3184 = vpop.f32.mrf.mxu0
    %3185 = vmatprep.mubr.f32.mxu0 0.0
    %3186 = vmatmul.mubr.f32.gmra.mxu0 %v3114
    %v3187 = vpop.f32.mrf.mxu0
    %v3188 = vadd.f32 0.0, %v3187
    %v3189 = vpop.f32.mrf.mxu0
    %3190 = vdwg.mxu0
    %v3192 = vsel %vm390, %v2695, 0
    %v3195 = vsel %vm390, %v2771, 0
    %3197 = vmatprep.subr.mxu0 0.0
    %3198 = vmatpush1.msra.mxu0 0.0
    %3199 = vmatprep.subr.mxu0 0.0
    %3200 = vmatpush1.msra.mxu0 0.0
    %3201 = vmatprep.subr.mxu0 0.0
    %3202 = vmatpush1.msra.mxu0 0.0
    %3203 = vmatprep.subr.mxu0 0.0
    %3204 = vmatpush1.msra.mxu0 0.0
    %3205 = vmatprep.subr.mxu0 0.0
    %3206 = vmatpush1.msra.mxu0 0.0
    %3207 = vmatprep.subr.mxu0 0.0
    %3208 = vmatpush1.msra.mxu0 0.0
    %3209 = vmatprep.subr.mxu0 0.0
    %3210 = vmatpush1.msra.mxu0 0.0
    %3211 = vmatprep.subr.mxu0 0.0
    %3212 = vmatpush1.msra.mxu0 0.0
    %3213 = vmatprep.subr.mxu0 0.0
    %3214 = vmatpush1.msra.mxu0 0.0
    %3215 = vmatprep.subr.mxu0 0.0
    %3216 = vmatpush1.msra.mxu0 0.0
    %3217 = vmatprep.subr.mxu0 0.0
    %3218 = vmatpush1.msra.mxu0 0.0
    %3219 = vmatprep.subr.mxu0 0.0
    %3220 = vmatpush1.msra.mxu0 0.0
    %3221 = vmatprep.subr.mxu0 0.0
    %3222 = vmatpush1.msra.mxu0 0.0
    %3223 = vmatprep.subr.mxu0 0.0
    %3224 = vmatpush1.msra.mxu0 0.0
    %3225 = vmatprep.subr.mxu0 0.0
    %3226 = vmatpush1.msra.mxu0 0.0
    %3227 = vmatprep.subr.mxu0 0.0
    %3228 = vmatpush1.msra.mxu0 %v2775
    %3229 = vmatprep.subr.mxu0 0.0
    %3230 = vmatpush2.msra.mxu0 0.0
    %3231 = vmatprep.subr.mxu0 0.0
    %3232 = vmatpush2.msra.mxu0 0.0
    %3233 = vmatprep.subr.mxu0 0.0
    %3234 = vmatpush2.msra.mxu0 0.0
    %3235 = vmatprep.subr.mxu0 0.0
    %3236 = vmatpush2.msra.mxu0 0.0
    %3237 = vmatprep.subr.mxu0 0.0
    %3238 = vmatpush2.msra.mxu0 0.0
    %3239 = vmatprep.subr.mxu0 0.0
    %3240 = vmatpush2.msra.mxu0 0.0
    %3241 = vmatprep.subr.mxu0 0.0
    %3242 = vmatpush2.msra.mxu0 0.0
    %3243 = vmatprep.subr.mxu0 0.0
    %3244 = vmatpush2.msra.mxu0 0.0
    %3245 = vmatprep.subr.mxu0 0.0
    %3246 = vmatpush2.msra.mxu0 0.0
    %3247 = vmatprep.subr.mxu0 0.0
    %3248 = vmatpush2.msra.mxu0 0.0
    %3249 = vmatprep.subr.mxu0 0.0
    %3250 = vmatpush2.msra.mxu0 0.0
    %3251 = vmatprep.subr.mxu0 0.0
    %3252 = vmatpush2.msra.mxu0 0.0
    %3253 = vmatprep.subr.mxu0 0.0
    %3254 = vmatpush2.msra.mxu0 0.0
    %3255 = vmatprep.subr.mxu0 0.0
    %3256 = vmatpush2.msra.mxu0 0.0
    %3257 = vmatprep.subr.mxu0 0.0
    %3258 = vmatpush2.msra.mxu0 0.0
    %3259 = vmatprep.subr.mxu0 0.0
    %3260 = vmatpush2.msra.mxu0 0.0
    %3261 = vmatprep.mubr.f32.mxu0 0.0
    %3262 = vmatmul.mubr.f32.gmra.mxu0 %v3192
    %v3263 = vpop.f32.mrf.mxu0
    %v3264 = vadd.f32 %v3183, %v3263
    %v3265 = vpop.f32.mrf.mxu0
    %3266 = vmatprep.mubr.f32.mxu0 0.0
    %3267 = vmatmul.mubr.f32.gmra.mxu0 %v3195
    %v3268 = vpop.f32.mrf.mxu0
    %v3269 = vadd.f32 %v3188, %v3268
    %v3270 = vpop.f32.mrf.mxu0
    %3271 = vdwg.mxu0
    %3272 = vrot.lane.b32.xlu0 %v2436, 112
    %v3273 = vpop.permute.xlu0 %3272
    %3274 = vrot.lane.b32.xlu0 %v2436, 80
    %v3275 = vpop.permute.xlu0 %3274
    %v3276 = vsel %vm390, %v3273, 0
    %v3278 = vsel %vm390, %v3275, 0
    %3280 = vmatprep.subr.mxu0 0.0
    %3281 = vmatpush1.xpose.msra.mxu0 0.0
    %3282 = vmatprep.subr.mxu0 0.0
    %3283 = vmatpush1.xpose.msra.mxu0 0.0
    %3284 = vmatprep.subr.mxu0 0.0
    %3285 = vmatpush1.xpose.msra.mxu0 0.0
    %3286 = vmatprep.subr.mxu0 0.0
    %3287 = vmatpush1.xpose.msra.mxu0 0.0
    %3288 = vmatprep.subr.mxu0 0.0
    %3289 = vmatpush1.xpose.msra.mxu0 0.0
    %3290 = vmatprep.subr.mxu0 0.0
    %3291 = vmatpush1.xpose.msra.mxu0 0.0
    %3292 = vmatprep.subr.mxu0 0.0
    %3293 = vmatpush1.xpose.msra.mxu0 0.0
    %3294 = vmatprep.subr.mxu0 0.0
    %3295 = vmatpush1.xpose.msra.mxu0 0.0
    %3296 = vmatprep.subr.mxu0 0.0
    %3297 = vmatpush1.xpose.msra.mxu0 0.0
    %3298 = vmatprep.subr.mxu0 0.0
    %3299 = vmatpush1.xpose.msra.mxu0 0.0
    %3300 = vmatprep.subr.mxu0 0.0
    %3301 = vmatpush1.xpose.msra.mxu0 0.0
    %3302 = vmatprep.subr.mxu0 0.0
    %3303 = vmatpush1.xpose.msra.mxu0 0.0
    %3304 = vmatprep.subr.mxu0 0.0
    %3305 = vmatpush1.xpose.msra.mxu0 0.0
    %3306 = vmatprep.subr.mxu0 0.0
    %3307 = vmatpush1.xpose.msra.mxu0 0.0
    %3308 = vmatprep.subr.mxu0 0.0
    %3309 = vmatpush1.xpose.msra.mxu0 0.0
    %3310 = vmatprep.subr.mxu0 0.0
    %3311 = vmatpush1.xpose.msra.mxu0 %v3278
    %3312 = vmatprep.subr.mxu0 0.0
    %3313 = vmatpush2.xpose.msra.mxu0 0.0
    %3314 = vmatprep.subr.mxu0 0.0
    %3315 = vmatpush2.xpose.msra.mxu0 0.0
    %3316 = vmatprep.subr.mxu0 0.0
    %3317 = vmatpush2.xpose.msra.mxu0 0.0
    %3318 = vmatprep.subr.mxu0 0.0
    %3319 = vmatpush2.xpose.msra.mxu0 0.0
    %3320 = vmatprep.subr.mxu0 0.0
    %3321 = vmatpush2.xpose.msra.mxu0 0.0
    %3322 = vmatprep.subr.mxu0 0.0
    %3323 = vmatpush2.xpose.msra.mxu0 0.0
    %3324 = vmatprep.subr.mxu0 0.0
    %3325 = vmatpush2.xpose.msra.mxu0 0.0
    %3326 = vmatprep.subr.mxu0 0.0
    %3327 = vmatpush2.xpose.msra.mxu0 0.0
    %3328 = vmatprep.subr.mxu0 0.0
    %3329 = vmatpush2.xpose.msra.mxu0 0.0
    %3330 = vmatprep.subr.mxu0 0.0
    %3331 = vmatpush2.xpose.msra.mxu0 0.0
    %3332 = vmatprep.subr.mxu0 0.0
    %3333 = vmatpush2.xpose.msra.mxu0 0.0
    %3334 = vmatprep.subr.mxu0 0.0
    %3335 = vmatpush2.xpose.msra.mxu0 0.0
    %3336 = vmatprep.subr.mxu0 0.0
    %3337 = vmatpush2.xpose.msra.mxu0 0.0
    %3338 = vmatprep.subr.mxu0 0.0
    %3339 = vmatpush2.xpose.msra.mxu0 0.0
    %3340 = vmatprep.subr.mxu0 0.0
    %3341 = vmatpush2.xpose.msra.mxu0 0.0
    %3342 = vmatprep.subr.mxu0 0.0
    %3343 = vmatpush2.xpose.msra.mxu0 0.0
    %3344 = vmatprep.mubr.f32.mxu0 0.0
    %3345 = vmatmul.mubr.f32.gmra.mxu0 %v3276
    %v3346 = vpop.f32.mrf.mxu0
    %v3347 = vadd.f32 0.0, %v3346
    %v3348 = vpop.f32.mrf.mxu0
    %3349 = vdwg.mxu0
    %3350 = vrot.lane.b32.xlu0 %v2441, 112
    %v3351 = vpop.permute.xlu0 %3350
    %3352 = vrot.lane.b32.xlu0 %v2441, 80
    %v3353 = vpop.permute.xlu0 %3352
    %v3354 = vsel %vm390, %v3351, 0
    %v3356 = vsel %vm390, %v3353, 0
    %3358 = vmatprep.subr.mxu0 0.0
    %3359 = vmatpush1.xpose.msra.mxu0 0.0
    %3360 = vmatprep.subr.mxu0 0.0
    %3361 = vmatpush1.xpose.msra.mxu0 0.0
    %3362 = vmatprep.subr.mxu0 0.0
    %3363 = vmatpush1.xpose.msra.mxu0 0.0
    %3364 = vmatprep.subr.mxu0 0.0
    %3365 = vmatpush1.xpose.msra.mxu0 0.0
    %3366 = vmatprep.subr.mxu0 0.0
    %3367 = vmatpush1.xpose.msra.mxu0 0.0
    %3368 = vmatprep.subr.mxu0 0.0
    %3369 = vmatpush1.xpose.msra.mxu0 0.0
    %3370 = vmatprep.subr.mxu0 0.0
    %3371 = vmatpush1.xpose.msra.mxu0 0.0
    %3372 = vmatprep.subr.mxu0 0.0
    %3373 = vmatpush1.xpose.msra.mxu0 0.0
    %3374 = vmatprep.subr.mxu0 0.0
    %3375 = vmatpush1.xpose.msra.mxu0 0.0
    %3376 = vmatprep.subr.mxu0 0.0
    %3377 = vmatpush1.xpose.msra.mxu0 0.0
    %3378 = vmatprep.subr.mxu0 0.0
    %3379 = vmatpush1.xpose.msra.mxu0 0.0
    %3380 = vmatprep.subr.mxu0 0.0
    %3381 = vmatpush1.xpose.msra.mxu0 0.0
    %3382 = vmatprep.subr.mxu0 0.0
    %3383 = vmatpush1.xpose.msra.mxu0 0.0
    %3384 = vmatprep.subr.mxu0 0.0
    %3385 = vmatpush1.xpose.msra.mxu0 0.0
    %3386 = vmatprep.subr.mxu0 0.0
    %3387 = vmatpush1.xpose.msra.mxu0 0.0
    %3388 = vmatprep.subr.mxu0 0.0
    %3389 = vmatpush1.xpose.msra.mxu0 %v3356
    %3390 = vmatprep.subr.mxu0 0.0
    %3391 = vmatpush2.xpose.msra.mxu0 0.0
    %3392 = vmatprep.subr.mxu0 0.0
    %3393 = vmatpush2.xpose.msra.mxu0 0.0
    %3394 = vmatprep.subr.mxu0 0.0
    %3395 = vmatpush2.xpose.msra.mxu0 0.0
    %3396 = vmatprep.subr.mxu0 0.0
    %3397 = vmatpush2.xpose.msra.mxu0 0.0
    %3398 = vmatprep.subr.mxu0 0.0
    %3399 = vmatpush2.xpose.msra.mxu0 0.0
    %3400 = vmatprep.subr.mxu0 0.0
    %3401 = vmatpush2.xpose.msra.mxu0 0.0
    %3402 = vmatprep.subr.mxu0 0.0
    %3403 = vmatpush2.xpose.msra.mxu0 0.0
    %3404 = vmatprep.subr.mxu0 0.0
    %3405 = vmatpush2.xpose.msra.mxu0 0.0
    %3406 = vmatprep.subr.mxu0 0.0
    %3407 = vmatpush2.xpose.msra.mxu0 0.0
    %3408 = vmatprep.subr.mxu0 0.0
    %3409 = vmatpush2.xpose.msra.mxu0 0.0
    %3410 = vmatprep.subr.mxu0 0.0
    %3411 = vmatpush2.xpose.msra.mxu0 0.0
    %3412 = vmatprep.subr.mxu0 0.0
    %3413 = vmatpush2.xpose.msra.mxu0 0.0
    %3414 = vmatprep.subr.mxu0 0.0
    %3415 = vmatpush2.xpose.msra.mxu0 0.0
    %3416 = vmatprep.subr.mxu0 0.0
    %3417 = vmatpush2.xpose.msra.mxu0 0.0
    %3418 = vmatprep.subr.mxu0 0.0
    %3419 = vmatpush2.xpose.msra.mxu0 0.0
    %3420 = vmatprep.subr.mxu0 0.0
    %3421 = vmatpush2.xpose.msra.mxu0 0.0
    %3422 = vmatprep.mubr.f32.mxu0 0.0
    %3423 = vmatmul.mubr.f32.gmra.mxu0 %v3354
    %v3424 = vpop.f32.mrf.mxu0
    %v3425 = vadd.f32 0.0, %v3424
    %v3426 = vpop.f32.mrf.mxu0
    %3427 = vdwg.mxu0
    %v3428 = vmul.f32 %v3347, 0.35355338
    %v3429 = vmul.f32 %v3425, 0.35355338
    %v3430 = vsel %vm390, %v3428, -inf
    %3431 = vmax.xlane.f32.xlu0 %v3430
    %v3432 = vpop.xlane.xlu0 %3431
    %v3433 = vsel %vm390, %v3429, -inf
    %3434 = vmax.xlane.f32.xlu0 %v3433
    %v3435 = vpop.xlane.xlu0 %3434
    %v3436 = vsub.f32 %v3428, %v3432
    %v3437 = vsub.f32 %v3429, %v3435
    %v3438 = vmul.f32 %v3436, 1.442695
    %v3439 = vpow.pop %v3438
    %v3440 = vmul.f32 %v3437, 1.442695
    %v3441 = vpow.pop %v3440
    %v3442 = vsel %vm390, %v3439, 0.0
    %3443 = vadd.xlane.f32.xlu0 %v3442
    %v3444 = vpop.xlane.xlu0 %3443
    %v3445 = vsel %vm390, %v3441, 0.0
    %3446 = vadd.xlane.f32.xlu0 %v3445
    %v3447 = vpop.xlane.xlu0 %3446
    %v3448 = vrcp.pop %v3444
    %v3449 = vrcp.pop %v3447
    %v3450 = vmul.f32 %v3439, %v3448
    %v3451 = vmul.f32 %v3441, %v3449
    %3452 = vrot.lane.b32.xlu0 %v2436, 48
    %v3453 = vpop.permute.xlu0 %3452
    %v3456 = vsel %vm390, %v3450, 0
    %3458 = vmatprep.subr.mxu0 0.0
    %3459 = vmatpush1.msra.mxu0 0.0
    %3460 = vmatprep.subr.mxu0 0.0
    %3461 = vmatpush1.msra.mxu0 0.0
    %3462 = vmatprep.subr.mxu0 0.0
    %3463 = vmatpush1.msra.mxu0 0.0
    %3464 = vmatprep.subr.mxu0 0.0
    %3465 = vmatpush1.msra.mxu0 0.0
    %3466 = vmatprep.subr.mxu0 0.0
    %3467 = vmatpush1.msra.mxu0 0.0
    %3468 = vmatprep.subr.mxu0 0.0
    %3469 = vmatpush1.msra.mxu0 0.0
    %3470 = vmatprep.subr.mxu0 0.0
    %3471 = vmatpush1.msra.mxu0 0.0
    %3472 = vmatprep.subr.mxu0 0.0
    %3473 = vmatpush1.msra.mxu0 0.0
    %3474 = vmatprep.subr.mxu0 0.0
    %3475 = vmatpush1.msra.mxu0 0.0
    %3476 = vmatprep.subr.mxu0 0.0
    %3477 = vmatpush1.msra.mxu0 0.0
    %3478 = vmatprep.subr.mxu0 0.0
    %3479 = vmatpush1.msra.mxu0 0.0
    %3480 = vmatprep.subr.mxu0 0.0
    %3481 = vmatpush1.msra.mxu0 0.0
    %3482 = vmatprep.subr.mxu0 0.0
    %3483 = vmatpush1.msra.mxu0 0.0
    %3484 = vmatprep.subr.mxu0 0.0
    %3485 = vmatpush1.msra.mxu0 0.0
    %3486 = vmatprep.subr.mxu0 0.0
    %3487 = vmatpush1.msra.mxu0 0.0
    %3488 = vmatprep.subr.mxu0 0.0
    %3489 = vmatpush1.msra.mxu0 %v3453
    %3490 = vmatprep.subr.mxu0 0.0
    %3491 = vmatpush2.msra.mxu0 0.0
    %3492 = vmatprep.subr.mxu0 0.0
    %3493 = vmatpush2.msra.mxu0 0.0
    %3494 = vmatprep.subr.mxu0 0.0
    %3495 = vmatpush2.msra.mxu0 0.0
    %3496 = vmatprep.subr.mxu0 0.0
    %3497 = vmatpush2.msra.mxu0 0.0
    %3498 = vmatprep.subr.mxu0 0.0
    %3499 = vmatpush2.msra.mxu0 0.0
    %3500 = vmatprep.subr.mxu0 0.0
    %3501 = vmatpush2.msra.mxu0 0.0
    %3502 = vmatprep.subr.mxu0 0.0
    %3503 = vmatpush2.msra.mxu0 0.0
    %3504 = vmatprep.subr.mxu0 0.0
    %3505 = vmatpush2.msra.mxu0 0.0
    %3506 = vmatprep.subr.mxu0 0.0
    %3507 = vmatpush2.msra.mxu0 0.0
    %3508 = vmatprep.subr.mxu0 0.0
    %3509 = vmatpush2.msra.mxu0 0.0
    %3510 = vmatprep.subr.mxu0 0.0
    %3511 = vmatpush2.msra.mxu0 0.0
    %3512 = vmatprep.subr.mxu0 0.0
    %3513 = vmatpush2.msra.mxu0 0.0
    %3514 = vmatprep.subr.mxu0 0.0
    %3515 = vmatpush2.msra.mxu0 0.0
    %3516 = vmatprep.subr.mxu0 0.0
    %3517 = vmatpush2.msra.mxu0 0.0
    %3518 = vmatprep.subr.mxu0 0.0
    %3519 = vmatpush2.msra.mxu0 0.0
    %3520 = vmatprep.subr.mxu0 0.0
    %3521 = vmatpush2.msra.mxu0 0.0
    %3522 = vmatprep.mubr.f32.mxu0 0.0
    %3523 = vmatmul.mubr.f32.gmra.mxu0 %v3456
    %v3524 = vpop.f32.mrf.mxu0
    %v3525 = vadd.f32 0.0, %v3524
    %v3526 = vpop.f32.mrf.mxu0
    %3527 = vdwg.mxu0
    %3528 = vrot.lane.b32.xlu0 %v2441, 48
    %v3529 = vpop.permute.xlu0 %3528
    %v3532 = vsel %vm390, %v3451, 0
    %3534 = vmatprep.subr.mxu0 0.0
    %3535 = vmatpush1.msra.mxu0 0.0
    %3536 = vmatprep.subr.mxu0 0.0
    %3537 = vmatpush1.msra.mxu0 0.0
    %3538 = vmatprep.subr.mxu0 0.0
    %3539 = vmatpush1.msra.mxu0 0.0
    %3540 = vmatprep.subr.mxu0 0.0
    %3541 = vmatpush1.msra.mxu0 0.0
    %3542 = vmatprep.subr.mxu0 0.0
    %3543 = vmatpush1.msra.mxu0 0.0
    %3544 = vmatprep.subr.mxu0 0.0
    %3545 = vmatpush1.msra.mxu0 0.0
    %3546 = vmatprep.subr.mxu0 0.0
    %3547 = vmatpush1.msra.mxu0 0.0
    %3548 = vmatprep.subr.mxu0 0.0
    %3549 = vmatpush1.msra.mxu0 0.0
    %3550 = vmatprep.subr.mxu0 0.0
    %3551 = vmatpush1.msra.mxu0 0.0
    %3552 = vmatprep.subr.mxu0 0.0
    %3553 = vmatpush1.msra.mxu0 0.0
    %3554 = vmatprep.subr.mxu0 0.0
    %3555 = vmatpush1.msra.mxu0 0.0
    %3556 = vmatprep.subr.mxu0 0.0
    %3557 = vmatpush1.msra.mxu0 0.0
    %3558 = vmatprep.subr.mxu0 0.0
    %3559 = vmatpush1.msra.mxu0 0.0
    %3560 = vmatprep.subr.mxu0 0.0
    %3561 = vmatpush1.msra.mxu0 0.0
    %3562 = vmatprep.subr.mxu0 0.0
    %3563 = vmatpush1.msra.mxu0 0.0
    %3564 = vmatprep.subr.mxu0 0.0
    %3565 = vmatpush1.msra.mxu0 %v3529
    %3566 = vmatprep.subr.mxu0 0.0
    %3567 = vmatpush2.msra.mxu0 0.0
    %3568 = vmatprep.subr.mxu0 0.0
    %3569 = vmatpush2.msra.mxu0 0.0
    %3570 = vmatprep.subr.mxu0 0.0
    %3571 = vmatpush2.msra.mxu0 0.0
    %3572 = vmatprep.subr.mxu0 0.0
    %3573 = vmatpush2.msra.mxu0 0.0
    %3574 = vmatprep.subr.mxu0 0.0
    %3575 = vmatpush2.msra.mxu0 0.0
    %3576 = vmatprep.subr.mxu0 0.0
    %3577 = vmatpush2.msra.mxu0 0.0
    %3578 = vmatprep.subr.mxu0 0.0
    %3579 = vmatpush2.msra.mxu0 0.0
    %3580 = vmatprep.subr.mxu0 0.0
    %3581 = vmatpush2.msra.mxu0 0.0
    %3582 = vmatprep.subr.mxu0 0.0
    %3583 = vmatpush2.msra.mxu0 0.0
    %3584 = vmatprep.subr.mxu0 0.0
    %3585 = vmatpush2.msra.mxu0 0.0
    %3586 = vmatprep.subr.mxu0 0.0
    %3587 = vmatpush2.msra.mxu0 0.0
    %3588 = vmatprep.subr.mxu0 0.0
    %3589 = vmatpush2.msra.mxu0 0.0
    %3590 = vmatprep.subr.mxu0 0.0
    %3591 = vmatpush2.msra.mxu0 0.0
    %3592 = vmatprep.subr.mxu0 0.0
    %3593 = vmatpush2.msra.mxu0 0.0
    %3594 = vmatprep.subr.mxu0 0.0
    %3595 = vmatpush2.msra.mxu0 0.0
    %3596 = vmatprep.subr.mxu0 0.0
    %3597 = vmatpush2.msra.mxu0 0.0
    %3598 = vmatprep.mubr.f32.mxu0 0.0
    %3599 = vmatmul.mubr.f32.gmra.mxu0 %v3532
    %v3600 = vpop.f32.mrf.mxu0
    %v3601 = vadd.f32 0.0, %v3600
    %v3602 = vpop.f32.mrf.mxu0
    %3603 = vdwg.mxu0
    %s3604 = scalar_lea.vmem [#allocation13], 48
    %v3605 = vld [vmem:[%s3604] sm:$0xff]
    %v3607 = vsel %vm390, %v3525, 0
    %v3610 = vsel %vm390, %v3601, 0
    %3612 = vmatprep.subr.mxu0 0.0
    %3613 = vmatpush1.msra.mxu0 0.0
    %3614 = vmatprep.subr.mxu0 0.0
    %3615 = vmatpush1.msra.mxu0 0.0
    %3616 = vmatprep.subr.mxu0 0.0
    %3617 = vmatpush1.msra.mxu0 0.0
    %3618 = vmatprep.subr.mxu0 0.0
    %3619 = vmatpush1.msra.mxu0 0.0
    %3620 = vmatprep.subr.mxu0 0.0
    %3621 = vmatpush1.msra.mxu0 0.0
    %3622 = vmatprep.subr.mxu0 0.0
    %3623 = vmatpush1.msra.mxu0 0.0
    %3624 = vmatprep.subr.mxu0 0.0
    %3625 = vmatpush1.msra.mxu0 0.0
    %3626 = vmatprep.subr.mxu0 0.0
    %3627 = vmatpush1.msra.mxu0 0.0
    %3628 = vmatprep.subr.mxu0 0.0
    %3629 = vmatpush1.msra.mxu0 0.0
    %3630 = vmatprep.subr.mxu0 0.0
    %3631 = vmatpush1.msra.mxu0 0.0
    %3632 = vmatprep.subr.mxu0 0.0
    %3633 = vmatpush1.msra.mxu0 0.0
    %3634 = vmatprep.subr.mxu0 0.0
    %3635 = vmatpush1.msra.mxu0 0.0
    %3636 = vmatprep.subr.mxu0 0.0
    %3637 = vmatpush1.msra.mxu0 0.0
    %3638 = vmatprep.subr.mxu0 0.0
    %3639 = vmatpush1.msra.mxu0 0.0
    %3640 = vmatprep.subr.mxu0 0.0
    %3641 = vmatpush1.msra.mxu0 0.0
    %3642 = vmatprep.subr.mxu0 0.0
    %3643 = vmatpush1.msra.mxu0 %v3605
    %3644 = vmatprep.subr.mxu0 0.0
    %3645 = vmatpush2.msra.mxu0 0.0
    %3646 = vmatprep.subr.mxu0 0.0
    %3647 = vmatpush2.msra.mxu0 0.0
    %3648 = vmatprep.subr.mxu0 0.0
    %3649 = vmatpush2.msra.mxu0 0.0
    %3650 = vmatprep.subr.mxu0 0.0
    %3651 = vmatpush2.msra.mxu0 0.0
    %3652 = vmatprep.subr.mxu0 0.0
    %3653 = vmatpush2.msra.mxu0 0.0
    %3654 = vmatprep.subr.mxu0 0.0
    %3655 = vmatpush2.msra.mxu0 0.0
    %3656 = vmatprep.subr.mxu0 0.0
    %3657 = vmatpush2.msra.mxu0 0.0
    %3658 = vmatprep.subr.mxu0 0.0
    %3659 = vmatpush2.msra.mxu0 0.0
    %3660 = vmatprep.subr.mxu0 0.0
    %3661 = vmatpush2.msra.mxu0 0.0
    %3662 = vmatprep.subr.mxu0 0.0
    %3663 = vmatpush2.msra.mxu0 0.0
    %3664 = vmatprep.subr.mxu0 0.0
    %3665 = vmatpush2.msra.mxu0 0.0
    %3666 = vmatprep.subr.mxu0 0.0
    %3667 = vmatpush2.msra.mxu0 0.0
    %3668 = vmatprep.subr.mxu0 0.0
    %3669 = vmatpush2.msra.mxu0 0.0
    %3670 = vmatprep.subr.mxu0 0.0
    %3671 = vmatpush2.msra.mxu0 0.0
    %3672 = vmatprep.subr.mxu0 0.0
    %3673 = vmatpush2.msra.mxu0 0.0
    %3674 = vmatprep.subr.mxu0 0.0
    %3675 = vmatpush2.msra.mxu0 0.0
    %3676 = vmatprep.mubr.f32.mxu0 0.0
    %3677 = vmatmul.mubr.f32.gmra.mxu0 %v3607
    %v3678 = vpop.f32.mrf.mxu0
    %v3679 = vadd.f32 0.0, %v3678
    %v3680 = vpop.f32.mrf.mxu0
    %3681 = vmatprep.mubr.f32.mxu0 0.0
    %3682 = vmatmul.mubr.f32.gmra.mxu0 %v3610
    %v3683 = vpop.f32.mrf.mxu0
    %v3684 = vadd.f32 0.0, %v3683
    %v3685 = vpop.f32.mrf.mxu0
    %3686 = vdwg.mxu0
    %v3687 = vadd.f32 %v3264, %v3679
    %v3688 = vadd.f32 %v3269, %v3684
    %3689 = vrot.lane.b32.xlu0 %v2436, 104
    %v3690 = vpop.permute.xlu0 %3689
    %3691 = vrot.lane.b32.xlu0 %v2436, 72
    %v3692 = vpop.permute.xlu0 %3691
    %v3693 = vsel %vm390, %v3690, 0
    %v3695 = vsel %vm390, %v3692, 0
    %3697 = vmatprep.subr.mxu0 0.0
    %3698 = vmatpush1.xpose.msra.mxu0 0.0
    %3699 = vmatprep.subr.mxu0 0.0
    %3700 = vmatpush1.xpose.msra.mxu0 0.0
    %3701 = vmatprep.subr.mxu0 0.0
    %3702 = vmatpush1.xpose.msra.mxu0 0.0
    %3703 = vmatprep.subr.mxu0 0.0
    %3704 = vmatpush1.xpose.msra.mxu0 0.0
    %3705 = vmatprep.subr.mxu0 0.0
    %3706 = vmatpush1.xpose.msra.mxu0 0.0
    %3707 = vmatprep.subr.mxu0 0.0
    %3708 = vmatpush1.xpose.msra.mxu0 0.0
    %3709 = vmatprep.subr.mxu0 0.0
    %3710 = vmatpush1.xpose.msra.mxu0 0.0
    %3711 = vmatprep.subr.mxu0 0.0
    %3712 = vmatpush1.xpose.msra.mxu0 0.0
    %3713 = vmatprep.subr.mxu0 0.0
    %3714 = vmatpush1.xpose.msra.mxu0 0.0
    %3715 = vmatprep.subr.mxu0 0.0
    %3716 = vmatpush1.xpose.msra.mxu0 0.0
    %3717 = vmatprep.subr.mxu0 0.0
    %3718 = vmatpush1.xpose.msra.mxu0 0.0
    %3719 = vmatprep.subr.mxu0 0.0
    %3720 = vmatpush1.xpose.msra.mxu0 0.0
    %3721 = vmatprep.subr.mxu0 0.0
    %3722 = vmatpush1.xpose.msra.mxu0 0.0
    %3723 = vmatprep.subr.mxu0 0.0
    %3724 = vmatpush1.xpose.msra.mxu0 0.0
    %3725 = vmatprep.subr.mxu0 0.0
    %3726 = vmatpush1.xpose.msra.mxu0 0.0
    %3727 = vmatprep.subr.mxu0 0.0
    %3728 = vmatpush1.xpose.msra.mxu0 %v3695
    %3729 = vmatprep.subr.mxu0 0.0
    %3730 = vmatpush2.xpose.msra.mxu0 0.0
    %3731 = vmatprep.subr.mxu0 0.0
    %3732 = vmatpush2.xpose.msra.mxu0 0.0
    %3733 = vmatprep.subr.mxu0 0.0
    %3734 = vmatpush2.xpose.msra.mxu0 0.0
    %3735 = vmatprep.subr.mxu0 0.0
    %3736 = vmatpush2.xpose.msra.mxu0 0.0
    %3737 = vmatprep.subr.mxu0 0.0
    %3738 = vmatpush2.xpose.msra.mxu0 0.0
    %3739 = vmatprep.subr.mxu0 0.0
    %3740 = vmatpush2.xpose.msra.mxu0 0.0
    %3741 = vmatprep.subr.mxu0 0.0
    %3742 = vmatpush2.xpose.msra.mxu0 0.0
    %3743 = vmatprep.subr.mxu0 0.0
    %3744 = vmatpush2.xpose.msra.mxu0 0.0
    %3745 = vmatprep.subr.mxu0 0.0
    %3746 = vmatpush2.xpose.msra.mxu0 0.0
    %3747 = vmatprep.subr.mxu0 0.0
    %3748 = vmatpush2.xpose.msra.mxu0 0.0
    %3749 = vmatprep.subr.mxu0 0.0
    %3750 = vmatpush2.xpose.msra.mxu0 0.0
    %3751 = vmatprep.subr.mxu0 0.0
    %3752 = vmatpush2.xpose.msra.mxu0 0.0
    %3753 = vmatprep.subr.mxu0 0.0
    %3754 = vmatpush2.xpose.msra.mxu0 0.0
    %3755 = vmatprep.subr.mxu0 0.0
    %3756 = vmatpush2.xpose.msra.mxu0 0.0
    %3757 = vmatprep.subr.mxu0 0.0
    %3758 = vmatpush2.xpose.msra.mxu0 0.0
    %3759 = vmatprep.subr.mxu0 0.0
    %3760 = vmatpush2.xpose.msra.mxu0 0.0
    %3761 = vmatprep.mubr.f32.mxu0 0.0
    %3762 = vmatmul.mubr.f32.gmra.mxu0 %v3693
    %v3763 = vpop.f32.mrf.mxu0
    %v3764 = vadd.f32 0.0, %v3763
    %v3765 = vpop.f32.mrf.mxu0
    %3766 = vdwg.mxu0
    %3767 = vrot.lane.b32.xlu0 %v2441, 104
    %v3768 = vpop.permute.xlu0 %3767
    %3769 = vrot.lane.b32.xlu0 %v2441, 72
    %v3770 = vpop.permute.xlu0 %3769
    %v3771 = vsel %vm390, %v3768, 0
    %v3773 = vsel %vm390, %v3770, 0
    %3775 = vmatprep.subr.mxu0 0.0
    %3776 = vmatpush1.xpose.msra.mxu0 0.0
    %3777 = vmatprep.subr.mxu0 0.0
    %3778 = vmatpush1.xpose.msra.mxu0 0.0
    %3779 = vmatprep.subr.mxu0 0.0
    %3780 = vmatpush1.xpose.msra.mxu0 0.0
    %3781 = vmatprep.subr.mxu0 0.0
    %3782 = vmatpush1.xpose.msra.mxu0 0.0
    %3783 = vmatprep.subr.mxu0 0.0
    %3784 = vmatpush1.xpose.msra.mxu0 0.0
    %3785 = vmatprep.subr.mxu0 0.0
    %3786 = vmatpush1.xpose.msra.mxu0 0.0
    %3787 = vmatprep.subr.mxu0 0.0
    %3788 = vmatpush1.xpose.msra.mxu0 0.0
    %3789 = vmatprep.subr.mxu0 0.0
    %3790 = vmatpush1.xpose.msra.mxu0 0.0
    %3791 = vmatprep.subr.mxu0 0.0
    %3792 = vmatpush1.xpose.msra.mxu0 0.0
    %3793 = vmatprep.subr.mxu0 0.0
    %3794 = vmatpush1.xpose.msra.mxu0 0.0
    %3795 = vmatprep.subr.mxu0 0.0
    %3796 = vmatpush1.xpose.msra.mxu0 0.0
    %3797 = vmatprep.subr.mxu0 0.0
    %3798 = vmatpush1.xpose.msra.mxu0 0.0
    %3799 = vmatprep.subr.mxu0 0.0
    %3800 = vmatpush1.xpose.msra.mxu0 0.0
    %3801 = vmatprep.subr.mxu0 0.0
    %3802 = vmatpush1.xpose.msra.mxu0 0.0
    %3803 = vmatprep.subr.mxu0 0.0
    %3804 = vmatpush1.xpose.msra.mxu0 0.0
    %3805 = vmatprep.subr.mxu0 0.0
    %3806 = vmatpush1.xpose.msra.mxu0 %v3773
    %3807 = vmatprep.subr.mxu0 0.0
    %3808 = vmatpush2.xpose.msra.mxu0 0.0
    %3809 = vmatprep.subr.mxu0 0.0
    %3810 = vmatpush2.xpose.msra.mxu0 0.0
    %3811 = vmatprep.subr.mxu0 0.0
    %3812 = vmatpush2.xpose.msra.mxu0 0.0
    %3813 = vmatprep.subr.mxu0 0.0
    %3814 = vmatpush2.xpose.msra.mxu0 0.0
    %3815 = vmatprep.subr.mxu0 0.0
    %3816 = vmatpush2.xpose.msra.mxu0 0.0
    %3817 = vmatprep.subr.mxu0 0.0
    %3818 = vmatpush2.xpose.msra.mxu0 0.0
    %3819 = vmatprep.subr.mxu0 0.0
    %3820 = vmatpush2.xpose.msra.mxu0 0.0
    %3821 = vmatprep.subr.mxu0 0.0
    %3822 = vmatpush2.xpose.msra.mxu0 0.0
    %3823 = vmatprep.subr.mxu0 0.0
    %3824 = vmatpush2.xpose.msra.mxu0 0.0
    %3825 = vmatprep.subr.mxu0 0.0
    %3826 = vmatpush2.xpose.msra.mxu0 0.0
    %3827 = vmatprep.subr.mxu0 0.0
    %3828 = vmatpush2.xpose.msra.mxu0 0.0
    %3829 = vmatprep.subr.mxu0 0.0
    %3830 = vmatpush2.xpose.msra.mxu0 0.0
    %3831 = vmatprep.subr.mxu0 0.0
    %3832 = vmatpush2.xpose.msra.mxu0 0.0
    %3833 = vmatprep.subr.mxu0 0.0
    %3834 = vmatpush2.xpose.msra.mxu0 0.0
    %3835 = vmatprep.subr.mxu0 0.0
    %3836 = vmatpush2.xpose.msra.mxu0 0.0
    %3837 = vmatprep.subr.mxu0 0.0
    %3838 = vmatpush2.xpose.msra.mxu0 0.0
    %3839 = vmatprep.mubr.f32.mxu0 0.0
    %3840 = vmatmul.mubr.f32.gmra.mxu0 %v3771
    %v3841 = vpop.f32.mrf.mxu0
    %v3842 = vadd.f32 0.0, %v3841
    %v3843 = vpop.f32.mrf.mxu0
    %3844 = vdwg.mxu0
    %v3845 = vmul.f32 %v3764, 0.35355338
    %v3846 = vmul.f32 %v3842, 0.35355338
    %v3847 = vsel %vm390, %v3845, -inf
    %3848 = vmax.xlane.f32.xlu0 %v3847
    %v3849 = vpop.xlane.xlu0 %3848
    %v3850 = vsel %vm390, %v3846, -inf
    %3851 = vmax.xlane.f32.xlu0 %v3850
    %v3852 = vpop.xlane.xlu0 %3851
    %v3853 = vsub.f32 %v3845, %v3849
    %v3854 = vsub.f32 %v3846, %v3852
    %v3855 = vmul.f32 %v3853, 1.442695
    %v3856 = vpow.pop %v3855
    %v3857 = vmul.f32 %v3854, 1.442695
    %v3858 = vpow.pop %v3857
    %v3859 = vsel %vm390, %v3856, 0.0
    %3860 = vadd.xlane.f32.xlu0 %v3859
    %v3861 = vpop.xlane.xlu0 %3860
    %v3862 = vsel %vm390, %v3858, 0.0
    %3863 = vadd.xlane.f32.xlu0 %v3862
    %v3864 = vpop.xlane.xlu0 %3863
    %v3865 = vrcp.pop %v3861
    %v3866 = vrcp.pop %v3864
    %v3867 = vmul.f32 %v3856, %v3865
    %v3868 = vmul.f32 %v3858, %v3866
    %3869 = vrot.lane.b32.xlu0 %v2436, 40
    %v3870 = vpop.permute.xlu0 %3869
    %v3873 = vsel %vm390, %v3867, 0
    %3875 = vmatprep.subr.mxu0 0.0
    %3876 = vmatpush1.msra.mxu0 0.0
    %3877 = vmatprep.subr.mxu0 0.0
    %3878 = vmatpush1.msra.mxu0 0.0
    %3879 = vmatprep.subr.mxu0 0.0
    %3880 = vmatpush1.msra.mxu0 0.0
    %3881 = vmatprep.subr.mxu0 0.0
    %3882 = vmatpush1.msra.mxu0 0.0
    %3883 = vmatprep.subr.mxu0 0.0
    %3884 = vmatpush1.msra.mxu0 0.0
    %3885 = vmatprep.subr.mxu0 0.0
    %3886 = vmatpush1.msra.mxu0 0.0
    %3887 = vmatprep.subr.mxu0 0.0
    %3888 = vmatpush1.msra.mxu0 0.0
    %3889 = vmatprep.subr.mxu0 0.0
    %3890 = vmatpush1.msra.mxu0 0.0
    %3891 = vmatprep.subr.mxu0 0.0
    %3892 = vmatpush1.msra.mxu0 0.0
    %3893 = vmatprep.subr.mxu0 0.0
    %3894 = vmatpush1.msra.mxu0 0.0
    %3895 = vmatprep.subr.mxu0 0.0
    %3896 = vmatpush1.msra.mxu0 0.0
    %3897 = vmatprep.subr.mxu0 0.0
    %3898 = vmatpush1.msra.mxu0 0.0
    %3899 = vmatprep.subr.mxu0 0.0
    %3900 = vmatpush1.msra.mxu0 0.0
    %3901 = vmatprep.subr.mxu0 0.0
    %3902 = vmatpush1.msra.mxu0 0.0
    %3903 = vmatprep.subr.mxu0 0.0
    %3904 = vmatpush1.msra.mxu0 0.0
    %3905 = vmatprep.subr.mxu0 0.0
    %3906 = vmatpush1.msra.mxu0 %v3870
    %3907 = vmatprep.subr.mxu0 0.0
    %3908 = vmatpush2.msra.mxu0 0.0
    %3909 = vmatprep.subr.mxu0 0.0
    %3910 = vmatpush2.msra.mxu0 0.0
    %3911 = vmatprep.subr.mxu0 0.0
    %3912 = vmatpush2.msra.mxu0 0.0
    %3913 = vmatprep.subr.mxu0 0.0
    %3914 = vmatpush2.msra.mxu0 0.0
    %3915 = vmatprep.subr.mxu0 0.0
    %3916 = vmatpush2.msra.mxu0 0.0
    %3917 = vmatprep.subr.mxu0 0.0
    %3918 = vmatpush2.msra.mxu0 0.0
    %3919 = vmatprep.subr.mxu0 0.0
    %3920 = vmatpush2.msra.mxu0 0.0
    %3921 = vmatprep.subr.mxu0 0.0
    %3922 = vmatpush2.msra.mxu0 0.0
    %3923 = vmatprep.subr.mxu0 0.0
    %3924 = vmatpush2.msra.mxu0 0.0
    %3925 = vmatprep.subr.mxu0 0.0
    %3926 = vmatpush2.msra.mxu0 0.0
    %3927 = vmatprep.subr.mxu0 0.0
    %3928 = vmatpush2.msra.mxu0 0.0
    %3929 = vmatprep.subr.mxu0 0.0
    %3930 = vmatpush2.msra.mxu0 0.0
    %3931 = vmatprep.subr.mxu0 0.0
    %3932 = vmatpush2.msra.mxu0 0.0
    %3933 = vmatprep.subr.mxu0 0.0
    %3934 = vmatpush2.msra.mxu0 0.0
    %3935 = vmatprep.subr.mxu0 0.0
    %3936 = vmatpush2.msra.mxu0 0.0
    %3937 = vmatprep.subr.mxu0 0.0
    %3938 = vmatpush2.msra.mxu0 0.0
    %3939 = vmatprep.mubr.f32.mxu0 0.0
    %3940 = vmatmul.mubr.f32.gmra.mxu0 %v3873
    %v3941 = vpop.f32.mrf.mxu0
    %v3942 = vadd.f32 0.0, %v3941
    %v3943 = vpop.f32.mrf.mxu0
    %3944 = vdwg.mxu0
    %3945 = vrot.lane.b32.xlu0 %v2441, 40
    %v3946 = vpop.permute.xlu0 %3945
    %v3949 = vsel %vm390, %v3868, 0
    %3951 = vmatprep.subr.mxu0 0.0
    %3952 = vmatpush1.msra.mxu0 0.0
    %3953 = vmatprep.subr.mxu0 0.0
    %3954 = vmatpush1.msra.mxu0 0.0
    %3955 = vmatprep.subr.mxu0 0.0
    %3956 = vmatpush1.msra.mxu0 0.0
    %3957 = vmatprep.subr.mxu0 0.0
    %3958 = vmatpush1.msra.mxu0 0.0
    %3959 = vmatprep.subr.mxu0 0.0
    %3960 = vmatpush1.msra.mxu0 0.0
    %3961 = vmatprep.subr.mxu0 0.0
    %3962 = vmatpush1.msra.mxu0 0.0
    %3963 = vmatprep.subr.mxu0 0.0
    %3964 = vmatpush1.msra.mxu0 0.0
    %3965 = vmatprep.subr.mxu0 0.0
    %3966 = vmatpush1.msra.mxu0 0.0
    %3967 = vmatprep.subr.mxu0 0.0
    %3968 = vmatpush1.msra.mxu0 0.0
    %3969 = vmatprep.subr.mxu0 0.0
    %3970 = vmatpush1.msra.mxu0 0.0
    %3971 = vmatprep.subr.mxu0 0.0
    %3972 = vmatpush1.msra.mxu0 0.0
    %3973 = vmatprep.subr.mxu0 0.0
    %3974 = vmatpush1.msra.mxu0 0.0
    %3975 = vmatprep.subr.mxu0 0.0
    %3976 = vmatpush1.msra.mxu0 0.0
    %3977 = vmatprep.subr.mxu0 0.0
    %3978 = vmatpush1.msra.mxu0 0.0
    %3979 = vmatprep.subr.mxu0 0.0
    %3980 = vmatpush1.msra.mxu0 0.0
    %3981 = vmatprep.subr.mxu0 0.0
    %3982 = vmatpush1.msra.mxu0 %v3946
    %3983 = vmatprep.subr.mxu0 0.0
    %3984 = vmatpush2.msra.mxu0 0.0
    %3985 = vmatprep.subr.mxu0 0.0
    %3986 = vmatpush2.msra.mxu0 0.0
    %3987 = vmatprep.subr.mxu0 0.0
    %3988 = vmatpush2.msra.mxu0 0.0
    %3989 = vmatprep.subr.mxu0 0.0
    %3990 = vmatpush2.msra.mxu0 0.0
    %3991 = vmatprep.subr.mxu0 0.0
    %3992 = vmatpush2.msra.mxu0 0.0
    %3993 = vmatprep.subr.mxu0 0.0
    %3994 = vmatpush2.msra.mxu0 0.0
    %3995 = vmatprep.subr.mxu0 0.0
    %3996 = vmatpush2.msra.mxu0 0.0
    %3997 = vmatprep.subr.mxu0 0.0
    %3998 = vmatpush2.msra.mxu0 0.0
    %3999 = vmatprep.subr.mxu0 0.0
    %4000 = vmatpush2.msra.mxu0 0.0
    %4001 = vmatprep.subr.mxu0 0.0
    %4002 = vmatpush2.msra.mxu0 0.0
    %4003 = vmatprep.subr.mxu0 0.0
    %4004 = vmatpush2.msra.mxu0 0.0
    %4005 = vmatprep.subr.mxu0 0.0
    %4006 = vmatpush2.msra.mxu0 0.0
    %4007 = vmatprep.subr.mxu0 0.0
    %4008 = vmatpush2.msra.mxu0 0.0
    %4009 = vmatprep.subr.mxu0 0.0
    %4010 = vmatpush2.msra.mxu0 0.0
    %4011 = vmatprep.subr.mxu0 0.0
    %4012 = vmatpush2.msra.mxu0 0.0
    %4013 = vmatprep.subr.mxu0 0.0
    %4014 = vmatpush2.msra.mxu0 0.0
    %4015 = vmatprep.mubr.f32.mxu0 0.0
    %4016 = vmatmul.mubr.f32.gmra.mxu0 %v3949
    %v4017 = vpop.f32.mrf.mxu0
    %v4018 = vadd.f32 0.0, %v4017
    %v4019 = vpop.f32.mrf.mxu0
    %4020 = vdwg.mxu0
    %s4021 = scalar_lea.vmem [#allocation13], 56
    %v4022 = vld [vmem:[%s4021] sm:$0xff]
    %v4024 = vsel %vm390, %v3942, 0
    %v4027 = vsel %vm390, %v4018, 0
    %4029 = vmatprep.subr.mxu0 0.0
    %4030 = vmatpush1.msra.mxu0 0.0
    %4031 = vmatprep.subr.mxu0 0.0
    %4032 = vmatpush1.msra.mxu0 0.0
    %4033 = vmatprep.subr.mxu0 0.0
    %4034 = vmatpush1.msra.mxu0 0.0
    %4035 = vmatprep.subr.mxu0 0.0
    %4036 = vmatpush1.msra.mxu0 0.0
    %4037 = vmatprep.subr.mxu0 0.0
    %4038 = vmatpush1.msra.mxu0 0.0
    %4039 = vmatprep.subr.mxu0 0.0
    %4040 = vmatpush1.msra.mxu0 0.0
    %4041 = vmatprep.subr.mxu0 0.0
    %4042 = vmatpush1.msra.mxu0 0.0
    %4043 = vmatprep.subr.mxu0 0.0
    %4044 = vmatpush1.msra.mxu0 0.0
    %4045 = vmatprep.subr.mxu0 0.0
    %4046 = vmatpush1.msra.mxu0 0.0
    %4047 = vmatprep.subr.mxu0 0.0
    %4048 = vmatpush1.msra.mxu0 0.0
    %4049 = vmatprep.subr.mxu0 0.0
    %4050 = vmatpush1.msra.mxu0 0.0
    %4051 = vmatprep.subr.mxu0 0.0
    %4052 = vmatpush1.msra.mxu0 0.0
    %4053 = vmatprep.subr.mxu0 0.0
    %4054 = vmatpush1.msra.mxu0 0.0
    %4055 = vmatprep.subr.mxu0 0.0
    %4056 = vmatpush1.msra.mxu0 0.0
    %4057 = vmatprep.subr.mxu0 0.0
    %4058 = vmatpush1.msra.mxu0 0.0
    %4059 = vmatprep.subr.mxu0 0.0
    %4060 = vmatpush1.msra.mxu0 %v4022
    %4061 = vmatprep.subr.mxu0 0.0
    %4062 = vmatpush2.msra.mxu0 0.0
    %4063 = vmatprep.subr.mxu0 0.0
    %4064 = vmatpush2.msra.mxu0 0.0
    %4065 = vmatprep.subr.mxu0 0.0
    %4066 = vmatpush2.msra.mxu0 0.0
    %4067 = vmatprep.subr.mxu0 0.0
    %4068 = vmatpush2.msra.mxu0 0.0
    %4069 = vmatprep.subr.mxu0 0.0
    %4070 = vmatpush2.msra.mxu0 0.0
    %4071 = vmatprep.subr.mxu0 0.0
    %4072 = vmatpush2.msra.mxu0 0.0
    %4073 = vmatprep.subr.mxu0 0.0
    %4074 = vmatpush2.msra.mxu0 0.0
    %4075 = vmatprep.subr.mxu0 0.0
    %4076 = vmatpush2.msra.mxu0 0.0
    %4077 = vmatprep.subr.mxu0 0.0
    %4078 = vmatpush2.msra.mxu0 0.0
    %4079 = vmatprep.subr.mxu0 0.0
    %4080 = vmatpush2.msra.mxu0 0.0
    %4081 = vmatprep.subr.mxu0 0.0
    %4082 = vmatpush2.msra.mxu0 0.0
    %4083 = vmatprep.subr.mxu0 0.0
    %4084 = vmatpush2.msra.mxu0 0.0
    %4085 = vmatprep.subr.mxu0 0.0
    %4086 = vmatpush2.msra.mxu0 0.0
    %4087 = vmatprep.subr.mxu0 0.0
    %4088 = vmatpush2.msra.mxu0 0.0
    %4089 = vmatprep.subr.mxu0 0.0
    %4090 = vmatpush2.msra.mxu0 0.0
    %4091 = vmatprep.subr.mxu0 0.0
    %4092 = vmatpush2.msra.mxu0 0.0
    %4093 = vmatprep.mubr.f32.mxu0 0.0
    %4094 = vmatmul.mubr.f32.gmra.mxu0 %v4024
    %v4095 = vpop.f32.mrf.mxu0
    %v4096 = vadd.f32 0.0, %v4095
    %v4097 = vpop.f32.mrf.mxu0
    %4098 = vmatprep.mubr.f32.mxu0 0.0
    %4099 = vmatmul.mubr.f32.gmra.mxu0 %v4027
    %v4100 = vpop.f32.mrf.mxu0
    %v4101 = vadd.f32 0.0, %v4100
    %v4102 = vpop.f32.mrf.mxu0
    %4103 = vdwg.mxu0
    %v4104 = vadd.f32 %v3687, %v4096
    %v4105 = vadd.f32 %v3688, %v4101
    %s4106 = scalar_lea.vmem %s8, 1
    %v4107 = vld [vmem:[%s4106] sm:$0x1]
    %v4109 = vlaneseq
    %v4110 = vshrl.u32 %v4109, 7
    %v4111 = vsub.s32 0, %v4110
    %v4112 = vrot.slane %v4107, %v4111
    %v4114 = vadd.f32 %v4104, %v4112
    %v4115 = vadd.f32 %v4105, %v4112
    %v4116 = vadd.f32 %v247, %v4114
    %v4117 = vadd.f32 %v248, %v4115
    %s4118 = scalar_lea.vmem [#allocation8], 4
    %v4119 = vld [vmem:[%s4118] sm:$0x1]
    %s4120 = scalar_lea.vmem [#allocation10], 4
    %v4121 = vld [vmem:[%s4120] sm:$0x1]
    %v4122 = vsel %vm175, %v4116, 0.0
    %4123 = vadd.xlane.f32.xlu0 %v4122
    %v4124 = vpop.xlane.xlu0 %4123
    %v4125 = vsel %vm175, %v4117, 0.0
    %4126 = vadd.xlane.f32.xlu0 %v4125
    %v4127 = vpop.xlane.xlu0 %4126
    %v4128 = vmul.f32 %v4124, %v182
    %v4129 = vmul.f32 %v4127, %v182
    %v4130 = vsub.f32 %v4116, %v4128
    %v4131 = vsub.f32 %v4117, %v4129
    %v4132 = vmul.f32 %v4130, %v4130
    %v4133 = vmul.f32 %v4131, %v4131
    %v4134 = vsel %vm175, %v4132, 0.0
    %4135 = vadd.xlane.f32.xlu0 %v4134
    %v4136 = vpop.xlane.xlu0 %4135
    %v4137 = vsel %vm175, %v4133, 0.0
    %4138 = vadd.xlane.f32.xlu0 %v4137
    %v4139 = vpop.xlane.xlu0 %4138
    %v4140 = vmul.f32 %v4136, %v182
    %v4141 = vmul.f32 %v4139, %v182
    %v4142 = vadd.f32 %v4140, 1e-06
    %v4143 = vadd.f32 %v4141, 1e-06
    %v4144 = vrsqrt.pop %v4142
    %v4145 = vrsqrt.pop %v4143
    %v4146 = vmul.f32 %v4130, %v4144
    %v4147 = vmul.f32 %v4131, %v4145
    %v4149 = vlaneseq
    %v4150 = vshrl.u32 %v4149, 7
    %v4151 = vsub.s32 0, %v4150
    %v4152 = vrot.slane %v4119, %v4151
    %v4154 = vmul.f32 %v4146, %v4152
    %v4155 = vmul.f32 %v4147, %v4152
    %v4157 = vlaneseq
    %v4158 = vshrl.u32 %v4157, 7
    %v4159 = vsub.s32 0, %v4158
    %v4160 = vrot.slane %v4121, %v4159
    %v4162 = vadd.f32 %v4154, %v4160
    %v4163 = vadd.f32 %v4155, %v4160
    %s4164 = scalar_lea.vmem [#allocation14], 32
    %v4165 = vld [vmem:[%s4164] sm:$0xff]
    %v4166 = vld [vmem:[%s4164 + $0x8] sm:$0xff]
    %v4167 = vld [vmem:[%s4164 + $0x10] sm:$0xff]
    %v4168 = vld [vmem:[%s4164 + $0x18] sm:$0xff]
    %s4169 = scalar_lea.vmem %s10, 1
    %v4170 = vld [vmem:[%s4169] sm:$0x1]
    %v4172 = vlaneseq
    %v4173 = vshrl.u32 %v4172, 7
    %v4174 = vsub.s32 0, %v4173
    %v4175 = vrot.slane %v4170, %v4174
    %v4178 = vsel %vm175, %v4162, 0
    %v4181 = vsel %vm175, %v4163, 0
    %4183 = vmatprep.subr.mxu0 0.0
    %4184 = vmatpush1.msra.mxu0 0.0
    %4185 = vmatprep.subr.mxu0 0.0
    %4186 = vmatpush1.msra.mxu0 0.0
    %4187 = vmatprep.subr.mxu0 0.0
    %4188 = vmatpush1.msra.mxu0 0.0
    %4189 = vmatprep.subr.mxu0 0.0
    %4190 = vmatpush1.msra.mxu0 0.0
    %4191 = vmatprep.subr.mxu0 0.0
    %4192 = vmatpush1.msra.mxu0 0.0
    %4193 = vmatprep.subr.mxu0 0.0
    %4194 = vmatpush1.msra.mxu0 0.0
    %4195 = vmatprep.subr.mxu0 0.0
    %4196 = vmatpush1.msra.mxu0 0.0
    %4197 = vmatprep.subr.mxu0 0.0
    %4198 = vmatpush1.msra.mxu0 0.0
    %4199 = vmatprep.subr.mxu0 0.0
    %4200 = vmatpush1.msra.mxu0 0.0
    %4201 = vmatprep.subr.mxu0 0.0
    %4202 = vmatpush1.msra.mxu0 0.0
    %4203 = vmatprep.subr.mxu0 0.0
    %4204 = vmatpush1.msra.mxu0 0.0
    %4205 = vmatprep.subr.mxu0 0.0
    %4206 = vmatpush1.msra.mxu0 0.0
    %4207 = vmatprep.subr.mxu0 0.0
    %4208 = vmatpush1.msra.mxu0 %v4168
    %4209 = vmatprep.subr.mxu0 0.0
    %4210 = vmatpush1.msra.mxu0 %v4167
    %4211 = vmatprep.subr.mxu0 0.0
    %4212 = vmatpush1.msra.mxu0 %v4166
    %4213 = vmatprep.subr.mxu0 0.0
    %4214 = vmatpush1.msra.mxu0 %v4165
    %4215 = vmatprep.subr.mxu0 0.0
    %4216 = vmatpush2.msra.mxu0 0.0
    %4217 = vmatprep.subr.mxu0 0.0
    %4218 = vmatpush2.msra.mxu0 0.0
    %4219 = vmatprep.subr.mxu0 0.0
    %4220 = vmatpush2.msra.mxu0 0.0
    %4221 = vmatprep.subr.mxu0 0.0
    %4222 = vmatpush2.msra.mxu0 0.0
    %4223 = vmatprep.subr.mxu0 0.0
    %4224 = vmatpush2.msra.mxu0 0.0
    %4225 = vmatprep.subr.mxu0 0.0
    %4226 = vmatpush2.msra.mxu0 0.0
    %4227 = vmatprep.subr.mxu0 0.0
    %4228 = vmatpush2.msra.mxu0 0.0
    %4229 = vmatprep.subr.mxu0 0.0
    %4230 = vmatpush2.msra.mxu0 0.0
    %4231 = vmatprep.subr.mxu0 0.0
    %4232 = vmatpush2.msra.mxu0 0.0
    %4233 = vmatprep.subr.mxu0 0.0
    %4234 = vmatpush2.msra.mxu0 0.0
    %4235 = vmatprep.subr.mxu0 0.0
    %4236 = vmatpush2.msra.mxu0 0.0
    %4237 = vmatprep.subr.mxu0 0.0
    %4238 = vmatpush2.msra.mxu0 0.0
    %4239 = vmatprep.subr.mxu0 0.0
    %4240 = vmatpush2.msra.mxu0 0.0
    %4241 = vmatprep.subr.mxu0 0.0
    %4242 = vmatpush2.msra.mxu0 0.0
    %4243 = vmatprep.subr.mxu0 0.0
    %4244 = vmatpush2.msra.mxu0 0.0
    %4245 = vmatprep.subr.mxu0 0.0
    %4246 = vmatpush2.msra.mxu0 0.0
    %4247 = vmatprep.mubr.f32.mxu0 0.0
    %4248 = vmatmul.mubr.f32.gmra.mxu0 %v4178
    %v4249 = vpop.f32.mrf.mxu0
    %v4250 = vadd.f32 %v4175, %v4249
    %v4251 = vpop.f32.mrf.mxu0
    %4252 = vmatprep.mubr.f32.mxu0 0.0
    %4253 = vmatmul.mubr.f32.gmra.mxu0 %v4181
    %v4254 = vpop.f32.mrf.mxu0
    %v4255 = vadd.f32 %v4175, %v4254
    %v4256 = vpop.f32.mrf.mxu0
    %4257 = vdwg.mxu0
    %v4258 = vmax.f32 %v4250, 0.0
    %v4259 = vmax.f32 %v4255, 0.0
    %s4260 = scalar_lea.vmem [#allocation16], 32
    %v4261 = vld [vmem:[%s4260] sm:$0xff]
    %v4262 = vld [vmem:[%s4260 + $0x8] sm:$0xff]
    %v4263 = vld [vmem:[%s4260 + $0x10] sm:$0xff]
    %v4264 = vld [vmem:[%s4260 + $0x18] sm:$0xff]
    %s4265 = scalar_lea.vmem %s12, 1
    %v4266 = vld [vmem:[%s4265] sm:$0x1]
    %v4268 = vlaneseq
    %v4269 = vshrl.u32 %v4268, 7
    %v4270 = vsub.s32 0, %v4269
    %v4271 = vrot.slane %v4266, %v4270
    %v4274 = vsel %vm175, %v4258, 0
    %v4277 = vsel %vm175, %v4259, 0
    %4279 = vmatprep.subr.mxu0 0.0
    %4280 = vmatpush1.msra.mxu0 0.0
    %4281 = vmatprep.subr.mxu0 0.0
    %4282 = vmatpush1.msra.mxu0 0.0
    %4283 = vmatprep.subr.mxu0 0.0
    %4284 = vmatpush1.msra.mxu0 0.0
    %4285 = vmatprep.subr.mxu0 0.0
    %4286 = vmatpush1.msra.mxu0 0.0
    %4287 = vmatprep.subr.mxu0 0.0
    %4288 = vmatpush1.msra.mxu0 0.0
    %4289 = vmatprep.subr.mxu0 0.0
    %4290 = vmatpush1.msra.mxu0 0.0
    %4291 = vmatprep.subr.mxu0 0.0
    %4292 = vmatpush1.msra.mxu0 0.0
    %4293 = vmatprep.subr.mxu0 0.0
    %4294 = vmatpush1.msra.mxu0 0.0
    %4295 = vmatprep.subr.mxu0 0.0
    %4296 = vmatpush1.msra.mxu0 0.0
    %4297 = vmatprep.subr.mxu0 0.0
    %4298 = vmatpush1.msra.mxu0 0.0
    %4299 = vmatprep.subr.mxu0 0.0
    %4300 = vmatpush1.msra.mxu0 0.0
    %4301 = vmatprep.subr.mxu0 0.0
    %4302 = vmatpush1.msra.mxu0 0.0
    %4303 = vmatprep.subr.mxu0 0.0
    %4304 = vmatpush1.msra.mxu0 %v4264
    %4305 = vmatprep.subr.mxu0 0.0
    %4306 = vmatpush1.msra.mxu0 %v4263
    %4307 = vmatprep.subr.mxu0 0.0
    %4308 = vmatpush1.msra.mxu0 %v4262
    %4309 = vmatprep.subr.mxu0 0.0
    %4310 = vmatpush1.msra.mxu0 %v4261
    %4311 = vmatprep.subr.mxu0 0.0
    %4312 = vmatpush2.msra.mxu0 0.0
    %4313 = vmatprep.subr.mxu0 0.0
    %4314 = vmatpush2.msra.mxu0 0.0
    %4315 = vmatprep.subr.mxu0 0.0
    %4316 = vmatpush2.msra.mxu0 0.0
    %4317 = vmatprep.subr.mxu0 0.0
    %4318 = vmatpush2.msra.mxu0 0.0
    %4319 = vmatprep.subr.mxu0 0.0
    %4320 = vmatpush2.msra.mxu0 0.0
    %4321 = vmatprep.subr.mxu0 0.0
    %4322 = vmatpush2.msra.mxu0 0.0
    %4323 = vmatprep.subr.mxu0 0.0
    %4324 = vmatpush2.msra.mxu0 0.0
    %4325 = vmatprep.subr.mxu0 0.0
    %4326 = vmatpush2.msra.mxu0 0.0
    %4327 = vmatprep.subr.mxu0 0.0
    %4328 = vmatpush2.msra.mxu0 0.0
    %4329 = vmatprep.subr.mxu0 0.0
    %4330 = vmatpush2.msra.mxu0 0.0
    %4331 = vmatprep.subr.mxu0 0.0
    %4332 = vmatpush2.msra.mxu0 0.0
    %4333 = vmatprep.subr.mxu0 0.0
    %4334 = vmatpush2.msra.mxu0 0.0
    %4335 = vmatprep.subr.mxu0 0.0
    %4336 = vmatpush2.msra.mxu0 0.0
    %4337 = vmatprep.subr.mxu0 0.0
    %4338 = vmatpush2.msra.mxu0 0.0
    %4339 = vmatprep.subr.mxu0 0.0
    %4340 = vmatpush2.msra.mxu0 0.0
    %4341 = vmatprep.subr.mxu0 0.0
    %4342 = vmatpush2.msra.mxu0 0.0
    %4343 = vmatprep.mubr.f32.mxu0 0.0
    %4344 = vmatmul.mubr.f32.gmra.mxu0 %v4274
    %v4345 = vpop.f32.mrf.mxu0
    %v4346 = vadd.f32 %v4271, %v4345
    %v4347 = vpop.f32.mrf.mxu0
    %4348 = vmatprep.mubr.f32.mxu0 0.0
    %4349 = vmatmul.mubr.f32.gmra.mxu0 %v4277
    %v4350 = vpop.f32.mrf.mxu0
    %v4351 = vadd.f32 %v4271, %v4350
    %v4352 = vpop.f32.mrf.mxu0
    %4353 = vdwg.mxu0
    %v4354 = vmax.f32 %v4346, 0.0
    %v4355 = vmax.f32 %v4351, 0.0
    %v4356 = vadd.f32 %v4116, %v4354
    %v4357 = vadd.f32 %v4117, %v4355
    %s4358 = scalar_lea.vmem [#allocation8], 5
    %v4359 = vld [vmem:[%s4358] sm:$0x1]
    %s4360 = scalar_lea.vmem [#allocation10], 5
    %v4361 = vld [vmem:[%s4360] sm:$0x1]
    %v4362 = vsel %vm175, %v4356, 0.0
    %4363 = vadd.xlane.f32.xlu0 %v4362
    %v4364 = vpop.xlane.xlu0 %4363
    %v4365 = vsel %vm175, %v4357, 0.0
    %4366 = vadd.xlane.f32.xlu0 %v4365
    %v4367 = vpop.xlane.xlu0 %4366
    %v4368 = vmul.f32 %v4364, %v182
    %v4369 = vmul.f32 %v4367, %v182
    %v4370 = vsub.f32 %v4356, %v4368
    %v4371 = vsub.f32 %v4357, %v4369
    %v4372 = vmul.f32 %v4370, %v4370
    %v4373 = vmul.f32 %v4371, %v4371
    %v4374 = vsel %vm175, %v4372, 0.0
    %4375 = vadd.xlane.f32.xlu0 %v4374
    %v4376 = vpop.xlane.xlu0 %4375
    %v4377 = vsel %vm175, %v4373, 0.0
    %4378 = vadd.xlane.f32.xlu0 %v4377
    %v4379 = vpop.xlane.xlu0 %4378
    %v4380 = vmul.f32 %v4376, %v182
    %v4381 = vmul.f32 %v4379, %v182
    %v4382 = vadd.f32 %v4380, 1e-05
    %v4383 = vadd.f32 %v4381, 1e-05
    %v4384 = vrsqrt.pop %v4382
    %v4385 = vrsqrt.pop %v4383
    %v4386 = vmul.f32 %v4370, %v4384
    %v4387 = vmul.f32 %v4371, %v4385
    %v4389 = vlaneseq
    %v4390 = vshrl.u32 %v4389, 7
    %v4391 = vsub.s32 0, %v4390
    %v4392 = vrot.slane %v4359, %v4391
    %v4394 = vmul.f32 %v4386, %v4392
    %v4395 = vmul.f32 %v4387, %v4392
    %v4397 = vlaneseq
    %v4398 = vshrl.u32 %v4397, 7
    %v4399 = vsub.s32 0, %v4398
    %v4400 = vrot.slane %v4361, %v4399
    %v4402 = vadd.f32 %v4394, %v4400
    %v4403 = vadd.f32 %v4395, %v4400
    %s4404 = scalar_lea.vmem [#allocation8], 6
    %v4405 = vld [vmem:[%s4404] sm:$0x1]
    %s4406 = scalar_lea.vmem [#allocation10], 6
    %v4407 = vld [vmem:[%s4406] sm:$0x1]
    %v4408 = vsel %vm175, %v2302, 0.0
    %4409 = vadd.xlane.f32.xlu0 %v4408
    %v4410 = vpop.xlane.xlu0 %4409
    %v4411 = vsel %vm175, %v2303, 0.0
    %4412 = vadd.xlane.f32.xlu0 %v4411
    %v4413 = vpop.xlane.xlu0 %4412
    %v4414 = vmul.f32 %v4410, %v182
    %v4415 = vmul.f32 %v4413, %v182
    %v4416 = vsub.f32 %v2302, %v4414
    %v4417 = vsub.f32 %v2303, %v4415
    %v4418 = vmul.f32 %v4416, %v4416
    %v4419 = vmul.f32 %v4417, %v4417
    %v4420 = vsel %vm175, %v4418, 0.0
    %4421 = vadd.xlane.f32.xlu0 %v4420
    %v4422 = vpop.xlane.xlu0 %4421
    %v4423 = vsel %vm175, %v4419, 0.0
    %4424 = vadd.xlane.f32.xlu0 %v4423
    %v4425 = vpop.xlane.xlu0 %4424
    %v4426 = vmul.f32 %v4422, %v182
    %v4427 = vmul.f32 %v4425, %v182
    %v4428 = vadd.f32 %v4426, 1e-05
    %v4429 = vadd.f32 %v4427, 1e-05
    %v4430 = vrsqrt.pop %v4428
    %v4431 = vrsqrt.pop %v4429
    %v4432 = vmul.f32 %v4416, %v4430
    %v4433 = vmul.f32 %v4417, %v4431
    %v4435 = vlaneseq
    %v4436 = vshrl.u32 %v4435, 7
    %v4437 = vsub.s32 0, %v4436
    %v4438 = vrot.slane %v4405, %v4437
    %v4440 = vmul.f32 %v4432, %v4438
    %v4441 = vmul.f32 %v4433, %v4438
    %v4443 = vlaneseq
    %v4444 = vshrl.u32 %v4443, 7
    %v4445 = vsub.s32 0, %v4444
    %v4446 = vrot.slane %v4407, %v4445
    %v4448 = vadd.f32 %v4440, %v4446
    %v4449 = vadd.f32 %v4441, %v4446
    %s4450 = scalar_lea.vmem [#allocation11], 64
    %v4451 = vld [vmem:[%s4450] sm:$0xff]
    %v4452 = vld [vmem:[%s4450 + $0x8] sm:$0xff]
    %v4453 = vld [vmem:[%s4450 + $0x10] sm:$0xff]
    %v4454 = vld [vmem:[%s4450 + $0x18] sm:$0xff]
    %s4455 = scalar_lea.vmem %s6, 2
    %v4456 = vld [vmem:[%s4455] sm:$0x1]
    %v4458 = vlaneseq
    %v4459 = vshrl.u32 %v4458, 7
    %v4460 = vsub.s32 0, %v4459
    %v4461 = vrot.slane %v4456, %v4460
    %v4464 = vsel %vm175, %v4448, 0
    %v4467 = vsel %vm175, %v4449, 0
    %4469 = vmatprep.subr.mxu0 0.0
    %4470 = vmatpush1.msra.mxu0 0.0
    %4471 = vmatprep.subr.mxu0 0.0
    %4472 = vmatpush1.msra.mxu0 0.0
    %4473 = vmatprep.subr.mxu0 0.0
    %4474 = vmatpush1.msra.mxu0 0.0
    %4475 = vmatprep.subr.mxu0 0.0
    %4476 = vmatpush1.msra.mxu0 0.0
    %4477 = vmatprep.subr.mxu0 0.0
    %4478 = vmatpush1.msra.mxu0 0.0
    %4479 = vmatprep.subr.mxu0 0.0
    %4480 = vmatpush1.msra.mxu0 0.0
    %4481 = vmatprep.subr.mxu0 0.0
    %4482 = vmatpush1.msra.mxu0 0.0
    %4483 = vmatprep.subr.mxu0 0.0
    %4484 = vmatpush1.msra.mxu0 0.0
    %4485 = vmatprep.subr.mxu0 0.0
    %4486 = vmatpush1.msra.mxu0 0.0
    %4487 = vmatprep.subr.mxu0 0.0
    %4488 = vmatpush1.msra.mxu0 0.0
    %4489 = vmatprep.subr.mxu0 0.0
    %4490 = vmatpush1.msra.mxu0 0.0
    %4491 = vmatprep.subr.mxu0 0.0
    %4492 = vmatpush1.msra.mxu0 0.0
    %4493 = vmatprep.subr.mxu0 0.0
    %4494 = vmatpush1.msra.mxu0 %v4454
    %4495 = vmatprep.subr.mxu0 0.0
    %4496 = vmatpush1.msra.mxu0 %v4453
    %4497 = vmatprep.subr.mxu0 0.0
    %4498 = vmatpush1.msra.mxu0 %v4452
    %4499 = vmatprep.subr.mxu0 0.0
    %4500 = vmatpush1.msra.mxu0 %v4451
    %4501 = vmatprep.subr.mxu0 0.0
    %4502 = vmatpush2.msra.mxu0 0.0
    %4503 = vmatprep.subr.mxu0 0.0
    %4504 = vmatpush2.msra.mxu0 0.0
    %4505 = vmatprep.subr.mxu0 0.0
    %4506 = vmatpush2.msra.mxu0 0.0
    %4507 = vmatprep.subr.mxu0 0.0
    %4508 = vmatpush2.msra.mxu0 0.0
    %4509 = vmatprep.subr.mxu0 0.0
    %4510 = vmatpush2.msra.mxu0 0.0
    %4511 = vmatprep.subr.mxu0 0.0
    %4512 = vmatpush2.msra.mxu0 0.0
    %4513 = vmatprep.subr.mxu0 0.0
    %4514 = vmatpush2.msra.mxu0 0.0
    %4515 = vmatprep.subr.mxu0 0.0
    %4516 = vmatpush2.msra.mxu0 0.0
    %4517 = vmatprep.subr.mxu0 0.0
    %4518 = vmatpush2.msra.mxu0 0.0
    %4519 = vmatprep.subr.mxu0 0.0
    %4520 = vmatpush2.msra.mxu0 0.0
    %4521 = vmatprep.subr.mxu0 0.0
    %4522 = vmatpush2.msra.mxu0 0.0
    %4523 = vmatprep.subr.mxu0 0.0
    %4524 = vmatpush2.msra.mxu0 0.0
    %4525 = vmatprep.subr.mxu0 0.0
    %4526 = vmatpush2.msra.mxu0 0.0
    %4527 = vmatprep.subr.mxu0 0.0
    %4528 = vmatpush2.msra.mxu0 0.0
    %4529 = vmatprep.subr.mxu0 0.0
    %4530 = vmatpush2.msra.mxu0 0.0
    %4531 = vmatprep.subr.mxu0 0.0
    %4532 = vmatpush2.msra.mxu0 0.0
    %4533 = vmatprep.mubr.f32.mxu0 0.0
    %4534 = vmatmul.mubr.f32.gmra.mxu0 %v4464
    %v4535 = vpop.f32.mrf.mxu0
    %v4536 = vadd.f32 %v4461, %v4535
    %v4537 = vpop.f32.mrf.mxu0
    %4538 = vmatprep.mubr.f32.mxu0 0.0
    %4539 = vmatmul.mubr.f32.gmra.mxu0 %v4467
    %v4540 = vpop.f32.mrf.mxu0
    %v4541 = vadd.f32 %v4461, %v4540
    %v4542 = vpop.f32.mrf.mxu0
    %4543 = vdwg.mxu0
    %4548 = vrot.lane.b32.xlu0 %v4451, 96
    %v4549 = vpop.permute.xlu0 %4548
    %4550 = vrot.lane.b32.xlu0 %v4452, 96
    %v4551 = vpop.permute.xlu0 %4550
    %4552 = vrot.lane.b32.xlu0 %v4453, 96
    %v4553 = vpop.permute.xlu0 %4552
    %4554 = vrot.lane.b32.xlu0 %v4454, 96
    %v4555 = vpop.permute.xlu0 %4554
    %4560 = vrot.lane.b32.xlu0 %v4461, 96
    %v4561 = vpop.permute.xlu0 %4560
    %v4564 = vsel %vm175, %v4402, 0
    %v4567 = vsel %vm175, %v4403, 0
    %4569 = vmatprep.subr.mxu0 0.0
    %4570 = vmatpush1.msra.mxu0 0.0
    %4571 = vmatprep.subr.mxu0 0.0
    %4572 = vmatpush1.msra.mxu0 0.0
    %4573 = vmatprep.subr.mxu0 0.0
    %4574 = vmatpush1.msra.mxu0 0.0
    %4575 = vmatprep.subr.mxu0 0.0
    %4576 = vmatpush1.msra.mxu0 0.0
    %4577 = vmatprep.subr.mxu0 0.0
    %4578 = vmatpush1.msra.mxu0 0.0
    %4579 = vmatprep.subr.mxu0 0.0
    %4580 = vmatpush1.msra.mxu0 0.0
    %4581 = vmatprep.subr.mxu0 0.0
    %4582 = vmatpush1.msra.mxu0 0.0
    %4583 = vmatprep.subr.mxu0 0.0
    %4584 = vmatpush1.msra.mxu0 0.0
    %4585 = vmatprep.subr.mxu0 0.0
    %4586 = vmatpush1.msra.mxu0 0.0
    %4587 = vmatprep.subr.mxu0 0.0
    %4588 = vmatpush1.msra.mxu0 0.0
    %4589 = vmatprep.subr.mxu0 0.0
    %4590 = vmatpush1.msra.mxu0 0.0
    %4591 = vmatprep.subr.mxu0 0.0
    %4592 = vmatpush1.msra.mxu0 0.0
    %4593 = vmatprep.subr.mxu0 0.0
    %4594 = vmatpush1.msra.mxu0 %v4555
    %4595 = vmatprep.subr.mxu0 0.0
    %4596 = vmatpush1.msra.mxu0 %v4553
    %4597 = vmatprep.subr.mxu0 0.0
    %4598 = vmatpush1.msra.mxu0 %v4551
    %4599 = vmatprep.subr.mxu0 0.0
    %4600 = vmatpush1.msra.mxu0 %v4549
    %4601 = vmatprep.subr.mxu0 0.0
    %4602 = vmatpush2.msra.mxu0 0.0
    %4603 = vmatprep.subr.mxu0 0.0
    %4604 = vmatpush2.msra.mxu0 0.0
    %4605 = vmatprep.subr.mxu0 0.0
    %4606 = vmatpush2.msra.mxu0 0.0
    %4607 = vmatprep.subr.mxu0 0.0
    %4608 = vmatpush2.msra.mxu0 0.0
    %4609 = vmatprep.subr.mxu0 0.0
    %4610 = vmatpush2.msra.mxu0 0.0
    %4611 = vmatprep.subr.mxu0 0.0
    %4612 = vmatpush2.msra.mxu0 0.0
    %4613 = vmatprep.subr.mxu0 0.0
    %4614 = vmatpush2.msra.mxu0 0.0
    %4615 = vmatprep.subr.mxu0 0.0
    %4616 = vmatpush2.msra.mxu0 0.0
    %4617 = vmatprep.subr.mxu0 0.0
    %4618 = vmatpush2.msra.mxu0 0.0
    %4619 = vmatprep.subr.mxu0 0.0
    %4620 = vmatpush2.msra.mxu0 0.0
    %4621 = vmatprep.subr.mxu0 0.0
    %4622 = vmatpush2.msra.mxu0 0.0
    %4623 = vmatprep.subr.mxu0 0.0
    %4624 = vmatpush2.msra.mxu0 0.0
    %4625 = vmatprep.subr.mxu0 0.0
    %4626 = vmatpush2.msra.mxu0 0.0
    %4627 = vmatprep.subr.mxu0 0.0
    %4628 = vmatpush2.msra.mxu0 0.0
    %4629 = vmatprep.subr.mxu0 0.0
    %4630 = vmatpush2.msra.mxu0 0.0
    %4631 = vmatprep.subr.mxu0 0.0
    %4632 = vmatpush2.msra.mxu0 0.0
    %4633 = vmatprep.mubr.f32.mxu0 0.0
    %4634 = vmatmul.mubr.f32.gmra.mxu0 %v4564
    %v4635 = vpop.f32.mrf.mxu0
    %v4636 = vadd.f32 %v4561, %v4635
    %v4637 = vpop.f32.mrf.mxu0
    %4638 = vmatprep.mubr.f32.mxu0 0.0
    %4639 = vmatmul.mubr.f32.gmra.mxu0 %v4567
    %v4640 = vpop.f32.mrf.mxu0
    %v4641 = vadd.f32 %v4561, %v4640
    %v4642 = vpop.f32.mrf.mxu0
    %4643 = vdwg.mxu0
    %v4645 = vsel %vm390, %v4536, 0
    %v4648 = vsel %vm390, %v4636, 0
    %4650 = vmatprep.subr.mxu0 0.0
    %4651 = vmatpush1.xpose.msra.mxu0 0.0
    %4652 = vmatprep.subr.mxu0 0.0
    %4653 = vmatpush1.xpose.msra.mxu0 0.0
    %4654 = vmatprep.subr.mxu0 0.0
    %4655 = vmatpush1.xpose.msra.mxu0 0.0
    %4656 = vmatprep.subr.mxu0 0.0
    %4657 = vmatpush1.xpose.msra.mxu0 0.0
    %4658 = vmatprep.subr.mxu0 0.0
    %4659 = vmatpush1.xpose.msra.mxu0 0.0
    %4660 = vmatprep.subr.mxu0 0.0
    %4661 = vmatpush1.xpose.msra.mxu0 0.0
    %4662 = vmatprep.subr.mxu0 0.0
    %4663 = vmatpush1.xpose.msra.mxu0 0.0
    %4664 = vmatprep.subr.mxu0 0.0
    %4665 = vmatpush1.xpose.msra.mxu0 0.0
    %4666 = vmatprep.subr.mxu0 0.0
    %4667 = vmatpush1.xpose.msra.mxu0 0.0
    %4668 = vmatprep.subr.mxu0 0.0
    %4669 = vmatpush1.xpose.msra.mxu0 0.0
    %4670 = vmatprep.subr.mxu0 0.0
    %4671 = vmatpush1.xpose.msra.mxu0 0.0
    %4672 = vmatprep.subr.mxu0 0.0
    %4673 = vmatpush1.xpose.msra.mxu0 0.0
    %4674 = vmatprep.subr.mxu0 0.0
    %4675 = vmatpush1.xpose.msra.mxu0 0.0
    %4676 = vmatprep.subr.mxu0 0.0
    %4677 = vmatpush1.xpose.msra.mxu0 0.0
    %4678 = vmatprep.subr.mxu0 0.0
    %4679 = vmatpush1.xpose.msra.mxu0 0.0
    %4680 = vmatprep.subr.mxu0 0.0
    %4681 = vmatpush1.xpose.msra.mxu0 %v4648
    %4682 = vmatprep.subr.mxu0 0.0
    %4683 = vmatpush2.xpose.msra.mxu0 0.0
    %4684 = vmatprep.subr.mxu0 0.0
    %4685 = vmatpush2.xpose.msra.mxu0 0.0
    %4686 = vmatprep.subr.mxu0 0.0
    %4687 = vmatpush2.xpose.msra.mxu0 0.0
    %4688 = vmatprep.subr.mxu0 0.0
    %4689 = vmatpush2.xpose.msra.mxu0 0.0
    %4690 = vmatprep.subr.mxu0 0.0
    %4691 = vmatpush2.xpose.msra.mxu0 0.0
    %4692 = vmatprep.subr.mxu0 0.0
    %4693 = vmatpush2.xpose.msra.mxu0 0.0
    %4694 = vmatprep.subr.mxu0 0.0
    %4695 = vmatpush2.xpose.msra.mxu0 0.0
    %4696 = vmatprep.subr.mxu0 0.0
    %4697 = vmatpush2.xpose.msra.mxu0 0.0
    %4698 = vmatprep.subr.mxu0 0.0
    %4699 = vmatpush2.xpose.msra.mxu0 0.0
    %4700 = vmatprep.subr.mxu0 0.0
    %4701 = vmatpush2.xpose.msra.mxu0 0.0
    %4702 = vmatprep.subr.mxu0 0.0
    %4703 = vmatpush2.xpose.msra.mxu0 0.0
    %4704 = vmatprep.subr.mxu0 0.0
    %4705 = vmatpush2.xpose.msra.mxu0 0.0
    %4706 = vmatprep.subr.mxu0 0.0
    %4707 = vmatpush2.xpose.msra.mxu0 0.0
    %4708 = vmatprep.subr.mxu0 0.0
    %4709 = vmatpush2.xpose.msra.mxu0 0.0
    %4710 = vmatprep.subr.mxu0 0.0
    %4711 = vmatpush2.xpose.msra.mxu0 0.0
    %4712 = vmatprep.subr.mxu0 0.0
    %4713 = vmatpush2.xpose.msra.mxu0 0.0
    %4714 = vmatprep.mubr.f32.mxu0 0.0
    %4715 = vmatmul.mubr.f32.gmra.mxu0 %v4645
    %v4716 = vpop.f32.mrf.mxu0
    %v4717 = vadd.f32 0.0, %v4716
    %v4718 = vpop.f32.mrf.mxu0
    %4719 = vdwg.mxu0
    %v4721 = vsel %vm390, %v4541, 0
    %v4724 = vsel %vm390, %v4641, 0
    %4726 = vmatprep.subr.mxu0 0.0
    %4727 = vmatpush1.xpose.msra.mxu0 0.0
    %4728 = vmatprep.subr.mxu0 0.0
    %4729 = vmatpush1.xpose.msra.mxu0 0.0
    %4730 = vmatprep.subr.mxu0 0.0
    %4731 = vmatpush1.xpose.msra.mxu0 0.0
    %4732 = vmatprep.subr.mxu0 0.0
    %4733 = vmatpush1.xpose.msra.mxu0 0.0
    %4734 = vmatprep.subr.mxu0 0.0
    %4735 = vmatpush1.xpose.msra.mxu0 0.0
    %4736 = vmatprep.subr.mxu0 0.0
    %4737 = vmatpush1.xpose.msra.mxu0 0.0
    %4738 = vmatprep.subr.mxu0 0.0
    %4739 = vmatpush1.xpose.msra.mxu0 0.0
    %4740 = vmatprep.subr.mxu0 0.0
    %4741 = vmatpush1.xpose.msra.mxu0 0.0
    %4742 = vmatprep.subr.mxu0 0.0
    %4743 = vmatpush1.xpose.msra.mxu0 0.0
    %4744 = vmatprep.subr.mxu0 0.0
    %4745 = vmatpush1.xpose.msra.mxu0 0.0
    %4746 = vmatprep.subr.mxu0 0.0
    %4747 = vmatpush1.xpose.msra.mxu0 0.0
    %4748 = vmatprep.subr.mxu0 0.0
    %4749 = vmatpush1.xpose.msra.mxu0 0.0
    %4750 = vmatprep.subr.mxu0 0.0
    %4751 = vmatpush1.xpose.msra.mxu0 0.0
    %4752 = vmatprep.subr.mxu0 0.0
    %4753 = vmatpush1.xpose.msra.mxu0 0.0
    %4754 = vmatprep.subr.mxu0 0.0
    %4755 = vmatpush1.xpose.msra.mxu0 0.0
    %4756 = vmatprep.subr.mxu0 0.0
    %4757 = vmatpush1.xpose.msra.mxu0 %v4724
    %4758 = vmatprep.subr.mxu0 0.0
    %4759 = vmatpush2.xpose.msra.mxu0 0.0
    %4760 = vmatprep.subr.mxu0 0.0
    %4761 = vmatpush2.xpose.msra.mxu0 0.0
    %4762 = vmatprep.subr.mxu0 0.0
    %4763 = vmatpush2.xpose.msra.mxu0 0.0
    %4764 = vmatprep.subr.mxu0 0.0
    %4765 = vmatpush2.xpose.msra.mxu0 0.0
    %4766 = vmatprep.subr.mxu0 0.0
    %4767 = vmatpush2.xpose.msra.mxu0 0.0
    %4768 = vmatprep.subr.mxu0 0.0
    %4769 = vmatpush2.xpose.msra.mxu0 0.0
    %4770 = vmatprep.subr.mxu0 0.0
    %4771 = vmatpush2.xpose.msra.mxu0 0.0
    %4772 = vmatprep.subr.mxu0 0.0
    %4773 = vmatpush2.xpose.msra.mxu0 0.0
    %4774 = vmatprep.subr.mxu0 0.0
    %4775 = vmatpush2.xpose.msra.mxu0 0.0
    %4776 = vmatprep.subr.mxu0 0.0
    %4777 = vmatpush2.xpose.msra.mxu0 0.0
    %4778 = vmatprep.subr.mxu0 0.0
    %4779 = vmatpush2.xpose.msra.mxu0 0.0
    %4780 = vmatprep.subr.mxu0 0.0
    %4781 = vmatpush2.xpose.msra.mxu0 0.0
    %4782 = vmatprep.subr.mxu0 0.0
    %4783 = vmatpush2.xpose.msra.mxu0 0.0
    %4784 = vmatprep.subr.mxu0 0.0
    %4785 = vmatpush2.xpose.msra.mxu0 0.0
    %4786 = vmatprep.subr.mxu0 0.0
    %4787 = vmatpush2.xpose.msra.mxu0 0.0
    %4788 = vmatprep.subr.mxu0 0.0
    %4789 = vmatpush2.xpose.msra.mxu0 0.0
    %4790 = vmatprep.mubr.f32.mxu0 0.0
    %4791 = vmatmul.mubr.f32.gmra.mxu0 %v4721
    %v4792 = vpop.f32.mrf.mxu0
    %v4793 = vadd.f32 0.0, %v4792
    %v4794 = vpop.f32.mrf.mxu0
    %4795 = vdwg.mxu0
    %v4796 = vmul.f32 %v4717, 0.35355338
    %v4797 = vmul.f32 %v4793, 0.35355338
    %v4798 = vsel %vm390, %v4796, -inf
    %4799 = vmax.xlane.f32.xlu0 %v4798
    %v4800 = vpop.xlane.xlu0 %4799
    %v4801 = vsel %vm390, %v4797, -inf
    %4802 = vmax.xlane.f32.xlu0 %v4801
    %v4803 = vpop.xlane.xlu0 %4802
    %v4804 = vsub.f32 %v4796, %v4800
    %v4805 = vsub.f32 %v4797, %v4803
    %v4806 = vmul.f32 %v4804, 1.442695
    %v4807 = vpow.pop %v4806
    %v4808 = vmul.f32 %v4805, 1.442695
    %v4809 = vpow.pop %v4808
    %v4810 = vsel %vm390, %v4807, 0.0
    %4811 = vadd.xlane.f32.xlu0 %v4810
    %v4812 = vpop.xlane.xlu0 %4811
    %v4813 = vsel %vm390, %v4809, 0.0
    %4814 = vadd.xlane.f32.xlu0 %v4813
    %v4815 = vpop.xlane.xlu0 %4814
    %v4816 = vrcp.pop %v4812
    %v4817 = vrcp.pop %v4815
    %v4818 = vmul.f32 %v4807, %v4816
    %v4819 = vmul.f32 %v4809, %v4817
    %4820 = vrot.lane.b32.xlu0 %v4636, 96
    %v4821 = vpop.permute.xlu0 %4820
    %v4824 = vsel %vm390, %v4818, 0
    %4826 = vmatprep.subr.mxu0 0.0
    %4827 = vmatpush1.msra.mxu0 0.0
    %4828 = vmatprep.subr.mxu0 0.0
    %4829 = vmatpush1.msra.mxu0 0.0
    %4830 = vmatprep.subr.mxu0 0.0
    %4831 = vmatpush1.msra.mxu0 0.0
    %4832 = vmatprep.subr.mxu0 0.0
    %4833 = vmatpush1.msra.mxu0 0.0
    %4834 = vmatprep.subr.mxu0 0.0
    %4835 = vmatpush1.msra.mxu0 0.0
    %4836 = vmatprep.subr.mxu0 0.0
    %4837 = vmatpush1.msra.mxu0 0.0
    %4838 = vmatprep.subr.mxu0 0.0
    %4839 = vmatpush1.msra.mxu0 0.0
    %4840 = vmatprep.subr.mxu0 0.0
    %4841 = vmatpush1.msra.mxu0 0.0
    %4842 = vmatprep.subr.mxu0 0.0
    %4843 = vmatpush1.msra.mxu0 0.0
    %4844 = vmatprep.subr.mxu0 0.0
    %4845 = vmatpush1.msra.mxu0 0.0
    %4846 = vmatprep.subr.mxu0 0.0
    %4847 = vmatpush1.msra.mxu0 0.0
    %4848 = vmatprep.subr.mxu0 0.0
    %4849 = vmatpush1.msra.mxu0 0.0
    %4850 = vmatprep.subr.mxu0 0.0
    %4851 = vmatpush1.msra.mxu0 0.0
    %4852 = vmatprep.subr.mxu0 0.0
    %4853 = vmatpush1.msra.mxu0 0.0
    %4854 = vmatprep.subr.mxu0 0.0
    %4855 = vmatpush1.msra.mxu0 0.0
    %4856 = vmatprep.subr.mxu0 0.0
    %4857 = vmatpush1.msra.mxu0 %v4821
    %4858 = vmatprep.subr.mxu0 0.0
    %4859 = vmatpush2.msra.mxu0 0.0
    %4860 = vmatprep.subr.mxu0 0.0
    %4861 = vmatpush2.msra.mxu0 0.0
    %4862 = vmatprep.subr.mxu0 0.0
    %4863 = vmatpush2.msra.mxu0 0.0
    %4864 = vmatprep.subr.mxu0 0.0
    %4865 = vmatpush2.msra.mxu0 0.0
    %4866 = vmatprep.subr.mxu0 0.0
    %4867 = vmatpush2.msra.mxu0 0.0
    %4868 = vmatprep.subr.mxu0 0.0
    %4869 = vmatpush2.msra.mxu0 0.0
    %4870 = vmatprep.subr.mxu0 0.0
    %4871 = vmatpush2.msra.mxu0 0.0
    %4872 = vmatprep.subr.mxu0 0.0
    %4873 = vmatpush2.msra.mxu0 0.0
    %4874 = vmatprep.subr.mxu0 0.0
    %4875 = vmatpush2.msra.mxu0 0.0
    %4876 = vmatprep.subr.mxu0 0.0
    %4877 = vmatpush2.msra.mxu0 0.0
    %4878 = vmatprep.subr.mxu0 0.0
    %4879 = vmatpush2.msra.mxu0 0.0
    %4880 = vmatprep.subr.mxu0 0.0
    %4881 = vmatpush2.msra.mxu0 0.0
    %4882 = vmatprep.subr.mxu0 0.0
    %4883 = vmatpush2.msra.mxu0 0.0
    %4884 = vmatprep.subr.mxu0 0.0
    %4885 = vmatpush2.msra.mxu0 0.0
    %4886 = vmatprep.subr.mxu0 0.0
    %4887 = vmatpush2.msra.mxu0 0.0
    %4888 = vmatprep.subr.mxu0 0.0
    %4889 = vmatpush2.msra.mxu0 0.0
    %4890 = vmatprep.mubr.f32.mxu0 0.0
    %4891 = vmatmul.mubr.f32.gmra.mxu0 %v4824
    %v4892 = vpop.f32.mrf.mxu0
    %v4893 = vadd.f32 0.0, %v4892
    %v4894 = vpop.f32.mrf.mxu0
    %4895 = vdwg.mxu0
    %4896 = vrot.lane.b32.xlu0 %v4641, 96
    %v4897 = vpop.permute.xlu0 %4896
    %v4900 = vsel %vm390, %v4819, 0
    %4902 = vmatprep.subr.mxu0 0.0
    %4903 = vmatpush1.msra.mxu0 0.0
    %4904 = vmatprep.subr.mxu0 0.0
    %4905 = vmatpush1.msra.mxu0 0.0
    %4906 = vmatprep.subr.mxu0 0.0
    %4907 = vmatpush1.msra.mxu0 0.0
    %4908 = vmatprep.subr.mxu0 0.0
    %4909 = vmatpush1.msra.mxu0 0.0
    %4910 = vmatprep.subr.mxu0 0.0
    %4911 = vmatpush1.msra.mxu0 0.0
    %4912 = vmatprep.subr.mxu0 0.0
    %4913 = vmatpush1.msra.mxu0 0.0
    %4914 = vmatprep.subr.mxu0 0.0
    %4915 = vmatpush1.msra.mxu0 0.0
    %4916 = vmatprep.subr.mxu0 0.0
    %4917 = vmatpush1.msra.mxu0 0.0
    %4918 = vmatprep.subr.mxu0 0.0
    %4919 = vmatpush1.msra.mxu0 0.0
    %4920 = vmatprep.subr.mxu0 0.0
    %4921 = vmatpush1.msra.mxu0 0.0
    %4922 = vmatprep.subr.mxu0 0.0
    %4923 = vmatpush1.msra.mxu0 0.0
    %4924 = vmatprep.subr.mxu0 0.0
    %4925 = vmatpush1.msra.mxu0 0.0
    %4926 = vmatprep.subr.mxu0 0.0
    %4927 = vmatpush1.msra.mxu0 0.0
    %4928 = vmatprep.subr.mxu0 0.0
    %4929 = vmatpush1.msra.mxu0 0.0
    %4930 = vmatprep.subr.mxu0 0.0
    %4931 = vmatpush1.msra.mxu0 0.0
    %4932 = vmatprep.subr.mxu0 0.0
    %4933 = vmatpush1.msra.mxu0 %v4897
    %4934 = vmatprep.subr.mxu0 0.0
    %4935 = vmatpush2.msra.mxu0 0.0
    %4936 = vmatprep.subr.mxu0 0.0
    %4937 = vmatpush2.msra.mxu0 0.0
    %4938 = vmatprep.subr.mxu0 0.0
    %4939 = vmatpush2.msra.mxu0 0.0
    %4940 = vmatprep.subr.mxu0 0.0
    %4941 = vmatpush2.msra.mxu0 0.0
    %4942 = vmatprep.subr.mxu0 0.0
    %4943 = vmatpush2.msra.mxu0 0.0
    %4944 = vmatprep.subr.mxu0 0.0
    %4945 = vmatpush2.msra.mxu0 0.0
    %4946 = vmatprep.subr.mxu0 0.0
    %4947 = vmatpush2.msra.mxu0 0.0
    %4948 = vmatprep.subr.mxu0 0.0
    %4949 = vmatpush2.msra.mxu0 0.0
    %4950 = vmatprep.subr.mxu0 0.0
    %4951 = vmatpush2.msra.mxu0 0.0
    %4952 = vmatprep.subr.mxu0 0.0
    %4953 = vmatpush2.msra.mxu0 0.0
    %4954 = vmatprep.subr.mxu0 0.0
    %4955 = vmatpush2.msra.mxu0 0.0
    %4956 = vmatprep.subr.mxu0 0.0
    %4957 = vmatpush2.msra.mxu0 0.0
    %4958 = vmatprep.subr.mxu0 0.0
    %4959 = vmatpush2.msra.mxu0 0.0
    %4960 = vmatprep.subr.mxu0 0.0
    %4961 = vmatpush2.msra.mxu0 0.0
    %4962 = vmatprep.subr.mxu0 0.0
    %4963 = vmatpush2.msra.mxu0 0.0
    %4964 = vmatprep.subr.mxu0 0.0
    %4965 = vmatpush2.msra.mxu0 0.0
    %4966 = vmatprep.mubr.f32.mxu0 0.0
    %4967 = vmatmul.mubr.f32.gmra.mxu0 %v4900
    %v4968 = vpop.f32.mrf.mxu0
    %v4969 = vadd.f32 0.0, %v4968
    %v4970 = vpop.f32.mrf.mxu0
    %4971 = vdwg.mxu0
    %s4972 = scalar_lea.vmem [#allocation13], 64
    %v4973 = vld [vmem:[%s4972] sm:$0xff]
    %4974 = vrot.lane.b32.xlu0 %v4536, 120
    %v4975 = vpop.permute.xlu0 %4974
    %4976 = vrot.lane.b32.xlu0 %v4636, 120
    %v4977 = vpop.permute.xlu0 %4976
    %v4978 = vsel %vm390, %v4975, 0
    %v4980 = vsel %vm390, %v4977, 0
    %4982 = vmatprep.subr.mxu0 0.0
    %4983 = vmatpush1.xpose.msra.mxu0 0.0
    %4984 = vmatprep.subr.mxu0 0.0
    %4985 = vmatpush1.xpose.msra.mxu0 0.0
    %4986 = vmatprep.subr.mxu0 0.0
    %4987 = vmatpush1.xpose.msra.mxu0 0.0
    %4988 = vmatprep.subr.mxu0 0.0
    %4989 = vmatpush1.xpose.msra.mxu0 0.0
    %4990 = vmatprep.subr.mxu0 0.0
    %4991 = vmatpush1.xpose.msra.mxu0 0.0
    %4992 = vmatprep.subr.mxu0 0.0
    %4993 = vmatpush1.xpose.msra.mxu0 0.0
    %4994 = vmatprep.subr.mxu0 0.0
    %4995 = vmatpush1.xpose.msra.mxu0 0.0
    %4996 = vmatprep.subr.mxu0 0.0
    %4997 = vmatpush1.xpose.msra.mxu0 0.0
    %4998 = vmatprep.subr.mxu0 0.0
    %4999 = vmatpush1.xpose.msra.mxu0 0.0
    %5000 = vmatprep.subr.mxu0 0.0
    %5001 = vmatpush1.xpose.msra.mxu0 0.0
    %5002 = vmatprep.subr.mxu0 0.0
    %5003 = vmatpush1.xpose.msra.mxu0 0.0
    %5004 = vmatprep.subr.mxu0 0.0
    %5005 = vmatpush1.xpose.msra.mxu0 0.0
    %5006 = vmatprep.subr.mxu0 0.0
    %5007 = vmatpush1.xpose.msra.mxu0 0.0
    %5008 = vmatprep.subr.mxu0 0.0
    %5009 = vmatpush1.xpose.msra.mxu0 0.0
    %5010 = vmatprep.subr.mxu0 0.0
    %5011 = vmatpush1.xpose.msra.mxu0 0.0
    %5012 = vmatprep.subr.mxu0 0.0
    %5013 = vmatpush1.xpose.msra.mxu0 %v4980
    %5014 = vmatprep.subr.mxu0 0.0
    %5015 = vmatpush2.xpose.msra.mxu0 0.0
    %5016 = vmatprep.subr.mxu0 0.0
    %5017 = vmatpush2.xpose.msra.mxu0 0.0
    %5018 = vmatprep.subr.mxu0 0.0
    %5019 = vmatpush2.xpose.msra.mxu0 0.0
    %5020 = vmatprep.subr.mxu0 0.0
    %5021 = vmatpush2.xpose.msra.mxu0 0.0
    %5022 = vmatprep.subr.mxu0 0.0
    %5023 = vmatpush2.xpose.msra.mxu0 0.0
    %5024 = vmatprep.subr.mxu0 0.0
    %5025 = vmatpush2.xpose.msra.mxu0 0.0
    %5026 = vmatprep.subr.mxu0 0.0
    %5027 = vmatpush2.xpose.msra.mxu0 0.0
    %5028 = vmatprep.subr.mxu0 0.0
    %5029 = vmatpush2.xpose.msra.mxu0 0.0
    %5030 = vmatprep.subr.mxu0 0.0
    %5031 = vmatpush2.xpose.msra.mxu0 0.0
    %5032 = vmatprep.subr.mxu0 0.0
    %5033 = vmatpush2.xpose.msra.mxu0 0.0
    %5034 = vmatprep.subr.mxu0 0.0
    %5035 = vmatpush2.xpose.msra.mxu0 0.0
    %5036 = vmatprep.subr.mxu0 0.0
    %5037 = vmatpush2.xpose.msra.mxu0 0.0
    %5038 = vmatprep.subr.mxu0 0.0
    %5039 = vmatpush2.xpose.msra.mxu0 0.0
    %5040 = vmatprep.subr.mxu0 0.0
    %5041 = vmatpush2.xpose.msra.mxu0 0.0
    %5042 = vmatprep.subr.mxu0 0.0
    %5043 = vmatpush2.xpose.msra.mxu0 0.0
    %5044 = vmatprep.subr.mxu0 0.0
    %5045 = vmatpush2.xpose.msra.mxu0 0.0
    %5046 = vmatprep.mubr.f32.mxu0 0.0
    %5047 = vmatmul.mubr.f32.gmra.mxu0 %v4978
    %v5048 = vpop.f32.mrf.mxu0
    %v5049 = vadd.f32 0.0, %v5048
    %v5050 = vpop.f32.mrf.mxu0
    %5051 = vdwg.mxu0
    %5052 = vrot.lane.b32.xlu0 %v4541, 120
    %v5053 = vpop.permute.xlu0 %5052
    %5054 = vrot.lane.b32.xlu0 %v4641, 120
    %v5055 = vpop.permute.xlu0 %5054
    %v5056 = vsel %vm390, %v5053, 0
    %v5058 = vsel %vm390, %v5055, 0
    %5060 = vmatprep.subr.mxu0 0.0
    %5061 = vmatpush1.xpose.msra.mxu0 0.0
    %5062 = vmatprep.subr.mxu0 0.0
    %5063 = vmatpush1.xpose.msra.mxu0 0.0
    %5064 = vmatprep.subr.mxu0 0.0
    %5065 = vmatpush1.xpose.msra.mxu0 0.0
    %5066 = vmatprep.subr.mxu0 0.0
    %5067 = vmatpush1.xpose.msra.mxu0 0.0
    %5068 = vmatprep.subr.mxu0 0.0
    %5069 = vmatpush1.xpose.msra.mxu0 0.0
    %5070 = vmatprep.subr.mxu0 0.0
    %5071 = vmatpush1.xpose.msra.mxu0 0.0
    %5072 = vmatprep.subr.mxu0 0.0
    %5073 = vmatpush1.xpose.msra.mxu0 0.0
    %5074 = vmatprep.subr.mxu0 0.0
    %5075 = vmatpush1.xpose.msra.mxu0 0.0
    %5076 = vmatprep.subr.mxu0 0.0
    %5077 = vmatpush1.xpose.msra.mxu0 0.0
    %5078 = vmatprep.subr.mxu0 0.0
    %5079 = vmatpush1.xpose.msra.mxu0 0.0
    %5080 = vmatprep.subr.mxu0 0.0
    %5081 = vmatpush1.xpose.msra.mxu0 0.0
    %5082 = vmatprep.subr.mxu0 0.0
    %5083 = vmatpush1.xpose.msra.mxu0 0.0
    %5084 = vmatprep.subr.mxu0 0.0
    %5085 = vmatpush1.xpose.msra.mxu0 0.0
    %5086 = vmatprep.subr.mxu0 0.0
    %5087 = vmatpush1.xpose.msra.mxu0 0.0
    %5088 = vmatprep.subr.mxu0 0.0
    %5089 = vmatpush1.xpose.msra.mxu0 0.0
    %5090 = vmatprep.subr.mxu0 0.0
    %5091 = vmatpush1.xpose.msra.mxu0 %v5058
    %5092 = vmatprep.subr.mxu0 0.0
    %5093 = vmatpush2.xpose.msra.mxu0 0.0
    %5094 = vmatprep.subr.mxu0 0.0
    %5095 = vmatpush2.xpose.msra.mxu0 0.0
    %5096 = vmatprep.subr.mxu0 0.0
    %5097 = vmatpush2.xpose.msra.mxu0 0.0
    %5098 = vmatprep.subr.mxu0 0.0
    %5099 = vmatpush2.xpose.msra.mxu0 0.0
    %5100 = vmatprep.subr.mxu0 0.0
    %5101 = vmatpush2.xpose.msra.mxu0 0.0
    %5102 = vmatprep.subr.mxu0 0.0
    %5103 = vmatpush2.xpose.msra.mxu0 0.0
    %5104 = vmatprep.subr.mxu0 0.0
    %5105 = vmatpush2.xpose.msra.mxu0 0.0
    %5106 = vmatprep.subr.mxu0 0.0
    %5107 = vmatpush2.xpose.msra.mxu0 0.0
    %5108 = vmatprep.subr.mxu0 0.0
    %5109 = vmatpush2.xpose.msra.mxu0 0.0
    %5110 = vmatprep.subr.mxu0 0.0
    %5111 = vmatpush2.xpose.msra.mxu0 0.0
    %5112 = vmatprep.subr.mxu0 0.0
    %5113 = vmatpush2.xpose.msra.mxu0 0.0
    %5114 = vmatprep.subr.mxu0 0.0
    %5115 = vmatpush2.xpose.msra.mxu0 0.0
    %5116 = vmatprep.subr.mxu0 0.0
    %5117 = vmatpush2.xpose.msra.mxu0 0.0
    %5118 = vmatprep.subr.mxu0 0.0
    %5119 = vmatpush2.xpose.msra.mxu0 0.0
    %5120 = vmatprep.subr.mxu0 0.0
    %5121 = vmatpush2.xpose.msra.mxu0 0.0
    %5122 = vmatprep.subr.mxu0 0.0
    %5123 = vmatpush2.xpose.msra.mxu0 0.0
    %5124 = vmatprep.mubr.f32.mxu0 0.0
    %5125 = vmatmul.mubr.f32.gmra.mxu0 %v5056
    %v5126 = vpop.f32.mrf.mxu0
    %v5127 = vadd.f32 0.0, %v5126
    %v5128 = vpop.f32.mrf.mxu0
    %5129 = vdwg.mxu0
    %v5130 = vmul.f32 %v5049, 0.35355338
    %v5131 = vmul.f32 %v5127, 0.35355338
    %v5132 = vsel %vm390, %v5130, -inf
    %5133 = vmax.xlane.f32.xlu0 %v5132
    %v5134 = vpop.xlane.xlu0 %5133
    %v5135 = vsel %vm390, %v5131, -inf
    %5136 = vmax.xlane.f32.xlu0 %v5135
    %v5137 = vpop.xlane.xlu0 %5136
    %v5138 = vsub.f32 %v5130, %v5134
    %v5139 = vsub.f32 %v5131, %v5137
    %v5140 = vmul.f32 %v5138, 1.442695
    %v5141 = vpow.pop %v5140
    %v5142 = vmul.f32 %v5139, 1.442695
    %v5143 = vpow.pop %v5142
    %v5144 = vsel %vm390, %v5141, 0.0
    %5145 = vadd.xlane.f32.xlu0 %v5144
    %v5146 = vpop.xlane.xlu0 %5145
    %v5147 = vsel %vm390, %v5143, 0.0
    %5148 = vadd.xlane.f32.xlu0 %v5147
    %v5149 = vpop.xlane.xlu0 %5148
    %v5150 = vrcp.pop %v5146
    %v5151 = vrcp.pop %v5149
    %v5152 = vmul.f32 %v5141, %v5150
    %v5153 = vmul.f32 %v5143, %v5151
    %5154 = vrot.lane.b32.xlu0 %v4636, 88
    %v5155 = vpop.permute.xlu0 %5154
    %v5158 = vsel %vm390, %v5152, 0
    %5160 = vmatprep.subr.mxu0 0.0
    %5161 = vmatpush1.msra.mxu0 0.0
    %5162 = vmatprep.subr.mxu0 0.0
    %5163 = vmatpush1.msra.mxu0 0.0
    %5164 = vmatprep.subr.mxu0 0.0
    %5165 = vmatpush1.msra.mxu0 0.0
    %5166 = vmatprep.subr.mxu0 0.0
    %5167 = vmatpush1.msra.mxu0 0.0
    %5168 = vmatprep.subr.mxu0 0.0
    %5169 = vmatpush1.msra.mxu0 0.0
    %5170 = vmatprep.subr.mxu0 0.0
    %5171 = vmatpush1.msra.mxu0 0.0
    %5172 = vmatprep.subr.mxu0 0.0
    %5173 = vmatpush1.msra.mxu0 0.0
    %5174 = vmatprep.subr.mxu0 0.0
    %5175 = vmatpush1.msra.mxu0 0.0
    %5176 = vmatprep.subr.mxu0 0.0
    %5177 = vmatpush1.msra.mxu0 0.0
    %5178 = vmatprep.subr.mxu0 0.0
    %5179 = vmatpush1.msra.mxu0 0.0
    %5180 = vmatprep.subr.mxu0 0.0
    %5181 = vmatpush1.msra.mxu0 0.0
    %5182 = vmatprep.subr.mxu0 0.0
    %5183 = vmatpush1.msra.mxu0 0.0
    %5184 = vmatprep.subr.mxu0 0.0
    %5185 = vmatpush1.msra.mxu0 0.0
    %5186 = vmatprep.subr.mxu0 0.0
    %5187 = vmatpush1.msra.mxu0 0.0
    %5188 = vmatprep.subr.mxu0 0.0
    %5189 = vmatpush1.msra.mxu0 0.0
    %5190 = vmatprep.subr.mxu0 0.0
    %5191 = vmatpush1.msra.mxu0 %v5155
    %5192 = vmatprep.subr.mxu0 0.0
    %5193 = vmatpush2.msra.mxu0 0.0
    %5194 = vmatprep.subr.mxu0 0.0
    %5195 = vmatpush2.msra.mxu0 0.0
    %5196 = vmatprep.subr.mxu0 0.0
    %5197 = vmatpush2.msra.mxu0 0.0
    %5198 = vmatprep.subr.mxu0 0.0
    %5199 = vmatpush2.msra.mxu0 0.0
    %5200 = vmatprep.subr.mxu0 0.0
    %5201 = vmatpush2.msra.mxu0 0.0
    %5202 = vmatprep.subr.mxu0 0.0
    %5203 = vmatpush2.msra.mxu0 0.0
    %5204 = vmatprep.subr.mxu0 0.0
    %5205 = vmatpush2.msra.mxu0 0.0
    %5206 = vmatprep.subr.mxu0 0.0
    %5207 = vmatpush2.msra.mxu0 0.0
    %5208 = vmatprep.subr.mxu0 0.0
    %5209 = vmatpush2.msra.mxu0 0.0
    %5210 = vmatprep.subr.mxu0 0.0
    %5211 = vmatpush2.msra.mxu0 0.0
    %5212 = vmatprep.subr.mxu0 0.0
    %5213 = vmatpush2.msra.mxu0 0.0
    %5214 = vmatprep.subr.mxu0 0.0
    %5215 = vmatpush2.msra.mxu0 0.0
    %5216 = vmatprep.subr.mxu0 0.0
    %5217 = vmatpush2.msra.mxu0 0.0
    %5218 = vmatprep.subr.mxu0 0.0
    %5219 = vmatpush2.msra.mxu0 0.0
    %5220 = vmatprep.subr.mxu0 0.0
    %5221 = vmatpush2.msra.mxu0 0.0
    %5222 = vmatprep.subr.mxu0 0.0
    %5223 = vmatpush2.msra.mxu0 0.0
    %5224 = vmatprep.mubr.f32.mxu0 0.0
    %5225 = vmatmul.mubr.f32.gmra.mxu0 %v5158
    %v5226 = vpop.f32.mrf.mxu0
    %v5227 = vadd.f32 0.0, %v5226
    %v5228 = vpop.f32.mrf.mxu0
    %5229 = vdwg.mxu0
    %5230 = vrot.lane.b32.xlu0 %v4641, 88
    %v5231 = vpop.permute.xlu0 %5230
    %v5234 = vsel %vm390, %v5153, 0
    %5236 = vmatprep.subr.mxu0 0.0
    %5237 = vmatpush1.msra.mxu0 0.0
    %5238 = vmatprep.subr.mxu0 0.0
    %5239 = vmatpush1.msra.mxu0 0.0
    %5240 = vmatprep.subr.mxu0 0.0
    %5241 = vmatpush1.msra.mxu0 0.0
    %5242 = vmatprep.subr.mxu0 0.0
    %5243 = vmatpush1.msra.mxu0 0.0
    %5244 = vmatprep.subr.mxu0 0.0
    %5245 = vmatpush1.msra.mxu0 0.0
    %5246 = vmatprep.subr.mxu0 0.0
    %5247 = vmatpush1.msra.mxu0 0.0
    %5248 = vmatprep.subr.mxu0 0.0
    %5249 = vmatpush1.msra.mxu0 0.0
    %5250 = vmatprep.subr.mxu0 0.0
    %5251 = vmatpush1.msra.mxu0 0.0
    %5252 = vmatprep.subr.mxu0 0.0
    %5253 = vmatpush1.msra.mxu0 0.0
    %5254 = vmatprep.subr.mxu0 0.0
    %5255 = vmatpush1.msra.mxu0 0.0
    %5256 = vmatprep.subr.mxu0 0.0
    %5257 = vmatpush1.msra.mxu0 0.0
    %5258 = vmatprep.subr.mxu0 0.0
    %5259 = vmatpush1.msra.mxu0 0.0
    %5260 = vmatprep.subr.mxu0 0.0
    %5261 = vmatpush1.msra.mxu0 0.0
    %5262 = vmatprep.subr.mxu0 0.0
    %5263 = vmatpush1.msra.mxu0 0.0
    %5264 = vmatprep.subr.mxu0 0.0
    %5265 = vmatpush1.msra.mxu0 0.0
    %5266 = vmatprep.subr.mxu0 0.0
    %5267 = vmatpush1.msra.mxu0 %v5231
    %5268 = vmatprep.subr.mxu0 0.0
    %5269 = vmatpush2.msra.mxu0 0.0
    %5270 = vmatprep.subr.mxu0 0.0
    %5271 = vmatpush2.msra.mxu0 0.0
    %5272 = vmatprep.subr.mxu0 0.0
    %5273 = vmatpush2.msra.mxu0 0.0
    %5274 = vmatprep.subr.mxu0 0.0
    %5275 = vmatpush2.msra.mxu0 0.0
    %5276 = vmatprep.subr.mxu0 0.0
    %5277 = vmatpush2.msra.mxu0 0.0
    %5278 = vmatprep.subr.mxu0 0.0
    %5279 = vmatpush2.msra.mxu0 0.0
    %5280 = vmatprep.subr.mxu0 0.0
    %5281 = vmatpush2.msra.mxu0 0.0
    %5282 = vmatprep.subr.mxu0 0.0
    %5283 = vmatpush2.msra.mxu0 0.0
    %5284 = vmatprep.subr.mxu0 0.0
    %5285 = vmatpush2.msra.mxu0 0.0
    %5286 = vmatprep.subr.mxu0 0.0
    %5287 = vmatpush2.msra.mxu0 0.0
    %5288 = vmatprep.subr.mxu0 0.0
    %5289 = vmatpush2.msra.mxu0 0.0
    %5290 = vmatprep.subr.mxu0 0.0
    %5291 = vmatpush2.msra.mxu0 0.0
    %5292 = vmatprep.subr.mxu0 0.0
    %5293 = vmatpush2.msra.mxu0 0.0
    %5294 = vmatprep.subr.mxu0 0.0
    %5295 = vmatpush2.msra.mxu0 0.0
    %5296 = vmatprep.subr.mxu0 0.0
    %5297 = vmatpush2.msra.mxu0 0.0
    %5298 = vmatprep.subr.mxu0 0.0
    %5299 = vmatpush2.msra.mxu0 0.0
    %5300 = vmatprep.mubr.f32.mxu0 0.0
    %5301 = vmatmul.mubr.f32.gmra.mxu0 %v5234
    %v5302 = vpop.f32.mrf.mxu0
    %v5303 = vadd.f32 0.0, %v5302
    %v5304 = vpop.f32.mrf.mxu0
    %5305 = vdwg.mxu0
    %s5306 = scalar_lea.vmem [#allocation13], 72
    %v5307 = vld [vmem:[%s5306] sm:$0xff]
    %v5309 = vsel %vm390, %v5227, 0
    %v5312 = vsel %vm390, %v5303, 0
    %5314 = vmatprep.subr.mxu0 0.0
    %5315 = vmatpush1.msra.mxu0 0.0
    %5316 = vmatprep.subr.mxu0 0.0
    %5317 = vmatpush1.msra.mxu0 0.0
    %5318 = vmatprep.subr.mxu0 0.0
    %5319 = vmatpush1.msra.mxu0 0.0
    %5320 = vmatprep.subr.mxu0 0.0
    %5321 = vmatpush1.msra.mxu0 0.0
    %5322 = vmatprep.subr.mxu0 0.0
    %5323 = vmatpush1.msra.mxu0 0.0
    %5324 = vmatprep.subr.mxu0 0.0
    %5325 = vmatpush1.msra.mxu0 0.0
    %5326 = vmatprep.subr.mxu0 0.0
    %5327 = vmatpush1.msra.mxu0 0.0
    %5328 = vmatprep.subr.mxu0 0.0
    %5329 = vmatpush1.msra.mxu0 0.0
    %5330 = vmatprep.subr.mxu0 0.0
    %5331 = vmatpush1.msra.mxu0 0.0
    %5332 = vmatprep.subr.mxu0 0.0
    %5333 = vmatpush1.msra.mxu0 0.0
    %5334 = vmatprep.subr.mxu0 0.0
    %5335 = vmatpush1.msra.mxu0 0.0
    %5336 = vmatprep.subr.mxu0 0.0
    %5337 = vmatpush1.msra.mxu0 0.0
    %5338 = vmatprep.subr.mxu0 0.0
    %5339 = vmatpush1.msra.mxu0 0.0
    %5340 = vmatprep.subr.mxu0 0.0
    %5341 = vmatpush1.msra.mxu0 0.0
    %5342 = vmatprep.subr.mxu0 0.0
    %5343 = vmatpush1.msra.mxu0 0.0
    %5344 = vmatprep.subr.mxu0 0.0
    %5345 = vmatpush1.msra.mxu0 %v5307
    %5346 = vmatprep.subr.mxu0 0.0
    %5347 = vmatpush2.msra.mxu0 0.0
    %5348 = vmatprep.subr.mxu0 0.0
    %5349 = vmatpush2.msra.mxu0 0.0
    %5350 = vmatprep.subr.mxu0 0.0
    %5351 = vmatpush2.msra.mxu0 0.0
    %5352 = vmatprep.subr.mxu0 0.0
    %5353 = vmatpush2.msra.mxu0 0.0
    %5354 = vmatprep.subr.mxu0 0.0
    %5355 = vmatpush2.msra.mxu0 0.0
    %5356 = vmatprep.subr.mxu0 0.0
    %5357 = vmatpush2.msra.mxu0 0.0
    %5358 = vmatprep.subr.mxu0 0.0
    %5359 = vmatpush2.msra.mxu0 0.0
    %5360 = vmatprep.subr.mxu0 0.0
    %5361 = vmatpush2.msra.mxu0 0.0
    %5362 = vmatprep.subr.mxu0 0.0
    %5363 = vmatpush2.msra.mxu0 0.0
    %5364 = vmatprep.subr.mxu0 0.0
    %5365 = vmatpush2.msra.mxu0 0.0
    %5366 = vmatprep.subr.mxu0 0.0
    %5367 = vmatpush2.msra.mxu0 0.0
    %5368 = vmatprep.subr.mxu0 0.0
    %5369 = vmatpush2.msra.mxu0 0.0
    %5370 = vmatprep.subr.mxu0 0.0
    %5371 = vmatpush2.msra.mxu0 0.0
    %5372 = vmatprep.subr.mxu0 0.0
    %5373 = vmatpush2.msra.mxu0 0.0
    %5374 = vmatprep.subr.mxu0 0.0
    %5375 = vmatpush2.msra.mxu0 0.0
    %5376 = vmatprep.subr.mxu0 0.0
    %5377 = vmatpush2.msra.mxu0 0.0
    %5378 = vmatprep.mubr.f32.mxu0 0.0
    %5379 = vmatmul.mubr.f32.gmra.mxu0 %v5309
    %v5380 = vpop.f32.mrf.mxu0
    %v5381 = vadd.f32 0.0, %v5380
    %v5382 = vpop.f32.mrf.mxu0
    %5383 = vmatprep.mubr.f32.mxu0 0.0
    %5384 = vmatmul.mubr.f32.gmra.mxu0 %v5312
    %v5385 = vpop.f32.mrf.mxu0
    %v5386 = vadd.f32 0.0, %v5385
    %v5387 = vpop.f32.mrf.mxu0
    %5388 = vdwg.mxu0
    %v5390 = vsel %vm390, %v4893, 0
    %v5393 = vsel %vm390, %v4969, 0
    %5395 = vmatprep.subr.mxu0 0.0
    %5396 = vmatpush1.msra.mxu0 0.0
    %5397 = vmatprep.subr.mxu0 0.0
    %5398 = vmatpush1.msra.mxu0 0.0
    %5399 = vmatprep.subr.mxu0 0.0
    %5400 = vmatpush1.msra.mxu0 0.0
    %5401 = vmatprep.subr.mxu0 0.0
    %5402 = vmatpush1.msra.mxu0 0.0
    %5403 = vmatprep.subr.mxu0 0.0
    %5404 = vmatpush1.msra.mxu0 0.0
    %5405 = vmatprep.subr.mxu0 0.0
    %5406 = vmatpush1.msra.mxu0 0.0
    %5407 = vmatprep.subr.mxu0 0.0
    %5408 = vmatpush1.msra.mxu0 0.0
    %5409 = vmatprep.subr.mxu0 0.0
    %5410 = vmatpush1.msra.mxu0 0.0
    %5411 = vmatprep.subr.mxu0 0.0
    %5412 = vmatpush1.msra.mxu0 0.0
    %5413 = vmatprep.subr.mxu0 0.0
    %5414 = vmatpush1.msra.mxu0 0.0
    %5415 = vmatprep.subr.mxu0 0.0
    %5416 = vmatpush1.msra.mxu0 0.0
    %5417 = vmatprep.subr.mxu0 0.0
    %5418 = vmatpush1.msra.mxu0 0.0
    %5419 = vmatprep.subr.mxu0 0.0
    %5420 = vmatpush1.msra.mxu0 0.0
    %5421 = vmatprep.subr.mxu0 0.0
    %5422 = vmatpush1.msra.mxu0 0.0
    %5423 = vmatprep.subr.mxu0 0.0
    %5424 = vmatpush1.msra.mxu0 0.0
    %5425 = vmatprep.subr.mxu0 0.0
    %5426 = vmatpush1.msra.mxu0 %v4973
    %5427 = vmatprep.subr.mxu0 0.0
    %5428 = vmatpush2.msra.mxu0 0.0
    %5429 = vmatprep.subr.mxu0 0.0
    %5430 = vmatpush2.msra.mxu0 0.0
    %5431 = vmatprep.subr.mxu0 0.0
    %5432 = vmatpush2.msra.mxu0 0.0
    %5433 = vmatprep.subr.mxu0 0.0
    %5434 = vmatpush2.msra.mxu0 0.0
    %5435 = vmatprep.subr.mxu0 0.0
    %5436 = vmatpush2.msra.mxu0 0.0
    %5437 = vmatprep.subr.mxu0 0.0
    %5438 = vmatpush2.msra.mxu0 0.0
    %5439 = vmatprep.subr.mxu0 0.0
    %5440 = vmatpush2.msra.mxu0 0.0
    %5441 = vmatprep.subr.mxu0 0.0
    %5442 = vmatpush2.msra.mxu0 0.0
    %5443 = vmatprep.subr.mxu0 0.0
    %5444 = vmatpush2.msra.mxu0 0.0
    %5445 = vmatprep.subr.mxu0 0.0
    %5446 = vmatpush2.msra.mxu0 0.0
    %5447 = vmatprep.subr.mxu0 0.0
    %5448 = vmatpush2.msra.mxu0 0.0
    %5449 = vmatprep.subr.mxu0 0.0
    %5450 = vmatpush2.msra.mxu0 0.0
    %5451 = vmatprep.subr.mxu0 0.0
    %5452 = vmatpush2.msra.mxu0 0.0
    %5453 = vmatprep.subr.mxu0 0.0
    %5454 = vmatpush2.msra.mxu0 0.0
    %5455 = vmatprep.subr.mxu0 0.0
    %5456 = vmatpush2.msra.mxu0 0.0
    %5457 = vmatprep.subr.mxu0 0.0
    %5458 = vmatpush2.msra.mxu0 0.0
    %5459 = vmatprep.mubr.f32.mxu0 0.0
    %5460 = vmatmul.mubr.f32.gmra.mxu0 %v5390
    %v5461 = vpop.f32.mrf.mxu0
    %v5462 = vadd.f32 %v5381, %v5461
    %v5463 = vpop.f32.mrf.mxu0
    %5464 = vmatprep.mubr.f32.mxu0 0.0
    %5465 = vmatmul.mubr.f32.gmra.mxu0 %v5393
    %v5466 = vpop.f32.mrf.mxu0
    %v5467 = vadd.f32 %v5386, %v5466
    %v5468 = vpop.f32.mrf.mxu0
    %5469 = vdwg.mxu0
    %5470 = vrot.lane.b32.xlu0 %v4536, 112
    %v5471 = vpop.permute.xlu0 %5470
    %5472 = vrot.lane.b32.xlu0 %v4636, 112
    %v5473 = vpop.permute.xlu0 %5472
    %v5474 = vsel %vm390, %v5471, 0
    %v5476 = vsel %vm390, %v5473, 0
    %5478 = vmatprep.subr.mxu0 0.0
    %5479 = vmatpush1.xpose.msra.mxu0 0.0
    %5480 = vmatprep.subr.mxu0 0.0
    %5481 = vmatpush1.xpose.msra.mxu0 0.0
    %5482 = vmatprep.subr.mxu0 0.0
    %5483 = vmatpush1.xpose.msra.mxu0 0.0
    %5484 = vmatprep.subr.mxu0 0.0
    %5485 = vmatpush1.xpose.msra.mxu0 0.0
    %5486 = vmatprep.subr.mxu0 0.0
    %5487 = vmatpush1.xpose.msra.mxu0 0.0
    %5488 = vmatprep.subr.mxu0 0.0
    %5489 = vmatpush1.xpose.msra.mxu0 0.0
    %5490 = vmatprep.subr.mxu0 0.0
    %5491 = vmatpush1.xpose.msra.mxu0 0.0
    %5492 = vmatprep.subr.mxu0 0.0
    %5493 = vmatpush1.xpose.msra.mxu0 0.0
    %5494 = vmatprep.subr.mxu0 0.0
    %5495 = vmatpush1.xpose.msra.mxu0 0.0
    %5496 = vmatprep.subr.mxu0 0.0
    %5497 = vmatpush1.xpose.msra.mxu0 0.0
    %5498 = vmatprep.subr.mxu0 0.0
    %5499 = vmatpush1.xpose.msra.mxu0 0.0
    %5500 = vmatprep.subr.mxu0 0.0
    %5501 = vmatpush1.xpose.msra.mxu0 0.0
    %5502 = vmatprep.subr.mxu0 0.0
    %5503 = vmatpush1.xpose.msra.mxu0 0.0
    %5504 = vmatprep.subr.mxu0 0.0
    %5505 = vmatpush1.xpose.msra.mxu0 0.0
    %5506 = vmatprep.subr.mxu0 0.0
    %5507 = vmatpush1.xpose.msra.mxu0 0.0
    %5508 = vmatprep.subr.mxu0 0.0
    %5509 = vmatpush1.xpose.msra.mxu0 %v5476
    %5510 = vmatprep.subr.mxu0 0.0
    %5511 = vmatpush2.xpose.msra.mxu0 0.0
    %5512 = vmatprep.subr.mxu0 0.0
    %5513 = vmatpush2.xpose.msra.mxu0 0.0
    %5514 = vmatprep.subr.mxu0 0.0
    %5515 = vmatpush2.xpose.msra.mxu0 0.0
    %5516 = vmatprep.subr.mxu0 0.0
    %5517 = vmatpush2.xpose.msra.mxu0 0.0
    %5518 = vmatprep.subr.mxu0 0.0
    %5519 = vmatpush2.xpose.msra.mxu0 0.0
    %5520 = vmatprep.subr.mxu0 0.0
    %5521 = vmatpush2.xpose.msra.mxu0 0.0
    %5522 = vmatprep.subr.mxu0 0.0
    %5523 = vmatpush2.xpose.msra.mxu0 0.0
    %5524 = vmatprep.subr.mxu0 0.0
    %5525 = vmatpush2.xpose.msra.mxu0 0.0
    %5526 = vmatprep.subr.mxu0 0.0
    %5527 = vmatpush2.xpose.msra.mxu0 0.0
    %5528 = vmatprep.subr.mxu0 0.0
    %5529 = vmatpush2.xpose.msra.mxu0 0.0
    %5530 = vmatprep.subr.mxu0 0.0
    %5531 = vmatpush2.xpose.msra.mxu0 0.0
    %5532 = vmatprep.subr.mxu0 0.0
    %5533 = vmatpush2.xpose.msra.mxu0 0.0
    %5534 = vmatprep.subr.mxu0 0.0
    %5535 = vmatpush2.xpose.msra.mxu0 0.0
    %5536 = vmatprep.subr.mxu0 0.0
    %5537 = vmatpush2.xpose.msra.mxu0 0.0
    %5538 = vmatprep.subr.mxu0 0.0
    %5539 = vmatpush2.xpose.msra.mxu0 0.0
    %5540 = vmatprep.subr.mxu0 0.0
    %5541 = vmatpush2.xpose.msra.mxu0 0.0
    %5542 = vmatprep.mubr.f32.mxu0 0.0
    %5543 = vmatmul.mubr.f32.gmra.mxu0 %v5474
    %v5544 = vpop.f32.mrf.mxu0
    %v5545 = vadd.f32 0.0, %v5544
    %v5546 = vpop.f32.mrf.mxu0
    %5547 = vdwg.mxu0
    %5548 = vrot.lane.b32.xlu0 %v4541, 112
    %v5549 = vpop.permute.xlu0 %5548
    %5550 = vrot.lane.b32.xlu0 %v4641, 112
    %v5551 = vpop.permute.xlu0 %5550
    %v5552 = vsel %vm390, %v5549, 0
    %v5554 = vsel %vm390, %v5551, 0
    %5556 = vmatprep.subr.mxu0 0.0
    %5557 = vmatpush1.xpose.msra.mxu0 0.0
    %5558 = vmatprep.subr.mxu0 0.0
    %5559 = vmatpush1.xpose.msra.mxu0 0.0
    %5560 = vmatprep.subr.mxu0 0.0
    %5561 = vmatpush1.xpose.msra.mxu0 0.0
    %5562 = vmatprep.subr.mxu0 0.0
    %5563 = vmatpush1.xpose.msra.mxu0 0.0
    %5564 = vmatprep.subr.mxu0 0.0
    %5565 = vmatpush1.xpose.msra.mxu0 0.0
    %5566 = vmatprep.subr.mxu0 0.0
    %5567 = vmatpush1.xpose.msra.mxu0 0.0
    %5568 = vmatprep.subr.mxu0 0.0
    %5569 = vmatpush1.xpose.msra.mxu0 0.0
    %5570 = vmatprep.subr.mxu0 0.0
    %5571 = vmatpush1.xpose.msra.mxu0 0.0
    %5572 = vmatprep.subr.mxu0 0.0
    %5573 = vmatpush1.xpose.msra.mxu0 0.0
    %5574 = vmatprep.subr.mxu0 0.0
    %5575 = vmatpush1.xpose.msra.mxu0 0.0
    %5576 = vmatprep.subr.mxu0 0.0
    %5577 = vmatpush1.xpose.msra.mxu0 0.0
    %5578 = vmatprep.subr.mxu0 0.0
    %5579 = vmatpush1.xpose.msra.mxu0 0.0
    %5580 = vmatprep.subr.mxu0 0.0
    %5581 = vmatpush1.xpose.msra.mxu0 0.0
    %5582 = vmatprep.subr.mxu0 0.0
    %5583 = vmatpush1.xpose.msra.mxu0 0.0
    %5584 = vmatprep.subr.mxu0 0.0
    %5585 = vmatpush1.xpose.msra.mxu0 0.0
    %5586 = vmatprep.subr.mxu0 0.0
    %5587 = vmatpush1.xpose.msra.mxu0 %v5554
    %5588 = vmatprep.subr.mxu0 0.0
    %5589 = vmatpush2.xpose.msra.mxu0 0.0
    %5590 = vmatprep.subr.mxu0 0.0
    %5591 = vmatpush2.xpose.msra.mxu0 0.0
    %5592 = vmatprep.subr.mxu0 0.0
    %5593 = vmatpush2.xpose.msra.mxu0 0.0
    %5594 = vmatprep.subr.mxu0 0.0
    %5595 = vmatpush2.xpose.msra.mxu0 0.0
    %5596 = vmatprep.subr.mxu0 0.0
    %5597 = vmatpush2.xpose.msra.mxu0 0.0
    %5598 = vmatprep.subr.mxu0 0.0
    %5599 = vmatpush2.xpose.msra.mxu0 0.0
    %5600 = vmatprep.subr.mxu0 0.0
    %5601 = vmatpush2.xpose.msra.mxu0 0.0
    %5602 = vmatprep.subr.mxu0 0.0
    %5603 = vmatpush2.xpose.msra.mxu0 0.0
    %5604 = vmatprep.subr.mxu0 0.0
    %5605 = vmatpush2.xpose.msra.mxu0 0.0
    %5606 = vmatprep.subr.mxu0 0.0
    %5607 = vmatpush2.xpose.msra.mxu0 0.0
    %5608 = vmatprep.subr.mxu0 0.0
    %5609 = vmatpush2.xpose.msra.mxu0 0.0
    %5610 = vmatprep.subr.mxu0 0.0
    %5611 = vmatpush2.xpose.msra.mxu0 0.0
    %5612 = vmatprep.subr.mxu0 0.0
    %5613 = vmatpush2.xpose.msra.mxu0 0.0
    %5614 = vmatprep.subr.mxu0 0.0
    %5615 = vmatpush2.xpose.msra.mxu0 0.0
    %5616 = vmatprep.subr.mxu0 0.0
    %5617 = vmatpush2.xpose.msra.mxu0 0.0
    %5618 = vmatprep.subr.mxu0 0.0
    %5619 = vmatpush2.xpose.msra.mxu0 0.0
    %5620 = vmatprep.mubr.f32.mxu0 0.0
    %5621 = vmatmul.mubr.f32.gmra.mxu0 %v5552
    %v5622 = vpop.f32.mrf.mxu0
    %v5623 = vadd.f32 0.0, %v5622
    %v5624 = vpop.f32.mrf.mxu0
    %5625 = vdwg.mxu0
    %v5626 = vmul.f32 %v5545, 0.35355338
    %v5627 = vmul.f32 %v5623, 0.35355338
    %v5628 = vsel %vm390, %v5626, -inf
    %5629 = vmax.xlane.f32.xlu0 %v5628
    %v5630 = vpop.xlane.xlu0 %5629
    %v5631 = vsel %vm390, %v5627, -inf
    %5632 = vmax.xlane.f32.xlu0 %v5631
    %v5633 = vpop.xlane.xlu0 %5632
    %v5634 = vsub.f32 %v5626, %v5630
    %v5635 = vsub.f32 %v5627, %v5633
    %v5636 = vmul.f32 %v5634, 1.442695
    %v5637 = vpow.pop %v5636
    %v5638 = vmul.f32 %v5635, 1.442695
    %v5639 = vpow.pop %v5638
    %v5640 = vsel %vm390, %v5637, 0.0
    %5641 = vadd.xlane.f32.xlu0 %v5640
    %v5642 = vpop.xlane.xlu0 %5641
    %v5643 = vsel %vm390, %v5639, 0.0
    %5644 = vadd.xlane.f32.xlu0 %v5643
    %v5645 = vpop.xlane.xlu0 %5644
    %v5646 = vrcp.pop %v5642
    %v5647 = vrcp.pop %v5645
    %v5648 = vmul.f32 %v5637, %v5646
    %v5649 = vmul.f32 %v5639, %v5647
    %5650 = vrot.lane.b32.xlu0 %v4636, 80
    %v5651 = vpop.permute.xlu0 %5650
    %v5654 = vsel %vm390, %v5648, 0
    %5656 = vmatprep.subr.mxu0 0.0
    %5657 = vmatpush1.msra.mxu0 0.0
    %5658 = vmatprep.subr.mxu0 0.0
    %5659 = vmatpush1.msra.mxu0 0.0
    %5660 = vmatprep.subr.mxu0 0.0
    %5661 = vmatpush1.msra.mxu0 0.0
    %5662 = vmatprep.subr.mxu0 0.0
    %5663 = vmatpush1.msra.mxu0 0.0
    %5664 = vmatprep.subr.mxu0 0.0
    %5665 = vmatpush1.msra.mxu0 0.0
    %5666 = vmatprep.subr.mxu0 0.0
    %5667 = vmatpush1.msra.mxu0 0.0
    %5668 = vmatprep.subr.mxu0 0.0
    %5669 = vmatpush1.msra.mxu0 0.0
    %5670 = vmatprep.subr.mxu0 0.0
    %5671 = vmatpush1.msra.mxu0 0.0
    %5672 = vmatprep.subr.mxu0 0.0
    %5673 = vmatpush1.msra.mxu0 0.0
    %5674 = vmatprep.subr.mxu0 0.0
    %5675 = vmatpush1.msra.mxu0 0.0
    %5676 = vmatprep.subr.mxu0 0.0
    %5677 = vmatpush1.msra.mxu0 0.0
    %5678 = vmatprep.subr.mxu0 0.0
    %5679 = vmatpush1.msra.mxu0 0.0
    %5680 = vmatprep.subr.mxu0 0.0
    %5681 = vmatpush1.msra.mxu0 0.0
    %5682 = vmatprep.subr.mxu0 0.0
    %5683 = vmatpush1.msra.mxu0 0.0
    %5684 = vmatprep.subr.mxu0 0.0
    %5685 = vmatpush1.msra.mxu0 0.0
    %5686 = vmatprep.subr.mxu0 0.0
    %5687 = vmatpush1.msra.mxu0 %v5651
    %5688 = vmatprep.subr.mxu0 0.0
    %5689 = vmatpush2.msra.mxu0 0.0
    %5690 = vmatprep.subr.mxu0 0.0
    %5691 = vmatpush2.msra.mxu0 0.0
    %5692 = vmatprep.subr.mxu0 0.0
    %5693 = vmatpush2.msra.mxu0 0.0
    %5694 = vmatprep.subr.mxu0 0.0
    %5695 = vmatpush2.msra.mxu0 0.0
    %5696 = vmatprep.subr.mxu0 0.0
    %5697 = vmatpush2.msra.mxu0 0.0
    %5698 = vmatprep.subr.mxu0 0.0
    %5699 = vmatpush2.msra.mxu0 0.0
    %5700 = vmatprep.subr.mxu0 0.0
    %5701 = vmatpush2.msra.mxu0 0.0
    %5702 = vmatprep.subr.mxu0 0.0
    %5703 = vmatpush2.msra.mxu0 0.0
    %5704 = vmatprep.subr.mxu0 0.0
    %5705 = vmatpush2.msra.mxu0 0.0
    %5706 = vmatprep.subr.mxu0 0.0
    %5707 = vmatpush2.msra.mxu0 0.0
    %5708 = vmatprep.subr.mxu0 0.0
    %5709 = vmatpush2.msra.mxu0 0.0
    %5710 = vmatprep.subr.mxu0 0.0
    %5711 = vmatpush2.msra.mxu0 0.0
    %5712 = vmatprep.subr.mxu0 0.0
    %5713 = vmatpush2.msra.mxu0 0.0
    %5714 = vmatprep.subr.mxu0 0.0
    %5715 = vmatpush2.msra.mxu0 0.0
    %5716 = vmatprep.subr.mxu0 0.0
    %5717 = vmatpush2.msra.mxu0 0.0
    %5718 = vmatprep.subr.mxu0 0.0
    %5719 = vmatpush2.msra.mxu0 0.0
    %5720 = vmatprep.mubr.f32.mxu0 0.0
    %5721 = vmatmul.mubr.f32.gmra.mxu0 %v5654
    %v5722 = vpop.f32.mrf.mxu0
    %v5723 = vadd.f32 0.0, %v5722
    %v5724 = vpop.f32.mrf.mxu0
    %5725 = vdwg.mxu0
    %5726 = vrot.lane.b32.xlu0 %v4641, 80
    %v5727 = vpop.permute.xlu0 %5726
    %v5730 = vsel %vm390, %v5649, 0
    %5732 = vmatprep.subr.mxu0 0.0
    %5733 = vmatpush1.msra.mxu0 0.0
    %5734 = vmatprep.subr.mxu0 0.0
    %5735 = vmatpush1.msra.mxu0 0.0
    %5736 = vmatprep.subr.mxu0 0.0
    %5737 = vmatpush1.msra.mxu0 0.0
    %5738 = vmatprep.subr.mxu0 0.0
    %5739 = vmatpush1.msra.mxu0 0.0
    %5740 = vmatprep.subr.mxu0 0.0
    %5741 = vmatpush1.msra.mxu0 0.0
    %5742 = vmatprep.subr.mxu0 0.0
    %5743 = vmatpush1.msra.mxu0 0.0
    %5744 = vmatprep.subr.mxu0 0.0
    %5745 = vmatpush1.msra.mxu0 0.0
    %5746 = vmatprep.subr.mxu0 0.0
    %5747 = vmatpush1.msra.mxu0 0.0
    %5748 = vmatprep.subr.mxu0 0.0
    %5749 = vmatpush1.msra.mxu0 0.0
    %5750 = vmatprep.subr.mxu0 0.0
    %5751 = vmatpush1.msra.mxu0 0.0
    %5752 = vmatprep.subr.mxu0 0.0
    %5753 = vmatpush1.msra.mxu0 0.0
    %5754 = vmatprep.subr.mxu0 0.0
    %5755 = vmatpush1.msra.mxu0 0.0
    %5756 = vmatprep.subr.mxu0 0.0
    %5757 = vmatpush1.msra.mxu0 0.0
    %5758 = vmatprep.subr.mxu0 0.0
    %5759 = vmatpush1.msra.mxu0 0.0
    %5760 = vmatprep.subr.mxu0 0.0
    %5761 = vmatpush1.msra.mxu0 0.0
    %5762 = vmatprep.subr.mxu0 0.0
    %5763 = vmatpush1.msra.mxu0 %v5727
    %5764 = vmatprep.subr.mxu0 0.0
    %5765 = vmatpush2.msra.mxu0 0.0
    %5766 = vmatprep.subr.mxu0 0.0
    %5767 = vmatpush2.msra.mxu0 0.0
    %5768 = vmatprep.subr.mxu0 0.0
    %5769 = vmatpush2.msra.mxu0 0.0
    %5770 = vmatprep.subr.mxu0 0.0
    %5771 = vmatpush2.msra.mxu0 0.0
    %5772 = vmatprep.subr.mxu0 0.0
    %5773 = vmatpush2.msra.mxu0 0.0
    %5774 = vmatprep.subr.mxu0 0.0
    %5775 = vmatpush2.msra.mxu0 0.0
    %5776 = vmatprep.subr.mxu0 0.0
    %5777 = vmatpush2.msra.mxu0 0.0
    %5778 = vmatprep.subr.mxu0 0.0
    %5779 = vmatpush2.msra.mxu0 0.0
    %5780 = vmatprep.subr.mxu0 0.0
    %5781 = vmatpush2.msra.mxu0 0.0
    %5782 = vmatprep.subr.mxu0 0.0
    %5783 = vmatpush2.msra.mxu0 0.0
    %5784 = vmatprep.subr.mxu0 0.0
    %5785 = vmatpush2.msra.mxu0 0.0
    %5786 = vmatprep.subr.mxu0 0.0
    %5787 = vmatpush2.msra.mxu0 0.0
    %5788 = vmatprep.subr.mxu0 0.0
    %5789 = vmatpush2.msra.mxu0 0.0
    %5790 = vmatprep.subr.mxu0 0.0
    %5791 = vmatpush2.msra.mxu0 0.0
    %5792 = vmatprep.subr.mxu0 0.0
    %5793 = vmatpush2.msra.mxu0 0.0
    %5794 = vmatprep.subr.mxu0 0.0
    %5795 = vmatpush2.msra.mxu0 0.0
    %5796 = vmatprep.mubr.f32.mxu0 0.0
    %5797 = vmatmul.mubr.f32.gmra.mxu0 %v5730
    %v5798 = vpop.f32.mrf.mxu0
    %v5799 = vadd.f32 0.0, %v5798
    %v5800 = vpop.f32.mrf.mxu0
    %5801 = vdwg.mxu0
    %s5802 = scalar_lea.vmem [#allocation13], 80
    %v5803 = vld [vmem:[%s5802] sm:$0xff]
    %v5805 = vsel %vm390, %v5723, 0
    %v5808 = vsel %vm390, %v5799, 0
    %5810 = vmatprep.subr.mxu0 0.0
    %5811 = vmatpush1.msra.mxu0 0.0
    %5812 = vmatprep.subr.mxu0 0.0
    %5813 = vmatpush1.msra.mxu0 0.0
    %5814 = vmatprep.subr.mxu0 0.0
    %5815 = vmatpush1.msra.mxu0 0.0
    %5816 = vmatprep.subr.mxu0 0.0
    %5817 = vmatpush1.msra.mxu0 0.0
    %5818 = vmatprep.subr.mxu0 0.0
    %5819 = vmatpush1.msra.mxu0 0.0
    %5820 = vmatprep.subr.mxu0 0.0
    %5821 = vmatpush1.msra.mxu0 0.0
    %5822 = vmatprep.subr.mxu0 0.0
    %5823 = vmatpush1.msra.mxu0 0.0
    %5824 = vmatprep.subr.mxu0 0.0
    %5825 = vmatpush1.msra.mxu0 0.0
    %5826 = vmatprep.subr.mxu0 0.0
    %5827 = vmatpush1.msra.mxu0 0.0
    %5828 = vmatprep.subr.mxu0 0.0
    %5829 = vmatpush1.msra.mxu0 0.0
    %5830 = vmatprep.subr.mxu0 0.0
    %5831 = vmatpush1.msra.mxu0 0.0
    %5832 = vmatprep.subr.mxu0 0.0
    %5833 = vmatpush1.msra.mxu0 0.0
    %5834 = vmatprep.subr.mxu0 0.0
    %5835 = vmatpush1.msra.mxu0 0.0
    %5836 = vmatprep.subr.mxu0 0.0
    %5837 = vmatpush1.msra.mxu0 0.0
    %5838 = vmatprep.subr.mxu0 0.0
    %5839 = vmatpush1.msra.mxu0 0.0
    %5840 = vmatprep.subr.mxu0 0.0
    %5841 = vmatpush1.msra.mxu0 %v5803
    %5842 = vmatprep.subr.mxu0 0.0
    %5843 = vmatpush2.msra.mxu0 0.0
    %5844 = vmatprep.subr.mxu0 0.0
    %5845 = vmatpush2.msra.mxu0 0.0
    %5846 = vmatprep.subr.mxu0 0.0
    %5847 = vmatpush2.msra.mxu0 0.0
    %5848 = vmatprep.subr.mxu0 0.0
    %5849 = vmatpush2.msra.mxu0 0.0
    %5850 = vmatprep.subr.mxu0 0.0
    %5851 = vmatpush2.msra.mxu0 0.0
    %5852 = vmatprep.subr.mxu0 0.0
    %5853 = vmatpush2.msra.mxu0 0.0
    %5854 = vmatprep.subr.mxu0 0.0
    %5855 = vmatpush2.msra.mxu0 0.0
    %5856 = vmatprep.subr.mxu0 0.0
    %5857 = vmatpush2.msra.mxu0 0.0
    %5858 = vmatprep.subr.mxu0 0.0
    %5859 = vmatpush2.msra.mxu0 0.0
    %5860 = vmatprep.subr.mxu0 0.0
    %5861 = vmatpush2.msra.mxu0 0.0
    %5862 = vmatprep.subr.mxu0 0.0
    %5863 = vmatpush2.msra.mxu0 0.0
    %5864 = vmatprep.subr.mxu0 0.0
    %5865 = vmatpush2.msra.mxu0 0.0
    %5866 = vmatprep.subr.mxu0 0.0
    %5867 = vmatpush2.msra.mxu0 0.0
    %5868 = vmatprep.subr.mxu0 0.0
    %5869 = vmatpush2.msra.mxu0 0.0
    %5870 = vmatprep.subr.mxu0 0.0
    %5871 = vmatpush2.msra.mxu0 0.0
    %5872 = vmatprep.subr.mxu0 0.0
    %5873 = vmatpush2.msra.mxu0 0.0
    %5874 = vmatprep.mubr.f32.mxu0 0.0
    %5875 = vmatmul.mubr.f32.gmra.mxu0 %v5805
    %v5876 = vpop.f32.mrf.mxu0
    %v5877 = vadd.f32 0.0, %v5876
    %v5878 = vpop.f32.mrf.mxu0
    %5879 = vmatprep.mubr.f32.mxu0 0.0
    %5880 = vmatmul.mubr.f32.gmra.mxu0 %v5808
    %v5881 = vpop.f32.mrf.mxu0
    %v5882 = vadd.f32 0.0, %v5881
    %v5883 = vpop.f32.mrf.mxu0
    %5884 = vdwg.mxu0
    %v5885 = vadd.f32 %v5462, %v5877
    %v5886 = vadd.f32 %v5467, %v5882
    %5887 = vrot.lane.b32.xlu0 %v4536, 104
    %v5888 = vpop.permute.xlu0 %5887
    %5889 = vrot.lane.b32.xlu0 %v4636, 104
    %v5890 = vpop.permute.xlu0 %5889
    %v5891 = vsel %vm390, %v5888, 0
    %v5893 = vsel %vm390, %v5890, 0
    %5895 = vmatprep.subr.mxu0 0.0
    %5896 = vmatpush1.xpose.msra.mxu0 0.0
    %5897 = vmatprep.subr.mxu0 0.0
    %5898 = vmatpush1.xpose.msra.mxu0 0.0
    %5899 = vmatprep.subr.mxu0 0.0
    %5900 = vmatpush1.xpose.msra.mxu0 0.0
    %5901 = vmatprep.subr.mxu0 0.0
    %5902 = vmatpush1.xpose.msra.mxu0 0.0
    %5903 = vmatprep.subr.mxu0 0.0
    %5904 = vmatpush1.xpose.msra.mxu0 0.0
    %5905 = vmatprep.subr.mxu0 0.0
    %5906 = vmatpush1.xpose.msra.mxu0 0.0
    %5907 = vmatprep.subr.mxu0 0.0
    %5908 = vmatpush1.xpose.msra.mxu0 0.0
    %5909 = vmatprep.subr.mxu0 0.0
    %5910 = vmatpush1.xpose.msra.mxu0 0.0
    %5911 = vmatprep.subr.mxu0 0.0
    %5912 = vmatpush1.xpose.msra.mxu0 0.0
    %5913 = vmatprep.subr.mxu0 0.0
    %5914 = vmatpush1.xpose.msra.mxu0 0.0
    %5915 = vmatprep.subr.mxu0 0.0
    %5916 = vmatpush1.xpose.msra.mxu0 0.0
    %5917 = vmatprep.subr.mxu0 0.0
    %5918 = vmatpush1.xpose.msra.mxu0 0.0
    %5919 = vmatprep.subr.mxu0 0.0
    %5920 = vmatpush1.xpose.msra.mxu0 0.0
    %5921 = vmatprep.subr.mxu0 0.0
    %5922 = vmatpush1.xpose.msra.mxu0 0.0
    %5923 = vmatprep.subr.mxu0 0.0
    %5924 = vmatpush1.xpose.msra.mxu0 0.0
    %5925 = vmatprep.subr.mxu0 0.0
    %5926 = vmatpush1.xpose.msra.mxu0 %v5893
    %5927 = vmatprep.subr.mxu0 0.0
    %5928 = vmatpush2.xpose.msra.mxu0 0.0
    %5929 = vmatprep.subr.mxu0 0.0
    %5930 = vmatpush2.xpose.msra.mxu0 0.0
    %5931 = vmatprep.subr.mxu0 0.0
    %5932 = vmatpush2.xpose.msra.mxu0 0.0
    %5933 = vmatprep.subr.mxu0 0.0
    %5934 = vmatpush2.xpose.msra.mxu0 0.0
    %5935 = vmatprep.subr.mxu0 0.0
    %5936 = vmatpush2.xpose.msra.mxu0 0.0
    %5937 = vmatprep.subr.mxu0 0.0
    %5938 = vmatpush2.xpose.msra.mxu0 0.0
    %5939 = vmatprep.subr.mxu0 0.0
    %5940 = vmatpush2.xpose.msra.mxu0 0.0
    %5941 = vmatprep.subr.mxu0 0.0
    %5942 = vmatpush2.xpose.msra.mxu0 0.0
    %5943 = vmatprep.subr.mxu0 0.0
    %5944 = vmatpush2.xpose.msra.mxu0 0.0
    %5945 = vmatprep.subr.mxu0 0.0
    %5946 = vmatpush2.xpose.msra.mxu0 0.0
    %5947 = vmatprep.subr.mxu0 0.0
    %5948 = vmatpush2.xpose.msra.mxu0 0.0
    %5949 = vmatprep.subr.mxu0 0.0
    %5950 = vmatpush2.xpose.msra.mxu0 0.0
    %5951 = vmatprep.subr.mxu0 0.0
    %5952 = vmatpush2.xpose.msra.mxu0 0.0
    %5953 = vmatprep.subr.mxu0 0.0
    %5954 = vmatpush2.xpose.msra.mxu0 0.0
    %5955 = vmatprep.subr.mxu0 0.0
    %5956 = vmatpush2.xpose.msra.mxu0 0.0
    %5957 = vmatprep.subr.mxu0 0.0
    %5958 = vmatpush2.xpose.msra.mxu0 0.0
    %5959 = vmatprep.mubr.f32.mxu0 0.0
    %5960 = vmatmul.mubr.f32.gmra.mxu0 %v5891
    %v5961 = vpop.f32.mrf.mxu0
    %v5962 = vadd.f32 0.0, %v5961
    %v5963 = vpop.f32.mrf.mxu0
    %5964 = vdwg.mxu0
    %5965 = vrot.lane.b32.xlu0 %v4541, 104
    %v5966 = vpop.permute.xlu0 %5965
    %5967 = vrot.lane.b32.xlu0 %v4641, 104
    %v5968 = vpop.permute.xlu0 %5967
    %v5969 = vsel %vm390, %v5966, 0
    %v5971 = vsel %vm390, %v5968, 0
    %5973 = vmatprep.subr.mxu0 0.0
    %5974 = vmatpush1.xpose.msra.mxu0 0.0
    %5975 = vmatprep.subr.mxu0 0.0
    %5976 = vmatpush1.xpose.msra.mxu0 0.0
    %5977 = vmatprep.subr.mxu0 0.0
    %5978 = vmatpush1.xpose.msra.mxu0 0.0
    %5979 = vmatprep.subr.mxu0 0.0
    %5980 = vmatpush1.xpose.msra.mxu0 0.0
    %5981 = vmatprep.subr.mxu0 0.0
    %5982 = vmatpush1.xpose.msra.mxu0 0.0
    %5983 = vmatprep.subr.mxu0 0.0
    %5984 = vmatpush1.xpose.msra.mxu0 0.0
    %5985 = vmatprep.subr.mxu0 0.0
    %5986 = vmatpush1.xpose.msra.mxu0 0.0
    %5987 = vmatprep.subr.mxu0 0.0
    %5988 = vmatpush1.xpose.msra.mxu0 0.0
    %5989 = vmatprep.subr.mxu0 0.0
    %5990 = vmatpush1.xpose.msra.mxu0 0.0
    %5991 = vmatprep.subr.mxu0 0.0
    %5992 = vmatpush1.xpose.msra.mxu0 0.0
    %5993 = vmatprep.subr.mxu0 0.0
    %5994 = vmatpush1.xpose.msra.mxu0 0.0
    %5995 = vmatprep.subr.mxu0 0.0
    %5996 = vmatpush1.xpose.msra.mxu0 0.0
    %5997 = vmatprep.subr.mxu0 0.0
    %5998 = vmatpush1.xpose.msra.mxu0 0.0
    %5999 = vmatprep.subr.mxu0 0.0
    %6000 = vmatpush1.xpose.msra.mxu0 0.0
    %6001 = vmatprep.subr.mxu0 0.0
    %6002 = vmatpush1.xpose.msra.mxu0 0.0
    %6003 = vmatprep.subr.mxu0 0.0
    %6004 = vmatpush1.xpose.msra.mxu0 %v5971
    %6005 = vmatprep.subr.mxu0 0.0
    %6006 = vmatpush2.xpose.msra.mxu0 0.0
    %6007 = vmatprep.subr.mxu0 0.0
    %6008 = vmatpush2.xpose.msra.mxu0 0.0
    %6009 = vmatprep.subr.mxu0 0.0
    %6010 = vmatpush2.xpose.msra.mxu0 0.0
    %6011 = vmatprep.subr.mxu0 0.0
    %6012 = vmatpush2.xpose.msra.mxu0 0.0
    %6013 = vmatprep.subr.mxu0 0.0
    %6014 = vmatpush2.xpose.msra.mxu0 0.0
    %6015 = vmatprep.subr.mxu0 0.0
    %6016 = vmatpush2.xpose.msra.mxu0 0.0
    %6017 = vmatprep.subr.mxu0 0.0
    %6018 = vmatpush2.xpose.msra.mxu0 0.0
    %6019 = vmatprep.subr.mxu0 0.0
    %6020 = vmatpush2.xpose.msra.mxu0 0.0
    %6021 = vmatprep.subr.mxu0 0.0
    %6022 = vmatpush2.xpose.msra.mxu0 0.0
    %6023 = vmatprep.subr.mxu0 0.0
    %6024 = vmatpush2.xpose.msra.mxu0 0.0
    %6025 = vmatprep.subr.mxu0 0.0
    %6026 = vmatpush2.xpose.msra.mxu0 0.0
    %6027 = vmatprep.subr.mxu0 0.0
    %6028 = vmatpush2.xpose.msra.mxu0 0.0
    %6029 = vmatprep.subr.mxu0 0.0
    %6030 = vmatpush2.xpose.msra.mxu0 0.0
    %6031 = vmatprep.subr.mxu0 0.0
    %6032 = vmatpush2.xpose.msra.mxu0 0.0
    %6033 = vmatprep.subr.mxu0 0.0
    %6034 = vmatpush2.xpose.msra.mxu0 0.0
    %6035 = vmatprep.subr.mxu0 0.0
    %6036 = vmatpush2.xpose.msra.mxu0 0.0
    %6037 = vmatprep.mubr.f32.mxu0 0.0
    %6038 = vmatmul.mubr.f32.gmra.mxu0 %v5969
    %v6039 = vpop.f32.mrf.mxu0
    %v6040 = vadd.f32 0.0, %v6039
    %v6041 = vpop.f32.mrf.mxu0
    %6042 = vdwg.mxu0
    %v6043 = vmul.f32 %v5962, 0.35355338
    %v6044 = vmul.f32 %v6040, 0.35355338
    %v6045 = vsel %vm390, %v6043, -inf
    %6046 = vmax.xlane.f32.xlu0 %v6045
    %v6047 = vpop.xlane.xlu0 %6046
    %v6048 = vsel %vm390, %v6044, -inf
    %6049 = vmax.xlane.f32.xlu0 %v6048
    %v6050 = vpop.xlane.xlu0 %6049
    %v6051 = vsub.f32 %v6043, %v6047
    %v6052 = vsub.f32 %v6044, %v6050
    %v6053 = vmul.f32 %v6051, 1.442695
    %v6054 = vpow.pop %v6053
    %v6055 = vmul.f32 %v6052, 1.442695
    %v6056 = vpow.pop %v6055
    %v6057 = vsel %vm390, %v6054, 0.0
    %6058 = vadd.xlane.f32.xlu0 %v6057
    %v6059 = vpop.xlane.xlu0 %6058
    %v6060 = vsel %vm390, %v6056, 0.0
    %6061 = vadd.xlane.f32.xlu0 %v6060
    %v6062 = vpop.xlane.xlu0 %6061
    %v6063 = vrcp.pop %v6059
    %v6064 = vrcp.pop %v6062
    %v6065 = vmul.f32 %v6054, %v6063
    %v6066 = vmul.f32 %v6056, %v6064
    %6067 = vrot.lane.b32.xlu0 %v4636, 72
    %v6068 = vpop.permute.xlu0 %6067
    %v6071 = vsel %vm390, %v6065, 0
    %6073 = vmatprep.subr.mxu0 0.0
    %6074 = vmatpush1.msra.mxu0 0.0
    %6075 = vmatprep.subr.mxu0 0.0
    %6076 = vmatpush1.msra.mxu0 0.0
    %6077 = vmatprep.subr.mxu0 0.0
    %6078 = vmatpush1.msra.mxu0 0.0
    %6079 = vmatprep.subr.mxu0 0.0
    %6080 = vmatpush1.msra.mxu0 0.0
    %6081 = vmatprep.subr.mxu0 0.0
    %6082 = vmatpush1.msra.mxu0 0.0
    %6083 = vmatprep.subr.mxu0 0.0
    %6084 = vmatpush1.msra.mxu0 0.0
    %6085 = vmatprep.subr.mxu0 0.0
    %6086 = vmatpush1.msra.mxu0 0.0
    %6087 = vmatprep.subr.mxu0 0.0
    %6088 = vmatpush1.msra.mxu0 0.0
    %6089 = vmatprep.subr.mxu0 0.0
    %6090 = vmatpush1.msra.mxu0 0.0
    %6091 = vmatprep.subr.mxu0 0.0
    %6092 = vmatpush1.msra.mxu0 0.0
    %6093 = vmatprep.subr.mxu0 0.0
    %6094 = vmatpush1.msra.mxu0 0.0
    %6095 = vmatprep.subr.mxu0 0.0
    %6096 = vmatpush1.msra.mxu0 0.0
    %6097 = vmatprep.subr.mxu0 0.0
    %6098 = vmatpush1.msra.mxu0 0.0
    %6099 = vmatprep.subr.mxu0 0.0
    %6100 = vmatpush1.msra.mxu0 0.0
    %6101 = vmatprep.subr.mxu0 0.0
    %6102 = vmatpush1.msra.mxu0 0.0
    %6103 = vmatprep.subr.mxu0 0.0
    %6104 = vmatpush1.msra.mxu0 %v6068
    %6105 = vmatprep.subr.mxu0 0.0
    %6106 = vmatpush2.msra.mxu0 0.0
    %6107 = vmatprep.subr.mxu0 0.0
    %6108 = vmatpush2.msra.mxu0 0.0
    %6109 = vmatprep.subr.mxu0 0.0
    %6110 = vmatpush2.msra.mxu0 0.0
    %6111 = vmatprep.subr.mxu0 0.0
    %6112 = vmatpush2.msra.mxu0 0.0
    %6113 = vmatprep.subr.mxu0 0.0
    %6114 = vmatpush2.msra.mxu0 0.0
    %6115 = vmatprep.subr.mxu0 0.0
    %6116 = vmatpush2.msra.mxu0 0.0
    %6117 = vmatprep.subr.mxu0 0.0
    %6118 = vmatpush2.msra.mxu0 0.0
    %6119 = vmatprep.subr.mxu0 0.0
    %6120 = vmatpush2.msra.mxu0 0.0
    %6121 = vmatprep.subr.mxu0 0.0
    %6122 = vmatpush2.msra.mxu0 0.0
    %6123 = vmatprep.subr.mxu0 0.0
    %6124 = vmatpush2.msra.mxu0 0.0
    %6125 = vmatprep.subr.mxu0 0.0
    %6126 = vmatpush2.msra.mxu0 0.0
    %6127 = vmatprep.subr.mxu0 0.0
    %6128 = vmatpush2.msra.mxu0 0.0
    %6129 = vmatprep.subr.mxu0 0.0
    %6130 = vmatpush2.msra.mxu0 0.0
    %6131 = vmatprep.subr.mxu0 0.0
    %6132 = vmatpush2.msra.mxu0 0.0
    %6133 = vmatprep.subr.mxu0 0.0
    %6134 = vmatpush2.msra.mxu0 0.0
    %6135 = vmatprep.subr.mxu0 0.0
    %6136 = vmatpush2.msra.mxu0 0.0
    %6137 = vmatprep.mubr.f32.mxu0 0.0
    %6138 = vmatmul.mubr.f32.gmra.mxu0 %v6071
    %v6139 = vpop.f32.mrf.mxu0
    %v6140 = vadd.f32 0.0, %v6139
    %v6141 = vpop.f32.mrf.mxu0
    %6142 = vdwg.mxu0
    %6143 = vrot.lane.b32.xlu0 %v4641, 72
    %v6144 = vpop.permute.xlu0 %6143
    %v6147 = vsel %vm390, %v6066, 0
    %6149 = vmatprep.subr.mxu0 0.0
    %6150 = vmatpush1.msra.mxu0 0.0
    %6151 = vmatprep.subr.mxu0 0.0
    %6152 = vmatpush1.msra.mxu0 0.0
    %6153 = vmatprep.subr.mxu0 0.0
    %6154 = vmatpush1.msra.mxu0 0.0
    %6155 = vmatprep.subr.mxu0 0.0
    %6156 = vmatpush1.msra.mxu0 0.0
    %6157 = vmatprep.subr.mxu0 0.0
    %6158 = vmatpush1.msra.mxu0 0.0
    %6159 = vmatprep.subr.mxu0 0.0
    %6160 = vmatpush1.msra.mxu0 0.0
    %6161 = vmatprep.subr.mxu0 0.0
    %6162 = vmatpush1.msra.mxu0 0.0
    %6163 = vmatprep.subr.mxu0 0.0
    %6164 = vmatpush1.msra.mxu0 0.0
    %6165 = vmatprep.subr.mxu0 0.0
    %6166 = vmatpush1.msra.mxu0 0.0
    %6167 = vmatprep.subr.mxu0 0.0
    %6168 = vmatpush1.msra.mxu0 0.0
    %6169 = vmatprep.subr.mxu0 0.0
    %6170 = vmatpush1.msra.mxu0 0.0
    %6171 = vmatprep.subr.mxu0 0.0
    %6172 = vmatpush1.msra.mxu0 0.0
    %6173 = vmatprep.subr.mxu0 0.0
    %6174 = vmatpush1.msra.mxu0 0.0
    %6175 = vmatprep.subr.mxu0 0.0
    %6176 = vmatpush1.msra.mxu0 0.0
    %6177 = vmatprep.subr.mxu0 0.0
    %6178 = vmatpush1.msra.mxu0 0.0
    %6179 = vmatprep.subr.mxu0 0.0
    %6180 = vmatpush1.msra.mxu0 %v6144
    %6181 = vmatprep.subr.mxu0 0.0
    %6182 = vmatpush2.msra.mxu0 0.0
    %6183 = vmatprep.subr.mxu0 0.0
    %6184 = vmatpush2.msra.mxu0 0.0
    %6185 = vmatprep.subr.mxu0 0.0
    %6186 = vmatpush2.msra.mxu0 0.0
    %6187 = vmatprep.subr.mxu0 0.0
    %6188 = vmatpush2.msra.mxu0 0.0
    %6189 = vmatprep.subr.mxu0 0.0
    %6190 = vmatpush2.msra.mxu0 0.0
    %6191 = vmatprep.subr.mxu0 0.0
    %6192 = vmatpush2.msra.mxu0 0.0
    %6193 = vmatprep.subr.mxu0 0.0
    %6194 = vmatpush2.msra.mxu0 0.0
    %6195 = vmatprep.subr.mxu0 0.0
    %6196 = vmatpush2.msra.mxu0 0.0
    %6197 = vmatprep.subr.mxu0 0.0
    %6198 = vmatpush2.msra.mxu0 0.0
    %6199 = vmatprep.subr.mxu0 0.0
    %6200 = vmatpush2.msra.mxu0 0.0
    %6201 = vmatprep.subr.mxu0 0.0
    %6202 = vmatpush2.msra.mxu0 0.0
    %6203 = vmatprep.subr.mxu0 0.0
    %6204 = vmatpush2.msra.mxu0 0.0
    %6205 = vmatprep.subr.mxu0 0.0
    %6206 = vmatpush2.msra.mxu0 0.0
    %6207 = vmatprep.subr.mxu0 0.0
    %6208 = vmatpush2.msra.mxu0 0.0
    %6209 = vmatprep.subr.mxu0 0.0
    %6210 = vmatpush2.msra.mxu0 0.0
    %6211 = vmatprep.subr.mxu0 0.0
    %6212 = vmatpush2.msra.mxu0 0.0
    %6213 = vmatprep.mubr.f32.mxu0 0.0
    %6214 = vmatmul.mubr.f32.gmra.mxu0 %v6147
    %v6215 = vpop.f32.mrf.mxu0
    %v6216 = vadd.f32 0.0, %v6215
    %v6217 = vpop.f32.mrf.mxu0
    %6218 = vdwg.mxu0
    %s6219 = scalar_lea.vmem [#allocation13], 88
    %v6220 = vld [vmem:[%s6219] sm:$0xff]
    %v6222 = vsel %vm390, %v6140, 0
    %v6225 = vsel %vm390, %v6216, 0
    %6227 = vmatprep.subr.mxu0 0.0
    %6228 = vmatpush1.msra.mxu0 0.0
    %6229 = vmatprep.subr.mxu0 0.0
    %6230 = vmatpush1.msra.mxu0 0.0
    %6231 = vmatprep.subr.mxu0 0.0
    %6232 = vmatpush1.msra.mxu0 0.0
    %6233 = vmatprep.subr.mxu0 0.0
    %6234 = vmatpush1.msra.mxu0 0.0
    %6235 = vmatprep.subr.mxu0 0.0
    %6236 = vmatpush1.msra.mxu0 0.0
    %6237 = vmatprep.subr.mxu0 0.0
    %6238 = vmatpush1.msra.mxu0 0.0
    %6239 = vmatprep.subr.mxu0 0.0
    %6240 = vmatpush1.msra.mxu0 0.0
    %6241 = vmatprep.subr.mxu0 0.0
    %6242 = vmatpush1.msra.mxu0 0.0
    %6243 = vmatprep.subr.mxu0 0.0
    %6244 = vmatpush1.msra.mxu0 0.0
    %6245 = vmatprep.subr.mxu0 0.0
    %6246 = vmatpush1.msra.mxu0 0.0
    %6247 = vmatprep.subr.mxu0 0.0
    %6248 = vmatpush1.msra.mxu0 0.0
    %6249 = vmatprep.subr.mxu0 0.0
    %6250 = vmatpush1.msra.mxu0 0.0
    %6251 = vmatprep.subr.mxu0 0.0
    %6252 = vmatpush1.msra.mxu0 0.0
    %6253 = vmatprep.subr.mxu0 0.0
    %6254 = vmatpush1.msra.mxu0 0.0
    %6255 = vmatprep.subr.mxu0 0.0
    %6256 = vmatpush1.msra.mxu0 0.0
    %6257 = vmatprep.subr.mxu0 0.0
    %6258 = vmatpush1.msra.mxu0 %v6220
    %6259 = vmatprep.subr.mxu0 0.0
    %6260 = vmatpush2.msra.mxu0 0.0
    %6261 = vmatprep.subr.mxu0 0.0
    %6262 = vmatpush2.msra.mxu0 0.0
    %6263 = vmatprep.subr.mxu0 0.0
    %6264 = vmatpush2.msra.mxu0 0.0
    %6265 = vmatprep.subr.mxu0 0.0
    %6266 = vmatpush2.msra.mxu0 0.0
    %6267 = vmatprep.subr.mxu0 0.0
    %6268 = vmatpush2.msra.mxu0 0.0
    %6269 = vmatprep.subr.mxu0 0.0
    %6270 = vmatpush2.msra.mxu0 0.0
    %6271 = vmatprep.subr.mxu0 0.0
    %6272 = vmatpush2.msra.mxu0 0.0
    %6273 = vmatprep.subr.mxu0 0.0
    %6274 = vmatpush2.msra.mxu0 0.0
    %6275 = vmatprep.subr.mxu0 0.0
    %6276 = vmatpush2.msra.mxu0 0.0
    %6277 = vmatprep.subr.mxu0 0.0
    %6278 = vmatpush2.msra.mxu0 0.0
    %6279 = vmatprep.subr.mxu0 0.0
    %6280 = vmatpush2.msra.mxu0 0.0
    %6281 = vmatprep.subr.mxu0 0.0
    %6282 = vmatpush2.msra.mxu0 0.0
    %6283 = vmatprep.subr.mxu0 0.0
    %6284 = vmatpush2.msra.mxu0 0.0
    %6285 = vmatprep.subr.mxu0 0.0
    %6286 = vmatpush2.msra.mxu0 0.0
    %6287 = vmatprep.subr.mxu0 0.0
    %6288 = vmatpush2.msra.mxu0 0.0
    %6289 = vmatprep.subr.mxu0 0.0
    %6290 = vmatpush2.msra.mxu0 0.0
    %6291 = vmatprep.mubr.f32.mxu0 0.0
    %6292 = vmatmul.mubr.f32.gmra.mxu0 %v6222
    %v6293 = vpop.f32.mrf.mxu0
    %v6294 = vadd.f32 0.0, %v6293
    %v6295 = vpop.f32.mrf.mxu0
    %6296 = vmatprep.mubr.f32.mxu0 0.0
    %6297 = vmatmul.mubr.f32.gmra.mxu0 %v6225
    %v6298 = vpop.f32.mrf.mxu0
    %v6299 = vadd.f32 0.0, %v6298
    %v6300 = vpop.f32.mrf.mxu0
    %6301 = vdwg.mxu0
    %v6302 = vadd.f32 %v5885, %v6294
    %v6303 = vadd.f32 %v5886, %v6299
    %s6304 = scalar_lea.vmem %s8, 2
    %v6305 = vld [vmem:[%s6304] sm:$0x1]
    %v6307 = vlaneseq
    %v6308 = vshrl.u32 %v6307, 7
    %v6309 = vsub.s32 0, %v6308
    %v6310 = vrot.slane %v6305, %v6309
    %v6312 = vadd.f32 %v6302, %v6310
    %v6313 = vadd.f32 %v6303, %v6310
    %v6314 = vadd.f32 %v2302, %v6312
    %v6315 = vadd.f32 %v2303, %v6313
    %s6316 = scalar_lea.vmem [#allocation8], 7
    %v6317 = vld [vmem:[%s6316] sm:$0x1]
    %s6318 = scalar_lea.vmem [#allocation10], 7
    %v6319 = vld [vmem:[%s6318] sm:$0x1]
    %v6320 = vsel %vm175, %v6314, 0.0
    %6321 = vadd.xlane.f32.xlu0 %v6320
    %v6322 = vpop.xlane.xlu0 %6321
    %v6323 = vsel %vm175, %v6315, 0.0
    %6324 = vadd.xlane.f32.xlu0 %v6323
    %v6325 = vpop.xlane.xlu0 %6324
    %v6326 = vmul.f32 %v6322, %v182
    %v6327 = vmul.f32 %v6325, %v182
    %v6328 = vsub.f32 %v6314, %v6326
    %v6329 = vsub.f32 %v6315, %v6327
    %v6330 = vmul.f32 %v6328, %v6328
    %v6331 = vmul.f32 %v6329, %v6329
    %v6332 = vsel %vm175, %v6330, 0.0
    %6333 = vadd.xlane.f32.xlu0 %v6332
    %v6334 = vpop.xlane.xlu0 %6333
    %v6335 = vsel %vm175, %v6331, 0.0
    %6336 = vadd.xlane.f32.xlu0 %v6335
    %v6337 = vpop.xlane.xlu0 %6336
    %v6338 = vmul.f32 %v6334, %v182
    %v6339 = vmul.f32 %v6337, %v182
    %v6340 = vadd.f32 %v6338, 1e-06
    %v6341 = vadd.f32 %v6339, 1e-06
    %v6342 = vrsqrt.pop %v6340
    %v6343 = vrsqrt.pop %v6341
    %v6344 = vmul.f32 %v6328, %v6342
    %v6345 = vmul.f32 %v6329, %v6343
    %v6347 = vlaneseq
    %v6348 = vshrl.u32 %v6347, 7
    %v6349 = vsub.s32 0, %v6348
    %v6350 = vrot.slane %v6317, %v6349
    %v6352 = vmul.f32 %v6344, %v6350
    %v6353 = vmul.f32 %v6345, %v6350
    %v6355 = vlaneseq
    %v6356 = vshrl.u32 %v6355, 7
    %v6357 = vsub.s32 0, %v6356
    %v6358 = vrot.slane %v6319, %v6357
    %v6360 = vadd.f32 %v6352, %v6358
    %v6361 = vadd.f32 %v6353, %v6358
    %s6362 = scalar_lea.vmem [#allocation14], 64
    %v6363 = vld [vmem:[%s6362] sm:$0xff]
    %v6364 = vld [vmem:[%s6362 + $0x8] sm:$0xff]
    %v6365 = vld [vmem:[%s6362 + $0x10] sm:$0xff]
    %v6366 = vld [vmem:[%s6362 + $0x18] sm:$0xff]
    %s6367 = scalar_lea.vmem %s10, 2
    %v6368 = vld [vmem:[%s6367] sm:$0x1]
    %v6370 = vlaneseq
    %v6371 = vshrl.u32 %v6370, 7
    %v6372 = vsub.s32 0, %v6371
    %v6373 = vrot.slane %v6368, %v6372
    %v6376 = vsel %vm175, %v6360, 0
    %v6379 = vsel %vm175, %v6361, 0
    %6381 = vmatprep.subr.mxu0 0.0
    %6382 = vmatpush1.msra.mxu0 0.0
    %6383 = vmatprep.subr.mxu0 0.0
    %6384 = vmatpush1.msra.mxu0 0.0
    %6385 = vmatprep.subr.mxu0 0.0
    %6386 = vmatpush1.msra.mxu0 0.0
    %6387 = vmatprep.subr.mxu0 0.0
    %6388 = vmatpush1.msra.mxu0 0.0
    %6389 = vmatprep.subr.mxu0 0.0
    %6390 = vmatpush1.msra.mxu0 0.0
    %6391 = vmatprep.subr.mxu0 0.0
    %6392 = vmatpush1.msra.mxu0 0.0
    %6393 = vmatprep.subr.mxu0 0.0
    %6394 = vmatpush1.msra.mxu0 0.0
    %6395 = vmatprep.subr.mxu0 0.0
    %6396 = vmatpush1.msra.mxu0 0.0
    %6397 = vmatprep.subr.mxu0 0.0
    %6398 = vmatpush1.msra.mxu0 0.0
    %6399 = vmatprep.subr.mxu0 0.0
    %6400 = vmatpush1.msra.mxu0 0.0
    %6401 = vmatprep.subr.mxu0 0.0
    %6402 = vmatpush1.msra.mxu0 0.0
    %6403 = vmatprep.subr.mxu0 0.0
    %6404 = vmatpush1.msra.mxu0 0.0
    %6405 = vmatprep.subr.mxu0 0.0
    %6406 = vmatpush1.msra.mxu0 %v6366
    %6407 = vmatprep.subr.mxu0 0.0
    %6408 = vmatpush1.msra.mxu0 %v6365
    %6409 = vmatprep.subr.mxu0 0.0
    %6410 = vmatpush1.msra.mxu0 %v6364
    %6411 = vmatprep.subr.mxu0 0.0
    %6412 = vmatpush1.msra.mxu0 %v6363
    %6413 = vmatprep.subr.mxu0 0.0
    %6414 = vmatpush2.msra.mxu0 0.0
    %6415 = vmatprep.subr.mxu0 0.0
    %6416 = vmatpush2.msra.mxu0 0.0
    %6417 = vmatprep.subr.mxu0 0.0
    %6418 = vmatpush2.msra.mxu0 0.0
    %6419 = vmatprep.subr.mxu0 0.0
    %6420 = vmatpush2.msra.mxu0 0.0
    %6421 = vmatprep.subr.mxu0 0.0
    %6422 = vmatpush2.msra.mxu0 0.0
    %6423 = vmatprep.subr.mxu0 0.0
    %6424 = vmatpush2.msra.mxu0 0.0
    %6425 = vmatprep.subr.mxu0 0.0
    %6426 = vmatpush2.msra.mxu0 0.0
    %6427 = vmatprep.subr.mxu0 0.0
    %6428 = vmatpush2.msra.mxu0 0.0
    %6429 = vmatprep.subr.mxu0 0.0
    %6430 = vmatpush2.msra.mxu0 0.0
    %6431 = vmatprep.subr.mxu0 0.0
    %6432 = vmatpush2.msra.mxu0 0.0
    %6433 = vmatprep.subr.mxu0 0.0
    %6434 = vmatpush2.msra.mxu0 0.0
    %6435 = vmatprep.subr.mxu0 0.0
    %6436 = vmatpush2.msra.mxu0 0.0
    %6437 = vmatprep.subr.mxu0 0.0
    %6438 = vmatpush2.msra.mxu0 0.0
    %6439 = vmatprep.subr.mxu0 0.0
    %6440 = vmatpush2.msra.mxu0 0.0
    %6441 = vmatprep.subr.mxu0 0.0
    %6442 = vmatpush2.msra.mxu0 0.0
    %6443 = vmatprep.subr.mxu0 0.0
    %6444 = vmatpush2.msra.mxu0 0.0
    %6445 = vmatprep.mubr.f32.mxu0 0.0
    %6446 = vmatmul.mubr.f32.gmra.mxu0 %v6376
    %v6447 = vpop.f32.mrf.mxu0
    %v6448 = vadd.f32 %v6373, %v6447
    %v6449 = vpop.f32.mrf.mxu0
    %6450 = vmatprep.mubr.f32.mxu0 0.0
    %6451 = vmatmul.mubr.f32.gmra.mxu0 %v6379
    %v6452 = vpop.f32.mrf.mxu0
    %v6453 = vadd.f32 %v6373, %v6452
    %v6454 = vpop.f32.mrf.mxu0
    %6455 = vdwg.mxu0
    %v6456 = vmax.f32 %v6448, 0.0
    %v6457 = vmax.f32 %v6453, 0.0
    %s6458 = scalar_lea.vmem [#allocation16], 64
    %v6459 = vld [vmem:[%s6458] sm:$0xff]
    %v6460 = vld [vmem:[%s6458 + $0x8] sm:$0xff]
    %v6461 = vld [vmem:[%s6458 + $0x10] sm:$0xff]
    %v6462 = vld [vmem:[%s6458 + $0x18] sm:$0xff]
    %s6463 = scalar_lea.vmem %s12, 2
    %v6464 = vld [vmem:[%s6463] sm:$0x1]
    %v6466 = vlaneseq
    %v6467 = vshrl.u32 %v6466, 7
    %v6468 = vsub.s32 0, %v6467
    %v6469 = vrot.slane %v6464, %v6468
    %v6472 = vsel %vm175, %v6456, 0
    %v6475 = vsel %vm175, %v6457, 0
    %6477 = vmatprep.subr.mxu0 0.0
    %6478 = vmatpush1.msra.mxu0 0.0
    %6479 = vmatprep.subr.mxu0 0.0
    %6480 = vmatpush1.msra.mxu0 0.0
    %6481 = vmatprep.subr.mxu0 0.0
    %6482 = vmatpush1.msra.mxu0 0.0
    %6483 = vmatprep.subr.mxu0 0.0
    %6484 = vmatpush1.msra.mxu0 0.0
    %6485 = vmatprep.subr.mxu0 0.0
    %6486 = vmatpush1.msra.mxu0 0.0
    %6487 = vmatprep.subr.mxu0 0.0
    %6488 = vmatpush1.msra.mxu0 0.0
    %6489 = vmatprep.subr.mxu0 0.0
    %6490 = vmatpush1.msra.mxu0 0.0
    %6491 = vmatprep.subr.mxu0 0.0
    %6492 = vmatpush1.msra.mxu0 0.0
    %6493 = vmatprep.subr.mxu0 0.0
    %6494 = vmatpush1.msra.mxu0 0.0
    %6495 = vmatprep.subr.mxu0 0.0
    %6496 = vmatpush1.msra.mxu0 0.0
    %6497 = vmatprep.subr.mxu0 0.0
    %6498 = vmatpush1.msra.mxu0 0.0
    %6499 = vmatprep.subr.mxu0 0.0
    %6500 = vmatpush1.msra.mxu0 0.0
    %6501 = vmatprep.subr.mxu0 0.0
    %6502 = vmatpush1.msra.mxu0 %v6462
    %6503 = vmatprep.subr.mxu0 0.0
    %6504 = vmatpush1.msra.mxu0 %v6461
    %6505 = vmatprep.subr.mxu0 0.0
    %6506 = vmatpush1.msra.mxu0 %v6460
    %6507 = vmatprep.subr.mxu0 0.0
    %6508 = vmatpush1.msra.mxu0 %v6459
    %6509 = vmatprep.subr.mxu0 0.0
    %6510 = vmatpush2.msra.mxu0 0.0
    %6511 = vmatprep.subr.mxu0 0.0
    %6512 = vmatpush2.msra.mxu0 0.0
    %6513 = vmatprep.subr.mxu0 0.0
    %6514 = vmatpush2.msra.mxu0 0.0
    %6515 = vmatprep.subr.mxu0 0.0
    %6516 = vmatpush2.msra.mxu0 0.0
    %6517 = vmatprep.subr.mxu0 0.0
    %6518 = vmatpush2.msra.mxu0 0.0
    %6519 = vmatprep.subr.mxu0 0.0
    %6520 = vmatpush2.msra.mxu0 0.0
    %6521 = vmatprep.subr.mxu0 0.0
    %6522 = vmatpush2.msra.mxu0 0.0
    %6523 = vmatprep.subr.mxu0 0.0
    %6524 = vmatpush2.msra.mxu0 0.0
    %6525 = vmatprep.subr.mxu0 0.0
    %6526 = vmatpush2.msra.mxu0 0.0
    %6527 = vmatprep.subr.mxu0 0.0
    %6528 = vmatpush2.msra.mxu0 0.0
    %6529 = vmatprep.subr.mxu0 0.0
    %6530 = vmatpush2.msra.mxu0 0.0
    %6531 = vmatprep.subr.mxu0 0.0
    %6532 = vmatpush2.msra.mxu0 0.0
    %6533 = vmatprep.subr.mxu0 0.0
    %6534 = vmatpush2.msra.mxu0 0.0
    %6535 = vmatprep.subr.mxu0 0.0
    %6536 = vmatpush2.msra.mxu0 0.0
    %6537 = vmatprep.subr.mxu0 0.0
    %6538 = vmatpush2.msra.mxu0 0.0
    %6539 = vmatprep.subr.mxu0 0.0
    %6540 = vmatpush2.msra.mxu0 0.0
    %6541 = vmatprep.mubr.f32.mxu0 0.0
    %6542 = vmatmul.mubr.f32.gmra.mxu0 %v6472
    %v6543 = vpop.f32.mrf.mxu0
    %v6544 = vadd.f32 %v6469, %v6543
    %v6545 = vpop.f32.mrf.mxu0
    %6546 = vmatprep.mubr.f32.mxu0 0.0
    %6547 = vmatmul.mubr.f32.gmra.mxu0 %v6475
    %v6548 = vpop.f32.mrf.mxu0
    %v6549 = vadd.f32 %v6469, %v6548
    %v6550 = vpop.f32.mrf.mxu0
    %6551 = vdwg.mxu0
    %v6552 = vmax.f32 %v6544, 0.0
    %v6553 = vmax.f32 %v6549, 0.0
    %v6554 = vadd.f32 %v6314, %v6552
    %v6555 = vadd.f32 %v6315, %v6553
    %s6556 = scalar_lea.vmem [#allocation8], 8
    %v6557 = vld [vmem:[%s6556] sm:$0x1]
    %s6558 = scalar_lea.vmem [#allocation10], 8
    %v6559 = vld [vmem:[%s6558] sm:$0x1]
    %v6560 = vsel %vm175, %v6554, 0.0
    %6561 = vadd.xlane.f32.xlu0 %v6560
    %v6562 = vpop.xlane.xlu0 %6561
    %v6563 = vsel %vm175, %v6555, 0.0
    %6564 = vadd.xlane.f32.xlu0 %v6563
    %v6565 = vpop.xlane.xlu0 %6564
    %v6566 = vmul.f32 %v6562, %v182
    %v6567 = vmul.f32 %v6565, %v182
    %v6568 = vsub.f32 %v6554, %v6566
    %v6569 = vsub.f32 %v6555, %v6567
    %v6570 = vmul.f32 %v6568, %v6568
    %v6571 = vmul.f32 %v6569, %v6569
    %v6572 = vsel %vm175, %v6570, 0.0
    %6573 = vadd.xlane.f32.xlu0 %v6572
    %v6574 = vpop.xlane.xlu0 %6573
    %v6575 = vsel %vm175, %v6571, 0.0
    %6576 = vadd.xlane.f32.xlu0 %v6575
    %v6577 = vpop.xlane.xlu0 %6576
    %v6578 = vmul.f32 %v6574, %v182
    %v6579 = vmul.f32 %v6577, %v182
    %v6580 = vadd.f32 %v6578, 1e-05
    %v6581 = vadd.f32 %v6579, 1e-05
    %v6582 = vrsqrt.pop %v6580
    %v6583 = vrsqrt.pop %v6581
    %v6584 = vmul.f32 %v6568, %v6582
    %v6585 = vmul.f32 %v6569, %v6583
    %v6587 = vlaneseq
    %v6588 = vshrl.u32 %v6587, 7
    %v6589 = vsub.s32 0, %v6588
    %v6590 = vrot.slane %v6557, %v6589
    %v6592 = vmul.f32 %v6584, %v6590
    %v6593 = vmul.f32 %v6585, %v6590
    %v6595 = vlaneseq
    %v6596 = vshrl.u32 %v6595, 7
    %v6597 = vsub.s32 0, %v6596
    %v6598 = vrot.slane %v6559, %v6597
    %v6600 = vadd.f32 %v6592, %v6598
    %v6601 = vadd.f32 %v6593, %v6598
    %s6602 = scalar_lea.vmem [#allocation8], 9
    %v6603 = vld [vmem:[%s6602] sm:$0x1]
    %s6604 = scalar_lea.vmem [#allocation10], 9
    %v6605 = vld [vmem:[%s6604] sm:$0x1]
    %v6607 = vlaneseq
    %v6608 = vshrl.u32 %v6607, 7
    %v6609 = vsub.s32 0, %v6608
    %v6610 = vrot.slane %v6603, %v6609
    %v6612 = vmul.f32 %v4386, %v6610
    %v6613 = vmul.f32 %v4387, %v6610
    %v6615 = vlaneseq
    %v6616 = vshrl.u32 %v6615, 7
    %v6617 = vsub.s32 0, %v6616
    %v6618 = vrot.slane %v6605, %v6617
    %v6620 = vadd.f32 %v6612, %v6618
    %v6621 = vadd.f32 %v6613, %v6618
    %s6622 = scalar_lea.vmem [#allocation11], 96
    %v6623 = vld [vmem:[%s6622] sm:$0xff]
    %v6624 = vld [vmem:[%s6622 + $0x8] sm:$0xff]
    %v6625 = vld [vmem:[%s6622 + $0x10] sm:$0xff]
    %v6626 = vld [vmem:[%s6622 + $0x18] sm:$0xff]
    %s6627 = scalar_lea.vmem %s6, 3
    %v6628 = vld [vmem:[%s6627] sm:$0x1]
    %v6630 = vlaneseq
    %v6631 = vshrl.u32 %v6630, 7
    %v6632 = vsub.s32 0, %v6631
    %v6633 = vrot.slane %v6628, %v6632
    %v6636 = vsel %vm175, %v6620, 0
    %v6639 = vsel %vm175, %v6621, 0
    %6641 = vmatprep.subr.mxu0 0.0
    %6642 = vmatpush1.msra.mxu0 0.0
    %6643 = vmatprep.subr.mxu0 0.0
    %6644 = vmatpush1.msra.mxu0 0.0
    %6645 = vmatprep.subr.mxu0 0.0
    %6646 = vmatpush1.msra.mxu0 0.0
    %6647 = vmatprep.subr.mxu0 0.0
    %6648 = vmatpush1.msra.mxu0 0.0
    %6649 = vmatprep.subr.mxu0 0.0
    %6650 = vmatpush1.msra.mxu0 0.0
    %6651 = vmatprep.subr.mxu0 0.0
    %6652 = vmatpush1.msra.mxu0 0.0
    %6653 = vmatprep.subr.mxu0 0.0
    %6654 = vmatpush1.msra.mxu0 0.0
    %6655 = vmatprep.subr.mxu0 0.0
    %6656 = vmatpush1.msra.mxu0 0.0
    %6657 = vmatprep.subr.mxu0 0.0
    %6658 = vmatpush1.msra.mxu0 0.0
    %6659 = vmatprep.subr.mxu0 0.0
    %6660 = vmatpush1.msra.mxu0 0.0
    %6661 = vmatprep.subr.mxu0 0.0
    %6662 = vmatpush1.msra.mxu0 0.0
    %6663 = vmatprep.subr.mxu0 0.0
    %6664 = vmatpush1.msra.mxu0 0.0
    %6665 = vmatprep.subr.mxu0 0.0
    %6666 = vmatpush1.msra.mxu0 %v6626
    %6667 = vmatprep.subr.mxu0 0.0
    %6668 = vmatpush1.msra.mxu0 %v6625
    %6669 = vmatprep.subr.mxu0 0.0
    %6670 = vmatpush1.msra.mxu0 %v6624
    %6671 = vmatprep.subr.mxu0 0.0
    %6672 = vmatpush1.msra.mxu0 %v6623
    %6673 = vmatprep.subr.mxu0 0.0
    %6674 = vmatpush2.msra.mxu0 0.0
    %6675 = vmatprep.subr.mxu0 0.0
    %6676 = vmatpush2.msra.mxu0 0.0
    %6677 = vmatprep.subr.mxu0 0.0
    %6678 = vmatpush2.msra.mxu0 0.0
    %6679 = vmatprep.subr.mxu0 0.0
    %6680 = vmatpush2.msra.mxu0 0.0
    %6681 = vmatprep.subr.mxu0 0.0
    %6682 = vmatpush2.msra.mxu0 0.0
    %6683 = vmatprep.subr.mxu0 0.0
    %6684 = vmatpush2.msra.mxu0 0.0
    %6685 = vmatprep.subr.mxu0 0.0
    %6686 = vmatpush2.msra.mxu0 0.0
    %6687 = vmatprep.subr.mxu0 0.0
    %6688 = vmatpush2.msra.mxu0 0.0
    %6689 = vmatprep.subr.mxu0 0.0
    %6690 = vmatpush2.msra.mxu0 0.0
    %6691 = vmatprep.subr.mxu0 0.0
    %6692 = vmatpush2.msra.mxu0 0.0
    %6693 = vmatprep.subr.mxu0 0.0
    %6694 = vmatpush2.msra.mxu0 0.0
    %6695 = vmatprep.subr.mxu0 0.0
    %6696 = vmatpush2.msra.mxu0 0.0
    %6697 = vmatprep.subr.mxu0 0.0
    %6698 = vmatpush2.msra.mxu0 0.0
    %6699 = vmatprep.subr.mxu0 0.0
    %6700 = vmatpush2.msra.mxu0 0.0
    %6701 = vmatprep.subr.mxu0 0.0
    %6702 = vmatpush2.msra.mxu0 0.0
    %6703 = vmatprep.subr.mxu0 0.0
    %6704 = vmatpush2.msra.mxu0 0.0
    %6705 = vmatprep.mubr.f32.mxu0 0.0
    %6706 = vmatmul.mubr.f32.gmra.mxu0 %v6636
    %v6707 = vpop.f32.mrf.mxu0
    %v6708 = vadd.f32 %v6633, %v6707
    %v6709 = vpop.f32.mrf.mxu0
    %6710 = vmatprep.mubr.f32.mxu0 0.0
    %6711 = vmatmul.mubr.f32.gmra.mxu0 %v6639
    %v6712 = vpop.f32.mrf.mxu0
    %v6713 = vadd.f32 %v6633, %v6712
    %v6714 = vpop.f32.mrf.mxu0
    %6715 = vdwg.mxu0
    %6720 = vrot.lane.b32.xlu0 %v6623, 96
    %v6721 = vpop.permute.xlu0 %6720
    %6722 = vrot.lane.b32.xlu0 %v6624, 96
    %v6723 = vpop.permute.xlu0 %6722
    %6724 = vrot.lane.b32.xlu0 %v6625, 96
    %v6725 = vpop.permute.xlu0 %6724
    %6726 = vrot.lane.b32.xlu0 %v6626, 96
    %v6727 = vpop.permute.xlu0 %6726
    %6732 = vrot.lane.b32.xlu0 %v6633, 96
    %v6733 = vpop.permute.xlu0 %6732
    %v6736 = vsel %vm175, %v6600, 0
    %v6739 = vsel %vm175, %v6601, 0
    %6741 = vmatprep.subr.mxu0 0.0
    %6742 = vmatpush1.msra.mxu0 0.0
    %6743 = vmatprep.subr.mxu0 0.0
    %6744 = vmatpush1.msra.mxu0 0.0
    %6745 = vmatprep.subr.mxu0 0.0
    %6746 = vmatpush1.msra.mxu0 0.0
    %6747 = vmatprep.subr.mxu0 0.0
    %6748 = vmatpush1.msra.mxu0 0.0
    %6749 = vmatprep.subr.mxu0 0.0
    %6750 = vmatpush1.msra.mxu0 0.0
    %6751 = vmatprep.subr.mxu0 0.0
    %6752 = vmatpush1.msra.mxu0 0.0
    %6753 = vmatprep.subr.mxu0 0.0
    %6754 = vmatpush1.msra.mxu0 0.0
    %6755 = vmatprep.subr.mxu0 0.0
    %6756 = vmatpush1.msra.mxu0 0.0
    %6757 = vmatprep.subr.mxu0 0.0
    %6758 = vmatpush1.msra.mxu0 0.0
    %6759 = vmatprep.subr.mxu0 0.0
    %6760 = vmatpush1.msra.mxu0 0.0
    %6761 = vmatprep.subr.mxu0 0.0
    %6762 = vmatpush1.msra.mxu0 0.0
    %6763 = vmatprep.subr.mxu0 0.0
    %6764 = vmatpush1.msra.mxu0 0.0
    %6765 = vmatprep.subr.mxu0 0.0
    %6766 = vmatpush1.msra.mxu0 %v6727
    %6767 = vmatprep.subr.mxu0 0.0
    %6768 = vmatpush1.msra.mxu0 %v6725
    %6769 = vmatprep.subr.mxu0 0.0
    %6770 = vmatpush1.msra.mxu0 %v6723
    %6771 = vmatprep.subr.mxu0 0.0
    %6772 = vmatpush1.msra.mxu0 %v6721
    %6773 = vmatprep.subr.mxu0 0.0
    %6774 = vmatpush2.msra.mxu0 0.0
    %6775 = vmatprep.subr.mxu0 0.0
    %6776 = vmatpush2.msra.mxu0 0.0
    %6777 = vmatprep.subr.mxu0 0.0
    %6778 = vmatpush2.msra.mxu0 0.0
    %6779 = vmatprep.subr.mxu0 0.0
    %6780 = vmatpush2.msra.mxu0 0.0
    %6781 = vmatprep.subr.mxu0 0.0
    %6782 = vmatpush2.msra.mxu0 0.0
    %6783 = vmatprep.subr.mxu0 0.0
    %6784 = vmatpush2.msra.mxu0 0.0
    %6785 = vmatprep.subr.mxu0 0.0
    %6786 = vmatpush2.msra.mxu0 0.0
    %6787 = vmatprep.subr.mxu0 0.0
    %6788 = vmatpush2.msra.mxu0 0.0
    %6789 = vmatprep.subr.mxu0 0.0
    %6790 = vmatpush2.msra.mxu0 0.0
    %6791 = vmatprep.subr.mxu0 0.0
    %6792 = vmatpush2.msra.mxu0 0.0
    %6793 = vmatprep.subr.mxu0 0.0
    %6794 = vmatpush2.msra.mxu0 0.0
    %6795 = vmatprep.subr.mxu0 0.0
    %6796 = vmatpush2.msra.mxu0 0.0
    %6797 = vmatprep.subr.mxu0 0.0
    %6798 = vmatpush2.msra.mxu0 0.0
    %6799 = vmatprep.subr.mxu0 0.0
    %6800 = vmatpush2.msra.mxu0 0.0
    %6801 = vmatprep.subr.mxu0 0.0
    %6802 = vmatpush2.msra.mxu0 0.0
    %6803 = vmatprep.subr.mxu0 0.0
    %6804 = vmatpush2.msra.mxu0 0.0
    %6805 = vmatprep.mubr.f32.mxu0 0.0
    %6806 = vmatmul.mubr.f32.gmra.mxu0 %v6736
    %v6807 = vpop.f32.mrf.mxu0
    %v6808 = vadd.f32 %v6733, %v6807
    %v6809 = vpop.f32.mrf.mxu0
    %6810 = vmatprep.mubr.f32.mxu0 0.0
    %6811 = vmatmul.mubr.f32.gmra.mxu0 %v6739
    %v6812 = vpop.f32.mrf.mxu0
    %v6813 = vadd.f32 %v6733, %v6812
    %v6814 = vpop.f32.mrf.mxu0
    %6815 = vdwg.mxu0
    %v6817 = vsel %vm390, %v6708, 0
    %v6820 = vsel %vm390, %v6808, 0
    %6822 = vmatprep.subr.mxu0 0.0
    %6823 = vmatpush1.xpose.msra.mxu0 0.0
    %6824 = vmatprep.subr.mxu0 0.0
    %6825 = vmatpush1.xpose.msra.mxu0 0.0
    %6826 = vmatprep.subr.mxu0 0.0
    %6827 = vmatpush1.xpose.msra.mxu0 0.0
    %6828 = vmatprep.subr.mxu0 0.0
    %6829 = vmatpush1.xpose.msra.mxu0 0.0
    %6830 = vmatprep.subr.mxu0 0.0
    %6831 = vmatpush1.xpose.msra.mxu0 0.0
    %6832 = vmatprep.subr.mxu0 0.0
    %6833 = vmatpush1.xpose.msra.mxu0 0.0
    %6834 = vmatprep.subr.mxu0 0.0
    %6835 = vmatpush1.xpose.msra.mxu0 0.0
    %6836 = vmatprep.subr.mxu0 0.0
    %6837 = vmatpush1.xpose.msra.mxu0 0.0
    %6838 = vmatprep.subr.mxu0 0.0
    %6839 = vmatpush1.xpose.msra.mxu0 0.0
    %6840 = vmatprep.subr.mxu0 0.0
    %6841 = vmatpush1.xpose.msra.mxu0 0.0
    %6842 = vmatprep.subr.mxu0 0.0
    %6843 = vmatpush1.xpose.msra.mxu0 0.0
    %6844 = vmatprep.subr.mxu0 0.0
    %6845 = vmatpush1.xpose.msra.mxu0 0.0
    %6846 = vmatprep.subr.mxu0 0.0
    %6847 = vmatpush1.xpose.msra.mxu0 0.0
    %6848 = vmatprep.subr.mxu0 0.0
    %6849 = vmatpush1.xpose.msra.mxu0 0.0
    %6850 = vmatprep.subr.mxu0 0.0
    %6851 = vmatpush1.xpose.msra.mxu0 0.0
    %6852 = vmatprep.subr.mxu0 0.0
    %6853 = vmatpush1.xpose.msra.mxu0 %v6820
    %6854 = vmatprep.subr.mxu0 0.0
    %6855 = vmatpush2.xpose.msra.mxu0 0.0
    %6856 = vmatprep.subr.mxu0 0.0
    %6857 = vmatpush2.xpose.msra.mxu0 0.0
    %6858 = vmatprep.subr.mxu0 0.0
    %6859 = vmatpush2.xpose.msra.mxu0 0.0
    %6860 = vmatprep.subr.mxu0 0.0
    %6861 = vmatpush2.xpose.msra.mxu0 0.0
    %6862 = vmatprep.subr.mxu0 0.0
    %6863 = vmatpush2.xpose.msra.mxu0 0.0
    %6864 = vmatprep.subr.mxu0 0.0
    %6865 = vmatpush2.xpose.msra.mxu0 0.0
    %6866 = vmatprep.subr.mxu0 0.0
    %6867 = vmatpush2.xpose.msra.mxu0 0.0
    %6868 = vmatprep.subr.mxu0 0.0
    %6869 = vmatpush2.xpose.msra.mxu0 0.0
    %6870 = vmatprep.subr.mxu0 0.0
    %6871 = vmatpush2.xpose.msra.mxu0 0.0
    %6872 = vmatprep.subr.mxu0 0.0
    %6873 = vmatpush2.xpose.msra.mxu0 0.0
    %6874 = vmatprep.subr.mxu0 0.0
    %6875 = vmatpush2.xpose.msra.mxu0 0.0
    %6876 = vmatprep.subr.mxu0 0.0
    %6877 = vmatpush2.xpose.msra.mxu0 0.0
    %6878 = vmatprep.subr.mxu0 0.0
    %6879 = vmatpush2.xpose.msra.mxu0 0.0
    %6880 = vmatprep.subr.mxu0 0.0
    %6881 = vmatpush2.xpose.msra.mxu0 0.0
    %6882 = vmatprep.subr.mxu0 0.0
    %6883 = vmatpush2.xpose.msra.mxu0 0.0
    %6884 = vmatprep.subr.mxu0 0.0
    %6885 = vmatpush2.xpose.msra.mxu0 0.0
    %6886 = vmatprep.mubr.f32.mxu0 0.0
    %6887 = vmatmul.mubr.f32.gmra.mxu0 %v6817
    %v6888 = vpop.f32.mrf.mxu0
    %v6889 = vadd.f32 0.0, %v6888
    %v6890 = vpop.f32.mrf.mxu0
    %6891 = vdwg.mxu0
    %v6893 = vsel %vm390, %v6713, 0
    %v6896 = vsel %vm390, %v6813, 0
    %6898 = vmatprep.subr.mxu0 0.0
    %6899 = vmatpush1.xpose.msra.mxu0 0.0
    %6900 = vmatprep.subr.mxu0 0.0
    %6901 = vmatpush1.xpose.msra.mxu0 0.0
    %6902 = vmatprep.subr.mxu0 0.0
    %6903 = vmatpush1.xpose.msra.mxu0 0.0
    %6904 = vmatprep.subr.mxu0 0.0
    %6905 = vmatpush1.xpose.msra.mxu0 0.0
    %6906 = vmatprep.subr.mxu0 0.0
    %6907 = vmatpush1.xpose.msra.mxu0 0.0
    %6908 = vmatprep.subr.mxu0 0.0
    %6909 = vmatpush1.xpose.msra.mxu0 0.0
    %6910 = vmatprep.subr.mxu0 0.0
    %6911 = vmatpush1.xpose.msra.mxu0 0.0
    %6912 = vmatprep.subr.mxu0 0.0
    %6913 = vmatpush1.xpose.msra.mxu0 0.0
    %6914 = vmatprep.subr.mxu0 0.0
    %6915 = vmatpush1.xpose.msra.mxu0 0.0
    %6916 = vmatprep.subr.mxu0 0.0
    %6917 = vmatpush1.xpose.msra.mxu0 0.0
    %6918 = vmatprep.subr.mxu0 0.0
    %6919 = vmatpush1.xpose.msra.mxu0 0.0
    %6920 = vmatprep.subr.mxu0 0.0
    %6921 = vmatpush1.xpose.msra.mxu0 0.0
    %6922 = vmatprep.subr.mxu0 0.0
    %6923 = vmatpush1.xpose.msra.mxu0 0.0
    %6924 = vmatprep.subr.mxu0 0.0
    %6925 = vmatpush1.xpose.msra.mxu0 0.0
    %6926 = vmatprep.subr.mxu0 0.0
    %6927 = vmatpush1.xpose.msra.mxu0 0.0
    %6928 = vmatprep.subr.mxu0 0.0
    %6929 = vmatpush1.xpose.msra.mxu0 %v6896
    %6930 = vmatprep.subr.mxu0 0.0
    %6931 = vmatpush2.xpose.msra.mxu0 0.0
    %6932 = vmatprep.subr.mxu0 0.0
    %6933 = vmatpush2.xpose.msra.mxu0 0.0
    %6934 = vmatprep.subr.mxu0 0.0
    %6935 = vmatpush2.xpose.msra.mxu0 0.0
    %6936 = vmatprep.subr.mxu0 0.0
    %6937 = vmatpush2.xpose.msra.mxu0 0.0
    %6938 = vmatprep.subr.mxu0 0.0
    %6939 = vmatpush2.xpose.msra.mxu0 0.0
    %6940 = vmatprep.subr.mxu0 0.0
    %6941 = vmatpush2.xpose.msra.mxu0 0.0
    %6942 = vmatprep.subr.mxu0 0.0
    %6943 = vmatpush2.xpose.msra.mxu0 0.0
    %6944 = vmatprep.subr.mxu0 0.0
    %6945 = vmatpush2.xpose.msra.mxu0 0.0
    %6946 = vmatprep.subr.mxu0 0.0
    %6947 = vmatpush2.xpose.msra.mxu0 0.0
    %6948 = vmatprep.subr.mxu0 0.0
    %6949 = vmatpush2.xpose.msra.mxu0 0.0
    %6950 = vmatprep.subr.mxu0 0.0
    %6951 = vmatpush2.xpose.msra.mxu0 0.0
    %6952 = vmatprep.subr.mxu0 0.0
    %6953 = vmatpush2.xpose.msra.mxu0 0.0
    %6954 = vmatprep.subr.mxu0 0.0
    %6955 = vmatpush2.xpose.msra.mxu0 0.0
    %6956 = vmatprep.subr.mxu0 0.0
    %6957 = vmatpush2.xpose.msra.mxu0 0.0
    %6958 = vmatprep.subr.mxu0 0.0
    %6959 = vmatpush2.xpose.msra.mxu0 0.0
    %6960 = vmatprep.subr.mxu0 0.0
    %6961 = vmatpush2.xpose.msra.mxu0 0.0
    %6962 = vmatprep.mubr.f32.mxu0 0.0
    %6963 = vmatmul.mubr.f32.gmra.mxu0 %v6893
    %v6964 = vpop.f32.mrf.mxu0
    %v6965 = vadd.f32 0.0, %v6964
    %v6966 = vpop.f32.mrf.mxu0
    %6967 = vdwg.mxu0
    %v6968 = vmul.f32 %v6889, 0.35355338
    %v6969 = vmul.f32 %v6965, 0.35355338
    %v6970 = vsel %vm390, %v6968, -inf
    %6971 = vmax.xlane.f32.xlu0 %v6970
    %v6972 = vpop.xlane.xlu0 %6971
    %v6973 = vsel %vm390, %v6969, -inf
    %6974 = vmax.xlane.f32.xlu0 %v6973
    %v6975 = vpop.xlane.xlu0 %6974
    %v6976 = vsub.f32 %v6968, %v6972
    %v6977 = vsub.f32 %v6969, %v6975
    %v6978 = vmul.f32 %v6976, 1.442695
    %v6979 = vpow.pop %v6978
    %v6980 = vmul.f32 %v6977, 1.442695
    %v6981 = vpow.pop %v6980
    %v6982 = vsel %vm390, %v6979, 0.0
    %6983 = vadd.xlane.f32.xlu0 %v6982
    %v6984 = vpop.xlane.xlu0 %6983
    %v6985 = vsel %vm390, %v6981, 0.0
    %6986 = vadd.xlane.f32.xlu0 %v6985
    %v6987 = vpop.xlane.xlu0 %6986
    %v6988 = vrcp.pop %v6984
    %v6989 = vrcp.pop %v6987
    %v6990 = vmul.f32 %v6979, %v6988
    %v6991 = vmul.f32 %v6981, %v6989
    %6992 = vrot.lane.b32.xlu0 %v6808, 96
    %v6993 = vpop.permute.xlu0 %6992
    %v6996 = vsel %vm390, %v6990, 0
    %6998 = vmatprep.subr.mxu0 0.0
    %6999 = vmatpush1.msra.mxu0 0.0
    %7000 = vmatprep.subr.mxu0 0.0
    %7001 = vmatpush1.msra.mxu0 0.0
    %7002 = vmatprep.subr.mxu0 0.0
    %7003 = vmatpush1.msra.mxu0 0.0
    %7004 = vmatprep.subr.mxu0 0.0
    %7005 = vmatpush1.msra.mxu0 0.0
    %7006 = vmatprep.subr.mxu0 0.0
    %7007 = vmatpush1.msra.mxu0 0.0
    %7008 = vmatprep.subr.mxu0 0.0
    %7009 = vmatpush1.msra.mxu0 0.0
    %7010 = vmatprep.subr.mxu0 0.0
    %7011 = vmatpush1.msra.mxu0 0.0
    %7012 = vmatprep.subr.mxu0 0.0
    %7013 = vmatpush1.msra.mxu0 0.0
    %7014 = vmatprep.subr.mxu0 0.0
    %7015 = vmatpush1.msra.mxu0 0.0
    %7016 = vmatprep.subr.mxu0 0.0
    %7017 = vmatpush1.msra.mxu0 0.0
    %7018 = vmatprep.subr.mxu0 0.0
    %7019 = vmatpush1.msra.mxu0 0.0
    %7020 = vmatprep.subr.mxu0 0.0
    %7021 = vmatpush1.msra.mxu0 0.0
    %7022 = vmatprep.subr.mxu0 0.0
    %7023 = vmatpush1.msra.mxu0 0.0
    %7024 = vmatprep.subr.mxu0 0.0
    %7025 = vmatpush1.msra.mxu0 0.0
    %7026 = vmatprep.subr.mxu0 0.0
    %7027 = vmatpush1.msra.mxu0 0.0
    %7028 = vmatprep.subr.mxu0 0.0
    %7029 = vmatpush1.msra.mxu0 %v6993
    %7030 = vmatprep.subr.mxu0 0.0
    %7031 = vmatpush2.msra.mxu0 0.0
    %7032 = vmatprep.subr.mxu0 0.0
    %7033 = vmatpush2.msra.mxu0 0.0
    %7034 = vmatprep.subr.mxu0 0.0
    %7035 = vmatpush2.msra.mxu0 0.0
    %7036 = vmatprep.subr.mxu0 0.0
    %7037 = vmatpush2.msra.mxu0 0.0
    %7038 = vmatprep.subr.mxu0 0.0
    %7039 = vmatpush2.msra.mxu0 0.0
    %7040 = vmatprep.subr.mxu0 0.0
    %7041 = vmatpush2.msra.mxu0 0.0
    %7042 = vmatprep.subr.mxu0 0.0
    %7043 = vmatpush2.msra.mxu0 0.0
    %7044 = vmatprep.subr.mxu0 0.0
    %7045 = vmatpush2.msra.mxu0 0.0
    %7046 = vmatprep.subr.mxu0 0.0
    %7047 = vmatpush2.msra.mxu0 0.0
    %7048 = vmatprep.subr.mxu0 0.0
    %7049 = vmatpush2.msra.mxu0 0.0
    %7050 = vmatprep.subr.mxu0 0.0
    %7051 = vmatpush2.msra.mxu0 0.0
    %7052 = vmatprep.subr.mxu0 0.0
    %7053 = vmatpush2.msra.mxu0 0.0
    %7054 = vmatprep.subr.mxu0 0.0
    %7055 = vmatpush2.msra.mxu0 0.0
    %7056 = vmatprep.subr.mxu0 0.0
    %7057 = vmatpush2.msra.mxu0 0.0
    %7058 = vmatprep.subr.mxu0 0.0
    %7059 = vmatpush2.msra.mxu0 0.0
    %7060 = vmatprep.subr.mxu0 0.0
    %7061 = vmatpush2.msra.mxu0 0.0
    %7062 = vmatprep.mubr.f32.mxu0 0.0
    %7063 = vmatmul.mubr.f32.gmra.mxu0 %v6996
    %v7064 = vpop.f32.mrf.mxu0
    %v7065 = vadd.f32 0.0, %v7064
    %v7066 = vpop.f32.mrf.mxu0
    %7067 = vdwg.mxu0
    %7068 = vrot.lane.b32.xlu0 %v6813, 96
    %v7069 = vpop.permute.xlu0 %7068
    %v7072 = vsel %vm390, %v6991, 0
    %7074 = vmatprep.subr.mxu0 0.0
    %7075 = vmatpush1.msra.mxu0 0.0
    %7076 = vmatprep.subr.mxu0 0.0
    %7077 = vmatpush1.msra.mxu0 0.0
    %7078 = vmatprep.subr.mxu0 0.0
    %7079 = vmatpush1.msra.mxu0 0.0
    %7080 = vmatprep.subr.mxu0 0.0
    %7081 = vmatpush1.msra.mxu0 0.0
    %7082 = vmatprep.subr.mxu0 0.0
    %7083 = vmatpush1.msra.mxu0 0.0
    %7084 = vmatprep.subr.mxu0 0.0
    %7085 = vmatpush1.msra.mxu0 0.0
    %7086 = vmatprep.subr.mxu0 0.0
    %7087 = vmatpush1.msra.mxu0 0.0
    %7088 = vmatprep.subr.mxu0 0.0
    %7089 = vmatpush1.msra.mxu0 0.0
    %7090 = vmatprep.subr.mxu0 0.0
    %7091 = vmatpush1.msra.mxu0 0.0
    %7092 = vmatprep.subr.mxu0 0.0
    %7093 = vmatpush1.msra.mxu0 0.0
    %7094 = vmatprep.subr.mxu0 0.0
    %7095 = vmatpush1.msra.mxu0 0.0
    %7096 = vmatprep.subr.mxu0 0.0
    %7097 = vmatpush1.msra.mxu0 0.0
    %7098 = vmatprep.subr.mxu0 0.0
    %7099 = vmatpush1.msra.mxu0 0.0
    %7100 = vmatprep.subr.mxu0 0.0
    %7101 = vmatpush1.msra.mxu0 0.0
    %7102 = vmatprep.subr.mxu0 0.0
    %7103 = vmatpush1.msra.mxu0 0.0
    %7104 = vmatprep.subr.mxu0 0.0
    %7105 = vmatpush1.msra.mxu0 %v7069
    %7106 = vmatprep.subr.mxu0 0.0
    %7107 = vmatpush2.msra.mxu0 0.0
    %7108 = vmatprep.subr.mxu0 0.0
    %7109 = vmatpush2.msra.mxu0 0.0
    %7110 = vmatprep.subr.mxu0 0.0
    %7111 = vmatpush2.msra.mxu0 0.0
    %7112 = vmatprep.subr.mxu0 0.0
    %7113 = vmatpush2.msra.mxu0 0.0
    %7114 = vmatprep.subr.mxu0 0.0
    %7115 = vmatpush2.msra.mxu0 0.0
    %7116 = vmatprep.subr.mxu0 0.0
    %7117 = vmatpush2.msra.mxu0 0.0
    %7118 = vmatprep.subr.mxu0 0.0
    %7119 = vmatpush2.msra.mxu0 0.0
    %7120 = vmatprep.subr.mxu0 0.0
    %7121 = vmatpush2.msra.mxu0 0.0
    %7122 = vmatprep.subr.mxu0 0.0
    %7123 = vmatpush2.msra.mxu0 0.0
    %7124 = vmatprep.subr.mxu0 0.0
    %7125 = vmatpush2.msra.mxu0 0.0
    %7126 = vmatprep.subr.mxu0 0.0
    %7127 = vmatpush2.msra.mxu0 0.0
    %7128 = vmatprep.subr.mxu0 0.0
    %7129 = vmatpush2.msra.mxu0 0.0
    %7130 = vmatprep.subr.mxu0 0.0
    %7131 = vmatpush2.msra.mxu0 0.0
    %7132 = vmatprep.subr.mxu0 0.0
    %7133 = vmatpush2.msra.mxu0 0.0
    %7134 = vmatprep.subr.mxu0 0.0
    %7135 = vmatpush2.msra.mxu0 0.0
    %7136 = vmatprep.subr.mxu0 0.0
    %7137 = vmatpush2.msra.mxu0 0.0
    %7138 = vmatprep.mubr.f32.mxu0 0.0
    %7139 = vmatmul.mubr.f32.gmra.mxu0 %v7072
    %v7140 = vpop.f32.mrf.mxu0
    %v7141 = vadd.f32 0.0, %v7140
    %v7142 = vpop.f32.mrf.mxu0
    %7143 = vdwg.mxu0
    %s7144 = scalar_lea.vmem [#allocation13], 96
    %v7145 = vld [vmem:[%s7144] sm:$0xff]
    %7146 = vrot.lane.b32.xlu0 %v6708, 120
    %v7147 = vpop.permute.xlu0 %7146
    %7148 = vrot.lane.b32.xlu0 %v6808, 120
    %v7149 = vpop.permute.xlu0 %7148
    %v7150 = vsel %vm390, %v7147, 0
    %v7152 = vsel %vm390, %v7149, 0
    %7154 = vmatprep.subr.mxu0 0.0
    %7155 = vmatpush1.xpose.msra.mxu0 0.0
    %7156 = vmatprep.subr.mxu0 0.0
    %7157 = vmatpush1.xpose.msra.mxu0 0.0
    %7158 = vmatprep.subr.mxu0 0.0
    %7159 = vmatpush1.xpose.msra.mxu0 0.0
    %7160 = vmatprep.subr.mxu0 0.0
    %7161 = vmatpush1.xpose.msra.mxu0 0.0
    %7162 = vmatprep.subr.mxu0 0.0
    %7163 = vmatpush1.xpose.msra.mxu0 0.0
    %7164 = vmatprep.subr.mxu0 0.0
    %7165 = vmatpush1.xpose.msra.mxu0 0.0
    %7166 = vmatprep.subr.mxu0 0.0
    %7167 = vmatpush1.xpose.msra.mxu0 0.0
    %7168 = vmatprep.subr.mxu0 0.0
    %7169 = vmatpush1.xpose.msra.mxu0 0.0
    %7170 = vmatprep.subr.mxu0 0.0
    %7171 = vmatpush1.xpose.msra.mxu0 0.0
    %7172 = vmatprep.subr.mxu0 0.0
    %7173 = vmatpush1.xpose.msra.mxu0 0.0
    %7174 = vmatprep.subr.mxu0 0.0
    %7175 = vmatpush1.xpose.msra.mxu0 0.0
    %7176 = vmatprep.subr.mxu0 0.0
    %7177 = vmatpush1.xpose.msra.mxu0 0.0
    %7178 = vmatprep.subr.mxu0 0.0
    %7179 = vmatpush1.xpose.msra.mxu0 0.0
    %7180 = vmatprep.subr.mxu0 0.0
    %7181 = vmatpush1.xpose.msra.mxu0 0.0
    %7182 = vmatprep.subr.mxu0 0.0
    %7183 = vmatpush1.xpose.msra.mxu0 0.0
    %7184 = vmatprep.subr.mxu0 0.0
    %7185 = vmatpush1.xpose.msra.mxu0 %v7152
    %7186 = vmatprep.subr.mxu0 0.0
    %7187 = vmatpush2.xpose.msra.mxu0 0.0
    %7188 = vmatprep.subr.mxu0 0.0
    %7189 = vmatpush2.xpose.msra.mxu0 0.0
    %7190 = vmatprep.subr.mxu0 0.0
    %7191 = vmatpush2.xpose.msra.mxu0 0.0
    %7192 = vmatprep.subr.mxu0 0.0
    %7193 = vmatpush2.xpose.msra.mxu0 0.0
    %7194 = vmatprep.subr.mxu0 0.0
    %7195 = vmatpush2.xpose.msra.mxu0 0.0
    %7196 = vmatprep.subr.mxu0 0.0
    %7197 = vmatpush2.xpose.msra.mxu0 0.0
    %7198 = vmatprep.subr.mxu0 0.0
    %7199 = vmatpush2.xpose.msra.mxu0 0.0
    %7200 = vmatprep.subr.mxu0 0.0
    %7201 = vmatpush2.xpose.msra.mxu0 0.0
    %7202 = vmatprep.subr.mxu0 0.0
    %7203 = vmatpush2.xpose.msra.mxu0 0.0
    %7204 = vmatprep.subr.mxu0 0.0
    %7205 = vmatpush2.xpose.msra.mxu0 0.0
    %7206 = vmatprep.subr.mxu0 0.0
    %7207 = vmatpush2.xpose.msra.mxu0 0.0
    %7208 = vmatprep.subr.mxu0 0.0
    %7209 = vmatpush2.xpose.msra.mxu0 0.0
    %7210 = vmatprep.subr.mxu0 0.0
    %7211 = vmatpush2.xpose.msra.mxu0 0.0
    %7212 = vmatprep.subr.mxu0 0.0
    %7213 = vmatpush2.xpose.msra.mxu0 0.0
    %7214 = vmatprep.subr.mxu0 0.0
    %7215 = vmatpush2.xpose.msra.mxu0 0.0
    %7216 = vmatprep.subr.mxu0 0.0
    %7217 = vmatpush2.xpose.msra.mxu0 0.0
    %7218 = vmatprep.mubr.f32.mxu0 0.0
    %7219 = vmatmul.mubr.f32.gmra.mxu0 %v7150
    %v7220 = vpop.f32.mrf.mxu0
    %v7221 = vadd.f32 0.0, %v7220
    %v7222 = vpop.f32.mrf.mxu0
    %7223 = vdwg.mxu0
    %7224 = vrot.lane.b32.xlu0 %v6713, 120
    %v7225 = vpop.permute.xlu0 %7224
    %7226 = vrot.lane.b32.xlu0 %v6813, 120
    %v7227 = vpop.permute.xlu0 %7226
    %v7228 = vsel %vm390, %v7225, 0
    %v7230 = vsel %vm390, %v7227, 0
    %7232 = vmatprep.subr.mxu0 0.0
    %7233 = vmatpush1.xpose.msra.mxu0 0.0
    %7234 = vmatprep.subr.mxu0 0.0
    %7235 = vmatpush1.xpose.msra.mxu0 0.0
    %7236 = vmatprep.subr.mxu0 0.0
    %7237 = vmatpush1.xpose.msra.mxu0 0.0
    %7238 = vmatprep.subr.mxu0 0.0
    %7239 = vmatpush1.xpose.msra.mxu0 0.0
    %7240 = vmatprep.subr.mxu0 0.0
    %7241 = vmatpush1.xpose.msra.mxu0 0.0
    %7242 = vmatprep.subr.mxu0 0.0
    %7243 = vmatpush1.xpose.msra.mxu0 0.0
    %7244 = vmatprep.subr.mxu0 0.0
    %7245 = vmatpush1.xpose.msra.mxu0 0.0
    %7246 = vmatprep.subr.mxu0 0.0
    %7247 = vmatpush1.xpose.msra.mxu0 0.0
    %7248 = vmatprep.subr.mxu0 0.0
    %7249 = vmatpush1.xpose.msra.mxu0 0.0
    %7250 = vmatprep.subr.mxu0 0.0
    %7251 = vmatpush1.xpose.msra.mxu0 0.0
    %7252 = vmatprep.subr.mxu0 0.0
    %7253 = vmatpush1.xpose.msra.mxu0 0.0
    %7254 = vmatprep.subr.mxu0 0.0
    %7255 = vmatpush1.xpose.msra.mxu0 0.0
    %7256 = vmatprep.subr.mxu0 0.0
    %7257 = vmatpush1.xpose.msra.mxu0 0.0
    %7258 = vmatprep.subr.mxu0 0.0
    %7259 = vmatpush1.xpose.msra.mxu0 0.0
    %7260 = vmatprep.subr.mxu0 0.0
    %7261 = vmatpush1.xpose.msra.mxu0 0.0
    %7262 = vmatprep.subr.mxu0 0.0
    %7263 = vmatpush1.xpose.msra.mxu0 %v7230
    %7264 = vmatprep.subr.mxu0 0.0
    %7265 = vmatpush2.xpose.msra.mxu0 0.0
    %7266 = vmatprep.subr.mxu0 0.0
    %7267 = vmatpush2.xpose.msra.mxu0 0.0
    %7268 = vmatprep.subr.mxu0 0.0
    %7269 = vmatpush2.xpose.msra.mxu0 0.0
    %7270 = vmatprep.subr.mxu0 0.0
    %7271 = vmatpush2.xpose.msra.mxu0 0.0
    %7272 = vmatprep.subr.mxu0 0.0
    %7273 = vmatpush2.xpose.msra.mxu0 0.0
    %7274 = vmatprep.subr.mxu0 0.0
    %7275 = vmatpush2.xpose.msra.mxu0 0.0
    %7276 = vmatprep.subr.mxu0 0.0
    %7277 = vmatpush2.xpose.msra.mxu0 0.0
    %7278 = vmatprep.subr.mxu0 0.0
    %7279 = vmatpush2.xpose.msra.mxu0 0.0
    %7280 = vmatprep.subr.mxu0 0.0
    %7281 = vmatpush2.xpose.msra.mxu0 0.0
    %7282 = vmatprep.subr.mxu0 0.0
    %7283 = vmatpush2.xpose.msra.mxu0 0.0
    %7284 = vmatprep.subr.mxu0 0.0
    %7285 = vmatpush2.xpose.msra.mxu0 0.0
    %7286 = vmatprep.subr.mxu0 0.0
    %7287 = vmatpush2.xpose.msra.mxu0 0.0
    %7288 = vmatprep.subr.mxu0 0.0
    %7289 = vmatpush2.xpose.msra.mxu0 0.0
    %7290 = vmatprep.subr.mxu0 0.0
    %7291 = vmatpush2.xpose.msra.mxu0 0.0
    %7292 = vmatprep.subr.mxu0 0.0
    %7293 = vmatpush2.xpose.msra.mxu0 0.0
    %7294 = vmatprep.subr.mxu0 0.0
    %7295 = vmatpush2.xpose.msra.mxu0 0.0
    %7296 = vmatprep.mubr.f32.mxu0 0.0
    %7297 = vmatmul.mubr.f32.gmra.mxu0 %v7228
    %v7298 = vpop.f32.mrf.mxu0
    %v7299 = vadd.f32 0.0, %v7298
    %v7300 = vpop.f32.mrf.mxu0
    %7301 = vdwg.mxu0
    %v7302 = vmul.f32 %v7221, 0.35355338
    %v7303 = vmul.f32 %v7299, 0.35355338
    %v7304 = vsel %vm390, %v7302, -inf
    %7305 = vmax.xlane.f32.xlu0 %v7304
    %v7306 = vpop.xlane.xlu0 %7305
    %v7307 = vsel %vm390, %v7303, -inf
    %7308 = vmax.xlane.f32.xlu0 %v7307
    %v7309 = vpop.xlane.xlu0 %7308
    %v7310 = vsub.f32 %v7302, %v7306
    %v7311 = vsub.f32 %v7303, %v7309
    %v7312 = vmul.f32 %v7310, 1.442695
    %v7313 = vpow.pop %v7312
    %v7314 = vmul.f32 %v7311, 1.442695
    %v7315 = vpow.pop %v7314
    %v7316 = vsel %vm390, %v7313, 0.0
    %7317 = vadd.xlane.f32.xlu0 %v7316
    %v7318 = vpop.xlane.xlu0 %7317
    %v7319 = vsel %vm390, %v7315, 0.0
    %7320 = vadd.xlane.f32.xlu0 %v7319
    %v7321 = vpop.xlane.xlu0 %7320
    %v7322 = vrcp.pop %v7318
    %v7323 = vrcp.pop %v7321
    %v7324 = vmul.f32 %v7313, %v7322
    %v7325 = vmul.f32 %v7315, %v7323
    %7326 = vrot.lane.b32.xlu0 %v6808, 88
    %v7327 = vpop.permute.xlu0 %7326
    %v7330 = vsel %vm390, %v7324, 0
    %7332 = vmatprep.subr.mxu0 0.0
    %7333 = vmatpush1.msra.mxu0 0.0
    %7334 = vmatprep.subr.mxu0 0.0
    %7335 = vmatpush1.msra.mxu0 0.0
    %7336 = vmatprep.subr.mxu0 0.0
    %7337 = vmatpush1.msra.mxu0 0.0
    %7338 = vmatprep.subr.mxu0 0.0
    %7339 = vmatpush1.msra.mxu0 0.0
    %7340 = vmatprep.subr.mxu0 0.0
    %7341 = vmatpush1.msra.mxu0 0.0
    %7342 = vmatprep.subr.mxu0 0.0
    %7343 = vmatpush1.msra.mxu0 0.0
    %7344 = vmatprep.subr.mxu0 0.0
    %7345 = vmatpush1.msra.mxu0 0.0
    %7346 = vmatprep.subr.mxu0 0.0
    %7347 = vmatpush1.msra.mxu0 0.0
    %7348 = vmatprep.subr.mxu0 0.0
    %7349 = vmatpush1.msra.mxu0 0.0
    %7350 = vmatprep.subr.mxu0 0.0
    %7351 = vmatpush1.msra.mxu0 0.0
    %7352 = vmatprep.subr.mxu0 0.0
    %7353 = vmatpush1.msra.mxu0 0.0
    %7354 = vmatprep.subr.mxu0 0.0
    %7355 = vmatpush1.msra.mxu0 0.0
    %7356 = vmatprep.subr.mxu0 0.0
    %7357 = vmatpush1.msra.mxu0 0.0
    %7358 = vmatprep.subr.mxu0 0.0
    %7359 = vmatpush1.msra.mxu0 0.0
    %7360 = vmatprep.subr.mxu0 0.0
    %7361 = vmatpush1.msra.mxu0 0.0
    %7362 = vmatprep.subr.mxu0 0.0
    %7363 = vmatpush1.msra.mxu0 %v7327
    %7364 = vmatprep.subr.mxu0 0.0
    %7365 = vmatpush2.msra.mxu0 0.0
    %7366 = vmatprep.subr.mxu0 0.0
    %7367 = vmatpush2.msra.mxu0 0.0
    %7368 = vmatprep.subr.mxu0 0.0
    %7369 = vmatpush2.msra.mxu0 0.0
    %7370 = vmatprep.subr.mxu0 0.0
    %7371 = vmatpush2.msra.mxu0 0.0
    %7372 = vmatprep.subr.mxu0 0.0
    %7373 = vmatpush2.msra.mxu0 0.0
    %7374 = vmatprep.subr.mxu0 0.0
    %7375 = vmatpush2.msra.mxu0 0.0
    %7376 = vmatprep.subr.mxu0 0.0
    %7377 = vmatpush2.msra.mxu0 0.0
    %7378 = vmatprep.subr.mxu0 0.0
    %7379 = vmatpush2.msra.mxu0 0.0
    %7380 = vmatprep.subr.mxu0 0.0
    %7381 = vmatpush2.msra.mxu0 0.0
    %7382 = vmatprep.subr.mxu0 0.0
    %7383 = vmatpush2.msra.mxu0 0.0
    %7384 = vmatprep.subr.mxu0 0.0
    %7385 = vmatpush2.msra.mxu0 0.0
    %7386 = vmatprep.subr.mxu0 0.0
    %7387 = vmatpush2.msra.mxu0 0.0
    %7388 = vmatprep.subr.mxu0 0.0
    %7389 = vmatpush2.msra.mxu0 0.0
    %7390 = vmatprep.subr.mxu0 0.0
    %7391 = vmatpush2.msra.mxu0 0.0
    %7392 = vmatprep.subr.mxu0 0.0
    %7393 = vmatpush2.msra.mxu0 0.0
    %7394 = vmatprep.subr.mxu0 0.0
    %7395 = vmatpush2.msra.mxu0 0.0
    %7396 = vmatprep.mubr.f32.mxu0 0.0
    %7397 = vmatmul.mubr.f32.gmra.mxu0 %v7330
    %v7398 = vpop.f32.mrf.mxu0
    %v7399 = vadd.f32 0.0, %v7398
    %v7400 = vpop.f32.mrf.mxu0
    %7401 = vdwg.mxu0
    %7402 = vrot.lane.b32.xlu0 %v6813, 88
    %v7403 = vpop.permute.xlu0 %7402
    %v7406 = vsel %vm390, %v7325, 0
    %7408 = vmatprep.subr.mxu0 0.0
    %7409 = vmatpush1.msra.mxu0 0.0
    %7410 = vmatprep.subr.mxu0 0.0
    %7411 = vmatpush1.msra.mxu0 0.0
    %7412 = vmatprep.subr.mxu0 0.0
    %7413 = vmatpush1.msra.mxu0 0.0
    %7414 = vmatprep.subr.mxu0 0.0
    %7415 = vmatpush1.msra.mxu0 0.0
    %7416 = vmatprep.subr.mxu0 0.0
    %7417 = vmatpush1.msra.mxu0 0.0
    %7418 = vmatprep.subr.mxu0 0.0
    %7419 = vmatpush1.msra.mxu0 0.0
    %7420 = vmatprep.subr.mxu0 0.0
    %7421 = vmatpush1.msra.mxu0 0.0
    %7422 = vmatprep.subr.mxu0 0.0
    %7423 = vmatpush1.msra.mxu0 0.0
    %7424 = vmatprep.subr.mxu0 0.0
    %7425 = vmatpush1.msra.mxu0 0.0
    %7426 = vmatprep.subr.mxu0 0.0
    %7427 = vmatpush1.msra.mxu0 0.0
    %7428 = vmatprep.subr.mxu0 0.0
    %7429 = vmatpush1.msra.mxu0 0.0
    %7430 = vmatprep.subr.mxu0 0.0
    %7431 = vmatpush1.msra.mxu0 0.0
    %7432 = vmatprep.subr.mxu0 0.0
    %7433 = vmatpush1.msra.mxu0 0.0
    %7434 = vmatprep.subr.mxu0 0.0
    %7435 = vmatpush1.msra.mxu0 0.0
    %7436 = vmatprep.subr.mxu0 0.0
    %7437 = vmatpush1.msra.mxu0 0.0
    %7438 = vmatprep.subr.mxu0 0.0
    %7439 = vmatpush1.msra.mxu0 %v7403
    %7440 = vmatprep.subr.mxu0 0.0
    %7441 = vmatpush2.msra.mxu0 0.0
    %7442 = vmatprep.subr.mxu0 0.0
    %7443 = vmatpush2.msra.mxu0 0.0
    %7444 = vmatprep.subr.mxu0 0.0
    %7445 = vmatpush2.msra.mxu0 0.0
    %7446 = vmatprep.subr.mxu0 0.0
    %7447 = vmatpush2.msra.mxu0 0.0
    %7448 = vmatprep.subr.mxu0 0.0
    %7449 = vmatpush2.msra.mxu0 0.0
    %7450 = vmatprep.subr.mxu0 0.0
    %7451 = vmatpush2.msra.mxu0 0.0
    %7452 = vmatprep.subr.mxu0 0.0
    %7453 = vmatpush2.msra.mxu0 0.0
    %7454 = vmatprep.subr.mxu0 0.0
    %7455 = vmatpush2.msra.mxu0 0.0
    %7456 = vmatprep.subr.mxu0 0.0
    %7457 = vmatpush2.msra.mxu0 0.0
    %7458 = vmatprep.subr.mxu0 0.0
    %7459 = vmatpush2.msra.mxu0 0.0
    %7460 = vmatprep.subr.mxu0 0.0
    %7461 = vmatpush2.msra.mxu0 0.0
    %7462 = vmatprep.subr.mxu0 0.0
    %7463 = vmatpush2.msra.mxu0 0.0
    %7464 = vmatprep.subr.mxu0 0.0
    %7465 = vmatpush2.msra.mxu0 0.0
    %7466 = vmatprep.subr.mxu0 0.0
    %7467 = vmatpush2.msra.mxu0 0.0
    %7468 = vmatprep.subr.mxu0 0.0
    %7469 = vmatpush2.msra.mxu0 0.0
    %7470 = vmatprep.subr.mxu0 0.0
    %7471 = vmatpush2.msra.mxu0 0.0
    %7472 = vmatprep.mubr.f32.mxu0 0.0
    %7473 = vmatmul.mubr.f32.gmra.mxu0 %v7406
    %v7474 = vpop.f32.mrf.mxu0
    %v7475 = vadd.f32 0.0, %v7474
    %v7476 = vpop.f32.mrf.mxu0
    %7477 = vdwg.mxu0
    %s7478 = scalar_lea.vmem [#allocation13], 104
    %v7479 = vld [vmem:[%s7478] sm:$0xff]
    %v7481 = vsel %vm390, %v7399, 0
    %v7484 = vsel %vm390, %v7475, 0
    %7486 = vmatprep.subr.mxu0 0.0
    %7487 = vmatpush1.msra.mxu0 0.0
    %7488 = vmatprep.subr.mxu0 0.0
    %7489 = vmatpush1.msra.mxu0 0.0
    %7490 = vmatprep.subr.mxu0 0.0
    %7491 = vmatpush1.msra.mxu0 0.0
    %7492 = vmatprep.subr.mxu0 0.0
    %7493 = vmatpush1.msra.mxu0 0.0
    %7494 = vmatprep.subr.mxu0 0.0
    %7495 = vmatpush1.msra.mxu0 0.0
    %7496 = vmatprep.subr.mxu0 0.0
    %7497 = vmatpush1.msra.mxu0 0.0
    %7498 = vmatprep.subr.mxu0 0.0
    %7499 = vmatpush1.msra.mxu0 0.0
    %7500 = vmatprep.subr.mxu0 0.0
    %7501 = vmatpush1.msra.mxu0 0.0
    %7502 = vmatprep.subr.mxu0 0.0
    %7503 = vmatpush1.msra.mxu0 0.0
    %7504 = vmatprep.subr.mxu0 0.0
    %7505 = vmatpush1.msra.mxu0 0.0
    %7506 = vmatprep.subr.mxu0 0.0
    %7507 = vmatpush1.msra.mxu0 0.0
    %7508 = vmatprep.subr.mxu0 0.0
    %7509 = vmatpush1.msra.mxu0 0.0
    %7510 = vmatprep.subr.mxu0 0.0
    %7511 = vmatpush1.msra.mxu0 0.0
    %7512 = vmatprep.subr.mxu0 0.0
    %7513 = vmatpush1.msra.mxu0 0.0
    %7514 = vmatprep.subr.mxu0 0.0
    %7515 = vmatpush1.msra.mxu0 0.0
    %7516 = vmatprep.subr.mxu0 0.0
    %7517 = vmatpush1.msra.mxu0 %v7479
    %7518 = vmatprep.subr.mxu0 0.0
    %7519 = vmatpush2.msra.mxu0 0.0
    %7520 = vmatprep.subr.mxu0 0.0
    %7521 = vmatpush2.msra.mxu0 0.0
    %7522 = vmatprep.subr.mxu0 0.0
    %7523 = vmatpush2.msra.mxu0 0.0
    %7524 = vmatprep.subr.mxu0 0.0
    %7525 = vmatpush2.msra.mxu0 0.0
    %7526 = vmatprep.subr.mxu0 0.0
    %7527 = vmatpush2.msra.mxu0 0.0
    %7528 = vmatprep.subr.mxu0 0.0
    %7529 = vmatpush2.msra.mxu0 0.0
    %7530 = vmatprep.subr.mxu0 0.0
    %7531 = vmatpush2.msra.mxu0 0.0
    %7532 = vmatprep.subr.mxu0 0.0
    %7533 = vmatpush2.msra.mxu0 0.0
    %7534 = vmatprep.subr.mxu0 0.0
    %7535 = vmatpush2.msra.mxu0 0.0
    %7536 = vmatprep.subr.mxu0 0.0
    %7537 = vmatpush2.msra.mxu0 0.0
    %7538 = vmatprep.subr.mxu0 0.0
    %7539 = vmatpush2.msra.mxu0 0.0
    %7540 = vmatprep.subr.mxu0 0.0
    %7541 = vmatpush2.msra.mxu0 0.0
    %7542 = vmatprep.subr.mxu0 0.0
    %7543 = vmatpush2.msra.mxu0 0.0
    %7544 = vmatprep.subr.mxu0 0.0
    %7545 = vmatpush2.msra.mxu0 0.0
    %7546 = vmatprep.subr.mxu0 0.0
    %7547 = vmatpush2.msra.mxu0 0.0
    %7548 = vmatprep.subr.mxu0 0.0
    %7549 = vmatpush2.msra.mxu0 0.0
    %7550 = vmatprep.mubr.f32.mxu0 0.0
    %7551 = vmatmul.mubr.f32.gmra.mxu0 %v7481
    %v7552 = vpop.f32.mrf.mxu0
    %v7553 = vadd.f32 0.0, %v7552
    %v7554 = vpop.f32.mrf.mxu0
    %7555 = vmatprep.mubr.f32.mxu0 0.0
    %7556 = vmatmul.mubr.f32.gmra.mxu0 %v7484
    %v7557 = vpop.f32.mrf.mxu0
    %v7558 = vadd.f32 0.0, %v7557
    %v7559 = vpop.f32.mrf.mxu0
    %7560 = vdwg.mxu0
    %v7562 = vsel %vm390, %v7065, 0
    %v7565 = vsel %vm390, %v7141, 0
    %7567 = vmatprep.subr.mxu0 0.0
    %7568 = vmatpush1.msra.mxu0 0.0
    %7569 = vmatprep.subr.mxu0 0.0
    %7570 = vmatpush1.msra.mxu0 0.0
    %7571 = vmatprep.subr.mxu0 0.0
    %7572 = vmatpush1.msra.mxu0 0.0
    %7573 = vmatprep.subr.mxu0 0.0
    %7574 = vmatpush1.msra.mxu0 0.0
    %7575 = vmatprep.subr.mxu0 0.0
    %7576 = vmatpush1.msra.mxu0 0.0
    %7577 = vmatprep.subr.mxu0 0.0
    %7578 = vmatpush1.msra.mxu0 0.0
    %7579 = vmatprep.subr.mxu0 0.0
    %7580 = vmatpush1.msra.mxu0 0.0
    %7581 = vmatprep.subr.mxu0 0.0
    %7582 = vmatpush1.msra.mxu0 0.0
    %7583 = vmatprep.subr.mxu0 0.0
    %7584 = vmatpush1.msra.mxu0 0.0
    %7585 = vmatprep.subr.mxu0 0.0
    %7586 = vmatpush1.msra.mxu0 0.0
    %7587 = vmatprep.subr.mxu0 0.0
    %7588 = vmatpush1.msra.mxu0 0.0
    %7589 = vmatprep.subr.mxu0 0.0
    %7590 = vmatpush1.msra.mxu0 0.0
    %7591 = vmatprep.subr.mxu0 0.0
    %7592 = vmatpush1.msra.mxu0 0.0
    %7593 = vmatprep.subr.mxu0 0.0
    %7594 = vmatpush1.msra.mxu0 0.0
    %7595 = vmatprep.subr.mxu0 0.0
    %7596 = vmatpush1.msra.mxu0 0.0
    %7597 = vmatprep.subr.mxu0 0.0
    %7598 = vmatpush1.msra.mxu0 %v7145
    %7599 = vmatprep.subr.mxu0 0.0
    %7600 = vmatpush2.msra.mxu0 0.0
    %7601 = vmatprep.subr.mxu0 0.0
    %7602 = vmatpush2.msra.mxu0 0.0
    %7603 = vmatprep.subr.mxu0 0.0
    %7604 = vmatpush2.msra.mxu0 0.0
    %7605 = vmatprep.subr.mxu0 0.0
    %7606 = vmatpush2.msra.mxu0 0.0
    %7607 = vmatprep.subr.mxu0 0.0
    %7608 = vmatpush2.msra.mxu0 0.0
    %7609 = vmatprep.subr.mxu0 0.0
    %7610 = vmatpush2.msra.mxu0 0.0
    %7611 = vmatprep.subr.mxu0 0.0
    %7612 = vmatpush2.msra.mxu0 0.0
    %7613 = vmatprep.subr.mxu0 0.0
    %7614 = vmatpush2.msra.mxu0 0.0
    %7615 = vmatprep.subr.mxu0 0.0
    %7616 = vmatpush2.msra.mxu0 0.0
    %7617 = vmatprep.subr.mxu0 0.0
    %7618 = vmatpush2.msra.mxu0 0.0
    %7619 = vmatprep.subr.mxu0 0.0
    %7620 = vmatpush2.msra.mxu0 0.0
    %7621 = vmatprep.subr.mxu0 0.0
    %7622 = vmatpush2.msra.mxu0 0.0
    %7623 = vmatprep.subr.mxu0 0.0
    %7624 = vmatpush2.msra.mxu0 0.0
    %7625 = vmatprep.subr.mxu0 0.0
    %7626 = vmatpush2.msra.mxu0 0.0
    %7627 = vmatprep.subr.mxu0 0.0
    %7628 = vmatpush2.msra.mxu0 0.0
    %7629 = vmatprep.subr.mxu0 0.0
    %7630 = vmatpush2.msra.mxu0 0.0
    %7631 = vmatprep.mubr.f32.mxu0 0.0
    %7632 = vmatmul.mubr.f32.gmra.mxu0 %v7562
    %v7633 = vpop.f32.mrf.mxu0
    %v7634 = vadd.f32 %v7553, %v7633
    %v7635 = vpop.f32.mrf.mxu0
    %7636 = vmatprep.mubr.f32.mxu0 0.0
    %7637 = vmatmul.mubr.f32.gmra.mxu0 %v7565
    %v7638 = vpop.f32.mrf.mxu0
    %v7639 = vadd.f32 %v7558, %v7638
    %v7640 = vpop.f32.mrf.mxu0
    %7641 = vdwg.mxu0
    %7642 = vrot.lane.b32.xlu0 %v6708, 112
    %v7643 = vpop.permute.xlu0 %7642
    %7644 = vrot.lane.b32.xlu0 %v6808, 112
    %v7645 = vpop.permute.xlu0 %7644
    %v7646 = vsel %vm390, %v7643, 0
    %v7648 = vsel %vm390, %v7645, 0
    %7650 = vmatprep.subr.mxu0 0.0
    %7651 = vmatpush1.xpose.msra.mxu0 0.0
    %7652 = vmatprep.subr.mxu0 0.0
    %7653 = vmatpush1.xpose.msra.mxu0 0.0
    %7654 = vmatprep.subr.mxu0 0.0
    %7655 = vmatpush1.xpose.msra.mxu0 0.0
    %7656 = vmatprep.subr.mxu0 0.0
    %7657 = vmatpush1.xpose.msra.mxu0 0.0
    %7658 = vmatprep.subr.mxu0 0.0
    %7659 = vmatpush1.xpose.msra.mxu0 0.0
    %7660 = vmatprep.subr.mxu0 0.0
    %7661 = vmatpush1.xpose.msra.mxu0 0.0
    %7662 = vmatprep.subr.mxu0 0.0
    %7663 = vmatpush1.xpose.msra.mxu0 0.0
    %7664 = vmatprep.subr.mxu0 0.0
    %7665 = vmatpush1.xpose.msra.mxu0 0.0
    %7666 = vmatprep.subr.mxu0 0.0
    %7667 = vmatpush1.xpose.msra.mxu0 0.0
    %7668 = vmatprep.subr.mxu0 0.0
    %7669 = vmatpush1.xpose.msra.mxu0 0.0
    %7670 = vmatprep.subr.mxu0 0.0
    %7671 = vmatpush1.xpose.msra.mxu0 0.0
    %7672 = vmatprep.subr.mxu0 0.0
    %7673 = vmatpush1.xpose.msra.mxu0 0.0
    %7674 = vmatprep.subr.mxu0 0.0
    %7675 = vmatpush1.xpose.msra.mxu0 0.0
    %7676 = vmatprep.subr.mxu0 0.0
    %7677 = vmatpush1.xpose.msra.mxu0 0.0
    %7678 = vmatprep.subr.mxu0 0.0
    %7679 = vmatpush1.xpose.msra.mxu0 0.0
    %7680 = vmatprep.subr.mxu0 0.0
    %7681 = vmatpush1.xpose.msra.mxu0 %v7648
    %7682 = vmatprep.subr.mxu0 0.0
    %7683 = vmatpush2.xpose.msra.mxu0 0.0
    %7684 = vmatprep.subr.mxu0 0.0
    %7685 = vmatpush2.xpose.msra.mxu0 0.0
    %7686 = vmatprep.subr.mxu0 0.0
    %7687 = vmatpush2.xpose.msra.mxu0 0.0
    %7688 = vmatprep.subr.mxu0 0.0
    %7689 = vmatpush2.xpose.msra.mxu0 0.0
    %7690 = vmatprep.subr.mxu0 0.0
    %7691 = vmatpush2.xpose.msra.mxu0 0.0
    %7692 = vmatprep.subr.mxu0 0.0
    %7693 = vmatpush2.xpose.msra.mxu0 0.0
    %7694 = vmatprep.subr.mxu0 0.0
    %7695 = vmatpush2.xpose.msra.mxu0 0.0
    %7696 = vmatprep.subr.mxu0 0.0
    %7697 = vmatpush2.xpose.msra.mxu0 0.0
    %7698 = vmatprep.subr.mxu0 0.0
    %7699 = vmatpush2.xpose.msra.mxu0 0.0
    %7700 = vmatprep.subr.mxu0 0.0
    %7701 = vmatpush2.xpose.msra.mxu0 0.0
    %7702 = vmatprep.subr.mxu0 0.0
    %7703 = vmatpush2.xpose.msra.mxu0 0.0
    %7704 = vmatprep.subr.mxu0 0.0
    %7705 = vmatpush2.xpose.msra.mxu0 0.0
    %7706 = vmatprep.subr.mxu0 0.0
    %7707 = vmatpush2.xpose.msra.mxu0 0.0
    %7708 = vmatprep.subr.mxu0 0.0
    %7709 = vmatpush2.xpose.msra.mxu0 0.0
    %7710 = vmatprep.subr.mxu0 0.0
    %7711 = vmatpush2.xpose.msra.mxu0 0.0
    %7712 = vmatprep.subr.mxu0 0.0
    %7713 = vmatpush2.xpose.msra.mxu0 0.0
    %7714 = vmatprep.mubr.f32.mxu0 0.0
    %7715 = vmatmul.mubr.f32.gmra.mxu0 %v7646
    %v7716 = vpop.f32.mrf.mxu0
    %v7717 = vadd.f32 0.0, %v7716
    %v7718 = vpop.f32.mrf.mxu0
    %7719 = vdwg.mxu0
    %7720 = vrot.lane.b32.xlu0 %v6713, 112
    %v7721 = vpop.permute.xlu0 %7720
    %7722 = vrot.lane.b32.xlu0 %v6813, 112
    %v7723 = vpop.permute.xlu0 %7722
    %v7724 = vsel %vm390, %v7721, 0
    %v7726 = vsel %vm390, %v7723, 0
    %7728 = vmatprep.subr.mxu0 0.0
    %7729 = vmatpush1.xpose.msra.mxu0 0.0
    %7730 = vmatprep.subr.mxu0 0.0
    %7731 = vmatpush1.xpose.msra.mxu0 0.0
    %7732 = vmatprep.subr.mxu0 0.0
    %7733 = vmatpush1.xpose.msra.mxu0 0.0
    %7734 = vmatprep.subr.mxu0 0.0
    %7735 = vmatpush1.xpose.msra.mxu0 0.0
    %7736 = vmatprep.subr.mxu0 0.0
    %7737 = vmatpush1.xpose.msra.mxu0 0.0
    %7738 = vmatprep.subr.mxu0 0.0
    %7739 = vmatpush1.xpose.msra.mxu0 0.0
    %7740 = vmatprep.subr.mxu0 0.0
    %7741 = vmatpush1.xpose.msra.mxu0 0.0
    %7742 = vmatprep.subr.mxu0 0.0
    %7743 = vmatpush1.xpose.msra.mxu0 0.0
    %7744 = vmatprep.subr.mxu0 0.0
    %7745 = vmatpush1.xpose.msra.mxu0 0.0
    %7746 = vmatprep.subr.mxu0 0.0
    %7747 = vmatpush1.xpose.msra.mxu0 0.0
    %7748 = vmatprep.subr.mxu0 0.0
    %7749 = vmatpush1.xpose.msra.mxu0 0.0
    %7750 = vmatprep.subr.mxu0 0.0
    %7751 = vmatpush1.xpose.msra.mxu0 0.0
    %7752 = vmatprep.subr.mxu0 0.0
    %7753 = vmatpush1.xpose.msra.mxu0 0.0
    %7754 = vmatprep.subr.mxu0 0.0
    %7755 = vmatpush1.xpose.msra.mxu0 0.0
    %7756 = vmatprep.subr.mxu0 0.0
    %7757 = vmatpush1.xpose.msra.mxu0 0.0
    %7758 = vmatprep.subr.mxu0 0.0
    %7759 = vmatpush1.xpose.msra.mxu0 %v7726
    %7760 = vmatprep.subr.mxu0 0.0
    %7761 = vmatpush2.xpose.msra.mxu0 0.0
    %7762 = vmatprep.subr.mxu0 0.0
    %7763 = vmatpush2.xpose.msra.mxu0 0.0
    %7764 = vmatprep.subr.mxu0 0.0
    %7765 = vmatpush2.xpose.msra.mxu0 0.0
    %7766 = vmatprep.subr.mxu0 0.0
    %7767 = vmatpush2.xpose.msra.mxu0 0.0
    %7768 = vmatprep.subr.mxu0 0.0
    %7769 = vmatpush2.xpose.msra.mxu0 0.0
    %7770 = vmatprep.subr.mxu0 0.0
    %7771 = vmatpush2.xpose.msra.mxu0 0.0
    %7772 = vmatprep.subr.mxu0 0.0
    %7773 = vmatpush2.xpose.msra.mxu0 0.0
    %7774 = vmatprep.subr.mxu0 0.0
    %7775 = vmatpush2.xpose.msra.mxu0 0.0
    %7776 = vmatprep.subr.mxu0 0.0
    %7777 = vmatpush2.xpose.msra.mxu0 0.0
    %7778 = vmatprep.subr.mxu0 0.0
    %7779 = vmatpush2.xpose.msra.mxu0 0.0
    %7780 = vmatprep.subr.mxu0 0.0
    %7781 = vmatpush2.xpose.msra.mxu0 0.0
    %7782 = vmatprep.subr.mxu0 0.0
    %7783 = vmatpush2.xpose.msra.mxu0 0.0
    %7784 = vmatprep.subr.mxu0 0.0
    %7785 = vmatpush2.xpose.msra.mxu0 0.0
    %7786 = vmatprep.subr.mxu0 0.0
    %7787 = vmatpush2.xpose.msra.mxu0 0.0
    %7788 = vmatprep.subr.mxu0 0.0
    %7789 = vmatpush2.xpose.msra.mxu0 0.0
    %7790 = vmatprep.subr.mxu0 0.0
    %7791 = vmatpush2.xpose.msra.mxu0 0.0
    %7792 = vmatprep.mubr.f32.mxu0 0.0
    %7793 = vmatmul.mubr.f32.gmra.mxu0 %v7724
    %v7794 = vpop.f32.mrf.mxu0
    %v7795 = vadd.f32 0.0, %v7794
    %v7796 = vpop.f32.mrf.mxu0
    %7797 = vdwg.mxu0
    %v7798 = vmul.f32 %v7717, 0.35355338
    %v7799 = vmul.f32 %v7795, 0.35355338
    %v7800 = vsel %vm390, %v7798, -inf
    %7801 = vmax.xlane.f32.xlu0 %v7800
    %v7802 = vpop.xlane.xlu0 %7801
    %v7803 = vsel %vm390, %v7799, -inf
    %7804 = vmax.xlane.f32.xlu0 %v7803
    %v7805 = vpop.xlane.xlu0 %7804
    %v7806 = vsub.f32 %v7798, %v7802
    %v7807 = vsub.f32 %v7799, %v7805
    %v7808 = vmul.f32 %v7806, 1.442695
    %v7809 = vpow.pop %v7808
    %v7810 = vmul.f32 %v7807, 1.442695
    %v7811 = vpow.pop %v7810
    %v7812 = vsel %vm390, %v7809, 0.0
    %7813 = vadd.xlane.f32.xlu0 %v7812
    %v7814 = vpop.xlane.xlu0 %7813
    %v7815 = vsel %vm390, %v7811, 0.0
    %7816 = vadd.xlane.f32.xlu0 %v7815
    %v7817 = vpop.xlane.xlu0 %7816
    %v7818 = vrcp.pop %v7814
    %v7819 = vrcp.pop %v7817
    %v7820 = vmul.f32 %v7809, %v7818
    %v7821 = vmul.f32 %v7811, %v7819
    %7822 = vrot.lane.b32.xlu0 %v6808, 80
    %v7823 = vpop.permute.xlu0 %7822
    %v7826 = vsel %vm390, %v7820, 0
    %7828 = vmatprep.subr.mxu0 0.0
    %7829 = vmatpush1.msra.mxu0 0.0
    %7830 = vmatprep.subr.mxu0 0.0
    %7831 = vmatpush1.msra.mxu0 0.0
    %7832 = vmatprep.subr.mxu0 0.0
    %7833 = vmatpush1.msra.mxu0 0.0
    %7834 = vmatprep.subr.mxu0 0.0
    %7835 = vmatpush1.msra.mxu0 0.0
    %7836 = vmatprep.subr.mxu0 0.0
    %7837 = vmatpush1.msra.mxu0 0.0
    %7838 = vmatprep.subr.mxu0 0.0
    %7839 = vmatpush1.msra.mxu0 0.0
    %7840 = vmatprep.subr.mxu0 0.0
    %7841 = vmatpush1.msra.mxu0 0.0
    %7842 = vmatprep.subr.mxu0 0.0
    %7843 = vmatpush1.msra.mxu0 0.0
    %7844 = vmatprep.subr.mxu0 0.0
    %7845 = vmatpush1.msra.mxu0 0.0
    %7846 = vmatprep.subr.mxu0 0.0
    %7847 = vmatpush1.msra.mxu0 0.0
    %7848 = vmatprep.subr.mxu0 0.0
    %7849 = vmatpush1.msra.mxu0 0.0
    %7850 = vmatprep.subr.mxu0 0.0
    %7851 = vmatpush1.msra.mxu0 0.0
    %7852 = vmatprep.subr.mxu0 0.0
    %7853 = vmatpush1.msra.mxu0 0.0
    %7854 = vmatprep.subr.mxu0 0.0
    %7855 = vmatpush1.msra.mxu0 0.0
    %7856 = vmatprep.subr.mxu0 0.0
    %7857 = vmatpush1.msra.mxu0 0.0
    %7858 = vmatprep.subr.mxu0 0.0
    %7859 = vmatpush1.msra.mxu0 %v7823
    %7860 = vmatprep.subr.mxu0 0.0
    %7861 = vmatpush2.msra.mxu0 0.0
    %7862 = vmatprep.subr.mxu0 0.0
    %7863 = vmatpush2.msra.mxu0 0.0
    %7864 = vmatprep.subr.mxu0 0.0
    %7865 = vmatpush2.msra.mxu0 0.0
    %7866 = vmatprep.subr.mxu0 0.0
    %7867 = vmatpush2.msra.mxu0 0.0
    %7868 = vmatprep.subr.mxu0 0.0
    %7869 = vmatpush2.msra.mxu0 0.0
    %7870 = vmatprep.subr.mxu0 0.0
    %7871 = vmatpush2.msra.mxu0 0.0
    %7872 = vmatprep.subr.mxu0 0.0
    %7873 = vmatpush2.msra.mxu0 0.0
    %7874 = vmatprep.subr.mxu0 0.0
    %7875 = vmatpush2.msra.mxu0 0.0
    %7876 = vmatprep.subr.mxu0 0.0
    %7877 = vmatpush2.msra.mxu0 0.0
    %7878 = vmatprep.subr.mxu0 0.0
    %7879 = vmatpush2.msra.mxu0 0.0
    %7880 = vmatprep.subr.mxu0 0.0
    %7881 = vmatpush2.msra.mxu0 0.0
    %7882 = vmatprep.subr.mxu0 0.0
    %7883 = vmatpush2.msra.mxu0 0.0
    %7884 = vmatprep.subr.mxu0 0.0
    %7885 = vmatpush2.msra.mxu0 0.0
    %7886 = vmatprep.subr.mxu0 0.0
    %7887 = vmatpush2.msra.mxu0 0.0
    %7888 = vmatprep.subr.mxu0 0.0
    %7889 = vmatpush2.msra.mxu0 0.0
    %7890 = vmatprep.subr.mxu0 0.0
    %7891 = vmatpush2.msra.mxu0 0.0
    %7892 = vmatprep.mubr.f32.mxu0 0.0
    %7893 = vmatmul.mubr.f32.gmra.mxu0 %v7826
    %v7894 = vpop.f32.mrf.mxu0
    %v7895 = vadd.f32 0.0, %v7894
    %v7896 = vpop.f32.mrf.mxu0
    %7897 = vdwg.mxu0
    %7898 = vrot.lane.b32.xlu0 %v6813, 80
    %v7899 = vpop.permute.xlu0 %7898
    %v7902 = vsel %vm390, %v7821, 0
    %7904 = vmatprep.subr.mxu0 0.0
    %7905 = vmatpush1.msra.mxu0 0.0
    %7906 = vmatprep.subr.mxu0 0.0
    %7907 = vmatpush1.msra.mxu0 0.0
    %7908 = vmatprep.subr.mxu0 0.0
    %7909 = vmatpush1.msra.mxu0 0.0
    %7910 = vmatprep.subr.mxu0 0.0
    %7911 = vmatpush1.msra.mxu0 0.0
    %7912 = vmatprep.subr.mxu0 0.0
    %7913 = vmatpush1.msra.mxu0 0.0
    %7914 = vmatprep.subr.mxu0 0.0
    %7915 = vmatpush1.msra.mxu0 0.0
    %7916 = vmatprep.subr.mxu0 0.0
    %7917 = vmatpush1.msra.mxu0 0.0
    %7918 = vmatprep.subr.mxu0 0.0
    %7919 = vmatpush1.msra.mxu0 0.0
    %7920 = vmatprep.subr.mxu0 0.0
    %7921 = vmatpush1.msra.mxu0 0.0
    %7922 = vmatprep.subr.mxu0 0.0
    %7923 = vmatpush1.msra.mxu0 0.0
    %7924 = vmatprep.subr.mxu0 0.0
    %7925 = vmatpush1.msra.mxu0 0.0
    %7926 = vmatprep.subr.mxu0 0.0
    %7927 = vmatpush1.msra.mxu0 0.0
    %7928 = vmatprep.subr.mxu0 0.0
    %7929 = vmatpush1.msra.mxu0 0.0
    %7930 = vmatprep.subr.mxu0 0.0
    %7931 = vmatpush1.msra.mxu0 0.0
    %7932 = vmatprep.subr.mxu0 0.0
    %7933 = vmatpush1.msra.mxu0 0.0
    %7934 = vmatprep.subr.mxu0 0.0
    %7935 = vmatpush1.msra.mxu0 %v7899
    %7936 = vmatprep.subr.mxu0 0.0
    %7937 = vmatpush2.msra.mxu0 0.0
    %7938 = vmatprep.subr.mxu0 0.0
    %7939 = vmatpush2.msra.mxu0 0.0
    %7940 = vmatprep.subr.mxu0 0.0
    %7941 = vmatpush2.msra.mxu0 0.0
    %7942 = vmatprep.subr.mxu0 0.0
    %7943 = vmatpush2.msra.mxu0 0.0
    %7944 = vmatprep.subr.mxu0 0.0
    %7945 = vmatpush2.msra.mxu0 0.0
    %7946 = vmatprep.subr.mxu0 0.0
    %7947 = vmatpush2.msra.mxu0 0.0
    %7948 = vmatprep.subr.mxu0 0.0
    %7949 = vmatpush2.msra.mxu0 0.0
    %7950 = vmatprep.subr.mxu0 0.0
    %7951 = vmatpush2.msra.mxu0 0.0
    %7952 = vmatprep.subr.mxu0 0.0
    %7953 = vmatpush2.msra.mxu0 0.0
    %7954 = vmatprep.subr.mxu0 0.0
    %7955 = vmatpush2.msra.mxu0 0.0
    %7956 = vmatprep.subr.mxu0 0.0
    %7957 = vmatpush2.msra.mxu0 0.0
    %7958 = vmatprep.subr.mxu0 0.0
    %7959 = vmatpush2.msra.mxu0 0.0
    %7960 = vmatprep.subr.mxu0 0.0
    %7961 = vmatpush2.msra.mxu0 0.0
    %7962 = vmatprep.subr.mxu0 0.0
    %7963 = vmatpush2.msra.mxu0 0.0
    %7964 = vmatprep.subr.mxu0 0.0
    %7965 = vmatpush2.msra.mxu0 0.0
    %7966 = vmatprep.subr.mxu0 0.0
    %7967 = vmatpush2.msra.mxu0 0.0
    %7968 = vmatprep.mubr.f32.mxu0 0.0
    %7969 = vmatmul.mubr.f32.gmra.mxu0 %v7902
    %v7970 = vpop.f32.mrf.mxu0
    %v7971 = vadd.f32 0.0, %v7970
    %v7972 = vpop.f32.mrf.mxu0
    %7973 = vdwg.mxu0
    %s7974 = scalar_lea.vmem [#allocation13], 112
    %v7975 = vld [vmem:[%s7974] sm:$0xff]
    %v7977 = vsel %vm390, %v7895, 0
    %v7980 = vsel %vm390, %v7971, 0
    %7982 = vmatprep.subr.mxu0 0.0
    %7983 = vmatpush1.msra.mxu0 0.0
    %7984 = vmatprep.subr.mxu0 0.0
    %7985 = vmatpush1.msra.mxu0 0.0
    %7986 = vmatprep.subr.mxu0 0.0
    %7987 = vmatpush1.msra.mxu0 0.0
    %7988 = vmatprep.subr.mxu0 0.0
    %7989 = vmatpush1.msra.mxu0 0.0
    %7990 = vmatprep.subr.mxu0 0.0
    %7991 = vmatpush1.msra.mxu0 0.0
    %7992 = vmatprep.subr.mxu0 0.0
    %7993 = vmatpush1.msra.mxu0 0.0
    %7994 = vmatprep.subr.mxu0 0.0
    %7995 = vmatpush1.msra.mxu0 0.0
    %7996 = vmatprep.subr.mxu0 0.0
    %7997 = vmatpush1.msra.mxu0 0.0
    %7998 = vmatprep.subr.mxu0 0.0
    %7999 = vmatpush1.msra.mxu0 0.0
    %8000 = vmatprep.subr.mxu0 0.0
    %8001 = vmatpush1.msra.mxu0 0.0
    %8002 = vmatprep.subr.mxu0 0.0
    %8003 = vmatpush1.msra.mxu0 0.0
    %8004 = vmatprep.subr.mxu0 0.0
    %8005 = vmatpush1.msra.mxu0 0.0
    %8006 = vmatprep.subr.mxu0 0.0
    %8007 = vmatpush1.msra.mxu0 0.0
    %8008 = vmatprep.subr.mxu0 0.0
    %8009 = vmatpush1.msra.mxu0 0.0
    %8010 = vmatprep.subr.mxu0 0.0
    %8011 = vmatpush1.msra.mxu0 0.0
    %8012 = vmatprep.subr.mxu0 0.0
    %8013 = vmatpush1.msra.mxu0 %v7975
    %8014 = vmatprep.subr.mxu0 0.0
    %8015 = vmatpush2.msra.mxu0 0.0
    %8016 = vmatprep.subr.mxu0 0.0
    %8017 = vmatpush2.msra.mxu0 0.0
    %8018 = vmatprep.subr.mxu0 0.0
    %8019 = vmatpush2.msra.mxu0 0.0
    %8020 = vmatprep.subr.mxu0 0.0
    %8021 = vmatpush2.msra.mxu0 0.0
    %8022 = vmatprep.subr.mxu0 0.0
    %8023 = vmatpush2.msra.mxu0 0.0
    %8024 = vmatprep.subr.mxu0 0.0
    %8025 = vmatpush2.msra.mxu0 0.0
    %8026 = vmatprep.subr.mxu0 0.0
    %8027 = vmatpush2.msra.mxu0 0.0
    %8028 = vmatprep.subr.mxu0 0.0
    %8029 = vmatpush2.msra.mxu0 0.0
    %8030 = vmatprep.subr.mxu0 0.0
    %8031 = vmatpush2.msra.mxu0 0.0
    %8032 = vmatprep.subr.mxu0 0.0
    %8033 = vmatpush2.msra.mxu0 0.0
    %8034 = vmatprep.subr.mxu0 0.0
    %8035 = vmatpush2.msra.mxu0 0.0
    %8036 = vmatprep.subr.mxu0 0.0
    %8037 = vmatpush2.msra.mxu0 0.0
    %8038 = vmatprep.subr.mxu0 0.0
    %8039 = vmatpush2.msra.mxu0 0.0
    %8040 = vmatprep.subr.mxu0 0.0
    %8041 = vmatpush2.msra.mxu0 0.0
    %8042 = vmatprep.subr.mxu0 0.0
    %8043 = vmatpush2.msra.mxu0 0.0
    %8044 = vmatprep.subr.mxu0 0.0
    %8045 = vmatpush2.msra.mxu0 0.0
    %8046 = vmatprep.mubr.f32.mxu0 0.0
    %8047 = vmatmul.mubr.f32.gmra.mxu0 %v7977
    %v8048 = vpop.f32.mrf.mxu0
    %v8049 = vadd.f32 0.0, %v8048
    %v8050 = vpop.f32.mrf.mxu0
    %8051 = vmatprep.mubr.f32.mxu0 0.0
    %8052 = vmatmul.mubr.f32.gmra.mxu0 %v7980
    %v8053 = vpop.f32.mrf.mxu0
    %v8054 = vadd.f32 0.0, %v8053
    %v8055 = vpop.f32.mrf.mxu0
    %8056 = vdwg.mxu0
    %v8057 = vadd.f32 %v7634, %v8049
    %v8058 = vadd.f32 %v7639, %v8054
    %8059 = vrot.lane.b32.xlu0 %v6708, 104
    %v8060 = vpop.permute.xlu0 %8059
    %8061 = vrot.lane.b32.xlu0 %v6808, 104
    %v8062 = vpop.permute.xlu0 %8061
    %v8063 = vsel %vm390, %v8060, 0
    %v8065 = vsel %vm390, %v8062, 0
    %8067 = vmatprep.subr.mxu0 0.0
    %8068 = vmatpush1.xpose.msra.mxu0 0.0
    %8069 = vmatprep.subr.mxu0 0.0
    %8070 = vmatpush1.xpose.msra.mxu0 0.0
    %8071 = vmatprep.subr.mxu0 0.0
    %8072 = vmatpush1.xpose.msra.mxu0 0.0
    %8073 = vmatprep.subr.mxu0 0.0
    %8074 = vmatpush1.xpose.msra.mxu0 0.0
    %8075 = vmatprep.subr.mxu0 0.0
    %8076 = vmatpush1.xpose.msra.mxu0 0.0
    %8077 = vmatprep.subr.mxu0 0.0
    %8078 = vmatpush1.xpose.msra.mxu0 0.0
    %8079 = vmatprep.subr.mxu0 0.0
    %8080 = vmatpush1.xpose.msra.mxu0 0.0
    %8081 = vmatprep.subr.mxu0 0.0
    %8082 = vmatpush1.xpose.msra.mxu0 0.0
    %8083 = vmatprep.subr.mxu0 0.0
    %8084 = vmatpush1.xpose.msra.mxu0 0.0
    %8085 = vmatprep.subr.mxu0 0.0
    %8086 = vmatpush1.xpose.msra.mxu0 0.0
    %8087 = vmatprep.subr.mxu0 0.0
    %8088 = vmatpush1.xpose.msra.mxu0 0.0
    %8089 = vmatprep.subr.mxu0 0.0
    %8090 = vmatpush1.xpose.msra.mxu0 0.0
    %8091 = vmatprep.subr.mxu0 0.0
    %8092 = vmatpush1.xpose.msra.mxu0 0.0
    %8093 = vmatprep.subr.mxu0 0.0
    %8094 = vmatpush1.xpose.msra.mxu0 0.0
    %8095 = vmatprep.subr.mxu0 0.0
    %8096 = vmatpush1.xpose.msra.mxu0 0.0
    %8097 = vmatprep.subr.mxu0 0.0
    %8098 = vmatpush1.xpose.msra.mxu0 %v8065
    %8099 = vmatprep.subr.mxu0 0.0
    %8100 = vmatpush2.xpose.msra.mxu0 0.0
    %8101 = vmatprep.subr.mxu0 0.0
    %8102 = vmatpush2.xpose.msra.mxu0 0.0
    %8103 = vmatprep.subr.mxu0 0.0
    %8104 = vmatpush2.xpose.msra.mxu0 0.0
    %8105 = vmatprep.subr.mxu0 0.0
    %8106 = vmatpush2.xpose.msra.mxu0 0.0
    %8107 = vmatprep.subr.mxu0 0.0
    %8108 = vmatpush2.xpose.msra.mxu0 0.0
    %8109 = vmatprep.subr.mxu0 0.0
    %8110 = vmatpush2.xpose.msra.mxu0 0.0
    %8111 = vmatprep.subr.mxu0 0.0
    %8112 = vmatpush2.xpose.msra.mxu0 0.0
    %8113 = vmatprep.subr.mxu0 0.0
    %8114 = vmatpush2.xpose.msra.mxu0 0.0
    %8115 = vmatprep.subr.mxu0 0.0
    %8116 = vmatpush2.xpose.msra.mxu0 0.0
    %8117 = vmatprep.subr.mxu0 0.0
    %8118 = vmatpush2.xpose.msra.mxu0 0.0
    %8119 = vmatprep.subr.mxu0 0.0
    %8120 = vmatpush2.xpose.msra.mxu0 0.0
    %8121 = vmatprep.subr.mxu0 0.0
    %8122 = vmatpush2.xpose.msra.mxu0 0.0
    %8123 = vmatprep.subr.mxu0 0.0
    %8124 = vmatpush2.xpose.msra.mxu0 0.0
    %8125 = vmatprep.subr.mxu0 0.0
    %8126 = vmatpush2.xpose.msra.mxu0 0.0
    %8127 = vmatprep.subr.mxu0 0.0
    %8128 = vmatpush2.xpose.msra.mxu0 0.0
    %8129 = vmatprep.subr.mxu0 0.0
    %8130 = vmatpush2.xpose.msra.mxu0 0.0
    %8131 = vmatprep.mubr.f32.mxu0 0.0
    %8132 = vmatmul.mubr.f32.gmra.mxu0 %v8063
    %v8133 = vpop.f32.mrf.mxu0
    %v8134 = vadd.f32 0.0, %v8133
    %v8135 = vpop.f32.mrf.mxu0
    %8136 = vdwg.mxu0
    %8137 = vrot.lane.b32.xlu0 %v6713, 104
    %v8138 = vpop.permute.xlu0 %8137
    %8139 = vrot.lane.b32.xlu0 %v6813, 104
    %v8140 = vpop.permute.xlu0 %8139
    %v8141 = vsel %vm390, %v8138, 0
    %v8143 = vsel %vm390, %v8140, 0
    %8145 = vmatprep.subr.mxu0 0.0
    %8146 = vmatpush1.xpose.msra.mxu0 0.0
    %8147 = vmatprep.subr.mxu0 0.0
    %8148 = vmatpush1.xpose.msra.mxu0 0.0
    %8149 = vmatprep.subr.mxu0 0.0
    %8150 = vmatpush1.xpose.msra.mxu0 0.0
    %8151 = vmatprep.subr.mxu0 0.0
    %8152 = vmatpush1.xpose.msra.mxu0 0.0
    %8153 = vmatprep.subr.mxu0 0.0
    %8154 = vmatpush1.xpose.msra.mxu0 0.0
    %8155 = vmatprep.subr.mxu0 0.0
    %8156 = vmatpush1.xpose.msra.mxu0 0.0
    %8157 = vmatprep.subr.mxu0 0.0
    %8158 = vmatpush1.xpose.msra.mxu0 0.0
    %8159 = vmatprep.subr.mxu0 0.0
    %8160 = vmatpush1.xpose.msra.mxu0 0.0
    %8161 = vmatprep.subr.mxu0 0.0
    %8162 = vmatpush1.xpose.msra.mxu0 0.0
    %8163 = vmatprep.subr.mxu0 0.0
    %8164 = vmatpush1.xpose.msra.mxu0 0.0
    %8165 = vmatprep.subr.mxu0 0.0
    %8166 = vmatpush1.xpose.msra.mxu0 0.0
    %8167 = vmatprep.subr.mxu0 0.0
    %8168 = vmatpush1.xpose.msra.mxu0 0.0
    %8169 = vmatprep.subr.mxu0 0.0
    %8170 = vmatpush1.xpose.msra.mxu0 0.0
    %8171 = vmatprep.subr.mxu0 0.0
    %8172 = vmatpush1.xpose.msra.mxu0 0.0
    %8173 = vmatprep.subr.mxu0 0.0
    %8174 = vmatpush1.xpose.msra.mxu0 0.0
    %8175 = vmatprep.subr.mxu0 0.0
    %8176 = vmatpush1.xpose.msra.mxu0 %v8143
    %8177 = vmatprep.subr.mxu0 0.0
    %8178 = vmatpush2.xpose.msra.mxu0 0.0
    %8179 = vmatprep.subr.mxu0 0.0
    %8180 = vmatpush2.xpose.msra.mxu0 0.0
    %8181 = vmatprep.subr.mxu0 0.0
    %8182 = vmatpush2.xpose.msra.mxu0 0.0
    %8183 = vmatprep.subr.mxu0 0.0
    %8184 = vmatpush2.xpose.msra.mxu0 0.0
    %8185 = vmatprep.subr.mxu0 0.0
    %8186 = vmatpush2.xpose.msra.mxu0 0.0
    %8187 = vmatprep.subr.mxu0 0.0
    %8188 = vmatpush2.xpose.msra.mxu0 0.0
    %8189 = vmatprep.subr.mxu0 0.0
    %8190 = vmatpush2.xpose.msra.mxu0 0.0
    %8191 = vmatprep.subr.mxu0 0.0
    %8192 = vmatpush2.xpose.msra.mxu0 0.0
    %8193 = vmatprep.subr.mxu0 0.0
    %8194 = vmatpush2.xpose.msra.mxu0 0.0
    %8195 = vmatprep.subr.mxu0 0.0
    %8196 = vmatpush2.xpose.msra.mxu0 0.0
    %8197 = vmatprep.subr.mxu0 0.0
    %8198 = vmatpush2.xpose.msra.mxu0 0.0
    %8199 = vmatprep.subr.mxu0 0.0
    %8200 = vmatpush2.xpose.msra.mxu0 0.0
    %8201 = vmatprep.subr.mxu0 0.0
    %8202 = vmatpush2.xpose.msra.mxu0 0.0
    %8203 = vmatprep.subr.mxu0 0.0
    %8204 = vmatpush2.xpose.msra.mxu0 0.0
    %8205 = vmatprep.subr.mxu0 0.0
    %8206 = vmatpush2.xpose.msra.mxu0 0.0
    %8207 = vmatprep.subr.mxu0 0.0
    %8208 = vmatpush2.xpose.msra.mxu0 0.0
    %8209 = vmatprep.mubr.f32.mxu0 0.0
    %8210 = vmatmul.mubr.f32.gmra.mxu0 %v8141
    %v8211 = vpop.f32.mrf.mxu0
    %v8212 = vadd.f32 0.0, %v8211
    %v8213 = vpop.f32.mrf.mxu0
    %8214 = vdwg.mxu0
    %v8215 = vmul.f32 %v8134, 0.35355338
    %v8216 = vmul.f32 %v8212, 0.35355338
    %v8217 = vsel %vm390, %v8215, -inf
    %8218 = vmax.xlane.f32.xlu0 %v8217
    %v8219 = vpop.xlane.xlu0 %8218
    %v8220 = vsel %vm390, %v8216, -inf
    %8221 = vmax.xlane.f32.xlu0 %v8220
    %v8222 = vpop.xlane.xlu0 %8221
    %v8223 = vsub.f32 %v8215, %v8219
    %v8224 = vsub.f32 %v8216, %v8222
    %v8225 = vmul.f32 %v8223, 1.442695
    %v8226 = vpow.pop %v8225
    %v8227 = vmul.f32 %v8224, 1.442695
    %v8228 = vpow.pop %v8227
    %v8229 = vsel %vm390, %v8226, 0.0
    %8230 = vadd.xlane.f32.xlu0 %v8229
    %v8231 = vpop.xlane.xlu0 %8230
    %v8232 = vsel %vm390, %v8228, 0.0
    %8233 = vadd.xlane.f32.xlu0 %v8232
    %v8234 = vpop.xlane.xlu0 %8233
    %v8235 = vrcp.pop %v8231
    %v8236 = vrcp.pop %v8234
    %v8237 = vmul.f32 %v8226, %v8235
    %v8238 = vmul.f32 %v8228, %v8236
    %8239 = vrot.lane.b32.xlu0 %v6808, 72
    %v8240 = vpop.permute.xlu0 %8239
    %v8243 = vsel %vm390, %v8237, 0
    %8245 = vmatprep.subr.mxu0 0.0
    %8246 = vmatpush1.msra.mxu0 0.0
    %8247 = vmatprep.subr.mxu0 0.0
    %8248 = vmatpush1.msra.mxu0 0.0
    %8249 = vmatprep.subr.mxu0 0.0
    %8250 = vmatpush1.msra.mxu0 0.0
    %8251 = vmatprep.subr.mxu0 0.0
    %8252 = vmatpush1.msra.mxu0 0.0
    %8253 = vmatprep.subr.mxu0 0.0
    %8254 = vmatpush1.msra.mxu0 0.0
    %8255 = vmatprep.subr.mxu0 0.0
    %8256 = vmatpush1.msra.mxu0 0.0
    %8257 = vmatprep.subr.mxu0 0.0
    %8258 = vmatpush1.msra.mxu0 0.0
    %8259 = vmatprep.subr.mxu0 0.0
    %8260 = vmatpush1.msra.mxu0 0.0
    %8261 = vmatprep.subr.mxu0 0.0
    %8262 = vmatpush1.msra.mxu0 0.0
    %8263 = vmatprep.subr.mxu0 0.0
    %8264 = vmatpush1.msra.mxu0 0.0
    %8265 = vmatprep.subr.mxu0 0.0
    %8266 = vmatpush1.msra.mxu0 0.0
    %8267 = vmatprep.subr.mxu0 0.0
    %8268 = vmatpush1.msra.mxu0 0.0
    %8269 = vmatprep.subr.mxu0 0.0
    %8270 = vmatpush1.msra.mxu0 0.0
    %8271 = vmatprep.subr.mxu0 0.0
    %8272 = vmatpush1.msra.mxu0 0.0
    %8273 = vmatprep.subr.mxu0 0.0
    %8274 = vmatpush1.msra.mxu0 0.0
    %8275 = vmatprep.subr.mxu0 0.0
    %8276 = vmatpush1.msra.mxu0 %v8240
    %8277 = vmatprep.subr.mxu0 0.0
    %8278 = vmatpush2.msra.mxu0 0.0
    %8279 = vmatprep.subr.mxu0 0.0
    %8280 = vmatpush2.msra.mxu0 0.0
    %8281 = vmatprep.subr.mxu0 0.0
    %8282 = vmatpush2.msra.mxu0 0.0
    %8283 = vmatprep.subr.mxu0 0.0
    %8284 = vmatpush2.msra.mxu0 0.0
    %8285 = vmatprep.subr.mxu0 0.0
    %8286 = vmatpush2.msra.mxu0 0.0
    %8287 = vmatprep.subr.mxu0 0.0
    %8288 = vmatpush2.msra.mxu0 0.0
    %8289 = vmatprep.subr.mxu0 0.0
    %8290 = vmatpush2.msra.mxu0 0.0
    %8291 = vmatprep.subr.mxu0 0.0
    %8292 = vmatpush2.msra.mxu0 0.0
    %8293 = vmatprep.subr.mxu0 0.0
    %8294 = vmatpush2.msra.mxu0 0.0
    %8295 = vmatprep.subr.mxu0 0.0
    %8296 = vmatpush2.msra.mxu0 0.0
    %8297 = vmatprep.subr.mxu0 0.0
    %8298 = vmatpush2.msra.mxu0 0.0
    %8299 = vmatprep.subr.mxu0 0.0
    %8300 = vmatpush2.msra.mxu0 0.0
    %8301 = vmatprep.subr.mxu0 0.0
    %8302 = vmatpush2.msra.mxu0 0.0
    %8303 = vmatprep.subr.mxu0 0.0
    %8304 = vmatpush2.msra.mxu0 0.0
    %8305 = vmatprep.subr.mxu0 0.0
    %8306 = vmatpush2.msra.mxu0 0.0
    %8307 = vmatprep.subr.mxu0 0.0
    %8308 = vmatpush2.msra.mxu0 0.0
    %8309 = vmatprep.mubr.f32.mxu0 0.0
    %8310 = vmatmul.mubr.f32.gmra.mxu0 %v8243
    %v8311 = vpop.f32.mrf.mxu0
    %v8312 = vadd.f32 0.0, %v8311
    %v8313 = vpop.f32.mrf.mxu0
    %8314 = vdwg.mxu0
    %8315 = vrot.lane.b32.xlu0 %v6813, 72
    %v8316 = vpop.permute.xlu0 %8315
    %v8319 = vsel %vm390, %v8238, 0
    %8321 = vmatprep.subr.mxu0 0.0
    %8322 = vmatpush1.msra.mxu0 0.0
    %8323 = vmatprep.subr.mxu0 0.0
    %8324 = vmatpush1.msra.mxu0 0.0
    %8325 = vmatprep.subr.mxu0 0.0
    %8326 = vmatpush1.msra.mxu0 0.0
    %8327 = vmatprep.subr.mxu0 0.0
    %8328 = vmatpush1.msra.mxu0 0.0
    %8329 = vmatprep.subr.mxu0 0.0
    %8330 = vmatpush1.msra.mxu0 0.0
    %8331 = vmatprep.subr.mxu0 0.0
    %8332 = vmatpush1.msra.mxu0 0.0
    %8333 = vmatprep.subr.mxu0 0.0
    %8334 = vmatpush1.msra.mxu0 0.0
    %8335 = vmatprep.subr.mxu0 0.0
    %8336 = vmatpush1.msra.mxu0 0.0
    %8337 = vmatprep.subr.mxu0 0.0
    %8338 = vmatpush1.msra.mxu0 0.0
    %8339 = vmatprep.subr.mxu0 0.0
    %8340 = vmatpush1.msra.mxu0 0.0
    %8341 = vmatprep.subr.mxu0 0.0
    %8342 = vmatpush1.msra.mxu0 0.0
    %8343 = vmatprep.subr.mxu0 0.0
    %8344 = vmatpush1.msra.mxu0 0.0
    %8345 = vmatprep.subr.mxu0 0.0
    %8346 = vmatpush1.msra.mxu0 0.0
    %8347 = vmatprep.subr.mxu0 0.0
    %8348 = vmatpush1.msra.mxu0 0.0
    %8349 = vmatprep.subr.mxu0 0.0
    %8350 = vmatpush1.msra.mxu0 0.0
    %8351 = vmatprep.subr.mxu0 0.0
    %8352 = vmatpush1.msra.mxu0 %v8316
    %8353 = vmatprep.subr.mxu0 0.0
    %8354 = vmatpush2.msra.mxu0 0.0
    %8355 = vmatprep.subr.mxu0 0.0
    %8356 = vmatpush2.msra.mxu0 0.0
    %8357 = vmatprep.subr.mxu0 0.0
    %8358 = vmatpush2.msra.mxu0 0.0
    %8359 = vmatprep.subr.mxu0 0.0
    %8360 = vmatpush2.msra.mxu0 0.0
    %8361 = vmatprep.subr.mxu0 0.0
    %8362 = vmatpush2.msra.mxu0 0.0
    %8363 = vmatprep.subr.mxu0 0.0
    %8364 = vmatpush2.msra.mxu0 0.0
    %8365 = vmatprep.subr.mxu0 0.0
    %8366 = vmatpush2.msra.mxu0 0.0
    %8367 = vmatprep.subr.mxu0 0.0
    %8368 = vmatpush2.msra.mxu0 0.0
    %8369 = vmatprep.subr.mxu0 0.0
    %8370 = vmatpush2.msra.mxu0 0.0
    %8371 = vmatprep.subr.mxu0 0.0
    %8372 = vmatpush2.msra.mxu0 0.0
    %8373 = vmatprep.subr.mxu0 0.0
    %8374 = vmatpush2.msra.mxu0 0.0
    %8375 = vmatprep.subr.mxu0 0.0
    %8376 = vmatpush2.msra.mxu0 0.0
    %8377 = vmatprep.subr.mxu0 0.0
    %8378 = vmatpush2.msra.mxu0 0.0
    %8379 = vmatprep.subr.mxu0 0.0
    %8380 = vmatpush2.msra.mxu0 0.0
    %8381 = vmatprep.subr.mxu0 0.0
    %8382 = vmatpush2.msra.mxu0 0.0
    %8383 = vmatprep.subr.mxu0 0.0
    %8384 = vmatpush2.msra.mxu0 0.0
    %8385 = vmatprep.mubr.f32.mxu0 0.0
    %8386 = vmatmul.mubr.f32.gmra.mxu0 %v8319
    %v8387 = vpop.f32.mrf.mxu0
    %v8388 = vadd.f32 0.0, %v8387
    %v8389 = vpop.f32.mrf.mxu0
    %8390 = vdwg.mxu0
    %s8391 = scalar_lea.vmem [#allocation13], 120
    %v8392 = vld [vmem:[%s8391] sm:$0xff]
    %v8394 = vsel %vm390, %v8312, 0
    %v8397 = vsel %vm390, %v8388, 0
    %8399 = vmatprep.subr.mxu0 0.0
    %8400 = vmatpush1.msra.mxu0 0.0
    %8401 = vmatprep.subr.mxu0 0.0
    %8402 = vmatpush1.msra.mxu0 0.0
    %8403 = vmatprep.subr.mxu0 0.0
    %8404 = vmatpush1.msra.mxu0 0.0
    %8405 = vmatprep.subr.mxu0 0.0
    %8406 = vmatpush1.msra.mxu0 0.0
    %8407 = vmatprep.subr.mxu0 0.0
    %8408 = vmatpush1.msra.mxu0 0.0
    %8409 = vmatprep.subr.mxu0 0.0
    %8410 = vmatpush1.msra.mxu0 0.0
    %8411 = vmatprep.subr.mxu0 0.0
    %8412 = vmatpush1.msra.mxu0 0.0
    %8413 = vmatprep.subr.mxu0 0.0
    %8414 = vmatpush1.msra.mxu0 0.0
    %8415 = vmatprep.subr.mxu0 0.0
    %8416 = vmatpush1.msra.mxu0 0.0
    %8417 = vmatprep.subr.mxu0 0.0
    %8418 = vmatpush1.msra.mxu0 0.0
    %8419 = vmatprep.subr.mxu0 0.0
    %8420 = vmatpush1.msra.mxu0 0.0
    %8421 = vmatprep.subr.mxu0 0.0
    %8422 = vmatpush1.msra.mxu0 0.0
    %8423 = vmatprep.subr.mxu0 0.0
    %8424 = vmatpush1.msra.mxu0 0.0
    %8425 = vmatprep.subr.mxu0 0.0
    %8426 = vmatpush1.msra.mxu0 0.0
    %8427 = vmatprep.subr.mxu0 0.0
    %8428 = vmatpush1.msra.mxu0 0.0
    %8429 = vmatprep.subr.mxu0 0.0
    %8430 = vmatpush1.msra.mxu0 %v8392
    %8431 = vmatprep.subr.mxu0 0.0
    %8432 = vmatpush2.msra.mxu0 0.0
    %8433 = vmatprep.subr.mxu0 0.0
    %8434 = vmatpush2.msra.mxu0 0.0
    %8435 = vmatprep.subr.mxu0 0.0
    %8436 = vmatpush2.msra.mxu0 0.0
    %8437 = vmatprep.subr.mxu0 0.0
    %8438 = vmatpush2.msra.mxu0 0.0
    %8439 = vmatprep.subr.mxu0 0.0
    %8440 = vmatpush2.msra.mxu0 0.0
    %8441 = vmatprep.subr.mxu0 0.0
    %8442 = vmatpush2.msra.mxu0 0.0
    %8443 = vmatprep.subr.mxu0 0.0
    %8444 = vmatpush2.msra.mxu0 0.0
    %8445 = vmatprep.subr.mxu0 0.0
    %8446 = vmatpush2.msra.mxu0 0.0
    %8447 = vmatprep.subr.mxu0 0.0
    %8448 = vmatpush2.msra.mxu0 0.0
    %8449 = vmatprep.subr.mxu0 0.0
    %8450 = vmatpush2.msra.mxu0 0.0
    %8451 = vmatprep.subr.mxu0 0.0
    %8452 = vmatpush2.msra.mxu0 0.0
    %8453 = vmatprep.subr.mxu0 0.0
    %8454 = vmatpush2.msra.mxu0 0.0
    %8455 = vmatprep.subr.mxu0 0.0
    %8456 = vmatpush2.msra.mxu0 0.0
    %8457 = vmatprep.subr.mxu0 0.0
    %8458 = vmatpush2.msra.mxu0 0.0
    %8459 = vmatprep.subr.mxu0 0.0
    %8460 = vmatpush2.msra.mxu0 0.0
    %8461 = vmatprep.subr.mxu0 0.0
    %8462 = vmatpush2.msra.mxu0 0.0
    %8463 = vmatprep.mubr.f32.mxu0 0.0
    %8464 = vmatmul.mubr.f32.gmra.mxu0 %v8394
    %v8465 = vpop.f32.mrf.mxu0
    %v8466 = vadd.f32 0.0, %v8465
    %v8467 = vpop.f32.mrf.mxu0
    %8468 = vmatprep.mubr.f32.mxu0 0.0
    %8469 = vmatmul.mubr.f32.gmra.mxu0 %v8397
    %v8470 = vpop.f32.mrf.mxu0
    %v8471 = vadd.f32 0.0, %v8470
    %v8472 = vpop.f32.mrf.mxu0
    %8473 = vdwg.mxu0
    %v8474 = vadd.f32 %v8057, %v8466
    %v8475 = vadd.f32 %v8058, %v8471
    %s8476 = scalar_lea.vmem %s8, 3
    %v8477 = vld [vmem:[%s8476] sm:$0x1]
    %v8479 = vlaneseq
    %v8480 = vshrl.u32 %v8479, 7
    %v8481 = vsub.s32 0, %v8480
    %v8482 = vrot.slane %v8477, %v8481
    %v8484 = vadd.f32 %v8474, %v8482
    %v8485 = vadd.f32 %v8475, %v8482
    %v8486 = vadd.f32 %v4356, %v8484
    %v8487 = vadd.f32 %v4357, %v8485
    %s8488 = scalar_lea.vmem [#allocation8], 10
    %v8489 = vld [vmem:[%s8488] sm:$0x1]
    %s8490 = scalar_lea.vmem [#allocation10], 10
    %v8491 = vld [vmem:[%s8490] sm:$0x1]
    %v8492 = vsel %vm175, %v8486, 0.0
    %8493 = vadd.xlane.f32.xlu0 %v8492
    %v8494 = vpop.xlane.xlu0 %8493
    %v8495 = vsel %vm175, %v8487, 0.0
    %8496 = vadd.xlane.f32.xlu0 %v8495
    %v8497 = vpop.xlane.xlu0 %8496
    %v8498 = vmul.f32 %v8494, %v182
    %v8499 = vmul.f32 %v8497, %v182
    %v8500 = vsub.f32 %v8486, %v8498
    %v8501 = vsub.f32 %v8487, %v8499
    %v8502 = vmul.f32 %v8500, %v8500
    %v8503 = vmul.f32 %v8501, %v8501
    %v8504 = vsel %vm175, %v8502, 0.0
    %8505 = vadd.xlane.f32.xlu0 %v8504
    %v8506 = vpop.xlane.xlu0 %8505
    %v8507 = vsel %vm175, %v8503, 0.0
    %8508 = vadd.xlane.f32.xlu0 %v8507
    %v8509 = vpop.xlane.xlu0 %8508
    %v8510 = vmul.f32 %v8506, %v182
    %v8511 = vmul.f32 %v8509, %v182
    %v8512 = vadd.f32 %v8510, 1e-06
    %v8513 = vadd.f32 %v8511, 1e-06
    %v8514 = vrsqrt.pop %v8512
    %v8515 = vrsqrt.pop %v8513
    %v8516 = vmul.f32 %v8500, %v8514
    %v8517 = vmul.f32 %v8501, %v8515
    %v8519 = vlaneseq
    %v8520 = vshrl.u32 %v8519, 7
    %v8521 = vsub.s32 0, %v8520
    %v8522 = vrot.slane %v8489, %v8521
    %v8524 = vmul.f32 %v8516, %v8522
    %v8525 = vmul.f32 %v8517, %v8522
    %v8527 = vlaneseq
    %v8528 = vshrl.u32 %v8527, 7
    %v8529 = vsub.s32 0, %v8528
    %v8530 = vrot.slane %v8491, %v8529
    %v8532 = vadd.f32 %v8524, %v8530
    %v8533 = vadd.f32 %v8525, %v8530
    %s8534 = scalar_lea.vmem [#allocation14], 96
    %v8535 = vld [vmem:[%s8534] sm:$0xff]
    %v8536 = vld [vmem:[%s8534 + $0x8] sm:$0xff]
    %v8537 = vld [vmem:[%s8534 + $0x10] sm:$0xff]
    %v8538 = vld [vmem:[%s8534 + $0x18] sm:$0xff]
    %s8539 = scalar_lea.vmem %s10, 3
    %v8540 = vld [vmem:[%s8539] sm:$0x1]
    %v8542 = vlaneseq
    %v8543 = vshrl.u32 %v8542, 7
    %v8544 = vsub.s32 0, %v8543
    %v8545 = vrot.slane %v8540, %v8544
    %v8548 = vsel %vm175, %v8532, 0
    %v8551 = vsel %vm175, %v8533, 0
    %8553 = vmatprep.subr.mxu0 0.0
    %8554 = vmatpush1.msra.mxu0 0.0
    %8555 = vmatprep.subr.mxu0 0.0
    %8556 = vmatpush1.msra.mxu0 0.0
    %8557 = vmatprep.subr.mxu0 0.0
    %8558 = vmatpush1.msra.mxu0 0.0
    %8559 = vmatprep.subr.mxu0 0.0
    %8560 = vmatpush1.msra.mxu0 0.0
    %8561 = vmatprep.subr.mxu0 0.0
    %8562 = vmatpush1.msra.mxu0 0.0
    %8563 = vmatprep.subr.mxu0 0.0
    %8564 = vmatpush1.msra.mxu0 0.0
    %8565 = vmatprep.subr.mxu0 0.0
    %8566 = vmatpush1.msra.mxu0 0.0
    %8567 = vmatprep.subr.mxu0 0.0
    %8568 = vmatpush1.msra.mxu0 0.0
    %8569 = vmatprep.subr.mxu0 0.0
    %8570 = vmatpush1.msra.mxu0 0.0
    %8571 = vmatprep.subr.mxu0 0.0
    %8572 = vmatpush1.msra.mxu0 0.0
    %8573 = vmatprep.subr.mxu0 0.0
    %8574 = vmatpush1.msra.mxu0 0.0
    %8575 = vmatprep.subr.mxu0 0.0
    %8576 = vmatpush1.msra.mxu0 0.0
    %8577 = vmatprep.subr.mxu0 0.0
    %8578 = vmatpush1.msra.mxu0 %v8538
    %8579 = vmatprep.subr.mxu0 0.0
    %8580 = vmatpush1.msra.mxu0 %v8537
    %8581 = vmatprep.subr.mxu0 0.0
    %8582 = vmatpush1.msra.mxu0 %v8536
    %8583 = vmatprep.subr.mxu0 0.0
    %8584 = vmatpush1.msra.mxu0 %v8535
    %8585 = vmatprep.subr.mxu0 0.0
    %8586 = vmatpush2.msra.mxu0 0.0
    %8587 = vmatprep.subr.mxu0 0.0
    %8588 = vmatpush2.msra.mxu0 0.0
    %8589 = vmatprep.subr.mxu0 0.0
    %8590 = vmatpush2.msra.mxu0 0.0
    %8591 = vmatprep.subr.mxu0 0.0
    %8592 = vmatpush2.msra.mxu0 0.0
    %8593 = vmatprep.subr.mxu0 0.0
    %8594 = vmatpush2.msra.mxu0 0.0
    %8595 = vmatprep.subr.mxu0 0.0
    %8596 = vmatpush2.msra.mxu0 0.0
    %8597 = vmatprep.subr.mxu0 0.0
    %8598 = vmatpush2.msra.mxu0 0.0
    %8599 = vmatprep.subr.mxu0 0.0
    %8600 = vmatpush2.msra.mxu0 0.0
    %8601 = vmatprep.subr.mxu0 0.0
    %8602 = vmatpush2.msra.mxu0 0.0
    %8603 = vmatprep.subr.mxu0 0.0
    %8604 = vmatpush2.msra.mxu0 0.0
    %8605 = vmatprep.subr.mxu0 0.0
    %8606 = vmatpush2.msra.mxu0 0.0
    %8607 = vmatprep.subr.mxu0 0.0
    %8608 = vmatpush2.msra.mxu0 0.0
    %8609 = vmatprep.subr.mxu0 0.0
    %8610 = vmatpush2.msra.mxu0 0.0
    %8611 = vmatprep.subr.mxu0 0.0
    %8612 = vmatpush2.msra.mxu0 0.0
    %8613 = vmatprep.subr.mxu0 0.0
    %8614 = vmatpush2.msra.mxu0 0.0
    %8615 = vmatprep.subr.mxu0 0.0
    %8616 = vmatpush2.msra.mxu0 0.0
    %8617 = vmatprep.mubr.f32.mxu0 0.0
    %8618 = vmatmul.mubr.f32.gmra.mxu0 %v8548
    %v8619 = vpop.f32.mrf.mxu0
    %v8620 = vadd.f32 %v8545, %v8619
    %v8621 = vpop.f32.mrf.mxu0
    %8622 = vmatprep.mubr.f32.mxu0 0.0
    %8623 = vmatmul.mubr.f32.gmra.mxu0 %v8551
    %v8624 = vpop.f32.mrf.mxu0
    %v8625 = vadd.f32 %v8545, %v8624
    %v8626 = vpop.f32.mrf.mxu0
    %8627 = vdwg.mxu0
    %v8628 = vmax.f32 %v8620, 0.0
    %v8629 = vmax.f32 %v8625, 0.0
    %s8630 = scalar_lea.vmem [#allocation16], 96
    %v8631 = vld [vmem:[%s8630] sm:$0xff]
    %v8632 = vld [vmem:[%s8630 + $0x8] sm:$0xff]
    %v8633 = vld [vmem:[%s8630 + $0x10] sm:$0xff]
    %v8634 = vld [vmem:[%s8630 + $0x18] sm:$0xff]
    %s8635 = scalar_lea.vmem %s12, 3
    %v8636 = vld [vmem:[%s8635] sm:$0x1]
    %v8638 = vlaneseq
    %v8639 = vshrl.u32 %v8638, 7
    %v8640 = vsub.s32 0, %v8639
    %v8641 = vrot.slane %v8636, %v8640
    %v8644 = vsel %vm175, %v8628, 0
    %v8647 = vsel %vm175, %v8629, 0
    %8649 = vmatprep.subr.mxu0 0.0
    %8650 = vmatpush1.msra.mxu0 0.0
    %8651 = vmatprep.subr.mxu0 0.0
    %8652 = vmatpush1.msra.mxu0 0.0
    %8653 = vmatprep.subr.mxu0 0.0
    %8654 = vmatpush1.msra.mxu0 0.0
    %8655 = vmatprep.subr.mxu0 0.0
    %8656 = vmatpush1.msra.mxu0 0.0
    %8657 = vmatprep.subr.mxu0 0.0
    %8658 = vmatpush1.msra.mxu0 0.0
    %8659 = vmatprep.subr.mxu0 0.0
    %8660 = vmatpush1.msra.mxu0 0.0
    %8661 = vmatprep.subr.mxu0 0.0
    %8662 = vmatpush1.msra.mxu0 0.0
    %8663 = vmatprep.subr.mxu0 0.0
    %8664 = vmatpush1.msra.mxu0 0.0
    %8665 = vmatprep.subr.mxu0 0.0
    %8666 = vmatpush1.msra.mxu0 0.0
    %8667 = vmatprep.subr.mxu0 0.0
    %8668 = vmatpush1.msra.mxu0 0.0
    %8669 = vmatprep.subr.mxu0 0.0
    %8670 = vmatpush1.msra.mxu0 0.0
    %8671 = vmatprep.subr.mxu0 0.0
    %8672 = vmatpush1.msra.mxu0 0.0
    %8673 = vmatprep.subr.mxu0 0.0
    %8674 = vmatpush1.msra.mxu0 %v8634
    %8675 = vmatprep.subr.mxu0 0.0
    %8676 = vmatpush1.msra.mxu0 %v8633
    %8677 = vmatprep.subr.mxu0 0.0
    %8678 = vmatpush1.msra.mxu0 %v8632
    %8679 = vmatprep.subr.mxu0 0.0
    %8680 = vmatpush1.msra.mxu0 %v8631
    %8681 = vmatprep.subr.mxu0 0.0
    %8682 = vmatpush2.msra.mxu0 0.0
    %8683 = vmatprep.subr.mxu0 0.0
    %8684 = vmatpush2.msra.mxu0 0.0
    %8685 = vmatprep.subr.mxu0 0.0
    %8686 = vmatpush2.msra.mxu0 0.0
    %8687 = vmatprep.subr.mxu0 0.0
    %8688 = vmatpush2.msra.mxu0 0.0
    %8689 = vmatprep.subr.mxu0 0.0
    %8690 = vmatpush2.msra.mxu0 0.0
    %8691 = vmatprep.subr.mxu0 0.0
    %8692 = vmatpush2.msra.mxu0 0.0
    %8693 = vmatprep.subr.mxu0 0.0
    %8694 = vmatpush2.msra.mxu0 0.0
    %8695 = vmatprep.subr.mxu0 0.0
    %8696 = vmatpush2.msra.mxu0 0.0
    %8697 = vmatprep.subr.mxu0 0.0
    %8698 = vmatpush2.msra.mxu0 0.0
    %8699 = vmatprep.subr.mxu0 0.0
    %8700 = vmatpush2.msra.mxu0 0.0
    %8701 = vmatprep.subr.mxu0 0.0
    %8702 = vmatpush2.msra.mxu0 0.0
    %8703 = vmatprep.subr.mxu0 0.0
    %8704 = vmatpush2.msra.mxu0 0.0
    %8705 = vmatprep.subr.mxu0 0.0
    %8706 = vmatpush2.msra.mxu0 0.0
    %8707 = vmatprep.subr.mxu0 0.0
    %8708 = vmatpush2.msra.mxu0 0.0
    %8709 = vmatprep.subr.mxu0 0.0
    %8710 = vmatpush2.msra.mxu0 0.0
    %8711 = vmatprep.subr.mxu0 0.0
    %8712 = vmatpush2.msra.mxu0 0.0
    %8713 = vmatprep.mubr.f32.mxu0 0.0
    %8714 = vmatmul.mubr.f32.gmra.mxu0 %v8644
    %v8715 = vpop.f32.mrf.mxu0
    %v8716 = vadd.f32 %v8641, %v8715
    %v8717 = vpop.f32.mrf.mxu0
    %8718 = vmatprep.mubr.f32.mxu0 0.0
    %8719 = vmatmul.mubr.f32.gmra.mxu0 %v8647
    %v8720 = vpop.f32.mrf.mxu0
    %v8721 = vadd.f32 %v8641, %v8720
    %v8722 = vpop.f32.mrf.mxu0
    %8723 = vdwg.mxu0
    %v8724 = vmax.f32 %v8716, 0.0
    %v8725 = vmax.f32 %v8721, 0.0
    %v8726 = vadd.f32 %v8486, %v8724
    %v8727 = vadd.f32 %v8487, %v8725
    %8728 = vst.msk [vmem:[#allocation17] sm:$0xff] %vm175, %v6554
    %8729 = vst.msk [vmem:[#allocation17 + $0x8] sm:$0xff] %vm175, %v6555
    %8730 = vst.msk [vmem:[#allocation18] sm:$0xff] %vm175, %v8726
    %8731 = vst.msk [vmem:[#allocation18 + $0x8] sm:$0xff] %vm175, %v8727
    // Predicated region
    $region90: #{tpu_custom_call.1} parent=1 // pred_check
      _
    $region91: #{tpu_custom_call.1} parent=1 // pred_check_branch
      %8733 = sbr.rel (0) target = $region93
    $region92: #{tpu_custom_call.1} parent=1 // pred_region
      %s8735 = ssub.s32 256, 256
      %8736 = vsyncadd [#allocation4], %s8735
      %s8737 = sshll.u32 [#allocation17], 4
      %s8738 = int_to_ptr.vmem [resolvable:$true] %s8737
      %8743 = dma.vmem_to_hbm [thread:$0]  %s8738, 256, %s13, [#allocation4], 128, 128, 8
    $region93: #{tpu_custom_call.1} parent=1 // pred_fallthru
      _
    // Predicated region
    $region94: #{tpu_custom_call.1} parent=1 // pred_check
      _
    $region95: #{tpu_custom_call.1} parent=1 // pred_check_branch
      %8745 = sbr.rel (0) target = $region97
    $region96: #{tpu_custom_call.1} parent=1 // pred_region
      %s8747 = ssub.s32 256, 256
      %8748 = vsyncadd [#allocation19], %s8747
      %s8749 = sshll.u32 [#allocation18], 4
      %s8750 = int_to_ptr.vmem [resolvable:$true] %s8749
      %8755 = dma.vmem_to_hbm [thread:$0]  %s8750, 256, %s14, [#allocation19], 128, 128, 8
    $region97: #{tpu_custom_call.1} parent=1 // pred_fallthru
      _
    // Predicated region
    $region98: #{tpu_custom_call.1} parent=1 // pred_check
      _
    $region99: #{tpu_custom_call.1} parent=1 // pred_check_branch
      %8757 = sbr.rel (0) target = $region101
    $region100: #{tpu_custom_call.1} parent=1 // pred_region
      %8758 = dma.done [#allocation4], 256
    $region101: #{tpu_custom_call.1} parent=1 // pred_fallthru
      _
    // Predicated region
    $region102: #{tpu_custom_call.1} parent=1 // pred_check
      _
    $region103: #{tpu_custom_call.1} parent=1 // pred_check_branch
      %8760 = sbr.rel (0) target = $region105
    $region104: #{tpu_custom_call.1} parent=1 // pred_region
      %8761 = dma.done [#allocation19], 256
    $region105: #{tpu_custom_call.1} parent=1 // pred_fallthru
      _
    %8762 = vsyncpa [#allocation3], 1
    %8763 = vsyncpa [#allocation6], 1
    %8764 = vsyncpa [#allocation9], 1
    %8765 = vsyncpa [#allocation12], 1
    %8766 = vsyncpa [#allocation15], 1
    %8767 = vsyncpa [#allocation4], 1
    %8768 = vsyncpa [#allocation19], 1

</llo_original>
